<compile_context>
chip_gen: v5e
topology: v5e:2x2
jax: 0.10.0
libtpu: 0.0.40
codegen_flags: <defaults>
</compile_context>

<pallas_src>
import jax
import jax.numpy as jnp
from jax.experimental import pallas as pl
from jax.experimental.pallas import tpu as pltpu

EPS = 1e-6
NUM_CLASSES_PAD = 128  # lane-dense padded class dim for the head


# ----------------------------------------------------------------------------
# small math helpers (usable inside kernels)
# ----------------------------------------------------------------------------
def _erf(x):
    # Abramowitz & Stegun 7.1.26, |abs err| < 1.5e-7: exact-erf GELU parity
    # with torch nn.GELU (default) using only exp / mul / select.  The divide
    # goes through the EUP via pl.reciprocal(approx=True) (off the VALU slot).
    # TODO(synk): switch to jax.lax.erf once its Mosaic lowering is guaranteed
    # on all target generations.
    a1, a2, a3, a4, a5 = (0.254829592, -0.284496736, 1.421413741,
                          -1.453152027, 1.061405429)
    p = 0.3275911
    ax = jnp.abs(x)
    t = pl.reciprocal(1.0 + p * ax, approx=True)
    poly = t * (a1 + t * (a2 + t * (a3 + t * (a4 + t * a5))))
    y = 1.0 - poly * jnp.exp(-ax * ax)
    return jnp.where(x >= 0, y, -y)


def _gelu_exact(x):
    return 0.5 * x * (1.0 + _erf(x * 0.7071067811865476))


def _pick_block_rows(m, cap=256):
    """Largest multiple-of-8 divisor of m that is <= cap, preferring a choice
    that yields >=2 grid steps (so both v7x TensorCores get work)."""
    def search(limit):
        for bm in range(min(m, limit), 7, -1):
            if m % bm == 0 and bm % 8 == 0:
                return bm
        return None
    bm = search(min(cap, m // 2)) if m >= 16 else None
    if bm is None:
        bm = search(cap) or m
    return bm


# ----------------------------------------------------------------------------
# Pallas kernels
# ----------------------------------------------------------------------------
def stem_kernel(rows_ref, w_ref, b_ref, g_ref, beta_ref, o_ref):
    """Fused stem: patch rows @ W + b followed by LayerNorm over channels."""
    rows = rows_ref[...].astype(jnp.bfloat16)                     # (bm, K)
    z = jnp.dot(rows, w_ref[...], preferred_element_type=jnp.float32)
    z = z + b_ref[...]
    mu = jnp.mean(z, axis=-1, keepdims=True)
    var = jnp.mean((z - mu) ** 2, axis=-1, keepdims=True)
    o_ref[...] = ((z - mu) * jax.lax.rsqrt(var + EPS) * g_ref[...]
                  + beta_ref[...]).astype(o_ref.dtype)


def dwconv7_kernel(x_ref, dww_ref, dwb_ref, o_ref, xpad_ref):
    """Depthwise 7x7 conv (stride 1, pad 3) for one image.

    Padding is built in a VMEM scratch with W padded to a multiple of 8; only
    the 3-wide halo is zeroed each step.  Every tap is an offset vld from the
    scratch ref (no in-register sublane shuffles) inside a fori_loop over kh
    (kw unrolled) so vreg live ranges stay bounded.  The output is stored as a
    lane/sublane-dense (1, H*W, C) token slab.
    """
    _, H, W, C = x_ref.shape
    Wp = xpad_ref.shape[1]

    zrow = jnp.zeros((3, Wp, C), jnp.float32)
    xpad_ref[0:3, :, :] = zrow                        # top halo rows
    xpad_ref[H + 3:H + 6, :, :] = zrow                # bottom halo rows
    zcol = jnp.zeros((H, 3, C), jnp.float32)
    xpad_ref[3:3 + H, 0:3, :] = zcol                  # left halo cols
    xpad_ref[3:3 + H, W + 3:W + 6, :] = zcol          # right halo cols
    xpad_ref[3:3 + H, 3:3 + W, :] = x_ref[0].astype(jnp.float32)

    def kh_body(kh, acc):
        for kw in range(7):                           # kw unrolled, kh rolled
            tap = xpad_ref[pl.ds(kh, H), pl.ds(kw, W), :]    # offset vld
            acc = acc + tap * dww_ref[kh * 7 + kw]           # (1, C) weight row
        return acc

    acc = jax.lax.fori_loop(0, 7, kh_body, jnp.zeros((H, W, C), jnp.float32))
    y = acc + dwb_ref[...]
    o_ref[...] = y.reshape(1, H * W, C).astype(o_ref.dtype)


def block_mlp_kernel(y_ref, x_ref, w1_ref, b1_ref, w2_ref, b2_ref, o_ref):
    """Token-tiled ConvNeXt MLP:

        out = x + GELU(LN0(y) @ W1' + b1') @ W2' + b2'

    LN0 is the affine-free layer norm: ln_g/ln_b are folded into W1'/b1' and
    layer-scale gamma into W2'/b2' by prepare_params().  M = batch*spatial
    token rows, so the MXU runs with large M.
    """
    y = y_ref[...].astype(jnp.float32)                            # (bm, C)
    mu = jnp.mean(y, axis=-1, keepdims=True)
    var = jnp.mean((y - mu) ** 2, axis=-1, keepdims=True)
    yn = (y - mu) * jax.lax.rsqrt(var + EPS)
    h = jnp.dot(yn.astype(jnp.bfloat16), w1_ref[...],
                preferred_element_type=jnp.float32) + b1_ref[...]
    h = _gelu_exact(h)
    h = jnp.dot(h.astype(jnp.bfloat16), w2_ref[...],
                preferred_element_type=jnp.float32) + b2_ref[...]
    o_ref[...] = (x_ref[...].astype(jnp.float32) + h).astype(o_ref.dtype)


def downsample_kernel(x_ref, w_ref, bias_ref, o_ref):
    """Fused downsample: per-tap LayerNorm (affine folded into w) followed by
    ONE K = 4*C0 matmul (the four 2x2/stride-2 taps are concatenated along K).
    """
    x = x_ref[...].astype(jnp.float32)                            # (bm, 4*C0)
    c0 = x.shape[-1] // 4
    parts = []
    for t in range(4):                      # lane-aligned 128-wide segments
        seg = x[:, t * c0:(t + 1) * c0]
        mu = jnp.mean(seg, axis=-1, keepdims=True)
        var = jnp.mean((seg - mu) ** 2, axis=-1, keepdims=True)
        parts.append((seg - mu) * jax.lax.rsqrt(var + EPS))
    xn = jnp.concatenate(parts, axis=-1)                          # (bm, 4*C0)
    o_ref[...] = (jnp.dot(xn.astype(jnp.bfloat16), w_ref[...],
                          preferred_element_type=jnp.float32)
                  + bias_ref[...]).astype(o_ref.dtype)


def head_kernel(x_ref, w_ref, bias_ref, o_ref):
    """Fused head per image: global mean pool -> LN (affine folded into the
    classifier weight/bias) -> Linear -> softmax.  Classes are lane-padded to
    128 with pad bias -1e30 so their softmax mass is exactly 0."""
    feat = jnp.mean(x_ref[0].astype(jnp.float32), axis=0, keepdims=True)
    mu = jnp.mean(feat, axis=-1, keepdims=True)
    var = jnp.mean((feat - mu) ** 2, axis=-1, keepdims=True)
    fn = (feat - mu) * jax.lax.rsqrt(var + EPS)
    logits = jnp.dot(fn.astype(jnp.bfloat16), w_ref[...],
                     preferred_element_type=jnp.float32) + bias_ref[...]
    m = jnp.max(logits, axis=-1, keepdims=True)
    e = jnp.exp(logits - m)
    o_ref[0] = (e / jnp.sum(e, axis=-1, keepdims=True)).astype(o_ref.dtype)


# ----------------------------------------------------------------------------
# wrappers (layout plumbing only; all compute is inside the kernels above)
# ----------------------------------------------------------------------------
def patchify(x, p):
    """NHWC -> (N*Ho*Wo, p*p*C) patch rows (stride-p conv as a matmul)."""
    N, H, W, C = x.shape
    x = x.reshape(N, H // p, p, W // p, p, C)
    x = x.transpose(0, 1, 3, 2, 4, 5)
    return x.reshape(N * (H // p) * (W // p), p * p * C)


def stem(x_nhwc, pp):
    N, H, W, _ = x_nhwc.shape
    rows = patchify(x_nhwc, 4)                                    # (M, 48)
    M, K = rows.shape
    C = pp["stem_w"].shape[1]
    bm = _pick_block_rows(M)
    out = pl.pallas_call(
        stem_kernel,
        out_shape=jax.ShapeDtypeStruct((M, C), x_nhwc.dtype),
        grid=(M // bm,),
        in_specs=[pl.BlockSpec((bm, K), lambda i: (i, 0)),
                  pl.BlockSpec((K, C), lambda i: (0, 0)),
                  pl.BlockSpec((1, C), lambda i: (0, 0)),
                  pl.BlockSpec((1, C), lambda i: (0, 0)),
                  pl.BlockSpec((1, C), lambda i: (0, 0))],
        out_specs=pl.BlockSpec((bm, C), lambda i: (i, 0)),
        compiler_params=pltpu.CompilerParams(
            dimension_semantics=("parallel",)),
    )(rows, pp["stem_w"], pp["stem_b"], pp["stem_ln_g"], pp["stem_ln_b"])
    return out.reshape(N, H // 4, W // 4, C)


def depthwise_conv7(x, bp):
    N, H, W, C = x.shape
    Wp = ((W + 6 + 7) // 8) * 8          # scratch width padded to sublane tile
    # TODO(synk): for large resolutions (e.g. 56x56 stage-0 on v7x) add an
    # H-row-tiled variant with a 3-row halo to keep the per-step VMEM footprint
    # well under 64 MiB; at these sizes one image per step is < 1 MiB.
    return pl.pallas_call(
        dwconv7_kernel,
        out_shape=jax.ShapeDtypeStruct((N, H * W, C), x.dtype),
        grid=(N,),
        in_specs=[pl.BlockSpec((1, H, W, C), lambda n: (n, 0, 0, 0)),
                  pl.BlockSpec((49, 1, C), lambda n: (0, 0, 0)),
                  pl.BlockSpec((1, C), lambda n: (0, 0))],
        out_specs=pl.BlockSpec((1, H * W, C), lambda n: (n, 0, 0)),
        scratch_shapes=[pltpu.VMEM((H + 6, Wp, C), jnp.float32)],
        compiler_params=pltpu.CompilerParams(
            dimension_semantics=("parallel",)),
        cost_estimate=pl.CostEstimate(
            flops=2 * 49 * N * H * W * C, transcendentals=0,
            bytes_accessed=2 * N * H * W * C * 4 + 49 * C * 4),
    )(x, bp["dw_w"], bp["dw_b"])


def block_mlp(y_tokens, x_tokens, bp):
    M, C = x_tokens.shape
    Cm = bp["w1"].shape[1]
    bm = _pick_block_rows(M)
    flops = 2 * M * C * Cm * 2
    return pl.pallas_call(
        block_mlp_kernel,
        out_shape=jax.ShapeDtypeStruct((M, C), x_tokens.dtype),
        grid=(M // bm,),
        in_specs=[pl.BlockSpec((bm, C), lambda i: (i, 0)),
                  pl.BlockSpec((bm, C), lambda i: (i, 0)),
                  pl.BlockSpec((C, Cm), lambda i: (0, 0)),
                  pl.BlockSpec((1, Cm), lambda i: (0, 0)),
                  pl.BlockSpec((Cm, C), lambda i: (0, 0)),
                  pl.BlockSpec((1, C), lambda i: (0, 0))],
        out_specs=pl.BlockSpec((bm, C), lambda i: (i, 0)),
        input_output_aliases={1: 0},               # residual written in place
        compiler_params=pltpu.CompilerParams(
            dimension_semantics=("parallel",)),
        cost_estimate=pl.CostEstimate(
            flops=flops, transcendentals=M * Cm,
            bytes_accessed=3 * M * C * 4 + 2 * C * Cm * 2),
    )(y_tokens, x_tokens, bp["w1"], bp["b1"], bp["w2"], bp["b2"])


def convnext_block(x, bp):
    N, H, W, C = x.shape
    y = depthwise_conv7(x, bp)                                    # (N, H*W, C)
    out = block_mlp(y.reshape(N * H * W, C), x.reshape(N * H * W, C), bp)
    return out.reshape(N, H, W, C)


def downsample(x, pp):
    N, H, W, C = x.shape
    Ho, Wo = H // 2, W // 2
    C1 = pp["ds_w"].shape[-1]
    # four stride-2 taps concatenated along K: (M, 4*C0)
    xt = x.reshape(N, Ho, 2, Wo, 2, C).transpose(0, 1, 3, 2, 4, 5)
    xt = xt.reshape(N * Ho * Wo, 4 * C)
    M = N * Ho * Wo
    bm = _pick_block_rows(M)
    out = pl.pallas_call(
        downsample_kernel,
        out_shape=jax.ShapeDtypeStruct((M, C1), x.dtype),
        grid=(M // bm,),
        in_specs=[pl.BlockSpec((bm, 4 * C), lambda i: (i, 0)),
                  pl.BlockSpec((4 * C, C1), lambda i: (0, 0)),
                  pl.BlockSpec((1, C1), lambda i: (0, 0))],
        out_specs=pl.BlockSpec((bm, C1), lambda i: (i, 0)),
        compiler_params=pltpu.CompilerParams(
            dimension_semantics=("parallel",)),
    )(xt, pp["ds_w"], pp["ds_b"])
    return out.reshape(N, Ho, Wo, C1)


def head(x, pp, num_classes):
    N, H, W, C = x.shape
    pred_pad = pl.pallas_call(
        head_kernel,
        out_shape=jax.ShapeDtypeStruct((N, 1, NUM_CLASSES_PAD), x.dtype),
        grid=(N,),
        in_specs=[pl.BlockSpec((1, H * W, C), lambda n: (n, 0, 0)),
                  pl.BlockSpec((C, NUM_CLASSES_PAD), lambda n: (0, 0)),
                  pl.BlockSpec((1, NUM_CLASSES_PAD), lambda n: (0, 0))],
        out_specs=pl.BlockSpec((1, 1, NUM_CLASSES_PAD), lambda n: (n, 0, 0)),
        compiler_params=pltpu.CompilerParams(
            dimension_semantics=("parallel",)),
    )(x.reshape(N, H * W, C), pp["head_w"], pp["head_bias"])
    return pred_pad.reshape(N, NUM_CLASSES_PAD)[:, :num_classes]


def convnext_forward(x_nchw, pp, num_classes=10):
    x = jnp.transpose(x_nchw, (0, 2, 3, 1))          # NCHW -> NHWC (lane = C)
    x = stem(x, pp)                                  # conv4x4/4 + LN
    x = convnext_block(x, pp["block0"])              # stage 0
    x = downsample(x, pp)                            # LN + conv2x2/2
    x = convnext_block(x, pp["block1"])              # stage 1
    pred = head(x, pp, num_classes)                  # pool + LN + fc + softmax
    return pred, None  # idx2label is None -> (pred, None), matching torch forward


# ----------------------------------------------------------------------------
# Deterministic synthetic parameters + one-time wrapper-side weight prep
# ----------------------------------------------------------------------------
def init_params(key, in_chans=3, dims=(128, 256), num_classes=10):
    ks = iter(jax.random.split(key, 32))
    nrm = lambda shape, s=0.05: (s * jax.random.normal(next(ks), shape)).astype(jnp.float32)

    def block_params(c):
        return {
            "dw_w": nrm((7, 7, c)),
            "dw_b": nrm((1, c)),
            "ln_g": jnp.ones((1, c), jnp.float32),
            "ln_b": jnp.zeros((1, c), jnp.float32),
            "w1": nrm((c, 4 * c)),
            "b1": jnp.zeros((1, 4 * c), jnp.float32),
            "w2": nrm((4 * c, c)),
            "b2": jnp.zeros((1, c), jnp.float32),
            "gamma": jnp.full((1, c), 0.1, jnp.float32),   # layer-scale
        }

    c0, c1 = dims
    return {
        "stem_w": nrm((4 * 4 * in_chans, c0)),
        "stem_b": jnp.zeros((1, c0), jnp.float32),
        "stem_ln_g": jnp.ones((1, c0), jnp.float32),
        "stem_ln_b": jnp.zeros((1, c0), jnp.float32),
        "block0": block_params(c0),
        "ds_ln_g": jnp.ones((1, c0), jnp.float32),
        "ds_ln_b": jnp.zeros((1, c0), jnp.float32),
        "ds_w": nrm((4, c0, c1)),           # (dh*2+dw, Cin, Cout)
        "ds_b": jnp.zeros((1, c1), jnp.float32),
        "block1": block_params(c1),
        "head_ln_g": jnp.ones((1, c1), jnp.float32),
        "head_ln_b": jnp.zeros((1, c1), jnp.float32),
        "head_w": nrm((c1, num_classes)),
        "head_b": jnp.zeros((1, num_classes), jnp.float32),
    }


def prepare_params(p, num_classes=10):
    """One-time weight prep (outside jit): fold LN affines / layer-scale into
    matmul weights, pre-cast every matmul weight to bf16, lane-pad the head."""
    bf16 = jnp.bfloat16

    def prep_block(bp):
        c = bp["w1"].shape[0]
        w1 = (bp["ln_g"].reshape(c, 1) * bp["w1"]).astype(bf16)     # diag(g)@W1
        b1 = bp["b1"] + bp["ln_b"] @ bp["w1"]
        w2 = (bp["w2"] * bp["gamma"].reshape(1, c)).astype(bf16)    # W2@diag(gamma)
        b2 = bp["b2"] * bp["gamma"]
        return {"dw_w": bp["dw_w"].reshape(49, 1, c),
                "dw_b": bp["dw_b"],
                "w1": w1, "b1": b1, "w2": w2, "b2": b2}

    c0 = p["ds_w"].shape[1]
    c1 = p["ds_w"].shape[2]
    ds_w_flat = p["ds_w"].reshape(4 * c0, c1)
    ds_bias = p["ds_b"] + jnp.tile(p["ds_ln_b"], (1, 4)) @ ds_w_flat
    ds_w = (p["ds_w"] * p["ds_ln_g"].reshape(1, c0, 1)).reshape(4 * c0, c1)

    head_bias = p["head_b"] + p["head_ln_b"] @ p["head_w"]
    head_w = p["head_ln_g"].reshape(c1, 1) * p["head_w"]
    pad = NUM_CLASSES_PAD - num_classes
    head_w = jnp.pad(head_w, ((0, 0), (0, pad)))
    head_bias = jnp.pad(head_bias, ((0, 0), (0, pad)), constant_values=-1e30)

    return {
        "stem_w": p["stem_w"].astype(bf16),
        "stem_b": p["stem_b"],
        "stem_ln_g": p["stem_ln_g"],
        "stem_ln_b": p["stem_ln_b"],
        "block0": prep_block(p["block0"]),
        "ds_w": ds_w.astype(bf16),
        "ds_b": ds_bias,
        "block1": prep_block(p["block1"]),
        "head_w": head_w.astype(bf16),
        "head_bias": head_bias,
    }


if __name__ == "__main__":
    key = jax.random.PRNGKey(0)
    k_x, k_p = jax.random.split(key)
    # small input consistent with a ConvNeXt image classifier (NCHW, 3 channels)
    x = jax.random.normal(k_x, (2, 3, 32, 32), jnp.float32)
    params = init_params(k_p)
    pparams = prepare_params(params)          # one-time fold + bf16 cast + pad

    pred, _ = jax.jit(convnext_forward)(x, pparams)
    pred = jax.block_until_ready(pred)

    assert pred.shape == (2, 10)
    assert bool(jnp.all(jnp.isfinite(pred)))
    # exact softmax divide in the head -> tight row-sum check
    assert bool(jnp.allclose(jnp.sum(pred, axis=-1), 1.0, atol=1e-4))
    print("KERNEL_OK")
</pallas_src>

<mosaic_0001>
module attributes {stable_mosaic.version = 11 : i64} {
  func.func @stem_kernel(%arg0: i32, %arg1: memref<64x48xf32, #tpu.memory_space<vmem>>, %arg2: memref<48x128xbf16, #tpu.memory_space<vmem>>, %arg3: memref<1x128xf32, #tpu.memory_space<vmem>>, %arg4: memref<1x128xf32, #tpu.memory_space<vmem>>, %arg5: memref<1x128xf32, #tpu.memory_space<vmem>>, %arg6: memref<64x128xf32, #tpu.memory_space<vmem>>) attributes {dimension_semantics = [#tpu.dimension_semantics<parallel>], iteration_bounds = array<i64: 2>, scalar_prefetch = 0 : i64, scratch_operands = 0 : i64, tpu.core_type = #tpu.core_type<tc>, window_params = [{transform_indices = @transform_0, window_bounds = array<i64: 64, 48>}, {pipeline_mode = #tpu.pipeline_mode<synchronous>, transform_indices = @transform_1, window_bounds = array<i64: 48, 128>}, {pipeline_mode = #tpu.pipeline_mode<synchronous>, transform_indices = @transform_2, window_bounds = array<i64: 1, 128>}, {pipeline_mode = #tpu.pipeline_mode<synchronous>, transform_indices = @transform_3, window_bounds = array<i64: 1, 128>}, {pipeline_mode = #tpu.pipeline_mode<synchronous>, transform_indices = @transform_4, window_bounds = array<i64: 1, 128>}, {transform_indices = @transform_5, window_bounds = array<i64: 64, 128>}]} {
    %c0 = arith.constant 0 : index
    %c0_0 = arith.constant 0 : index
    %0 = vector.load %arg1[%c0, %c0_0] : memref<64x48xf32, #tpu.memory_space<vmem>>, vector<64x48xf32>
    %1 = arith.truncf %0 : vector<64x48xf32> to vector<64x48xbf16>
    %c0_1 = arith.constant 0 : index
    %c0_2 = arith.constant 0 : index
    %2 = vector.load %arg2[%c0_1, %c0_2] : memref<48x128xbf16, #tpu.memory_space<vmem>>, vector<48x128xbf16>
    %cst = arith.constant dense<0.000000e+00> : vector<64x128xf32>
    %3 = tpu.matmul %1, %2, %cst {dimension_numbers = #tpu.dot_dimension_numbers<[1], [0], [0], [1], [0, 0, 1, 1], [], []>} : vector<64x48xbf16>, vector<48x128xbf16>, vector<64x128xf32> -> vector<64x128xf32>
    %c0_3 = arith.constant 0 : index
    %c0_4 = arith.constant 0 : index
    %4 = vector.load %arg3[%c0_3, %c0_4] : memref<1x128xf32, #tpu.memory_space<vmem>>, vector<1x128xf32>
    %5 = vector.broadcast %4 : vector<1x128xf32> to vector<64x128xf32>
    %6 = arith.addf %3, %5 : vector<64x128xf32>
    %cst_5 = arith.constant dense<0.000000e+00> : vector<64xf32>
    %7 = vector.multi_reduction <add>, %6, %cst_5 [1] : vector<64x128xf32> to vector<64xf32>
    %8 = vector.shape_cast %7 : vector<64xf32> to vector<64x1xf32>
    %cst_6 = arith.constant 1.280000e+02 : f32
    %9 = vector.broadcast %cst_6 : f32 to vector<64x1xf32>
    %10 = arith.divf %8, %9 : vector<64x1xf32>
    %11 = vector.broadcast %10 : vector<64x1xf32> to vector<64x128xf32>
    %12 = arith.subf %6, %11 : vector<64x128xf32>
    %13 = arith.mulf %12, %12 : vector<64x128xf32>
    %cst_7 = arith.constant dense<0.000000e+00> : vector<64xf32>
    %14 = vector.multi_reduction <add>, %13, %cst_7 [1] : vector<64x128xf32> to vector<64xf32>
    %15 = vector.shape_cast %14 : vector<64xf32> to vector<64x1xf32>
    %cst_8 = arith.constant 1.280000e+02 : f32
    %16 = vector.broadcast %cst_8 : f32 to vector<64x1xf32>
    %17 = arith.divf %15, %16 : vector<64x1xf32>
    %18 = vector.broadcast %10 : vector<64x1xf32> to vector<64x128xf32>
    %19 = arith.subf %6, %18 : vector<64x128xf32>
    %cst_9 = arith.constant 9.99999997E-7 : f32
    %20 = vector.broadcast %cst_9 : f32 to vector<64x1xf32>
    %21 = arith.addf %17, %20 : vector<64x1xf32>
    %22 = math.rsqrt %21 : vector<64x1xf32>
    %23 = vector.broadcast %22 : vector<64x1xf32> to vector<64x128xf32>
    %24 = arith.mulf %19, %23 : vector<64x128xf32>
    %c0_10 = arith.constant 0 : index
    %c0_11 = arith.constant 0 : index
    %25 = vector.load %arg4[%c0_10, %c0_11] : memref<1x128xf32, #tpu.memory_space<vmem>>, vector<1x128xf32>
    %26 = vector.broadcast %25 : vector<1x128xf32> to vector<64x128xf32>
    %27 = arith.mulf %24, %26 : vector<64x128xf32>
    %c0_12 = arith.constant 0 : index
    %c0_13 = arith.constant 0 : index
    %28 = vector.load %arg5[%c0_12, %c0_13] : memref<1x128xf32, #tpu.memory_space<vmem>>, vector<1x128xf32>
    %29 = vector.broadcast %28 : vector<1x128xf32> to vector<64x128xf32>
    %30 = arith.addf %27, %29 : vector<64x128xf32>
    %c0_14 = arith.constant 0 : index
    %c0_15 = arith.constant 0 : index
    %31 = vector.load %arg6[%c0_14, %c0_15] : memref<64x128xf32, #tpu.memory_space<vmem>>, vector<64x128xf32>
    tpu.vector_store %arg6[%c0_14, %c0_15], %30 {strides = array<i32>} : memref<64x128xf32, #tpu.memory_space<vmem>>, vector<64x128xf32>,
    return
  }
  func.func @transform_0(%arg0: i32) -> (i32, i32) {
    %c0_i32 = arith.constant 0 : i32
    %c0_i32_0 = arith.constant 0 : i32
    return %arg0, %c0_i32 : i32, i32
  }
  func.func @transform_1(%arg0: i32) -> (i32, i32) {
    %c0_i32 = arith.constant 0 : i32
    %c0_i32_0 = arith.constant 0 : i32
    %c0_i32_1 = arith.constant 0 : i32
    return %c0_i32, %c0_i32_0 : i32, i32
  }
  func.func @transform_2(%arg0: i32) -> (i32, i32) {
    %c0_i32 = arith.constant 0 : i32
    %c0_i32_0 = arith.constant 0 : i32
    %c0_i32_1 = arith.constant 0 : i32
    return %c0_i32, %c0_i32_0 : i32, i32
  }
  func.func @transform_3(%arg0: i32) -> (i32, i32) {
    %c0_i32 = arith.constant 0 : i32
    %c0_i32_0 = arith.constant 0 : i32
    %c0_i32_1 = arith.constant 0 : i32
    return %c0_i32, %c0_i32_0 : i32, i32
  }
  func.func @transform_4(%arg0: i32) -> (i32, i32) {
    %c0_i32 = arith.constant 0 : i32
    %c0_i32_0 = arith.constant 0 : i32
    %c0_i32_1 = arith.constant 0 : i32
    return %c0_i32, %c0_i32_0 : i32, i32
  }
  func.func @transform_5(%arg0: i32) -> (i32, i32) {
    %c0_i32 = arith.constant 0 : i32
    %c0_i32_0 = arith.constant 0 : i32
    return %arg0, %c0_i32 : i32, i32
  }
}

module attributes {stable_mosaic.version = 11 : i64} {
  func.func @dwconv7_kernel(%arg0: i32, %arg1: memref<1x8x8x128xf32, #tpu.memory_space<vmem>>, %arg2: memref<49x1x128xf32, #tpu.memory_space<vmem>>, %arg3: memref<1x128xf32, #tpu.memory_space<vmem>>, %arg4: memref<1x64x128xf32, #tpu.memory_space<vmem>>, %arg5: memref<14x16x128xf32, #tpu.memory_space<vmem>>) attributes {dimension_semantics = [#tpu.dimension_semantics<parallel>], iteration_bounds = array<i64: 2>, scalar_prefetch = 0 : i64, scratch_operands = 1 : i64, tpu.core_type = #tpu.core_type<tc>, window_params = [{transform_indices = @transform_0, window_bounds = array<i64: 1, 8, 8, 128>}, {pipeline_mode = #tpu.pipeline_mode<synchronous>, transform_indices = @transform_1, window_bounds = array<i64: 49, 1, 128>}, {pipeline_mode = #tpu.pipeline_mode<synchronous>, transform_indices = @transform_2, window_bounds = array<i64: 1, 128>}, {transform_indices = @transform_3, window_bounds = array<i64: 1, 64, 128>}]} {
    %cst = arith.constant 0.000000e+00 : f32
    %0 = vector.broadcast %cst : f32 to vector<3x16x128xf32>
    %c0 = arith.constant 0 : index
    %c0_0 = arith.constant 0 : index
    %c0_1 = arith.constant 0 : index
    %1 = vector.load %arg5[%c0, %c0_0, %c0_1] : memref<14x16x128xf32, #tpu.memory_space<vmem>>, vector<3x16x128xf32>
    tpu.vector_store %arg5[%c0, %c0_0, %c0_1], %0 {strides = array<i32>} : memref<14x16x128xf32, #tpu.memory_space<vmem>>, vector<3x16x128xf32>,
    %c11 = arith.constant 11 : index
    %c0_2 = arith.constant 0 : index
    %c0_3 = arith.constant 0 : index
    %2 = vector.load %arg5[%c11, %c0_2, %c0_3] : memref<14x16x128xf32, #tpu.memory_space<vmem>>, vector<3x16x128xf32>
    tpu.vector_store %arg5[%c11, %c0_2, %c0_3], %0 {strides = array<i32>} : memref<14x16x128xf32, #tpu.memory_space<vmem>>, vector<3x16x128xf32>,
    %cst_4 = arith.constant 0.000000e+00 : f32
    %3 = vector.broadcast %cst_4 : f32 to vector<8x3x128xf32>
    %c3 = arith.constant 3 : index
    %c0_5 = arith.constant 0 : index
    %c0_6 = arith.constant 0 : index
    %4 = vector.load %arg5[%c3, %c0_5, %c0_6] : memref<14x16x128xf32, #tpu.memory_space<vmem>>, vector<8x3x128xf32>
    tpu.vector_store %arg5[%c3, %c0_5, %c0_6], %3 {strides = array<i32>} : memref<14x16x128xf32, #tpu.memory_space<vmem>>, vector<8x3x128xf32>,
    %c3_7 = arith.constant 3 : index
    %c11_8 = arith.constant 11 : index
    %c0_9 = arith.constant 0 : index
    %5 = vector.load %arg5[%c3_7, %c11_8, %c0_9] : memref<14x16x128xf32, #tpu.memory_space<vmem>>, vector<8x3x128xf32>
    tpu.vector_store %arg5[%c3_7, %c11_8, %c0_9], %3 {strides = array<i32>} : memref<14x16x128xf32, #tpu.memory_space<vmem>>, vector<8x3x128xf32>,
    %c0_10 = arith.constant 0 : index
    %c0_11 = arith.constant 0 : index
    %c0_12 = arith.constant 0 : index
    %c0_13 = arith.constant 0 : index
    %6 = vector.load %arg1[%c0_10, %c0_11, %c0_12, %c0_13] : memref<1x8x8x128xf32, #tpu.memory_space<vmem>>, vector<1x8x8x128xf32>
    %7 = vector.shape_cast %6 : vector<1x8x8x128xf32> to vector<8x8x128xf32>
    %c3_14 = arith.constant 3 : index
    %c3_15 = arith.constant 3 : index
    %c0_16 = arith.constant 0 : index
    %8 = vector.load %arg5[%c3_14, %c3_15, %c0_16] : memref<14x16x128xf32, #tpu.memory_space<vmem>>, vector<8x8x128xf32>
    tpu.vector_store %arg5[%c3_14, %c3_15, %c0_16], %7 {strides = array<i32>} : memref<14x16x128xf32, #tpu.memory_space<vmem>>, vector<8x8x128xf32>,
    %cst_17 = arith.constant 0.000000e+00 : f32
    %9 = vector.broadcast %cst_17 : f32 to vector<8x8x128xf32>
    %c0_i32 = arith.constant 0 : i32
    %c7_i32 = arith.constant 7 : i32
    %10 = arith.addi %c0_i32, %c7_i32 : i32
    %c1_i32 = arith.constant 1 : i32
    %11 = scf.for %arg6 = %c0_i32 to %10 step %c1_i32 iter_args(%arg7 = %9) -> (vector<8x8x128xf32>)  : i32 {
      %18 = arith.index_cast %arg6 : i32 to index
      %c0_24 = arith.constant 0 : index
      %c0_25 = arith.constant 0 : index
      %19 = vector.load %arg5[%18, %c0_24, %c0_25] : memref<14x16x128xf32, #tpu.memory_space<vmem>>, vector<8x8x128xf32>
      %c7_i32_26 = arith.constant 7 : i32
      %20 = arith.muli %arg6, %c7_i32_26 : i32
      %c0_i32_27 = arith.constant 0 : i32
      %21 = arith.addi %20, %c0_i32_27 : i32
      %22 = arith.index_cast %21 : i32 to index
      %c0_28 = arith.constant 0 : index
      %c0_29 = arith.constant 0 : index
      %23 = vector.load %arg2[%22, %c0_28, %c0_29] : memref<49x1x128xf32, #tpu.memory_space<vmem>>, vector<1x1x128xf32>
      %24 = vector.shape_cast %23 : vector<1x1x128xf32> to vector<1x128xf32>
      %25 = vector.shape_cast %24 : vector<1x128xf32> to vector<1x1x128xf32>
      %26 = vector.broadcast %25 : vector<1x1x128xf32> to vector<8x8x128xf32>
      %27 = arith.mulf %19, %26 : vector<8x8x128xf32>
      %28 = arith.addf %arg7, %27 : vector<8x8x128xf32>
      %29 = arith.index_cast %arg6 : i32 to index
      %c1 = arith.constant 1 : index
      %c0_30 = arith.constant 0 : index
      %30 = vector.load %arg5[%29, %c1, %c0_30] : memref<14x16x128xf32, #tpu.memory_space<vmem>>, vector<8x8x128xf32>
      %c7_i32_31 = arith.constant 7 : i32
      %31 = arith.muli %arg6, %c7_i32_31 : i32
      %c1_i32_32 = arith.constant 1 : i32
      %32 = arith.addi %31, %c1_i32_32 : i32
      %33 = arith.index_cast %32 : i32 to index
      %c0_33 = arith.constant 0 : index
      %c0_34 = arith.constant 0 : index
      %34 = vector.load %arg2[%33, %c0_33, %c0_34] : memref<49x1x128xf32, #tpu.memory_space<vmem>>, vector<1x1x128xf32>
      %35 = vector.shape_cast %34 : vector<1x1x128xf32> to vector<1x128xf32>
      %36 = vector.shape_cast %35 : vector<1x128xf32> to vector<1x1x128xf32>
      %37 = vector.broadcast %36 : vector<1x1x128xf32> to vector<8x8x128xf32>
      %38 = arith.mulf %30, %37 : vector<8x8x128xf32>
      %39 = arith.addf %28, %38 : vector<8x8x128xf32>
      %40 = arith.index_cast %arg6 : i32 to index
      %c2 = arith.constant 2 : index
      %c0_35 = arith.constant 0 : index
      %41 = vector.load %arg5[%40, %c2, %c0_35] : memref<14x16x128xf32, #tpu.memory_space<vmem>>, vector<8x8x128xf32>
      %c7_i32_36 = arith.constant 7 : i32
      %42 = arith.muli %arg6, %c7_i32_36 : i32
      %c2_i32 = arith.constant 2 : i32
      %43 = arith.addi %42, %c2_i32 : i32
      %44 = arith.index_cast %43 : i32 to index
      %c0_37 = arith.constant 0 : index
      %c0_38 = arith.constant 0 : index
      %45 = vector.load %arg2[%44, %c0_37, %c0_38] : memref<49x1x128xf32, #tpu.memory_space<vmem>>, vector<1x1x128xf32>
      %46 = vector.shape_cast %45 : vector<1x1x128xf32> to vector<1x128xf32>
      %47 = vector.shape_cast %46 : vector<1x128xf32> to vector<1x1x128xf32>
      %48 = vector.broadcast %47 : vector<1x1x128xf32> to vector<8x8x128xf32>
      %49 = arith.mulf %41, %48 : vector<8x8x128xf32>
      %50 = arith.addf %39, %49 : vector<8x8x128xf32>
      %51 = arith.index_cast %arg6 : i32 to index
      %c3_39 = arith.constant 3 : index
      %c0_40 = arith.constant 0 : index
      %52 = vector.load %arg5[%51, %c3_39, %c0_40] : memref<14x16x128xf32, #tpu.memory_space<vmem>>, vector<8x8x128xf32>
      %c7_i32_41 = arith.constant 7 : i32
      %53 = arith.muli %arg6, %c7_i32_41 : i32
      %c3_i32 = arith.constant 3 : i32
      %54 = arith.addi %53, %c3_i32 : i32
      %55 = arith.index_cast %54 : i32 to index
      %c0_42 = arith.constant 0 : index
      %c0_43 = arith.constant 0 : index
      %56 = vector.load %arg2[%55, %c0_42, %c0_43] : memref<49x1x128xf32, #tpu.memory_space<vmem>>, vector<1x1x128xf32>
      %57 = vector.shape_cast %56 : vector<1x1x128xf32> to vector<1x128xf32>
      %58 = vector.shape_cast %57 : vector<1x128xf32> to vector<1x1x128xf32>
      %59 = vector.broadcast %58 : vector<1x1x128xf32> to vector<8x8x128xf32>
      %60 = arith.mulf %52, %59 : vector<8x8x128xf32>
      %61 = arith.addf %50, %60 : vector<8x8x128xf32>
      %62 = arith.index_cast %arg6 : i32 to index
      %c4 = arith.constant 4 : index
      %c0_44 = arith.constant 0 : index
      %63 = vector.load %arg5[%62, %c4, %c0_44] : memref<14x16x128xf32, #tpu.memory_space<vmem>>, vector<8x8x128xf32>
      %c7_i32_45 = arith.constant 7 : i32
      %64 = arith.muli %arg6, %c7_i32_45 : i32
      %c4_i32 = arith.constant 4 : i32
      %65 = arith.addi %64, %c4_i32 : i32
      %66 = arith.index_cast %65 : i32 to index
      %c0_46 = arith.constant 0 : index
      %c0_47 = arith.constant 0 : index
      %67 = vector.load %arg2[%66, %c0_46, %c0_47] : memref<49x1x128xf32, #tpu.memory_space<vmem>>, vector<1x1x128xf32>
      %68 = vector.shape_cast %67 : vector<1x1x128xf32> to vector<1x128xf32>
      %69 = vector.shape_cast %68 : vector<1x128xf32> to vector<1x1x128xf32>
      %70 = vector.broadcast %69 : vector<1x1x128xf32> to vector<8x8x128xf32>
      %71 = arith.mulf %63, %70 : vector<8x8x128xf32>
      %72 = arith.addf %61, %71 : vector<8x8x128xf32>
      %73 = arith.index_cast %arg6 : i32 to index
      %c5 = arith.constant 5 : index
      %c0_48 = arith.constant 0 : index
      %74 = vector.load %arg5[%73, %c5, %c0_48] : memref<14x16x128xf32, #tpu.memory_space<vmem>>, vector<8x8x128xf32>
      %c7_i32_49 = arith.constant 7 : i32
      %75 = arith.muli %arg6, %c7_i32_49 : i32
      %c5_i32 = arith.constant 5 : i32
      %76 = arith.addi %75, %c5_i32 : i32
      %77 = arith.index_cast %76 : i32 to index
      %c0_50 = arith.constant 0 : index
      %c0_51 = arith.constant 0 : index
      %78 = vector.load %arg2[%77, %c0_50, %c0_51] : memref<49x1x128xf32, #tpu.memory_space<vmem>>, vector<1x1x128xf32>
      %79 = vector.shape_cast %78 : vector<1x1x128xf32> to vector<1x128xf32>
      %80 = vector.shape_cast %79 : vector<1x128xf32> to vector<1x1x128xf32>
      %81 = vector.broadcast %80 : vector<1x1x128xf32> to vector<8x8x128xf32>
      %82 = arith.mulf %74, %81 : vector<8x8x128xf32>
      %83 = arith.addf %72, %82 : vector<8x8x128xf32>
      %84 = arith.index_cast %arg6 : i32 to index
      %c6 = arith.constant 6 : index
      %c0_52 = arith.constant 0 : index
      %85 = vector.load %arg5[%84, %c6, %c0_52] : memref<14x16x128xf32, #tpu.memory_space<vmem>>, vector<8x8x128xf32>
      %c7_i32_53 = arith.constant 7 : i32
      %86 = arith.muli %arg6, %c7_i32_53 : i32
      %c6_i32 = arith.constant 6 : i32
      %87 = arith.addi %86, %c6_i32 : i32
      %88 = arith.index_cast %87 : i32 to index
      %c0_54 = arith.constant 0 : index
      %c0_55 = arith.constant 0 : index
      %89 = vector.load %arg2[%88, %c0_54, %c0_55] : memref<49x1x128xf32, #tpu.memory_space<vmem>>, vector<1x1x128xf32>
      %90 = vector.shape_cast %89 : vector<1x1x128xf32> to vector<1x128xf32>
      %91 = vector.shape_cast %90 : vector<1x128xf32> to vector<1x1x128xf32>
      %92 = vector.broadcast %91 : vector<1x1x128xf32> to vector<8x8x128xf32>
      %93 = arith.mulf %85, %92 : vector<8x8x128xf32>
      %94 = arith.addf %83, %93 : vector<8x8x128xf32>
      scf.yield %94 : vector<8x8x128xf32>
    }
    %c7_i32_18 = arith.constant 7 : i32
    %c0_19 = arith.constant 0 : index
    %c0_20 = arith.constant 0 : index
    %12 = vector.load %arg3[%c0_19, %c0_20] : memref<1x128xf32, #tpu.memory_space<vmem>>, vector<1x128xf32>
    %13 = vector.shape_cast %12 : vector<1x128xf32> to vector<1x1x128xf32>
    %14 = vector.broadcast %13 : vector<1x1x128xf32> to vector<8x8x128xf32>
    %15 = arith.addf %11, %14 : vector<8x8x128xf32>
    %16 = vector.shape_cast %15 : vector<8x8x128xf32> to vector<1x64x128xf32>
    %c0_21 = arith.constant 0 : index
    %c0_22 = arith.constant 0 : index
    %c0_23 = arith.constant 0 : index
    %17 = vector.load %arg4[%c0_21, %c0_22, %c0_23] : memref<1x64x128xf32, #tpu.memory_space<vmem>>, vector<1x64x128xf32>
    tpu.vector_store %arg4[%c0_21, %c0_22, %c0_23], %16 {strides = array<i32>} : memref<1x64x128xf32, #tpu.memory_space<vmem>>, vector<1x64x128xf32>,
    return
  }
  func.func @transform_0(%arg0: i32) -> (i32, i32, i32, i32) {
    %c0_i32 = arith.constant 0 : i32
    %c0_i32_0 = arith.constant 0 : i32
    %c0_i32_1 = arith.constant 0 : i32
    %c0_i32_2 = arith.constant 0 : i32
    return %arg0, %c0_i32, %c0_i32_0, %c0_i32_1 : i32, i32, i32, i32
  }
  func.func @transform_1(%arg0: i32) -> (i32, i32, i32) {
    %c0_i32 = arith.constant 0 : i32
    %c0_i32_0 = arith.constant 0 : i32
    %c0_i32_1 = arith.constant 0 : i32
    %c0_i32_2 = arith.constant 0 : i32
    return %c0_i32, %c0_i32_0, %c0_i32_1 : i32, i32, i32
  }
  func.func @transform_2(%arg0: i32) -> (i32, i32) {
    %c0_i32 = arith.constant 0 : i32
    %c0_i32_0 = arith.constant 0 : i32
    %c0_i32_1 = arith.constant 0 : i32
    return %c0_i32, %c0_i32_0 : i32, i32
  }
  func.func @transform_3(%arg0: i32) -> (i32, i32, i32) {
    %c0_i32 = arith.constant 0 : i32
    %c0_i32_0 = arith.constant 0 : i32
    %c0_i32_1 = arith.constant 0 : i32
    return %arg0, %c0_i32, %c0_i32_0 : i32, i32, i32
  }
}

module attributes {stable_mosaic.version = 11 : i64} {
  func.func @block_mlp_kernel(%arg0: i32, %arg1: memref<64x128xf32, #tpu.memory_space<vmem>>, %arg2: memref<64x128xf32, #tpu.memory_space<vmem>>, %arg3: memref<128x512xbf16, #tpu.memory_space<vmem>>, %arg4: memref<1x512xf32, #tpu.memory_space<vmem>>, %arg5: memref<512x128xbf16, #tpu.memory_space<vmem>>, %arg6: memref<1x128xf32, #tpu.memory_space<vmem>>, %arg7: memref<64x128xf32, #tpu.memory_space<vmem>>) attributes {dimension_semantics = [#tpu.dimension_semantics<parallel>], iteration_bounds = array<i64: 2>, scalar_prefetch = 0 : i64, scratch_operands = 0 : i64, tpu.core_type = #tpu.core_type<tc>, window_params = [{transform_indices = @transform_0, window_bounds = array<i64: 64, 128>}, {transform_indices = @transform_1, window_bounds = array<i64: 64, 128>}, {pipeline_mode = #tpu.pipeline_mode<synchronous>, transform_indices = @transform_2, window_bounds = array<i64: 128, 512>}, {pipeline_mode = #tpu.pipeline_mode<synchronous>, transform_indices = @transform_3, window_bounds = array<i64: 1, 512>}, {pipeline_mode = #tpu.pipeline_mode<synchronous>, transform_indices = @transform_4, window_bounds = array<i64: 512, 128>}, {pipeline_mode = #tpu.pipeline_mode<synchronous>, transform_indices = @transform_5, window_bounds = array<i64: 1, 128>}, {transform_indices = @transform_6, window_bounds = array<i64: 64, 128>}]} {
    %c0 = arith.constant 0 : index
    %c0_0 = arith.constant 0 : index
    %0 = vector.load %arg1[%c0, %c0_0] : memref<64x128xf32, #tpu.memory_space<vmem>>, vector<64x128xf32>
    %cst = arith.constant dense<0.000000e+00> : vector<64xf32>
    %1 = vector.multi_reduction <add>, %0, %cst [1] : vector<64x128xf32> to vector<64xf32>
    %2 = vector.shape_cast %1 : vector<64xf32> to vector<64x1xf32>
    %cst_1 = arith.constant 1.280000e+02 : f32
    %3 = vector.broadcast %cst_1 : f32 to vector<64x1xf32>
    %4 = arith.divf %2, %3 : vector<64x1xf32>
    %5 = vector.broadcast %4 : vector<64x1xf32> to vector<64x128xf32>
    %6 = arith.subf %0, %5 : vector<64x128xf32>
    %7 = arith.mulf %6, %6 : vector<64x128xf32>
    %cst_2 = arith.constant dense<0.000000e+00> : vector<64xf32>
    %8 = vector.multi_reduction <add>, %7, %cst_2 [1] : vector<64x128xf32> to vector<64xf32>
    %9 = vector.shape_cast %8 : vector<64xf32> to vector<64x1xf32>
    %cst_3 = arith.constant 1.280000e+02 : f32
    %10 = vector.broadcast %cst_3 : f32 to vector<64x1xf32>
    %11 = arith.divf %9, %10 : vector<64x1xf32>
    %12 = vector.broadcast %4 : vector<64x1xf32> to vector<64x128xf32>
    %13 = arith.subf %0, %12 : vector<64x128xf32>
    %cst_4 = arith.constant 9.99999997E-7 : f32
    %14 = vector.broadcast %cst_4 : f32 to vector<64x1xf32>
    %15 = arith.addf %11, %14 : vector<64x1xf32>
    %16 = math.rsqrt %15 : vector<64x1xf32>
    %17 = vector.broadcast %16 : vector<64x1xf32> to vector<64x128xf32>
    %18 = arith.mulf %13, %17 : vector<64x128xf32>
    %19 = arith.truncf %18 : vector<64x128xf32> to vector<64x128xbf16>
    %c0_5 = arith.constant 0 : index
    %c0_6 = arith.constant 0 : index
    %20 = vector.load %arg3[%c0_5, %c0_6] : memref<128x512xbf16, #tpu.memory_space<vmem>>, vector<128x512xbf16>
    %cst_7 = arith.constant dense<0.000000e+00> : vector<64x512xf32>
    %21 = tpu.matmul %19, %20, %cst_7 {dimension_numbers = #tpu.dot_dimension_numbers<[1], [0], [0], [1], [0, 0, 1, 1], [], []>} : vector<64x128xbf16>, vector<128x512xbf16>, vector<64x512xf32> -> vector<64x512xf32>
    %c0_8 = arith.constant 0 : index
    %c0_9 = arith.constant 0 : index
    %22 = vector.load %arg4[%c0_8, %c0_9] : memref<1x512xf32, #tpu.memory_space<vmem>>, vector<1x512xf32>
    %23 = vector.broadcast %22 : vector<1x512xf32> to vector<64x512xf32>
    %24 = arith.addf %21, %23 : vector<64x512xf32>
    %cst_10 = arith.constant 5.000000e-01 : f32
    %25 = vector.broadcast %cst_10 : f32 to vector<64x512xf32>
    %26 = arith.mulf %25, %24 : vector<64x512xf32>
    %cst_11 = arith.constant 0.707106769 : f32
    %27 = vector.broadcast %cst_11 : f32 to vector<64x512xf32>
    %28 = arith.mulf %24, %27 : vector<64x512xf32>
    %29 = math.absf %28 : vector<64x512xf32>
    %cst_12 = arith.constant 0.327591091 : f32
    %30 = vector.broadcast %cst_12 : f32 to vector<64x512xf32>
    %31 = arith.mulf %30, %29 : vector<64x512xf32>
    %cst_13 = arith.constant 1.000000e+00 : f32
    %32 = vector.broadcast %cst_13 : f32 to vector<64x512xf32>
    %33 = arith.addf %32, %31 : vector<64x512xf32>
    %34 = tpu.reciprocal %33 {approx = true} : vector<64x512xf32> -> vector<64x512xf32>
    %cst_14 = arith.constant 1.06140542 : f32
    %35 = vector.broadcast %cst_14 : f32 to vector<64x512xf32>
    %36 = arith.mulf %34, %35 : vector<64x512xf32>
    %cst_15 = arith.constant -1.45315206 : f32
    %37 = vector.broadcast %cst_15 : f32 to vector<64x512xf32>
    %38 = arith.addf %37, %36 : vector<64x512xf32>
    %39 = arith.mulf %34, %38 : vector<64x512xf32>
    %cst_16 = arith.constant 1.42141378 : f32
    %40 = vector.broadcast %cst_16 : f32 to vector<64x512xf32>
    %41 = arith.addf %40, %39 : vector<64x512xf32>
    %42 = arith.mulf %34, %41 : vector<64x512xf32>
    %cst_17 = arith.constant -0.284496725 : f32
    %43 = vector.broadcast %cst_17 : f32 to vector<64x512xf32>
    %44 = arith.addf %43, %42 : vector<64x512xf32>
    %45 = arith.mulf %34, %44 : vector<64x512xf32>
    %cst_18 = arith.constant 0.254829586 : f32
    %46 = vector.broadcast %cst_18 : f32 to vector<64x512xf32>
    %47 = arith.addf %46, %45 : vector<64x512xf32>
    %48 = arith.mulf %34, %47 : vector<64x512xf32>
    %cst_19 = arith.constant 0.000000e+00 : f32
    %49 = vector.broadcast %cst_19 : f32 to vector<64x512xf32>
    %50 = arith.subf %49, %29 : vector<64x512xf32>
    %51 = arith.mulf %50, %29 : vector<64x512xf32>
    %52 = math.exp %51 : vector<64x512xf32>
    %53 = arith.mulf %48, %52 : vector<64x512xf32>
    %cst_20 = arith.constant 1.000000e+00 : f32
    %54 = vector.broadcast %cst_20 : f32 to vector<64x512xf32>
    %55 = arith.subf %54, %53 : vector<64x512xf32>
    %cst_21 = arith.constant 0.000000e+00 : f32
    %56 = vector.broadcast %cst_21 : f32 to vector<64x512xf32>
    %57 = arith.cmpf oge, %28, %56 : vector<64x512xf32>
    %cst_22 = arith.constant 0.000000e+00 : f32
    %58 = vector.broadcast %cst_22 : f32 to vector<64x512xf32>
    %59 = arith.subf %58, %55 : vector<64x512xf32>
    %60 = arith.select %57, %55, %59 : vector<64x512xi1>, vector<64x512xf32>
    %cst_23 = arith.constant 1.000000e+00 : f32
    %61 = vector.broadcast %cst_23 : f32 to vector<64x512xf32>
    %62 = arith.addf %61, %60 : vector<64x512xf32>
    %63 = arith.mulf %26, %62 : vector<64x512xf32>
    %64 = arith.truncf %63 : vector<64x512xf32> to vector<64x512xbf16>
    %c0_24 = arith.constant 0 : index
    %c0_25 = arith.constant 0 : index
    %65 = vector.load %arg5[%c0_24, %c0_25] : memref<512x128xbf16, #tpu.memory_space<vmem>>, vector<512x128xbf16>
    %cst_26 = arith.constant dense<0.000000e+00> : vector<64x128xf32>
    %66 = tpu.matmul %64, %65, %cst_26 {dimension_numbers = #tpu.dot_dimension_numbers<[1], [0], [0], [1], [0, 0, 1, 1], [], []>} : vector<64x512xbf16>, vector<512x128xbf16>, vector<64x128xf32> -> vector<64x128xf32>
    %c0_27 = arith.constant 0 : index
    %c0_28 = arith.constant 0 : index
    %67 = vector.load %arg6[%c0_27, %c0_28] : memref<1x128xf32, #tpu.memory_space<vmem>>, vector<1x128xf32>
    %68 = vector.broadcast %67 : vector<1x128xf32> to vector<64x128xf32>
    %69 = arith.addf %66, %68 : vector<64x128xf32>
    %c0_29 = arith.constant 0 : index
    %c0_30 = arith.constant 0 : index
    %70 = vector.load %arg2[%c0_29, %c0_30] : memref<64x128xf32, #tpu.memory_space<vmem>>, vector<64x128xf32>
    %71 = arith.addf %70, %69 : vector<64x128xf32>
    %c0_31 = arith.constant 0 : index
    %c0_32 = arith.constant 0 : index
    %72 = vector.load %arg7[%c0_31, %c0_32] : memref<64x128xf32, #tpu.memory_space<vmem>>, vector<64x128xf32>
    tpu.vector_store %arg7[%c0_31, %c0_32], %71 {strides = array<i32>} : memref<64x128xf32, #tpu.memory_space<vmem>>, vector<64x128xf32>,
    return
  }
  func.func @transform_0(%arg0: i32) -> (i32, i32) {
    %c0_i32 = arith.constant 0 : i32
    %c0_i32_0 = arith.constant 0 : i32
    return %arg0, %c0_i32 : i32, i32
  }
  func.func @transform_1(%arg0: i32) -> (i32, i32) {
    %c0_i32 = arith.constant 0 : i32
    %c0_i32_0 = arith.constant 0 : i32
    return %arg0, %c0_i32 : i32, i32
  }
  func.func @transform_2(%arg0: i32) -> (i32, i32) {
    %c0_i32 = arith.constant 0 : i32
    %c0_i32_0 = arith.constant 0 : i32
    %c0_i32_1 = arith.constant 0 : i32
    return %c0_i32, %c0_i32_0 : i32, i32
  }
  func.func @transform_3(%arg0: i32) -> (i32, i32) {
    %c0_i32 = arith.constant 0 : i32
    %c0_i32_0 = arith.constant 0 : i32
    %c0_i32_1 = arith.constant 0 : i32
    return %c0_i32, %c0_i32_0 : i32, i32
  }
  func.func @transform_4(%arg0: i32) -> (i32, i32) {
    %c0_i32 = arith.constant 0 : i32
    %c0_i32_0 = arith.constant 0 : i32
    %c0_i32_1 = arith.constant 0 : i32
    return %c0_i32, %c0_i32_0 : i32, i32
  }
  func.func @transform_5(%arg0: i32) -> (i32, i32) {
    %c0_i32 = arith.constant 0 : i32
    %c0_i32_0 = arith.constant 0 : i32
    %c0_i32_1 = arith.constant 0 : i32
    return %c0_i32, %c0_i32_0 : i32, i32
  }
  func.func @transform_6(%arg0: i32) -> (i32, i32) {
    %c0_i32 = arith.constant 0 : i32
    %c0_i32_0 = arith.constant 0 : i32
    return %arg0, %c0_i32 : i32, i32
  }
}

module attributes {stable_mosaic.version = 11 : i64} {
  func.func @downsample_kernel(%arg0: i32, %arg1: memref<16x512xf32, #tpu.memory_space<vmem>>, %arg2: memref<512x256xbf16, #tpu.memory_space<vmem>>, %arg3: memref<1x256xf32, #tpu.memory_space<vmem>>, %arg4: memref<16x256xf32, #tpu.memory_space<vmem>>) attributes {dimension_semantics = [#tpu.dimension_semantics<parallel>], iteration_bounds = array<i64: 2>, scalar_prefetch = 0 : i64, scratch_operands = 0 : i64, tpu.core_type = #tpu.core_type<tc>, window_params = [{transform_indices = @transform_0, window_bounds = array<i64: 16, 512>}, {pipeline_mode = #tpu.pipeline_mode<synchronous>, transform_indices = @transform_1, window_bounds = array<i64: 512, 256>}, {pipeline_mode = #tpu.pipeline_mode<synchronous>, transform_indices = @transform_2, window_bounds = array<i64: 1, 256>}, {transform_indices = @transform_3, window_bounds = array<i64: 16, 256>}]} {
    %c0 = arith.constant 0 : index
    %c0_0 = arith.constant 0 : index
    %0 = vector.load %arg1[%c0, %c0_0] : memref<16x512xf32, #tpu.memory_space<vmem>>, vector<16x512xf32>
    %1 = vector.extract_strided_slice %0 {offsets = [0, 0], sizes = [16, 128], strides = [1, 1]} : vector<16x512xf32> to vector<16x128xf32>
    %cst = arith.constant dense<0.000000e+00> : vector<16xf32>
    %2 = vector.multi_reduction <add>, %1, %cst [1] : vector<16x128xf32> to vector<16xf32>
    %3 = vector.shape_cast %2 : vector<16xf32> to vector<16x1xf32>
    %cst_1 = arith.constant 1.280000e+02 : f32
    %4 = vector.broadcast %cst_1 : f32 to vector<16x1xf32>
    %5 = arith.divf %3, %4 : vector<16x1xf32>
    %6 = vector.broadcast %5 : vector<16x1xf32> to vector<16x128xf32>
    %7 = arith.subf %1, %6 : vector<16x128xf32>
    %8 = arith.mulf %7, %7 : vector<16x128xf32>
    %cst_2 = arith.constant dense<0.000000e+00> : vector<16xf32>
    %9 = vector.multi_reduction <add>, %8, %cst_2 [1] : vector<16x128xf32> to vector<16xf32>
    %10 = vector.shape_cast %9 : vector<16xf32> to vector<16x1xf32>
    %cst_3 = arith.constant 1.280000e+02 : f32
    %11 = vector.broadcast %cst_3 : f32 to vector<16x1xf32>
    %12 = arith.divf %10, %11 : vector<16x1xf32>
    %13 = vector.broadcast %5 : vector<16x1xf32> to vector<16x128xf32>
    %14 = arith.subf %1, %13 : vector<16x128xf32>
    %cst_4 = arith.constant 9.99999997E-7 : f32
    %15 = vector.broadcast %cst_4 : f32 to vector<16x1xf32>
    %16 = arith.addf %12, %15 : vector<16x1xf32>
    %17 = math.rsqrt %16 : vector<16x1xf32>
    %18 = vector.broadcast %17 : vector<16x1xf32> to vector<16x128xf32>
    %19 = arith.mulf %14, %18 : vector<16x128xf32>
    %20 = vector.extract_strided_slice %0 {offsets = [0, 128], sizes = [16, 128], strides = [1, 1]} : vector<16x512xf32> to vector<16x128xf32>
    %cst_5 = arith.constant dense<0.000000e+00> : vector<16xf32>
    %21 = vector.multi_reduction <add>, %20, %cst_5 [1] : vector<16x128xf32> to vector<16xf32>
    %22 = vector.shape_cast %21 : vector<16xf32> to vector<16x1xf32>
    %cst_6 = arith.constant 1.280000e+02 : f32
    %23 = vector.broadcast %cst_6 : f32 to vector<16x1xf32>
    %24 = arith.divf %22, %23 : vector<16x1xf32>
    %25 = vector.broadcast %24 : vector<16x1xf32> to vector<16x128xf32>
    %26 = arith.subf %20, %25 : vector<16x128xf32>
    %27 = arith.mulf %26, %26 : vector<16x128xf32>
    %cst_7 = arith.constant dense<0.000000e+00> : vector<16xf32>
    %28 = vector.multi_reduction <add>, %27, %cst_7 [1] : vector<16x128xf32> to vector<16xf32>
    %29 = vector.shape_cast %28 : vector<16xf32> to vector<16x1xf32>
    %cst_8 = arith.constant 1.280000e+02 : f32
    %30 = vector.broadcast %cst_8 : f32 to vector<16x1xf32>
    %31 = arith.divf %29, %30 : vector<16x1xf32>
    %32 = vector.broadcast %24 : vector<16x1xf32> to vector<16x128xf32>
    %33 = arith.subf %20, %32 : vector<16x128xf32>
    %cst_9 = arith.constant 9.99999997E-7 : f32
    %34 = vector.broadcast %cst_9 : f32 to vector<16x1xf32>
    %35 = arith.addf %31, %34 : vector<16x1xf32>
    %36 = math.rsqrt %35 : vector<16x1xf32>
    %37 = vector.broadcast %36 : vector<16x1xf32> to vector<16x128xf32>
    %38 = arith.mulf %33, %37 : vector<16x128xf32>
    %39 = vector.extract_strided_slice %0 {offsets = [0, 256], sizes = [16, 128], strides = [1, 1]} : vector<16x512xf32> to vector<16x128xf32>
    %cst_10 = arith.constant dense<0.000000e+00> : vector<16xf32>
    %40 = vector.multi_reduction <add>, %39, %cst_10 [1] : vector<16x128xf32> to vector<16xf32>
    %41 = vector.shape_cast %40 : vector<16xf32> to vector<16x1xf32>
    %cst_11 = arith.constant 1.280000e+02 : f32
    %42 = vector.broadcast %cst_11 : f32 to vector<16x1xf32>
    %43 = arith.divf %41, %42 : vector<16x1xf32>
    %44 = vector.broadcast %43 : vector<16x1xf32> to vector<16x128xf32>
    %45 = arith.subf %39, %44 : vector<16x128xf32>
    %46 = arith.mulf %45, %45 : vector<16x128xf32>
    %cst_12 = arith.constant dense<0.000000e+00> : vector<16xf32>
    %47 = vector.multi_reduction <add>, %46, %cst_12 [1] : vector<16x128xf32> to vector<16xf32>
    %48 = vector.shape_cast %47 : vector<16xf32> to vector<16x1xf32>
    %cst_13 = arith.constant 1.280000e+02 : f32
    %49 = vector.broadcast %cst_13 : f32 to vector<16x1xf32>
    %50 = arith.divf %48, %49 : vector<16x1xf32>
    %51 = vector.broadcast %43 : vector<16x1xf32> to vector<16x128xf32>
    %52 = arith.subf %39, %51 : vector<16x128xf32>
    %cst_14 = arith.constant 9.99999997E-7 : f32
    %53 = vector.broadcast %cst_14 : f32 to vector<16x1xf32>
    %54 = arith.addf %50, %53 : vector<16x1xf32>
    %55 = math.rsqrt %54 : vector<16x1xf32>
    %56 = vector.broadcast %55 : vector<16x1xf32> to vector<16x128xf32>
    %57 = arith.mulf %52, %56 : vector<16x128xf32>
    %58 = vector.extract_strided_slice %0 {offsets = [0, 384], sizes = [16, 128], strides = [1, 1]} : vector<16x512xf32> to vector<16x128xf32>
    %cst_15 = arith.constant dense<0.000000e+00> : vector<16xf32>
    %59 = vector.multi_reduction <add>, %58, %cst_15 [1] : vector<16x128xf32> to vector<16xf32>
    %60 = vector.shape_cast %59 : vector<16xf32> to vector<16x1xf32>
    %cst_16 = arith.constant 1.280000e+02 : f32
    %61 = vector.broadcast %cst_16 : f32 to vector<16x1xf32>
    %62 = arith.divf %60, %61 : vector<16x1xf32>
    %63 = vector.broadcast %62 : vector<16x1xf32> to vector<16x128xf32>
    %64 = arith.subf %58, %63 : vector<16x128xf32>
    %65 = arith.mulf %64, %64 : vector<16x128xf32>
    %cst_17 = arith.constant dense<0.000000e+00> : vector<16xf32>
    %66 = vector.multi_reduction <add>, %65, %cst_17 [1] : vector<16x128xf32> to vector<16xf32>
    %67 = vector.shape_cast %66 : vector<16xf32> to vector<16x1xf32>
    %cst_18 = arith.constant 1.280000e+02 : f32
    %68 = vector.broadcast %cst_18 : f32 to vector<16x1xf32>
    %69 = arith.divf %67, %68 : vector<16x1xf32>
    %70 = vector.broadcast %62 : vector<16x1xf32> to vector<16x128xf32>
    %71 = arith.subf %58, %70 : vector<16x128xf32>
    %cst_19 = arith.constant 9.99999997E-7 : f32
    %72 = vector.broadcast %cst_19 : f32 to vector<16x1xf32>
    %73 = arith.addf %69, %72 : vector<16x1xf32>
    %74 = math.rsqrt %73 : vector<16x1xf32>
    %75 = vector.broadcast %74 : vector<16x1xf32> to vector<16x128xf32>
    %76 = arith.mulf %71, %75 : vector<16x128xf32>
    %77 = tpu.concatenate %19, %38, %57, %76 in 1 : vector<16x128xf32>, vector<16x128xf32>, vector<16x128xf32>, vector<16x128xf32> -> vector<16x512xf32>
    %78 = arith.truncf %77 : vector<16x512xf32> to vector<16x512xbf16>
    %c0_20 = arith.constant 0 : index
    %c0_21 = arith.constant 0 : index
    %79 = vector.load %arg2[%c0_20, %c0_21] : memref<512x256xbf16, #tpu.memory_space<vmem>>, vector<512x256xbf16>
    %cst_22 = arith.constant dense<0.000000e+00> : vector<16x256xf32>
    %80 = tpu.matmul %78, %79, %cst_22 {dimension_numbers = #tpu.dot_dimension_numbers<[1], [0], [0], [1], [0, 0, 1, 1], [], []>} : vector<16x512xbf16>, vector<512x256xbf16>, vector<16x256xf32> -> vector<16x256xf32>
    %c0_23 = arith.constant 0 : index
    %c0_24 = arith.constant 0 : index
    %81 = vector.load %arg3[%c0_23, %c0_24] : memref<1x256xf32, #tpu.memory_space<vmem>>, vector<1x256xf32>
    %82 = vector.broadcast %81 : vector<1x256xf32> to vector<16x256xf32>
    %83 = arith.addf %80, %82 : vector<16x256xf32>
    %c0_25 = arith.constant 0 : index
    %c0_26 = arith.constant 0 : index
    %84 = vector.load %arg4[%c0_25, %c0_26] : memref<16x256xf32, #tpu.memory_space<vmem>>, vector<16x256xf32>
    tpu.vector_store %arg4[%c0_25, %c0_26], %83 {strides = array<i32>} : memref<16x256xf32, #tpu.memory_space<vmem>>, vector<16x256xf32>,
    return
  }
  func.func @transform_0(%arg0: i32) -> (i32, i32) {
    %c0_i32 = arith.constant 0 : i32
    %c0_i32_0 = arith.constant 0 : i32
    return %arg0, %c0_i32 : i32, i32
  }
  func.func @transform_1(%arg0: i32) -> (i32, i32) {
    %c0_i32 = arith.constant 0 : i32
    %c0_i32_0 = arith.constant 0 : i32
    %c0_i32_1 = arith.constant 0 : i32
    return %c0_i32, %c0_i32_0 : i32, i32
  }
  func.func @transform_2(%arg0: i32) -> (i32, i32) {
    %c0_i32 = arith.constant 0 : i32
    %c0_i32_0 = arith.constant 0 : i32
    %c0_i32_1 = arith.constant 0 : i32
    return %c0_i32, %c0_i32_0 : i32, i32
  }
  func.func @transform_3(%arg0: i32) -> (i32, i32) {
    %c0_i32 = arith.constant 0 : i32
    %c0_i32_0 = arith.constant 0 : i32
    return %arg0, %c0_i32 : i32, i32
  }
}

module attributes {stable_mosaic.version = 11 : i64} {
  func.func @dwconv7_kernel(%arg0: i32, %arg1: memref<1x4x4x256xf32, #tpu.memory_space<vmem>>, %arg2: memref<49x1x256xf32, #tpu.memory_space<vmem>>, %arg3: memref<1x256xf32, #tpu.memory_space<vmem>>, %arg4: memref<1x16x256xf32, #tpu.memory_space<vmem>>, %arg5: memref<10x16x256xf32, #tpu.memory_space<vmem>>) attributes {dimension_semantics = [#tpu.dimension_semantics<parallel>], iteration_bounds = array<i64: 2>, scalar_prefetch = 0 : i64, scratch_operands = 1 : i64, tpu.core_type = #tpu.core_type<tc>, window_params = [{transform_indices = @transform_0, window_bounds = array<i64: 1, 4, 4, 256>}, {pipeline_mode = #tpu.pipeline_mode<synchronous>, transform_indices = @transform_1, window_bounds = array<i64: 49, 1, 256>}, {pipeline_mode = #tpu.pipeline_mode<synchronous>, transform_indices = @transform_2, window_bounds = array<i64: 1, 256>}, {transform_indices = @transform_3, window_bounds = array<i64: 1, 16, 256>}]} {
    %cst = arith.constant 0.000000e+00 : f32
    %0 = vector.broadcast %cst : f32 to vector<3x16x256xf32>
    %c0 = arith.constant 0 : index
    %c0_0 = arith.constant 0 : index
    %c0_1 = arith.constant 0 : index
    %1 = vector.load %arg5[%c0, %c0_0, %c0_1] : memref<10x16x256xf32, #tpu.memory_space<vmem>>, vector<3x16x256xf32>
    tpu.vector_store %arg5[%c0, %c0_0, %c0_1], %0 {strides = array<i32>} : memref<10x16x256xf32, #tpu.memory_space<vmem>>, vector<3x16x256xf32>,
    %c7 = arith.constant 7 : index
    %c0_2 = arith.constant 0 : index
    %c0_3 = arith.constant 0 : index
    %2 = vector.load %arg5[%c7, %c0_2, %c0_3] : memref<10x16x256xf32, #tpu.memory_space<vmem>>, vector<3x16x256xf32>
    tpu.vector_store %arg5[%c7, %c0_2, %c0_3], %0 {strides = array<i32>} : memref<10x16x256xf32, #tpu.memory_space<vmem>>, vector<3x16x256xf32>,
    %cst_4 = arith.constant 0.000000e+00 : f32
    %3 = vector.broadcast %cst_4 : f32 to vector<4x3x256xf32>
    %c3 = arith.constant 3 : index
    %c0_5 = arith.constant 0 : index
    %c0_6 = arith.constant 0 : index
    %4 = vector.load %arg5[%c3, %c0_5, %c0_6] : memref<10x16x256xf32, #tpu.memory_space<vmem>>, vector<4x3x256xf32>
    tpu.vector_store %arg5[%c3, %c0_5, %c0_6], %3 {strides = array<i32>} : memref<10x16x256xf32, #tpu.memory_space<vmem>>, vector<4x3x256xf32>,
    %c3_7 = arith.constant 3 : index
    %c7_8 = arith.constant 7 : index
    %c0_9 = arith.constant 0 : index
    %5 = vector.load %arg5[%c3_7, %c7_8, %c0_9] : memref<10x16x256xf32, #tpu.memory_space<vmem>>, vector<4x3x256xf32>
    tpu.vector_store %arg5[%c3_7, %c7_8, %c0_9], %3 {strides = array<i32>} : memref<10x16x256xf32, #tpu.memory_space<vmem>>, vector<4x3x256xf32>,
    %c0_10 = arith.constant 0 : index
    %c0_11 = arith.constant 0 : index
    %c0_12 = arith.constant 0 : index
    %c0_13 = arith.constant 0 : index
    %6 = vector.load %arg1[%c0_10, %c0_11, %c0_12, %c0_13] : memref<1x4x4x256xf32, #tpu.memory_space<vmem>>, vector<1x4x4x256xf32>
    %7 = vector.shape_cast %6 : vector<1x4x4x256xf32> to vector<4x4x256xf32>
    %c3_14 = arith.constant 3 : index
    %c3_15 = arith.constant 3 : index
    %c0_16 = arith.constant 0 : index
    %8 = vector.load %arg5[%c3_14, %c3_15, %c0_16] : memref<10x16x256xf32, #tpu.memory_space<vmem>>, vector<4x4x256xf32>
    tpu.vector_store %arg5[%c3_14, %c3_15, %c0_16], %7 {strides = array<i32>} : memref<10x16x256xf32, #tpu.memory_space<vmem>>, vector<4x4x256xf32>,
    %cst_17 = arith.constant 0.000000e+00 : f32
    %9 = vector.broadcast %cst_17 : f32 to vector<4x4x256xf32>
    %c0_i32 = arith.constant 0 : i32
    %c7_i32 = arith.constant 7 : i32
    %10 = arith.addi %c0_i32, %c7_i32 : i32
    %c1_i32 = arith.constant 1 : i32
    %11 = scf.for %arg6 = %c0_i32 to %10 step %c1_i32 iter_args(%arg7 = %9) -> (vector<4x4x256xf32>)  : i32 {
      %18 = arith.index_cast %arg6 : i32 to index
      %c0_24 = arith.constant 0 : index
      %c0_25 = arith.constant 0 : index
      %19 = vector.load %arg5[%18, %c0_24, %c0_25] : memref<10x16x256xf32, #tpu.memory_space<vmem>>, vector<4x4x256xf32>
      %c7_i32_26 = arith.constant 7 : i32
      %20 = arith.muli %arg6, %c7_i32_26 : i32
      %c0_i32_27 = arith.constant 0 : i32
      %21 = arith.addi %20, %c0_i32_27 : i32
      %22 = arith.index_cast %21 : i32 to index
      %c0_28 = arith.constant 0 : index
      %c0_29 = arith.constant 0 : index
      %23 = vector.load %arg2[%22, %c0_28, %c0_29] : memref<49x1x256xf32, #tpu.memory_space<vmem>>, vector<1x1x256xf32>
      %24 = vector.shape_cast %23 : vector<1x1x256xf32> to vector<1x256xf32>
      %25 = vector.shape_cast %24 : vector<1x256xf32> to vector<1x1x256xf32>
      %26 = vector.broadcast %25 : vector<1x1x256xf32> to vector<4x4x256xf32>
      %27 = arith.mulf %19, %26 : vector<4x4x256xf32>
      %28 = arith.addf %arg7, %27 : vector<4x4x256xf32>
      %29 = arith.index_cast %arg6 : i32 to index
      %c1 = arith.constant 1 : index
      %c0_30 = arith.constant 0 : index
      %30 = vector.load %arg5[%29, %c1, %c0_30] : memref<10x16x256xf32, #tpu.memory_space<vmem>>, vector<4x4x256xf32>
      %c7_i32_31 = arith.constant 7 : i32
      %31 = arith.muli %arg6, %c7_i32_31 : i32
      %c1_i32_32 = arith.constant 1 : i32
      %32 = arith.addi %31, %c1_i32_32 : i32
      %33 = arith.index_cast %32 : i32 to index
      %c0_33 = arith.constant 0 : index
      %c0_34 = arith.constant 0 : index
      %34 = vector.load %arg2[%33, %c0_33, %c0_34] : memref<49x1x256xf32, #tpu.memory_space<vmem>>, vector<1x1x256xf32>
      %35 = vector.shape_cast %34 : vector<1x1x256xf32> to vector<1x256xf32>
      %36 = vector.shape_cast %35 : vector<1x256xf32> to vector<1x1x256xf32>
      %37 = vector.broadcast %36 : vector<1x1x256xf32> to vector<4x4x256xf32>
      %38 = arith.mulf %30, %37 : vector<4x4x256xf32>
      %39 = arith.addf %28, %38 : vector<4x4x256xf32>
      %40 = arith.index_cast %arg6 : i32 to index
      %c2 = arith.constant 2 : index
      %c0_35 = arith.constant 0 : index
      %41 = vector.load %arg5[%40, %c2, %c0_35] : memref<10x16x256xf32, #tpu.memory_space<vmem>>, vector<4x4x256xf32>
      %c7_i32_36 = arith.constant 7 : i32
      %42 = arith.muli %arg6, %c7_i32_36 : i32
      %c2_i32 = arith.constant 2 : i32
      %43 = arith.addi %42, %c2_i32 : i32
      %44 = arith.index_cast %43 : i32 to index
      %c0_37 = arith.constant 0 : index
      %c0_38 = arith.constant 0 : index
      %45 = vector.load %arg2[%44, %c0_37, %c0_38] : memref<49x1x256xf32, #tpu.memory_space<vmem>>, vector<1x1x256xf32>
      %46 = vector.shape_cast %45 : vector<1x1x256xf32> to vector<1x256xf32>
      %47 = vector.shape_cast %46 : vector<1x256xf32> to vector<1x1x256xf32>
      %48 = vector.broadcast %47 : vector<1x1x256xf32> to vector<4x4x256xf32>
      %49 = arith.mulf %41, %48 : vector<4x4x256xf32>
      %50 = arith.addf %39, %49 : vector<4x4x256xf32>
      %51 = arith.index_cast %arg6 : i32 to index
      %c3_39 = arith.constant 3 : index
      %c0_40 = arith.constant 0 : index
      %52 = vector.load %arg5[%51, %c3_39, %c0_40] : memref<10x16x256xf32, #tpu.memory_space<vmem>>, vector<4x4x256xf32>
      %c7_i32_41 = arith.constant 7 : i32
      %53 = arith.muli %arg6, %c7_i32_41 : i32
      %c3_i32 = arith.constant 3 : i32
      %54 = arith.addi %53, %c3_i32 : i32
      %55 = arith.index_cast %54 : i32 to index
      %c0_42 = arith.constant 0 : index
      %c0_43 = arith.constant 0 : index
      %56 = vector.load %arg2[%55, %c0_42, %c0_43] : memref<49x1x256xf32, #tpu.memory_space<vmem>>, vector<1x1x256xf32>
      %57 = vector.shape_cast %56 : vector<1x1x256xf32> to vector<1x256xf32>
      %58 = vector.shape_cast %57 : vector<1x256xf32> to vector<1x1x256xf32>
      %59 = vector.broadcast %58 : vector<1x1x256xf32> to vector<4x4x256xf32>
      %60 = arith.mulf %52, %59 : vector<4x4x256xf32>
      %61 = arith.addf %50, %60 : vector<4x4x256xf32>
      %62 = arith.index_cast %arg6 : i32 to index
      %c4 = arith.constant 4 : index
      %c0_44 = arith.constant 0 : index
      %63 = vector.load %arg5[%62, %c4, %c0_44] : memref<10x16x256xf32, #tpu.memory_space<vmem>>, vector<4x4x256xf32>
      %c7_i32_45 = arith.constant 7 : i32
      %64 = arith.muli %arg6, %c7_i32_45 : i32
      %c4_i32 = arith.constant 4 : i32
      %65 = arith.addi %64, %c4_i32 : i32
      %66 = arith.index_cast %65 : i32 to index
      %c0_46 = arith.constant 0 : index
      %c0_47 = arith.constant 0 : index
      %67 = vector.load %arg2[%66, %c0_46, %c0_47] : memref<49x1x256xf32, #tpu.memory_space<vmem>>, vector<1x1x256xf32>
      %68 = vector.shape_cast %67 : vector<1x1x256xf32> to vector<1x256xf32>
      %69 = vector.shape_cast %68 : vector<1x256xf32> to vector<1x1x256xf32>
      %70 = vector.broadcast %69 : vector<1x1x256xf32> to vector<4x4x256xf32>
      %71 = arith.mulf %63, %70 : vector<4x4x256xf32>
      %72 = arith.addf %61, %71 : vector<4x4x256xf32>
      %73 = arith.index_cast %arg6 : i32 to index
      %c5 = arith.constant 5 : index
      %c0_48 = arith.constant 0 : index
      %74 = vector.load %arg5[%73, %c5, %c0_48] : memref<10x16x256xf32, #tpu.memory_space<vmem>>, vector<4x4x256xf32>
      %c7_i32_49 = arith.constant 7 : i32
      %75 = arith.muli %arg6, %c7_i32_49 : i32
      %c5_i32 = arith.constant 5 : i32
      %76 = arith.addi %75, %c5_i32 : i32
      %77 = arith.index_cast %76 : i32 to index
      %c0_50 = arith.constant 0 : index
      %c0_51 = arith.constant 0 : index
      %78 = vector.load %arg2[%77, %c0_50, %c0_51] : memref<49x1x256xf32, #tpu.memory_space<vmem>>, vector<1x1x256xf32>
      %79 = vector.shape_cast %78 : vector<1x1x256xf32> to vector<1x256xf32>
      %80 = vector.shape_cast %79 : vector<1x256xf32> to vector<1x1x256xf32>
      %81 = vector.broadcast %80 : vector<1x1x256xf32> to vector<4x4x256xf32>
      %82 = arith.mulf %74, %81 : vector<4x4x256xf32>
      %83 = arith.addf %72, %82 : vector<4x4x256xf32>
      %84 = arith.index_cast %arg6 : i32 to index
      %c6 = arith.constant 6 : index
      %c0_52 = arith.constant 0 : index
      %85 = vector.load %arg5[%84, %c6, %c0_52] : memref<10x16x256xf32, #tpu.memory_space<vmem>>, vector<4x4x256xf32>
      %c7_i32_53 = arith.constant 7 : i32
      %86 = arith.muli %arg6, %c7_i32_53 : i32
      %c6_i32 = arith.constant 6 : i32
      %87 = arith.addi %86, %c6_i32 : i32
      %88 = arith.index_cast %87 : i32 to index
      %c0_54 = arith.constant 0 : index
      %c0_55 = arith.constant 0 : index
      %89 = vector.load %arg2[%88, %c0_54, %c0_55] : memref<49x1x256xf32, #tpu.memory_space<vmem>>, vector<1x1x256xf32>
      %90 = vector.shape_cast %89 : vector<1x1x256xf32> to vector<1x256xf32>
      %91 = vector.shape_cast %90 : vector<1x256xf32> to vector<1x1x256xf32>
      %92 = vector.broadcast %91 : vector<1x1x256xf32> to vector<4x4x256xf32>
      %93 = arith.mulf %85, %92 : vector<4x4x256xf32>
      %94 = arith.addf %83, %93 : vector<4x4x256xf32>
      scf.yield %94 : vector<4x4x256xf32>
    }
    %c7_i32_18 = arith.constant 7 : i32
    %c0_19 = arith.constant 0 : index
    %c0_20 = arith.constant 0 : index
    %12 = vector.load %arg3[%c0_19, %c0_20] : memref<1x256xf32, #tpu.memory_space<vmem>>, vector<1x256xf32>
    %13 = vector.shape_cast %12 : vector<1x256xf32> to vector<1x1x256xf32>
    %14 = vector.broadcast %13 : vector<1x1x256xf32> to vector<4x4x256xf32>
    %15 = arith.addf %11, %14 : vector<4x4x256xf32>
    %16 = vector.shape_cast %15 : vector<4x4x256xf32> to vector<1x16x256xf32>
    %c0_21 = arith.constant 0 : index
    %c0_22 = arith.constant 0 : index
    %c0_23 = arith.constant 0 : index
    %17 = vector.load %arg4[%c0_21, %c0_22, %c0_23] : memref<1x16x256xf32, #tpu.memory_space<vmem>>, vector<1x16x256xf32>
    tpu.vector_store %arg4[%c0_21, %c0_22, %c0_23], %16 {strides = array<i32>} : memref<1x16x256xf32, #tpu.memory_space<vmem>>, vector<1x16x256xf32>,
    return
  }
  func.func @transform_0(%arg0: i32) -> (i32, i32, i32, i32) {
    %c0_i32 = arith.constant 0 : i32
    %c0_i32_0 = arith.constant 0 : i32
    %c0_i32_1 = arith.constant 0 : i32
    %c0_i32_2 = arith.constant 0 : i32
    return %arg0, %c0_i32, %c0_i32_0, %c0_i32_1 : i32, i32, i32, i32
  }
  func.func @transform_1(%arg0: i32) -> (i32, i32, i32) {
    %c0_i32 = arith.constant 0 : i32
    %c0_i32_0 = arith.constant 0 : i32
    %c0_i32_1 = arith.constant 0 : i32
    %c0_i32_2 = arith.constant 0 : i32
    return %c0_i32, %c0_i32_0, %c0_i32_1 : i32, i32, i32
  }
  func.func @transform_2(%arg0: i32) -> (i32, i32) {
    %c0_i32 = arith.constant 0 : i32
    %c0_i32_0 = arith.constant 0 : i32
    %c0_i32_1 = arith.constant 0 : i32
    return %c0_i32, %c0_i32_0 : i32, i32
  }
  func.func @transform_3(%arg0: i32) -> (i32, i32, i32) {
    %c0_i32 = arith.constant 0 : i32
    %c0_i32_0 = arith.constant 0 : i32
    %c0_i32_1 = arith.constant 0 : i32
    return %arg0, %c0_i32, %c0_i32_0 : i32, i32, i32
  }
}

module attributes {stable_mosaic.version = 11 : i64} {
  func.func @block_mlp_kernel(%arg0: i32, %arg1: memref<16x256xf32, #tpu.memory_space<vmem>>, %arg2: memref<16x256xf32, #tpu.memory_space<vmem>>, %arg3: memref<256x1024xbf16, #tpu.memory_space<vmem>>, %arg4: memref<1x1024xf32, #tpu.memory_space<vmem>>, %arg5: memref<1024x256xbf16, #tpu.memory_space<vmem>>, %arg6: memref<1x256xf32, #tpu.memory_space<vmem>>, %arg7: memref<16x256xf32, #tpu.memory_space<vmem>>) attributes {dimension_semantics = [#tpu.dimension_semantics<parallel>], iteration_bounds = array<i64: 2>, scalar_prefetch = 0 : i64, scratch_operands = 0 : i64, tpu.core_type = #tpu.core_type<tc>, window_params = [{transform_indices = @transform_0, window_bounds = array<i64: 16, 256>}, {transform_indices = @transform_1, window_bounds = array<i64: 16, 256>}, {pipeline_mode = #tpu.pipeline_mode<synchronous>, transform_indices = @transform_2, window_bounds = array<i64: 256, 1024>}, {pipeline_mode = #tpu.pipeline_mode<synchronous>, transform_indices = @transform_3, window_bounds = array<i64: 1, 1024>}, {pipeline_mode = #tpu.pipeline_mode<synchronous>, transform_indices = @transform_4, window_bounds = array<i64: 1024, 256>}, {pipeline_mode = #tpu.pipeline_mode<synchronous>, transform_indices = @transform_5, window_bounds = array<i64: 1, 256>}, {transform_indices = @transform_6, window_bounds = array<i64: 16, 256>}]} {
    %c0 = arith.constant 0 : index
    %c0_0 = arith.constant 0 : index
    %0 = vector.load %arg1[%c0, %c0_0] : memref<16x256xf32, #tpu.memory_space<vmem>>, vector<16x256xf32>
    %cst = arith.constant dense<0.000000e+00> : vector<16xf32>
    %1 = vector.multi_reduction <add>, %0, %cst [1] : vector<16x256xf32> to vector<16xf32>
    %2 = vector.shape_cast %1 : vector<16xf32> to vector<16x1xf32>
    %cst_1 = arith.constant 2.560000e+02 : f32
    %3 = vector.broadcast %cst_1 : f32 to vector<16x1xf32>
    %4 = arith.divf %2, %3 : vector<16x1xf32>
    %5 = vector.broadcast %4 : vector<16x1xf32> to vector<16x256xf32>
    %6 = arith.subf %0, %5 : vector<16x256xf32>
    %7 = arith.mulf %6, %6 : vector<16x256xf32>
    %cst_2 = arith.constant dense<0.000000e+00> : vector<16xf32>
    %8 = vector.multi_reduction <add>, %7, %cst_2 [1] : vector<16x256xf32> to vector<16xf32>
    %9 = vector.shape_cast %8 : vector<16xf32> to vector<16x1xf32>
    %cst_3 = arith.constant 2.560000e+02 : f32
    %10 = vector.broadcast %cst_3 : f32 to vector<16x1xf32>
    %11 = arith.divf %9, %10 : vector<16x1xf32>
    %12 = vector.broadcast %4 : vector<16x1xf32> to vector<16x256xf32>
    %13 = arith.subf %0, %12 : vector<16x256xf32>
    %cst_4 = arith.constant 9.99999997E-7 : f32
    %14 = vector.broadcast %cst_4 : f32 to vector<16x1xf32>
    %15 = arith.addf %11, %14 : vector<16x1xf32>
    %16 = math.rsqrt %15 : vector<16x1xf32>
    %17 = vector.broadcast %16 : vector<16x1xf32> to vector<16x256xf32>
    %18 = arith.mulf %13, %17 : vector<16x256xf32>
    %19 = arith.truncf %18 : vector<16x256xf32> to vector<16x256xbf16>
    %c0_5 = arith.constant 0 : index
    %c0_6 = arith.constant 0 : index
    %20 = vector.load %arg3[%c0_5, %c0_6] : memref<256x1024xbf16, #tpu.memory_space<vmem>>, vector<256x1024xbf16>
    %cst_7 = arith.constant dense<0.000000e+00> : vector<16x1024xf32>
    %21 = tpu.matmul %19, %20, %cst_7 {dimension_numbers = #tpu.dot_dimension_numbers<[1], [0], [0], [1], [0, 0, 1, 1], [], []>} : vector<16x256xbf16>, vector<256x1024xbf16>, vector<16x1024xf32> -> vector<16x1024xf32>
    %c0_8 = arith.constant 0 : index
    %c0_9 = arith.constant 0 : index
    %22 = vector.load %arg4[%c0_8, %c0_9] : memref<1x1024xf32, #tpu.memory_space<vmem>>, vector<1x1024xf32>
    %23 = vector.broadcast %22 : vector<1x1024xf32> to vector<16x1024xf32>
    %24 = arith.addf %21, %23 : vector<16x1024xf32>
    %cst_10 = arith.constant 5.000000e-01 : f32
    %25 = vector.broadcast %cst_10 : f32 to vector<16x1024xf32>
    %26 = arith.mulf %25, %24 : vector<16x1024xf32>
    %cst_11 = arith.constant 0.707106769 : f32
    %27 = vector.broadcast %cst_11 : f32 to vector<16x1024xf32>
    %28 = arith.mulf %24, %27 : vector<16x1024xf32>
    %29 = math.absf %28 : vector<16x1024xf32>
    %cst_12 = arith.constant 0.327591091 : f32
    %30 = vector.broadcast %cst_12 : f32 to vector<16x1024xf32>
    %31 = arith.mulf %30, %29 : vector<16x1024xf32>
    %cst_13 = arith.constant 1.000000e+00 : f32
    %32 = vector.broadcast %cst_13 : f32 to vector<16x1024xf32>
    %33 = arith.addf %32, %31 : vector<16x1024xf32>
    %34 = tpu.reciprocal %33 {approx = true} : vector<16x1024xf32> -> vector<16x1024xf32>
    %cst_14 = arith.constant 1.06140542 : f32
    %35 = vector.broadcast %cst_14 : f32 to vector<16x1024xf32>
    %36 = arith.mulf %34, %35 : vector<16x1024xf32>
    %cst_15 = arith.constant -1.45315206 : f32
    %37 = vector.broadcast %cst_15 : f32 to vector<16x1024xf32>
    %38 = arith.addf %37, %36 : vector<16x1024xf32>
    %39 = arith.mulf %34, %38 : vector<16x1024xf32>
    %cst_16 = arith.constant 1.42141378 : f32
    %40 = vector.broadcast %cst_16 : f32 to vector<16x1024xf32>
    %41 = arith.addf %40, %39 : vector<16x1024xf32>
    %42 = arith.mulf %34, %41 : vector<16x1024xf32>
    %cst_17 = arith.constant -0.284496725 : f32
    %43 = vector.broadcast %cst_17 : f32 to vector<16x1024xf32>
    %44 = arith.addf %43, %42 : vector<16x1024xf32>
    %45 = arith.mulf %34, %44 : vector<16x1024xf32>
    %cst_18 = arith.constant 0.254829586 : f32
    %46 = vector.broadcast %cst_18 : f32 to vector<16x1024xf32>
    %47 = arith.addf %46, %45 : vector<16x1024xf32>
    %48 = arith.mulf %34, %47 : vector<16x1024xf32>
    %cst_19 = arith.constant 0.000000e+00 : f32
    %49 = vector.broadcast %cst_19 : f32 to vector<16x1024xf32>
    %50 = arith.subf %49, %29 : vector<16x1024xf32>
    %51 = arith.mulf %50, %29 : vector<16x1024xf32>
    %52 = math.exp %51 : vector<16x1024xf32>
    %53 = arith.mulf %48, %52 : vector<16x1024xf32>
    %cst_20 = arith.constant 1.000000e+00 : f32
    %54 = vector.broadcast %cst_20 : f32 to vector<16x1024xf32>
    %55 = arith.subf %54, %53 : vector<16x1024xf32>
    %cst_21 = arith.constant 0.000000e+00 : f32
    %56 = vector.broadcast %cst_21 : f32 to vector<16x1024xf32>
    %57 = arith.cmpf oge, %28, %56 : vector<16x1024xf32>
    %cst_22 = arith.constant 0.000000e+00 : f32
    %58 = vector.broadcast %cst_22 : f32 to vector<16x1024xf32>
    %59 = arith.subf %58, %55 : vector<16x1024xf32>
    %60 = arith.select %57, %55, %59 : vector<16x1024xi1>, vector<16x1024xf32>
    %cst_23 = arith.constant 1.000000e+00 : f32
    %61 = vector.broadcast %cst_23 : f32 to vector<16x1024xf32>
    %62 = arith.addf %61, %60 : vector<16x1024xf32>
    %63 = arith.mulf %26, %62 : vector<16x1024xf32>
    %64 = arith.truncf %63 : vector<16x1024xf32> to vector<16x1024xbf16>
    %c0_24 = arith.constant 0 : index
    %c0_25 = arith.constant 0 : index
    %65 = vector.load %arg5[%c0_24, %c0_25] : memref<1024x256xbf16, #tpu.memory_space<vmem>>, vector<1024x256xbf16>
    %cst_26 = arith.constant dense<0.000000e+00> : vector<16x256xf32>
    %66 = tpu.matmul %64, %65, %cst_26 {dimension_numbers = #tpu.dot_dimension_numbers<[1], [0], [0], [1], [0, 0, 1, 1], [], []>} : vector<16x1024xbf16>, vector<1024x256xbf16>, vector<16x256xf32> -> vector<16x256xf32>
    %c0_27 = arith.constant 0 : index
    %c0_28 = arith.constant 0 : index
    %67 = vector.load %arg6[%c0_27, %c0_28] : memref<1x256xf32, #tpu.memory_space<vmem>>, vector<1x256xf32>
    %68 = vector.broadcast %67 : vector<1x256xf32> to vector<16x256xf32>
    %69 = arith.addf %66, %68 : vector<16x256xf32>
    %c0_29 = arith.constant 0 : index
    %c0_30 = arith.constant 0 : index
    %70 = vector.load %arg2[%c0_29, %c0_30] : memref<16x256xf32, #tpu.memory_space<vmem>>, vector<16x256xf32>
    %71 = arith.addf %70, %69 : vector<16x256xf32>
    %c0_31 = arith.constant 0 : index
    %c0_32 = arith.constant 0 : index
    %72 = vector.load %arg7[%c0_31, %c0_32] : memref<16x256xf32, #tpu.memory_space<vmem>>, vector<16x256xf32>
    tpu.vector_store %arg7[%c0_31, %c0_32], %71 {strides = array<i32>} : memref<16x256xf32, #tpu.memory_space<vmem>>, vector<16x256xf32>,
    return
  }
  func.func @transform_0(%arg0: i32) -> (i32, i32) {
    %c0_i32 = arith.constant 0 : i32
    %c0_i32_0 = arith.constant 0 : i32
    return %arg0, %c0_i32 : i32, i32
  }
  func.func @transform_1(%arg0: i32) -> (i32, i32) {
    %c0_i32 = arith.constant 0 : i32
    %c0_i32_0 = arith.constant 0 : i32
    return %arg0, %c0_i32 : i32, i32
  }
  func.func @transform_2(%arg0: i32) -> (i32, i32) {
    %c0_i32 = arith.constant 0 : i32
    %c0_i32_0 = arith.constant 0 : i32
    %c0_i32_1 = arith.constant 0 : i32
    return %c0_i32, %c0_i32_0 : i32, i32
  }
  func.func @transform_3(%arg0: i32) -> (i32, i32) {
    %c0_i32 = arith.constant 0 : i32
    %c0_i32_0 = arith.constant 0 : i32
    %c0_i32_1 = arith.constant 0 : i32
    return %c0_i32, %c0_i32_0 : i32, i32
  }
  func.func @transform_4(%arg0: i32) -> (i32, i32) {
    %c0_i32 = arith.constant 0 : i32
    %c0_i32_0 = arith.constant 0 : i32
    %c0_i32_1 = arith.constant 0 : i32
    return %c0_i32, %c0_i32_0 : i32, i32
  }
  func.func @transform_5(%arg0: i32) -> (i32, i32) {
    %c0_i32 = arith.constant 0 : i32
    %c0_i32_0 = arith.constant 0 : i32
    %c0_i32_1 = arith.constant 0 : i32
    return %c0_i32, %c0_i32_0 : i32, i32
  }
  func.func @transform_6(%arg0: i32) -> (i32, i32) {
    %c0_i32 = arith.constant 0 : i32
    %c0_i32_0 = arith.constant 0 : i32
    return %arg0, %c0_i32 : i32, i32
  }
}

module attributes {stable_mosaic.version = 11 : i64} {
  func.func @head_kernel(%arg0: i32, %arg1: memref<1x16x256xf32, #tpu.memory_space<vmem>>, %arg2: memref<256x128xbf16, #tpu.memory_space<vmem>>, %arg3: memref<1x128xf32, #tpu.memory_space<vmem>>, %arg4: memref<1x1x128xf32, #tpu.memory_space<vmem>>) attributes {dimension_semantics = [#tpu.dimension_semantics<parallel>], iteration_bounds = array<i64: 2>, scalar_prefetch = 0 : i64, scratch_operands = 0 : i64, tpu.core_type = #tpu.core_type<tc>, window_params = [{transform_indices = @transform_0, window_bounds = array<i64: 1, 16, 256>}, {pipeline_mode = #tpu.pipeline_mode<synchronous>, transform_indices = @transform_1, window_bounds = array<i64: 256, 128>}, {pipeline_mode = #tpu.pipeline_mode<synchronous>, transform_indices = @transform_2, window_bounds = array<i64: 1, 128>}, {transform_indices = @transform_3, window_bounds = array<i64: 1, 1, 128>}]} {
    %c0 = arith.constant 0 : index
    %c0_0 = arith.constant 0 : index
    %c0_1 = arith.constant 0 : index
    %0 = vector.load %arg1[%c0, %c0_0, %c0_1] : memref<1x16x256xf32, #tpu.memory_space<vmem>>, vector<1x16x256xf32>
    %1 = vector.shape_cast %0 : vector<1x16x256xf32> to vector<16x256xf32>
    %cst = arith.constant dense<0.000000e+00> : vector<256xf32>
    %2 = vector.multi_reduction <add>, %1, %cst [0] : vector<16x256xf32> to vector<256xf32>
    %3 = vector.shape_cast %2 : vector<256xf32> to vector<1x256xf32>
    %cst_2 = arith.constant 1.600000e+01 : f32
    %4 = vector.broadcast %cst_2 : f32 to vector<1x256xf32>
    %5 = arith.divf %3, %4 : vector<1x256xf32>
    %cst_3 = arith.constant dense<0.000000e+00> : vector<1xf32>
    %6 = vector.multi_reduction <add>, %5, %cst_3 [1] : vector<1x256xf32> to vector<1xf32>
    %7 = vector.shape_cast %6 : vector<1xf32> to vector<1x1xf32>
    %cst_4 = arith.constant 2.560000e+02 : f32
    %8 = vector.broadcast %cst_4 : f32 to vector<1x1xf32>
    %9 = arith.divf %7, %8 : vector<1x1xf32>
    %10 = vector.broadcast %9 : vector<1x1xf32> to vector<1x256xf32>
    %11 = arith.subf %5, %10 : vector<1x256xf32>
    %12 = arith.mulf %11, %11 : vector<1x256xf32>
    %cst_5 = arith.constant dense<0.000000e+00> : vector<1xf32>
    %13 = vector.multi_reduction <add>, %12, %cst_5 [1] : vector<1x256xf32> to vector<1xf32>
    %14 = vector.shape_cast %13 : vector<1xf32> to vector<1x1xf32>
    %cst_6 = arith.constant 2.560000e+02 : f32
    %15 = vector.broadcast %cst_6 : f32 to vector<1x1xf32>
    %16 = arith.divf %14, %15 : vector<1x1xf32>
    %17 = vector.broadcast %9 : vector<1x1xf32> to vector<1x256xf32>
    %18 = arith.subf %5, %17 : vector<1x256xf32>
    %cst_7 = arith.constant 9.99999997E-7 : f32
    %19 = vector.broadcast %cst_7 : f32 to vector<1x1xf32>
    %20 = arith.addf %16, %19 : vector<1x1xf32>
    %21 = math.rsqrt %20 : vector<1x1xf32>
    %22 = vector.broadcast %21 : vector<1x1xf32> to vector<1x256xf32>
    %23 = arith.mulf %18, %22 : vector<1x256xf32>
    %24 = arith.truncf %23 : vector<1x256xf32> to vector<1x256xbf16>
    %c0_8 = arith.constant 0 : index
    %c0_9 = arith.constant 0 : index
    %25 = vector.load %arg2[%c0_8, %c0_9] : memref<256x128xbf16, #tpu.memory_space<vmem>>, vector<256x128xbf16>
    %cst_10 = arith.constant dense<0.000000e+00> : vector<1x128xf32>
    %26 = tpu.matmul %24, %25, %cst_10 {dimension_numbers = #tpu.dot_dimension_numbers<[1], [0], [0], [1], [0, 0, 1, 1], [], []>} : vector<1x256xbf16>, vector<256x128xbf16>, vector<1x128xf32> -> vector<1x128xf32>
    %c0_11 = arith.constant 0 : index
    %c0_12 = arith.constant 0 : index
    %27 = vector.load %arg3[%c0_11, %c0_12] : memref<1x128xf32, #tpu.memory_space<vmem>>, vector<1x128xf32>
    %28 = arith.addf %26, %27 : vector<1x128xf32>
    %cst_13 = arith.constant dense<0xFF800000> : vector<1xf32>
    %29 = vector.multi_reduction <maximumf>, %28, %cst_13 [1] : vector<1x128xf32> to vector<1xf32>
    %30 = vector.shape_cast %29 : vector<1xf32> to vector<1x1xf32>
    %31 = vector.broadcast %30 : vector<1x1xf32> to vector<1x128xf32>
    %32 = arith.subf %28, %31 : vector<1x128xf32>
    %33 = math.exp %32 : vector<1x128xf32>
    %cst_14 = arith.constant dense<0.000000e+00> : vector<1xf32>
    %34 = vector.multi_reduction <add>, %33, %cst_14 [1] : vector<1x128xf32> to vector<1xf32>
    %35 = vector.shape_cast %34 : vector<1xf32> to vector<1x1xf32>
    %36 = vector.broadcast %35 : vector<1x1xf32> to vector<1x128xf32>
    %37 = arith.divf %33, %36 : vector<1x128xf32>
    %c0_15 = arith.constant 0 : index
    %c0_16 = arith.constant 0 : index
    %c0_17 = arith.constant 0 : index
    %38 = vector.load %arg4[%c0_15, %c0_16, %c0_17] : memref<1x1x128xf32, #tpu.memory_space<vmem>>, vector<1x1x128xf32>
    %39 = vector.shape_cast %38 : vector<1x1x128xf32> to vector<1x128xf32>
    %40 = vector.shape_cast %37 : vector<1x128xf32> to vector<1x1x128xf32>
    tpu.vector_store %arg4[%c0_15, %c0_16, %c0_17], %40 {strides = array<i32>} : memref<1x1x128xf32, #tpu.memory_space<vmem>>, vector<1x1x128xf32>,
    return
  }
  func.func @transform_0(%arg0: i32) -> (i32, i32, i32) {
    %c0_i32 = arith.constant 0 : i32
    %c0_i32_0 = arith.constant 0 : i32
    %c0_i32_1 = arith.constant 0 : i32
    return %arg0, %c0_i32, %c0_i32_0 : i32, i32, i32
  }
  func.func @transform_1(%arg0: i32) -> (i32, i32) {
    %c0_i32 = arith.constant 0 : i32
    %c0_i32_0 = arith.constant 0 : i32
    %c0_i32_1 = arith.constant 0 : i32
    return %c0_i32, %c0_i32_0 : i32, i32
  }
  func.func @transform_2(%arg0: i32) -> (i32, i32) {
    %c0_i32 = arith.constant 0 : i32
    %c0_i32_0 = arith.constant 0 : i32
    %c0_i32_1 = arith.constant 0 : i32
    return %c0_i32, %c0_i32_0 : i32, i32
  }
  func.func @transform_3(%arg0: i32) -> (i32, i32, i32) {
    %c0_i32 = arith.constant 0 : i32
    %c0_i32_0 = arith.constant 0 : i32
    %c0_i32_1 = arith.constant 0 : i32
    return %arg0, %c0_i32, %c0_i32_0 : i32, i32, i32
  }
}

</mosaic_0001>

<llo_original>
// kernel: convnext_forward.7
$region0: #{convnext_forward.7}
  #allocation0 [shape = 'u32[]', space=smem, size = 0x4, offset = 0x4, fixed_abs, tag = 'smem constant byte address 0x4 - core index']
  #allocation1 [shape = 'u32[72,128]{1,0:T(1,128)}', space=vmem, size = 0x9000, scoped, tag = 'internal scratch']
  %s0 = inlined_call_operand.vmem [shape: f32[128,48], index: 0, kind: input, shape index: {}]
  %s1 = inlined_call_operand.vmem [shape: bf16[48,128], index: 1, kind: input, shape index: {}]
  %s2 = inlined_call_operand.vmem [shape: f32[1,128], index: 2, kind: input, shape index: {}]
  %s3 = inlined_call_operand.vmem [shape: f32[1,128], index: 3, kind: input, shape index: {}]
  %s4 = inlined_call_operand.vmem [shape: f32[1,128], index: 4, kind: input, shape index: {}]
  %s5 = inlined_call_operand.vmem [shape: f32[128,128], index: 5, kind: output, shape index: {}]
  %s6 = sld [smem:[#allocation0]]
  $region53: #{convnext_forward.7} parent=0
    _
  %s8 = ssub.s32 1, %s6
  %s9 = scalar_select 0, %s8, %s6
  loop: start=0, step=1, limit=4
  $region2: #{convnext_forward.7} parent=0 // loop_pre_header
    _
  $region3: #{convnext_forward.7} parent=0 // loop_header
    %s11 = sphi 0, %s15
    %p12 = scmp.ge.s32.totalorder %s11, 4
    %s21 = sphi 0, %s23
    %s24 = sphi 0, %s21
    %s25 = sphi 0, %s24
    %s41 = sphi 0, %s25
    %s45 = sphi 0, %s45
    %s47 = sphi 0, %s45
    %s48 = sphi 0, %s47
    %s62 = sphi 0, %s48
    %s66 = sphi 0, %s66
    %s68 = sphi 0, %s66
    %s69 = sphi 0, %s68
    %s83 = sphi 0, %s69
    %s87 = sphi 0, %s87
    %s89 = sphi 0, %s87
    %s90 = sphi 0, %s89
    %s104 = sphi 0, %s90
    %s108 = sphi 0, %s108
    %s110 = sphi 0, %s108
    %s111 = sphi 0, %s110
    %s125 = sphi 0, %s111
    %s131 = sphi 0, %s133
    %s134 = sphi 0, %s131
    %s135 = sphi 0, %s134
    %s151 = sphi 0, %s135
  $region4: #{convnext_forward.7} parent=0 // loop_header_branch
    %14 = sbr.rel (%p12) target = $region8
  $region5: #{convnext_forward.7} parent=0 // loop_body
    %s16 = ssub.s32 %s11, 1
    %s17 = ssub.s32 %s11, 2
    %s18 = sadd.s32 %s11, 1
    %s19 = ssub.s32 %s11, %s18
    %p20 = scmp.eq.s32.totalorder %s19, 0
    %s22 = sadd.s32 %s21, 1
    %s23 = scalar_select %p20, %s21, %s22
    %p26 = pneg %p20
    %p27 = scmp.eq.s32.totalorder %s11, 1
    %p28 = por %p26, %p27
    %p29 = scmp.ne.s32.totalorder %s21, %s24
    %p30 = scmp.eq.s32.totalorder %s11, 0
    %p31 = por %p29, %p30
    %p32 = scmp.ne.s32.totalorder %s21, %s24
    %p33 = scmp.eq.s32.totalorder %s16, 1
    %p34 = por %p32, %p33
    %p35 = scmp.ne.s32.totalorder %s24, %s25
    %p36 = scmp.eq.s32.totalorder %s16, 0
    %p37 = por %p35, %p36
    %p38 = scmp.ne.s32.totalorder %s24, %s25
    %p39 = scmp.eq.s32.totalorder %s17, 1
    %p40 = por %p38, %p39
    %p42 = scmp.ne.s32.totalorder %s25, %s41
    %p43 = scmp.eq.s32.totalorder %s17, 0
    %p44 = por %p42, %p43
    %s46 = sadd.s32 %s45, 1
    %p49 = scmp.eq.s32.totalorder %s11, 1
    %p50 = scmp.ne.s32.totalorder %s45, %s47
    %p51 = scmp.eq.s32.totalorder %s11, 0
    %p52 = por %p50, %p51
    %p53 = scmp.ne.s32.totalorder %s45, %s47
    %p54 = scmp.eq.s32.totalorder %s16, 1
    %p55 = por %p53, %p54
    %p56 = scmp.ne.s32.totalorder %s47, %s48
    %p57 = scmp.eq.s32.totalorder %s16, 0
    %p58 = por %p56, %p57
    %p59 = scmp.ne.s32.totalorder %s47, %s48
    %p60 = scmp.eq.s32.totalorder %s17, 1
    %p61 = por %p59, %p60
    %p63 = scmp.ne.s32.totalorder %s48, %s62
    %p64 = scmp.eq.s32.totalorder %s17, 0
    %p65 = por %p63, %p64
    %s67 = sadd.s32 %s66, 1
    %p70 = scmp.eq.s32.totalorder %s11, 1
    %p71 = scmp.ne.s32.totalorder %s66, %s68
    %p72 = scmp.eq.s32.totalorder %s11, 0
    %p73 = por %p71, %p72
    %p74 = scmp.ne.s32.totalorder %s66, %s68
    %p75 = scmp.eq.s32.totalorder %s16, 1
    %p76 = por %p74, %p75
    %p77 = scmp.ne.s32.totalorder %s68, %s69
    %p78 = scmp.eq.s32.totalorder %s16, 0
    %p79 = por %p77, %p78
    %p80 = scmp.ne.s32.totalorder %s68, %s69
    %p81 = scmp.eq.s32.totalorder %s17, 1
    %p82 = por %p80, %p81
    %p84 = scmp.ne.s32.totalorder %s69, %s83
    %p85 = scmp.eq.s32.totalorder %s17, 0
    %p86 = por %p84, %p85
    %s88 = sadd.s32 %s87, 1
    %p91 = scmp.eq.s32.totalorder %s11, 1
    %p92 = scmp.ne.s32.totalorder %s87, %s89
    %p93 = scmp.eq.s32.totalorder %s11, 0
    %p94 = por %p92, %p93
    %p95 = scmp.ne.s32.totalorder %s87, %s89
    %p96 = scmp.eq.s32.totalorder %s16, 1
    %p97 = por %p95, %p96
    %p98 = scmp.ne.s32.totalorder %s89, %s90
    %p99 = scmp.eq.s32.totalorder %s16, 0
    %p100 = por %p98, %p99
    %p101 = scmp.ne.s32.totalorder %s89, %s90
    %p102 = scmp.eq.s32.totalorder %s17, 1
    %p103 = por %p101, %p102
    %p105 = scmp.ne.s32.totalorder %s90, %s104
    %p106 = scmp.eq.s32.totalorder %s17, 0
    %p107 = por %p105, %p106
    %s109 = sadd.s32 %s108, 1
    %p112 = scmp.eq.s32.totalorder %s11, 1
    %p113 = scmp.ne.s32.totalorder %s108, %s110
    %p114 = scmp.eq.s32.totalorder %s11, 0
    %p115 = por %p113, %p114
    %p116 = scmp.ne.s32.totalorder %s108, %s110
    %p117 = scmp.eq.s32.totalorder %s16, 1
    %p118 = por %p116, %p117
    %p119 = scmp.ne.s32.totalorder %s110, %s111
    %p120 = scmp.eq.s32.totalorder %s16, 0
    %p121 = por %p119, %p120
    %p122 = scmp.ne.s32.totalorder %s110, %s111
    %p123 = scmp.eq.s32.totalorder %s17, 1
    %p124 = por %p122, %p123
    %p126 = scmp.ne.s32.totalorder %s111, %s125
    %p127 = scmp.eq.s32.totalorder %s17, 0
    %p128 = por %p126, %p127
    %s129 = ssub.s32 %s11, %s18
    %p130 = scmp.eq.s32.totalorder %s129, 0
    %s132 = sadd.s32 %s131, 1
    %s133 = scalar_select %p130, %s131, %s132
    %p136 = pneg %p130
    %p137 = scmp.eq.s32.totalorder %s11, 1
    %p138 = por %p136, %p137
    %p139 = scmp.ne.s32.totalorder %s131, %s134
    %p140 = scmp.eq.s32.totalorder %s11, 0
    %p141 = por %p139, %p140
    %p142 = scmp.ne.s32.totalorder %s131, %s134
    %p143 = scmp.eq.s32.totalorder %s16, 1
    %p144 = por %p142, %p143
    %p145 = scmp.ne.s32.totalorder %s134, %s135
    %p146 = scmp.eq.s32.totalorder %s16, 0
    %p147 = por %p145, %p146
    %p148 = scmp.ne.s32.totalorder %s134, %s135
    %p149 = scmp.eq.s32.totalorder %s17, 1
    %p150 = por %p148, %p149
    %p152 = scmp.ne.s32.totalorder %s135, %s151
    %p153 = scmp.eq.s32.totalorder %s17, 0
    %p154 = por %p152, %p153
    %p155 = scmp.le.s32.totalorder 1, %s11
    %p156 = scmp.lt.s32.totalorder %s11, 3
    %p157 = pnand %p155, %p156
    %p158 = pneg %p157
    // Predicated region
    $region9: #{convnext_forward.7} parent=5 // pred_check
      _
    $region10: #{convnext_forward.7} parent=5 // pred_check_branch
      %160 = sbr.rel (%p157) target = $region12
    $region11: #{convnext_forward.7} parent=5 // pred_region
      %s161 = ssub.s32 %s11, 1
      // Predicated region
      $region13: #{convnext_forward.7} parent=11 // pred_check
        %p162 = pneg %p58
      $region14: #{convnext_forward.7} parent=11 // pred_check_branch
        %164 = sbr.rel (%p162) target = $region16
      $region15: #{convnext_forward.7} parent=11 // pred_region
        _
      $region16: #{convnext_forward.7} parent=11 // pred_fallthru
        _
      // Predicated region
      $region17: #{convnext_forward.7} parent=11 // pred_check
        %p165 = pneg %p79
      $region18: #{convnext_forward.7} parent=11 // pred_check_branch
        %167 = sbr.rel (%p165) target = $region20
      $region19: #{convnext_forward.7} parent=11 // pred_region
        _
      $region20: #{convnext_forward.7} parent=11 // pred_fallthru
        _
      // Predicated region
      $region21: #{convnext_forward.7} parent=11 // pred_check
        %p168 = pneg %p100
      $region22: #{convnext_forward.7} parent=11 // pred_check_branch
        %170 = sbr.rel (%p168) target = $region24
      $region23: #{convnext_forward.7} parent=11 // pred_region
        _
      $region24: #{convnext_forward.7} parent=11 // pred_fallthru
        _
      // Predicated region
      $region25: #{convnext_forward.7} parent=11 // pred_check
        %p171 = pneg %p121
      $region26: #{convnext_forward.7} parent=11 // pred_check_branch
        %173 = sbr.rel (%p171) target = $region28
      $region27: #{convnext_forward.7} parent=11 // pred_region
        _
      $region28: #{convnext_forward.7} parent=11 // pred_fallthru
        _
    $region12: #{convnext_forward.7} parent=5 // pred_fallthru
      _
    %p174 = scmp.lt.s32.totalorder %s11, 2
    // Predicated region
    $region29: #{convnext_forward.7} parent=5 // pred_check
      %p175 = pneg %p174
    $region30: #{convnext_forward.7} parent=5 // pred_check_branch
      %177 = sbr.rel (%p175) target = $region32
    $region31: #{convnext_forward.7} parent=5 // pred_region
      // Predicated region
      $region33: #{convnext_forward.7} parent=31 // pred_check
        %p178 = pneg %p31
      $region34: #{convnext_forward.7} parent=31 // pred_check_branch
        %180 = sbr.rel (%p178) target = $region36
      $region35: #{convnext_forward.7} parent=31 // pred_region
        %s181 = smul.u32 8, %s11
        %p182 = scmp.lt.s32.totalorder %s181, 15
        %s183 = scalar_select %p182, %s181, 15
        %s184 = smul.addr %s183, 8
        %s185 = scalar_lea.vmem %s0, %s184
        %s186 = smul.u32 8, %s11
      $region36: #{convnext_forward.7} parent=31 // pred_fallthru
        _
    $region32: #{convnext_forward.7} parent=5 // pred_fallthru
      _
    %p187 = scmp.le.s32.totalorder 1, %s11
    %p188 = scmp.lt.s32.totalorder %s11, 3
    %p189 = pnand %p187, %p188
    %p190 = pneg %p189
    // Predicated region
    $region37: #{convnext_forward.7} parent=5 // pred_check
      _
    $region38: #{convnext_forward.7} parent=5 // pred_check_branch
      %192 = sbr.rel (%p189) target = $region40
    $region39: #{convnext_forward.7} parent=5 // pred_region
      %s193 = ssub.s32 %s11, 1
      %s194 = smul.u32 8, %s16
      %p195 = scmp.lt.s32.totalorder %s194, 15
      %s196 = scalar_select %p195, %s194, 15
      %s197 = smul.addr %s196, 8
      %s198 = scalar_lea.vmem %s0, %s197
      %p199 = pneg %p37
      %p200 = pneg %p34
      %p201 = pneg %p58
      %p202 = pneg %p55
      %p203 = pneg %p79
      %p204 = pneg %p76
      %p205 = pneg %p100
      %p206 = pneg %p97
      %p207 = pneg %p121
      %p208 = pneg %p118
      %p209 = pneg %p147
      %p210 = pneg %p144
      %s211 = smul.u32 8, %s16
      %p212 = scmp.lt.s32.totalorder %s211, 15
      %s213 = scalar_select %p212, %s211, 15
      %s214 = smul.addr %s213, 8
      %s215 = scalar_lea.vmem %s5, %s214
      %s216 = smul.u32 8, %s16
      %p217 = scmp.lt.s32.totalorder %s216, 15
      %s218 = scalar_select %p217, %s216, 15
      %s219 = smul.addr %s218, 8
      %s220 = scalar_lea.vmem %s0, %s219
      %s221 = smul.u32 8, %s16
      %s222 = smul.u32 8, %s16
      %p223 = scmp.lt.s32.totalorder %s222, 15
      %s224 = scalar_select %p223, %s222, 15
      %s225 = smul.addr %s224, 8
      %s226 = scalar_lea.vmem %s5, %s225
      %s227 = smul.u32 8, %s16
      %v229 = vld [vmem:[%s220] sm:$0xff]
      %v230 = vld [vmem:[%s220 + $0x8] sm:$0xff]
      %v231 = vld [vmem:[%s220 + $0x10] sm:$0xff]
      %v232 = vld [vmem:[%s220 + $0x18] sm:$0xff]
      %v233 = vld [vmem:[%s220 + $0x20] sm:$0xff]
      %v234 = vld [vmem:[%s220 + $0x28] sm:$0xff]
      %v235 = vld [vmem:[%s220 + $0x30] sm:$0xff]
      %v236 = vld [vmem:[%s220 + $0x38] sm:$0xff]
      %v237 = vpack.c.bf16 %v230, %v229
      %v238 = vpack.c.bf16 %v232, %v231
      %v239 = vpack.c.bf16 %v234, %v233
      %v240 = vpack.c.bf16 %v236, %v235
      %v241 = vld [vmem:[%s1] sm:$0xf]
      %v242 = vld [vmem:[%s1 + $0x4] sm:$0xf]
      %v243 = vld [vmem:[%s1 + $0x8] sm:$0xf]
      %v244 = vld [vmem:[%s1 + $0xc] sm:$0xf]
      %v245 = vld [vmem:[%s1 + $0x10] sm:$0xf]
      %v246 = vld [vmem:[%s1 + $0x14] sm:$0xf]
      %v247 = vld [vmem:[%s2] sm:$0x1]
      %v249 = vperm.slane %v247, 0
      %v257 = vunpack.c.l.b16 %v241
      %v258 = vunpack.c.l.b16 %v242
      %v259 = vunpack.c.l.b16 %v243
      %v260 = vunpack.c.l.b16 %v244
      %v261 = vunpack.c.l.b16 %v245
      %v262 = vunpack.c.l.b16 %v246
      %v263 = vpack.c.b16 %v258, %v257
      %v264 = vpack.c.b16 %v260, %v259
      %v265 = vpack.c.b16 %v262, %v261
      %vm269 = vcmask 392192
      %v271 = vsel %vm269, %v237, 0
      %v274 = vsel %vm269, %v238, 0
      %v277 = vsel %vm269, %v239, 0
      %v280 = vsel %vm269, %v240, 0
      %282 = vmatpush.bf16.msra.mxu0 0
      %283 = vmatpush.bf16.msra.mxu0 0
      %284 = vmatpush.bf16.msra.mxu0 0
      %285 = vmatpush.bf16.msra.mxu0 0
      %286 = vmatpush.bf16.msra.mxu0 0
      %287 = vmatpush.bf16.msra.mxu0 %v265
      %288 = vmatpush.bf16.msra.mxu0 %v264
      %289 = vmatpush.bf16.msra.mxu0 %v263
      %290 = vmatmul.bf16.gmra.mxu0 %v271
      %v291 = vpop.f32.mrf.mxu0
      %v292 = vadd.f32 %v249, %v291
      %v293 = vpop.f32.mrf.mxu0
      %v294 = vadd.f32 %v249, %v293
      %295 = vmatmul.bf16.gmra.mxu0 %v274
      %v296 = vpop.f32.mrf.mxu0
      %v297 = vadd.f32 %v249, %v296
      %v298 = vpop.f32.mrf.mxu0
      %v299 = vadd.f32 %v249, %v298
      %300 = vmatmul.bf16.gmra.mxu0 %v277
      %v301 = vpop.f32.mrf.mxu0
      %v302 = vadd.f32 %v249, %v301
      %v303 = vpop.f32.mrf.mxu0
      %v304 = vadd.f32 %v249, %v303
      %305 = vmatmul.bf16.gmra.mxu0 %v280
      %v306 = vpop.f32.mrf.mxu0
      %v307 = vadd.f32 %v249, %v306
      %v308 = vpop.f32.mrf.mxu0
      %v309 = vadd.f32 %v249, %v308
      %310 = vdwg.mxu0
      %311 = vadd.xlane.f32.xlu0 %v292
      %v312 = vpop.xlane.xlu0 %311
      %313 = vadd.xlane.f32.xlu0 %v294
      %v314 = vpop.xlane.xlu0 %313
      %315 = vadd.xlane.f32.xlu0 %v297
      %v316 = vpop.xlane.xlu0 %315
      %317 = vadd.xlane.f32.xlu0 %v299
      %v318 = vpop.xlane.xlu0 %317
      %319 = vadd.xlane.f32.xlu0 %v302
      %v320 = vpop.xlane.xlu0 %319
      %321 = vadd.xlane.f32.xlu0 %v304
      %v322 = vpop.xlane.xlu0 %321
      %323 = vadd.xlane.f32.xlu0 %v307
      %v324 = vpop.xlane.xlu0 %323
      %325 = vadd.xlane.f32.xlu0 %v309
      %v326 = vpop.xlane.xlu0 %325
      %v327 = vrcp.pop 128.0
      %v328 = vmul.f32 128.0, %v327
      %v329 = vsub.f32 1.0, %v328
      %v330 = vmul.f32 %v327, %v329
      %v331 = vadd.f32 %v327, %v330
      %vm332 = vweird.f32 %v327
      %v333 = vsel %vm332, %v327, %v331
      %v334 = vmul.f32 %v312, %v333
      %v335 = vmul.f32 %v314, %v333
      %v336 = vmul.f32 %v316, %v333
      %v337 = vmul.f32 %v318, %v333
      %v338 = vmul.f32 %v320, %v333
      %v339 = vmul.f32 %v322, %v333
      %v340 = vmul.f32 %v324, %v333
      %v341 = vmul.f32 %v326, %v333
      %v342 = vsub.f32 %v292, %v334
      %v343 = vsub.f32 %v294, %v335
      %v344 = vsub.f32 %v297, %v336
      %v345 = vsub.f32 %v299, %v337
      %v346 = vsub.f32 %v302, %v338
      %v347 = vsub.f32 %v304, %v339
      %v348 = vsub.f32 %v307, %v340
      %v349 = vsub.f32 %v309, %v341
      %v350 = vmul.f32 %v342, %v342
      %v351 = vmul.f32 %v343, %v343
      %v352 = vmul.f32 %v344, %v344
      %v353 = vmul.f32 %v345, %v345
      %v354 = vmul.f32 %v346, %v346
      %v355 = vmul.f32 %v347, %v347
      %v356 = vmul.f32 %v348, %v348
      %v357 = vmul.f32 %v349, %v349
      %358 = vadd.xlane.f32.xlu0 %v350
      %v359 = vpop.xlane.xlu0 %358
      %360 = vadd.xlane.f32.xlu0 %v351
      %v361 = vpop.xlane.xlu0 %360
      %362 = vadd.xlane.f32.xlu0 %v352
      %v363 = vpop.xlane.xlu0 %362
      %364 = vadd.xlane.f32.xlu0 %v353
      %v365 = vpop.xlane.xlu0 %364
      %366 = vadd.xlane.f32.xlu0 %v354
      %v367 = vpop.xlane.xlu0 %366
      %368 = vadd.xlane.f32.xlu0 %v355
      %v369 = vpop.xlane.xlu0 %368
      %370 = vadd.xlane.f32.xlu0 %v356
      %v371 = vpop.xlane.xlu0 %370
      %372 = vadd.xlane.f32.xlu0 %v357
      %v373 = vpop.xlane.xlu0 %372
      %v374 = vmul.f32 %v359, %v333
      %v375 = vmul.f32 %v361, %v333
      %v376 = vmul.f32 %v363, %v333
      %v377 = vmul.f32 %v365, %v333
      %v378 = vmul.f32 %v367, %v333
      %v379 = vmul.f32 %v369, %v333
      %v380 = vmul.f32 %v371, %v333
      %v381 = vmul.f32 %v373, %v333
      %v382 = vadd.f32 %v374, 1e-06
      %v383 = vadd.f32 %v375, 1e-06
      %v384 = vadd.f32 %v376, 1e-06
      %v385 = vadd.f32 %v377, 1e-06
      %v386 = vadd.f32 %v378, 1e-06
      %v387 = vadd.f32 %v379, 1e-06
      %v388 = vadd.f32 %v380, 1e-06
      %v389 = vadd.f32 %v381, 1e-06
      %v390 = vrsqrt.pop %v382
      %v391 = vmul.f32 %v390, %v382
      %v392 = vmul.f32 %v391, %v390
      %v393 = vmul.f32 0.5, %v392
      %v394 = vsub.f32 1.5, %v393
      %v395 = vmul.f32 %v390, %v394
      %vm396 = vweird.f32 %v382
      %vm397 = vweird.f32 %v390
      %vm398 = vmor %vm396, %vm397
      %v399 = vsel %vm398, %v390, %v395
      %v400 = vrsqrt.pop %v383
      %v401 = vmul.f32 %v400, %v383
      %v402 = vmul.f32 %v401, %v400
      %v403 = vmul.f32 0.5, %v402
      %v404 = vsub.f32 1.5, %v403
      %v405 = vmul.f32 %v400, %v404
      %vm406 = vweird.f32 %v383
      %vm407 = vweird.f32 %v400
      %vm408 = vmor %vm406, %vm407
      %v409 = vsel %vm408, %v400, %v405
      %v410 = vrsqrt.pop %v384
      %v411 = vmul.f32 %v410, %v384
      %v412 = vmul.f32 %v411, %v410
      %v413 = vmul.f32 0.5, %v412
      %v414 = vsub.f32 1.5, %v413
      %v415 = vmul.f32 %v410, %v414
      %vm416 = vweird.f32 %v384
      %vm417 = vweird.f32 %v410
      %vm418 = vmor %vm416, %vm417
      %v419 = vsel %vm418, %v410, %v415
      %v420 = vrsqrt.pop %v385
      %v421 = vmul.f32 %v420, %v385
      %v422 = vmul.f32 %v421, %v420
      %v423 = vmul.f32 0.5, %v422
      %v424 = vsub.f32 1.5, %v423
      %v425 = vmul.f32 %v420, %v424
      %vm426 = vweird.f32 %v385
      %vm427 = vweird.f32 %v420
      %vm428 = vmor %vm426, %vm427
      %v429 = vsel %vm428, %v420, %v425
      %v430 = vrsqrt.pop %v386
      %v431 = vmul.f32 %v430, %v386
      %v432 = vmul.f32 %v431, %v430
      %v433 = vmul.f32 0.5, %v432
      %v434 = vsub.f32 1.5, %v433
      %v435 = vmul.f32 %v430, %v434
      %vm436 = vweird.f32 %v386
      %vm437 = vweird.f32 %v430
      %vm438 = vmor %vm436, %vm437
      %v439 = vsel %vm438, %v430, %v435
      %v440 = vrsqrt.pop %v387
      %v441 = vmul.f32 %v440, %v387
      %v442 = vmul.f32 %v441, %v440
      %v443 = vmul.f32 0.5, %v442
      %v444 = vsub.f32 1.5, %v443
      %v445 = vmul.f32 %v440, %v444
      %vm446 = vweird.f32 %v387
      %vm447 = vweird.f32 %v440
      %vm448 = vmor %vm446, %vm447
      %v449 = vsel %vm448, %v440, %v445
      %v450 = vrsqrt.pop %v388
      %v451 = vmul.f32 %v450, %v388
      %v452 = vmul.f32 %v451, %v450
      %v453 = vmul.f32 0.5, %v452
      %v454 = vsub.f32 1.5, %v453
      %v455 = vmul.f32 %v450, %v454
      %vm456 = vweird.f32 %v388
      %vm457 = vweird.f32 %v450
      %vm458 = vmor %vm456, %vm457
      %v459 = vsel %vm458, %v450, %v455
      %v460 = vrsqrt.pop %v389
      %v461 = vmul.f32 %v460, %v389
      %v462 = vmul.f32 %v461, %v460
      %v463 = vmul.f32 0.5, %v462
      %v464 = vsub.f32 1.5, %v463
      %v465 = vmul.f32 %v460, %v464
      %vm466 = vweird.f32 %v389
      %vm467 = vweird.f32 %v460
      %vm468 = vmor %vm466, %vm467
      %v469 = vsel %vm468, %v460, %v465
      %v470 = vmul.f32 %v342, %v399
      %v471 = vmul.f32 %v343, %v409
      %v472 = vmul.f32 %v344, %v419
      %v473 = vmul.f32 %v345, %v429
      %v474 = vmul.f32 %v346, %v439
      %v475 = vmul.f32 %v347, %v449
      %v476 = vmul.f32 %v348, %v459
      %v477 = vmul.f32 %v349, %v469
      %v478 = vld [vmem:[%s3] sm:$0x1]
      %v480 = vperm.slane %v478, 0
      %v482 = vmul.f32 %v470, %v480
      %v483 = vmul.f32 %v471, %v480
      %v484 = vmul.f32 %v472, %v480
      %v485 = vmul.f32 %v473, %v480
      %v486 = vmul.f32 %v474, %v480
      %v487 = vmul.f32 %v475, %v480
      %v488 = vmul.f32 %v476, %v480
      %v489 = vmul.f32 %v477, %v480
      %v490 = vld [vmem:[%s4] sm:$0x1]
      %v492 = vperm.slane %v490, 0
      %v494 = vadd.f32 %v482, %v492
      %v495 = vadd.f32 %v483, %v492
      %v496 = vadd.f32 %v484, %v492
      %v497 = vadd.f32 %v485, %v492
      %v498 = vadd.f32 %v486, %v492
      %v499 = vadd.f32 %v487, %v492
      %v500 = vadd.f32 %v488, %v492
      %v501 = vadd.f32 %v489, %v492
      %502 = vst [vmem:[%s226] sm:$0xff] %v494
      %503 = vst [vmem:[%s226 + $0x8] sm:$0xff] %v495
      %504 = vst [vmem:[%s226 + $0x10] sm:$0xff] %v496
      %505 = vst [vmem:[%s226 + $0x18] sm:$0xff] %v497
      %506 = vst [vmem:[%s226 + $0x20] sm:$0xff] %v498
      %507 = vst [vmem:[%s226 + $0x28] sm:$0xff] %v499
      %508 = vst [vmem:[%s226 + $0x30] sm:$0xff] %v500
      %509 = vst [vmem:[%s226 + $0x38] sm:$0xff] %v501
      %s510 = smul.u32 8, %s16
      %p511 = scmp.lt.s32.totalorder %s510, 15
      %s512 = scalar_select %p511, %s510, 15
      %s513 = smul.addr %s512, 8
      %s514 = scalar_lea.vmem %s5, %s513
      // Predicated region
      $region41: #{convnext_forward.7} parent=39 // pred_check
        %p515 = pneg %p144
      $region42: #{convnext_forward.7} parent=39 // pred_check_branch
        %517 = sbr.rel (%p515) target = $region44
      $region43: #{convnext_forward.7} parent=39 // pred_region
        %s518 = smul.u32 8, %s16
      $region44: #{convnext_forward.7} parent=39 // pred_fallthru
        _
    $region40: #{convnext_forward.7} parent=5 // pred_fallthru
      _
    %p519 = scmp.le.s32.totalorder 2, %s11
    // Predicated region
    $region45: #{convnext_forward.7} parent=5 // pred_check
      %p520 = pneg %p519
    $region46: #{convnext_forward.7} parent=5 // pred_check_branch
      %522 = sbr.rel (%p520) target = $region48
    $region47: #{convnext_forward.7} parent=5 // pred_region
      %s523 = ssub.s32 %s11, 2
      // Predicated region
      $region49: #{convnext_forward.7} parent=47 // pred_check
        %p524 = pneg %p150
      $region50: #{convnext_forward.7} parent=47 // pred_check_branch
        %526 = sbr.rel (%p524) target = $region52
      $region51: #{convnext_forward.7} parent=47 // pred_region
        %s527 = smul.u32 8, %s17
        %p528 = scmp.lt.s32.totalorder %s527, 15
        %s529 = scalar_select %p528, %s527, 15
        %s530 = smul.addr %s529, 8
        %s531 = scalar_lea.vmem %s5, %s530
      $region52: #{convnext_forward.7} parent=47 // pred_fallthru
        _
    $region48: #{convnext_forward.7} parent=5 // pred_fallthru
      _
  $region6: #{convnext_forward.7} parent=0 // loop_footer
    %s15 = sadd.s32 1, %s11
  $region7: #{convnext_forward.7} parent=0 // loop_footer_branch
    %10 = sbr.rel target = $region3
  $region8: #{convnext_forward.7} parent=0 // loop_exit
    _

// kernel: convnext_forward.8
$region0: #{convnext_forward.8}
  #allocation0 [shape = 'u32[]', space=smem, size = 0x4, offset = 0x4, fixed_abs, tag = 'smem constant byte address 0x4 - core index']
  #allocation1 [shape = 'u32[72,128]{1,0:T(1,128)}', space=vmem, size = 0x9000, scoped, tag = 'internal scratch']
  #allocation2 [shape = 'f32[14,16,128]{2,1,0:T(8,128)}', space=vmem, size = 0x1c000, scoped, tag = 'scratch operand']
  %s0 = inlined_call_operand.vmem [shape: f32[2,8,8,128], index: 0, kind: input, shape index: {}]
  %s1 = inlined_call_operand.vmem [shape: f32[49,1,128], index: 1, kind: input, shape index: {}]
  %s2 = inlined_call_operand.vmem [shape: f32[1,128], index: 2, kind: input, shape index: {}]
  %s3 = inlined_call_operand.vmem [shape: f32[2,64,128], index: 3, kind: output, shape index: {}]
  %s4 = sld [smem:[#allocation0]]
  $region52: #{convnext_forward.8} parent=0
    _
  %s6 = ssub.s32 1, %s4
  %s7 = scalar_select 0, %s6, %s4
  loop: start=0, step=1, limit=4
  $region2: #{convnext_forward.8} parent=0 // loop_pre_header
    _
  $region3: #{convnext_forward.8} parent=0 // loop_header
    %s9 = sphi 0, %s13
    %p10 = scmp.ge.s32.totalorder %s9, 4
    %s19 = sphi 0, %s21
    %s22 = sphi 0, %s19
    %s23 = sphi 0, %s22
    %s39 = sphi 0, %s23
    %s43 = sphi 0, %s43
    %s45 = sphi 0, %s43
    %s46 = sphi 0, %s45
    %s60 = sphi 0, %s46
    %s64 = sphi 0, %s64
    %s66 = sphi 0, %s64
    %s67 = sphi 0, %s66
    %s81 = sphi 0, %s67
    %s87 = sphi 0, %s89
    %s90 = sphi 0, %s87
    %s91 = sphi 0, %s90
    %s107 = sphi 0, %s91
  $region4: #{convnext_forward.8} parent=0 // loop_header_branch
    %12 = sbr.rel (%p10) target = $region8
  $region5: #{convnext_forward.8} parent=0 // loop_body
    %s14 = ssub.s32 %s9, 1
    %s15 = ssub.s32 %s9, 2
    %s16 = sadd.s32 %s9, 1
    %s17 = ssub.s32 %s9, %s16
    %p18 = scmp.eq.s32.totalorder %s17, 0
    %s20 = sadd.s32 %s19, 1
    %s21 = scalar_select %p18, %s19, %s20
    %p24 = pneg %p18
    %p25 = scmp.eq.s32.totalorder %s9, 1
    %p26 = por %p24, %p25
    %p27 = scmp.ne.s32.totalorder %s19, %s22
    %p28 = scmp.eq.s32.totalorder %s9, 0
    %p29 = por %p27, %p28
    %p30 = scmp.ne.s32.totalorder %s19, %s22
    %p31 = scmp.eq.s32.totalorder %s14, 1
    %p32 = por %p30, %p31
    %p33 = scmp.ne.s32.totalorder %s22, %s23
    %p34 = scmp.eq.s32.totalorder %s14, 0
    %p35 = por %p33, %p34
    %p36 = scmp.ne.s32.totalorder %s22, %s23
    %p37 = scmp.eq.s32.totalorder %s15, 1
    %p38 = por %p36, %p37
    %p40 = scmp.ne.s32.totalorder %s23, %s39
    %p41 = scmp.eq.s32.totalorder %s15, 0
    %p42 = por %p40, %p41
    %s44 = sadd.s32 %s43, 1
    %p47 = scmp.eq.s32.totalorder %s9, 1
    %p48 = scmp.ne.s32.totalorder %s43, %s45
    %p49 = scmp.eq.s32.totalorder %s9, 0
    %p50 = por %p48, %p49
    %p51 = scmp.ne.s32.totalorder %s43, %s45
    %p52 = scmp.eq.s32.totalorder %s14, 1
    %p53 = por %p51, %p52
    %p54 = scmp.ne.s32.totalorder %s45, %s46
    %p55 = scmp.eq.s32.totalorder %s14, 0
    %p56 = por %p54, %p55
    %p57 = scmp.ne.s32.totalorder %s45, %s46
    %p58 = scmp.eq.s32.totalorder %s15, 1
    %p59 = por %p57, %p58
    %p61 = scmp.ne.s32.totalorder %s46, %s60
    %p62 = scmp.eq.s32.totalorder %s15, 0
    %p63 = por %p61, %p62
    %s65 = sadd.s32 %s64, 1
    %p68 = scmp.eq.s32.totalorder %s9, 1
    %p69 = scmp.ne.s32.totalorder %s64, %s66
    %p70 = scmp.eq.s32.totalorder %s9, 0
    %p71 = por %p69, %p70
    %p72 = scmp.ne.s32.totalorder %s64, %s66
    %p73 = scmp.eq.s32.totalorder %s14, 1
    %p74 = por %p72, %p73
    %p75 = scmp.ne.s32.totalorder %s66, %s67
    %p76 = scmp.eq.s32.totalorder %s14, 0
    %p77 = por %p75, %p76
    %p78 = scmp.ne.s32.totalorder %s66, %s67
    %p79 = scmp.eq.s32.totalorder %s15, 1
    %p80 = por %p78, %p79
    %p82 = scmp.ne.s32.totalorder %s67, %s81
    %p83 = scmp.eq.s32.totalorder %s15, 0
    %p84 = por %p82, %p83
    %s85 = ssub.s32 %s9, %s16
    %p86 = scmp.eq.s32.totalorder %s85, 0
    %s88 = sadd.s32 %s87, 1
    %s89 = scalar_select %p86, %s87, %s88
    %p92 = pneg %p86
    %p93 = scmp.eq.s32.totalorder %s9, 1
    %p94 = por %p92, %p93
    %p95 = scmp.ne.s32.totalorder %s87, %s90
    %p96 = scmp.eq.s32.totalorder %s9, 0
    %p97 = por %p95, %p96
    %p98 = scmp.ne.s32.totalorder %s87, %s90
    %p99 = scmp.eq.s32.totalorder %s14, 1
    %p100 = por %p98, %p99
    %p101 = scmp.ne.s32.totalorder %s90, %s91
    %p102 = scmp.eq.s32.totalorder %s14, 0
    %p103 = por %p101, %p102
    %p104 = scmp.ne.s32.totalorder %s90, %s91
    %p105 = scmp.eq.s32.totalorder %s15, 1
    %p106 = por %p104, %p105
    %p108 = scmp.ne.s32.totalorder %s91, %s107
    %p109 = scmp.eq.s32.totalorder %s15, 0
    %p110 = por %p108, %p109
    %p111 = scmp.le.s32.totalorder 1, %s9
    %p112 = scmp.lt.s32.totalorder %s9, 3
    %p113 = pnand %p111, %p112
    %p114 = pneg %p113
    // Predicated region
    $region9: #{convnext_forward.8} parent=5 // pred_check
      _
    $region10: #{convnext_forward.8} parent=5 // pred_check_branch
      %116 = sbr.rel (%p113) target = $region12
    $region11: #{convnext_forward.8} parent=5 // pred_region
      %s117 = ssub.s32 %s9, 1
      // Predicated region
      $region13: #{convnext_forward.8} parent=11 // pred_check
        %p118 = pneg %p56
      $region14: #{convnext_forward.8} parent=11 // pred_check_branch
        %120 = sbr.rel (%p118) target = $region16
      $region15: #{convnext_forward.8} parent=11 // pred_region
        _
      $region16: #{convnext_forward.8} parent=11 // pred_fallthru
        _
      // Predicated region
      $region17: #{convnext_forward.8} parent=11 // pred_check
        %p121 = pneg %p77
      $region18: #{convnext_forward.8} parent=11 // pred_check_branch
        %123 = sbr.rel (%p121) target = $region20
      $region19: #{convnext_forward.8} parent=11 // pred_region
        _
      $region20: #{convnext_forward.8} parent=11 // pred_fallthru
        _
    $region12: #{convnext_forward.8} parent=5 // pred_fallthru
      _
    %p124 = scmp.lt.s32.totalorder %s9, 2
    // Predicated region
    $region21: #{convnext_forward.8} parent=5 // pred_check
      %p125 = pneg %p124
    $region22: #{convnext_forward.8} parent=5 // pred_check_branch
      %127 = sbr.rel (%p125) target = $region24
    $region23: #{convnext_forward.8} parent=5 // pred_region
      // Predicated region
      $region25: #{convnext_forward.8} parent=23 // pred_check
        %p128 = pneg %p29
      $region26: #{convnext_forward.8} parent=23 // pred_check_branch
        %130 = sbr.rel (%p128) target = $region28
      $region27: #{convnext_forward.8} parent=23 // pred_region
        %p131 = scmp.lt.s32.totalorder %s9, 1
        %s132 = scalar_select %p131, %s9, 1
        %s133 = smul.addr %s132, 8
        %s134 = smul.addr %s133, 8
        %s135 = scalar_lea.vmem %s0, %s134
      $region28: #{convnext_forward.8} parent=23 // pred_fallthru
        _
    $region24: #{convnext_forward.8} parent=5 // pred_fallthru
      _
    %p136 = scmp.le.s32.totalorder 1, %s9
    %p137 = scmp.lt.s32.totalorder %s9, 3
    %p138 = pnand %p136, %p137
    %p139 = pneg %p138
    // Predicated region
    $region29: #{convnext_forward.8} parent=5 // pred_check
      _
    $region30: #{convnext_forward.8} parent=5 // pred_check_branch
      %141 = sbr.rel (%p138) target = $region32
    $region31: #{convnext_forward.8} parent=5 // pred_region
      %s142 = ssub.s32 %s9, 1
      %p143 = scmp.lt.s32.totalorder %s14, 1
      %s144 = scalar_select %p143, %s14, 1
      %s145 = smul.addr %s144, 8
      %s146 = smul.addr %s145, 8
      %s147 = scalar_lea.vmem %s0, %s146
      %p148 = pneg %p35
      %p149 = pneg %p32
      %p150 = pneg %p56
      %p151 = pneg %p53
      %p152 = pneg %p77
      %p153 = pneg %p74
      %p154 = pneg %p103
      %p155 = pneg %p100
      %p156 = scmp.lt.s32.totalorder %s14, 1
      %s157 = scalar_select %p156, %s14, 1
      %s158 = smul.addr %s157, 8
      %s159 = smul.addr %s158, 8
      %s160 = scalar_lea.vmem %s3, %s159
      %p161 = scmp.lt.s32.totalorder %s14, 1
      %s162 = scalar_select %p161, %s14, 1
      %s163 = smul.addr %s162, 8
      %s164 = smul.addr %s163, 8
      %s165 = scalar_lea.vmem %s0, %s164
      %p166 = scmp.lt.s32.totalorder %s14, 1
      %s167 = scalar_select %p166, %s14, 1
      %s168 = smul.addr %s167, 8
      %s169 = smul.addr %s168, 8
      %s170 = scalar_lea.vmem %s3, %s169
      %171 = vst [vmem:[#allocation2] sm:$0xff] 0.0
      %172 = vst [vmem:[#allocation2 + $0x8] sm:$0xff] 0.0
      %173 = vst [vmem:[#allocation2 + $0x10] sm:$0xff] 0.0
      %174 = vst [vmem:[#allocation2 + $0x18] sm:$0xff] 0.0
      %175 = vst [vmem:[#allocation2 + $0x20] sm:$0xff] 0.0
      %176 = vst [vmem:[#allocation2 + $0x28] sm:$0xff] 0.0
      %s177 = scalar_lea.vmem [#allocation2], 176
      %178 = vst [vmem:[%s177] sm:$0xff] 0.0
      %179 = vst [vmem:[%s177 + $0x8] sm:$0xff] 0.0
      %180 = vst [vmem:[%s177 + $0x10] sm:$0xff] 0.0
      %181 = vst [vmem:[%s177 + $0x18] sm:$0xff] 0.0
      %182 = vst [vmem:[%s177 + $0x20] sm:$0xff] 0.0
      %183 = vst [vmem:[%s177 + $0x28] sm:$0xff] 0.0
      %s184 = scalar_lea.vmem [#allocation2], 48
      %185 = vst [vmem:[%s184] sm:$0x7] 0.0
      %186 = vst [vmem:[%s184 + $0x10] sm:$0x7] 0.0
      %187 = vst [vmem:[%s184 + $0x20] sm:$0x7] 0.0
      %188 = vst [vmem:[%s184 + $0x30] sm:$0x7] 0.0
      %189 = vst [vmem:[%s184 + $0x40] sm:$0x7] 0.0
      %190 = vst [vmem:[%s184 + $0x50] sm:$0x7] 0.0
      %191 = vst [vmem:[%s184 + $0x60] sm:$0x7] 0.0
      %192 = vst [vmem:[%s184 + $0x70] sm:$0x7] 0.0
      %193 = vst [vmem:[%s184 + $0xb] sm:$0x7] 0.0
      %194 = vst [vmem:[%s184 + $0x1b] sm:$0x7] 0.0
      %195 = vst [vmem:[%s184 + $0x2b] sm:$0x7] 0.0
      %196 = vst [vmem:[%s184 + $0x3b] sm:$0x7] 0.0
      %197 = vst [vmem:[%s184 + $0x4b] sm:$0x7] 0.0
      %198 = vst [vmem:[%s184 + $0x5b] sm:$0x7] 0.0
      %199 = vst [vmem:[%s184 + $0x6b] sm:$0x7] 0.0
      %200 = vst [vmem:[%s184 + $0x7b] sm:$0x7] 0.0
      %v201 = vld [vmem:[%s165] sm:$0xff]
      %v202 = vld [vmem:[%s165 + $0x8] sm:$0xff]
      %v203 = vld [vmem:[%s165 + $0x10] sm:$0xff]
      %v204 = vld [vmem:[%s165 + $0x18] sm:$0xff]
      %v205 = vld [vmem:[%s165 + $0x20] sm:$0xff]
      %v206 = vld [vmem:[%s165 + $0x28] sm:$0xff]
      %v207 = vld [vmem:[%s165 + $0x30] sm:$0xff]
      %v208 = vld [vmem:[%s165 + $0x38] sm:$0xff]
      %209 = vst [vmem:[%s184 + $0x3] sm:$0xff] %v201
      %210 = vst [vmem:[%s184 + $0x13] sm:$0xff] %v202
      %211 = vst [vmem:[%s184 + $0x23] sm:$0xff] %v203
      %212 = vst [vmem:[%s184 + $0x33] sm:$0xff] %v204
      %213 = vst [vmem:[%s184 + $0x43] sm:$0xff] %v205
      %214 = vst [vmem:[%s184 + $0x53] sm:$0xff] %v206
      %215 = vst [vmem:[%s184 + $0x63] sm:$0xff] %v207
      %216 = vst [vmem:[%s184 + $0x73] sm:$0xff] %v208
      loop: start=0, step=1, limit=7
      $region33: #{convnext_forward.8} parent=31 // loop_pre_header
        _
      $region34: #{convnext_forward.8} parent=31 // loop_header
        %s218 = sphi 0, %s222
        %p219 = scmp.ge.s32.totalorder %s218, 7
        %v223 = vphi 0.0, %v435
        %v224 = vphi 0.0, %v436
        %v225 = vphi 0.0, %v437
        %v226 = vphi 0.0, %v438
        %v227 = vphi 0.0, %v439
        %v228 = vphi 0.0, %v440
        %v229 = vphi 0.0, %v441
        %v230 = vphi 0.0, %v442
      $region35: #{convnext_forward.8} parent=31 // loop_header_branch
        %221 = sbr.rel (%p219) target = $region39
      $region36: #{convnext_forward.8} parent=31 // loop_body
        %s231 = smul.u32 %s218, 16
        %s232 = scalar_lea.vmem [#allocation2], %s231
        %v233 = vld [vmem:[%s232] sm:$0xff]
        %v234 = vld [vmem:[%s232 + $0x10] sm:$0xff]
        %v235 = vld [vmem:[%s232 + $0x20] sm:$0xff]
        %v236 = vld [vmem:[%s232 + $0x30] sm:$0xff]
        %v237 = vld [vmem:[%s232 + $0x40] sm:$0xff]
        %v238 = vld [vmem:[%s232 + $0x50] sm:$0xff]
        %v239 = vld [vmem:[%s232 + $0x60] sm:$0xff]
        %v240 = vld [vmem:[%s232 + $0x70] sm:$0xff]
        %s241 = smul.u32 %s218, 7
        %s242 = scalar_lea.vmem %s1, %s241
        %v243 = vld [vmem:[%s242] sm:$0x1]
        %v245 = vperm.slane %v243, 0
        %v247 = vmul.f32 %v233, %v245
        %v248 = vmul.f32 %v234, %v245
        %v249 = vmul.f32 %v235, %v245
        %v250 = vmul.f32 %v236, %v245
        %v251 = vmul.f32 %v237, %v245
        %v252 = vmul.f32 %v238, %v245
        %v253 = vmul.f32 %v239, %v245
        %v254 = vmul.f32 %v240, %v245
        %v255 = vadd.f32 %v223, %v247
        %v256 = vadd.f32 %v224, %v248
        %v257 = vadd.f32 %v225, %v249
        %v258 = vadd.f32 %v226, %v250
        %v259 = vadd.f32 %v227, %v251
        %v260 = vadd.f32 %v228, %v252
        %v261 = vadd.f32 %v229, %v253
        %v262 = vadd.f32 %v230, %v254
        %v263 = vld [vmem:[%s232 + $0x1] sm:$0xff]
        %v264 = vld [vmem:[%s232 + $0x11] sm:$0xff]
        %v265 = vld [vmem:[%s232 + $0x21] sm:$0xff]
        %v266 = vld [vmem:[%s232 + $0x31] sm:$0xff]
        %v267 = vld [vmem:[%s232 + $0x41] sm:$0xff]
        %v268 = vld [vmem:[%s232 + $0x51] sm:$0xff]
        %v269 = vld [vmem:[%s232 + $0x61] sm:$0xff]
        %v270 = vld [vmem:[%s232 + $0x71] sm:$0xff]
        %s271 = sadd.s32 %s241, 1
        %s272 = scalar_lea.vmem %s1, %s271
        %v273 = vld [vmem:[%s272] sm:$0x1]
        %v275 = vperm.slane %v273, 0
        %v277 = vmul.f32 %v263, %v275
        %v278 = vmul.f32 %v264, %v275
        %v279 = vmul.f32 %v265, %v275
        %v280 = vmul.f32 %v266, %v275
        %v281 = vmul.f32 %v267, %v275
        %v282 = vmul.f32 %v268, %v275
        %v283 = vmul.f32 %v269, %v275
        %v284 = vmul.f32 %v270, %v275
        %v285 = vadd.f32 %v255, %v277
        %v286 = vadd.f32 %v256, %v278
        %v287 = vadd.f32 %v257, %v279
        %v288 = vadd.f32 %v258, %v280
        %v289 = vadd.f32 %v259, %v281
        %v290 = vadd.f32 %v260, %v282
        %v291 = vadd.f32 %v261, %v283
        %v292 = vadd.f32 %v262, %v284
        %v293 = vld [vmem:[%s232 + $0x2] sm:$0xff]
        %v294 = vld [vmem:[%s232 + $0x12] sm:$0xff]
        %v295 = vld [vmem:[%s232 + $0x22] sm:$0xff]
        %v296 = vld [vmem:[%s232 + $0x32] sm:$0xff]
        %v297 = vld [vmem:[%s232 + $0x42] sm:$0xff]
        %v298 = vld [vmem:[%s232 + $0x52] sm:$0xff]
        %v299 = vld [vmem:[%s232 + $0x62] sm:$0xff]
        %v300 = vld [vmem:[%s232 + $0x72] sm:$0xff]
        %s301 = sadd.s32 %s241, 2
        %s302 = scalar_lea.vmem %s1, %s301
        %v303 = vld [vmem:[%s302] sm:$0x1]
        %v305 = vperm.slane %v303, 0
        %v307 = vmul.f32 %v293, %v305
        %v308 = vmul.f32 %v294, %v305
        %v309 = vmul.f32 %v295, %v305
        %v310 = vmul.f32 %v296, %v305
        %v311 = vmul.f32 %v297, %v305
        %v312 = vmul.f32 %v298, %v305
        %v313 = vmul.f32 %v299, %v305
        %v314 = vmul.f32 %v300, %v305
        %v315 = vadd.f32 %v285, %v307
        %v316 = vadd.f32 %v286, %v308
        %v317 = vadd.f32 %v287, %v309
        %v318 = vadd.f32 %v288, %v310
        %v319 = vadd.f32 %v289, %v311
        %v320 = vadd.f32 %v290, %v312
        %v321 = vadd.f32 %v291, %v313
        %v322 = vadd.f32 %v292, %v314
        %v323 = vld [vmem:[%s232 + $0x3] sm:$0xff]
        %v324 = vld [vmem:[%s232 + $0x13] sm:$0xff]
        %v325 = vld [vmem:[%s232 + $0x23] sm:$0xff]
        %v326 = vld [vmem:[%s232 + $0x33] sm:$0xff]
        %v327 = vld [vmem:[%s232 + $0x43] sm:$0xff]
        %v328 = vld [vmem:[%s232 + $0x53] sm:$0xff]
        %v329 = vld [vmem:[%s232 + $0x63] sm:$0xff]
        %v330 = vld [vmem:[%s232 + $0x73] sm:$0xff]
        %s331 = sadd.s32 %s241, 3
        %s332 = scalar_lea.vmem %s1, %s331
        %v333 = vld [vmem:[%s332] sm:$0x1]
        %v335 = vperm.slane %v333, 0
        %v337 = vmul.f32 %v323, %v335
        %v338 = vmul.f32 %v324, %v335
        %v339 = vmul.f32 %v325, %v335
        %v340 = vmul.f32 %v326, %v335
        %v341 = vmul.f32 %v327, %v335
        %v342 = vmul.f32 %v328, %v335
        %v343 = vmul.f32 %v329, %v335
        %v344 = vmul.f32 %v330, %v335
        %v345 = vadd.f32 %v315, %v337
        %v346 = vadd.f32 %v316, %v338
        %v347 = vadd.f32 %v317, %v339
        %v348 = vadd.f32 %v318, %v340
        %v349 = vadd.f32 %v319, %v341
        %v350 = vadd.f32 %v320, %v342
        %v351 = vadd.f32 %v321, %v343
        %v352 = vadd.f32 %v322, %v344
        %v353 = vld [vmem:[%s232 + $0x4] sm:$0xff]
        %v354 = vld [vmem:[%s232 + $0x14] sm:$0xff]
        %v355 = vld [vmem:[%s232 + $0x24] sm:$0xff]
        %v356 = vld [vmem:[%s232 + $0x34] sm:$0xff]
        %v357 = vld [vmem:[%s232 + $0x44] sm:$0xff]
        %v358 = vld [vmem:[%s232 + $0x54] sm:$0xff]
        %v359 = vld [vmem:[%s232 + $0x64] sm:$0xff]
        %v360 = vld [vmem:[%s232 + $0x74] sm:$0xff]
        %s361 = sadd.s32 %s241, 4
        %s362 = scalar_lea.vmem %s1, %s361
        %v363 = vld [vmem:[%s362] sm:$0x1]
        %v365 = vperm.slane %v363, 0
        %v367 = vmul.f32 %v353, %v365
        %v368 = vmul.f32 %v354, %v365
        %v369 = vmul.f32 %v355, %v365
        %v370 = vmul.f32 %v356, %v365
        %v371 = vmul.f32 %v357, %v365
        %v372 = vmul.f32 %v358, %v365
        %v373 = vmul.f32 %v359, %v365
        %v374 = vmul.f32 %v360, %v365
        %v375 = vadd.f32 %v345, %v367
        %v376 = vadd.f32 %v346, %v368
        %v377 = vadd.f32 %v347, %v369
        %v378 = vadd.f32 %v348, %v370
        %v379 = vadd.f32 %v349, %v371
        %v380 = vadd.f32 %v350, %v372
        %v381 = vadd.f32 %v351, %v373
        %v382 = vadd.f32 %v352, %v374
        %v383 = vld [vmem:[%s232 + $0x5] sm:$0xff]
        %v384 = vld [vmem:[%s232 + $0x15] sm:$0xff]
        %v385 = vld [vmem:[%s232 + $0x25] sm:$0xff]
        %v386 = vld [vmem:[%s232 + $0x35] sm:$0xff]
        %v387 = vld [vmem:[%s232 + $0x45] sm:$0xff]
        %v388 = vld [vmem:[%s232 + $0x55] sm:$0xff]
        %v389 = vld [vmem:[%s232 + $0x65] sm:$0xff]
        %v390 = vld [vmem:[%s232 + $0x75] sm:$0xff]
        %s391 = sadd.s32 %s241, 5
        %s392 = scalar_lea.vmem %s1, %s391
        %v393 = vld [vmem:[%s392] sm:$0x1]
        %v395 = vperm.slane %v393, 0
        %v397 = vmul.f32 %v383, %v395
        %v398 = vmul.f32 %v384, %v395
        %v399 = vmul.f32 %v385, %v395
        %v400 = vmul.f32 %v386, %v395
        %v401 = vmul.f32 %v387, %v395
        %v402 = vmul.f32 %v388, %v395
        %v403 = vmul.f32 %v389, %v395
        %v404 = vmul.f32 %v390, %v395
        %v405 = vadd.f32 %v375, %v397
        %v406 = vadd.f32 %v376, %v398
        %v407 = vadd.f32 %v377, %v399
        %v408 = vadd.f32 %v378, %v400
        %v409 = vadd.f32 %v379, %v401
        %v410 = vadd.f32 %v380, %v402
        %v411 = vadd.f32 %v381, %v403
        %v412 = vadd.f32 %v382, %v404
        %v413 = vld [vmem:[%s232 + $0x6] sm:$0xff]
        %v414 = vld [vmem:[%s232 + $0x16] sm:$0xff]
        %v415 = vld [vmem:[%s232 + $0x26] sm:$0xff]
        %v416 = vld [vmem:[%s232 + $0x36] sm:$0xff]
        %v417 = vld [vmem:[%s232 + $0x46] sm:$0xff]
        %v418 = vld [vmem:[%s232 + $0x56] sm:$0xff]
        %v419 = vld [vmem:[%s232 + $0x66] sm:$0xff]
        %v420 = vld [vmem:[%s232 + $0x76] sm:$0xff]
        %s421 = sadd.s32 %s241, 6
        %s422 = scalar_lea.vmem %s1, %s421
        %v423 = vld [vmem:[%s422] sm:$0x1]
        %v425 = vperm.slane %v423, 0
        %v427 = vmul.f32 %v413, %v425
        %v428 = vmul.f32 %v414, %v425
        %v429 = vmul.f32 %v415, %v425
        %v430 = vmul.f32 %v416, %v425
        %v431 = vmul.f32 %v417, %v425
        %v432 = vmul.f32 %v418, %v425
        %v433 = vmul.f32 %v419, %v425
        %v434 = vmul.f32 %v420, %v425
        %v435 = vadd.f32 %v405, %v427
        %v436 = vadd.f32 %v406, %v428
        %v437 = vadd.f32 %v407, %v429
        %v438 = vadd.f32 %v408, %v430
        %v439 = vadd.f32 %v409, %v431
        %v440 = vadd.f32 %v410, %v432
        %v441 = vadd.f32 %v411, %v433
        %v442 = vadd.f32 %v412, %v434
      $region37: #{convnext_forward.8} parent=31 // loop_footer
        %s222 = sadd.s32 1, %s218
      $region38: #{convnext_forward.8} parent=31 // loop_footer_branch
        %217 = sbr.rel target = $region34
      $region39: #{convnext_forward.8} parent=31 // loop_exit
        _
      %v443 = vld [vmem:[%s2] sm:$0x1]
      %v445 = vperm.slane %v443, 0
      %v447 = vadd.f32 %v223, %v445
      %v448 = vadd.f32 %v224, %v445
      %v449 = vadd.f32 %v225, %v445
      %v450 = vadd.f32 %v226, %v445
      %v451 = vadd.f32 %v227, %v445
      %v452 = vadd.f32 %v228, %v445
      %v453 = vadd.f32 %v229, %v445
      %v454 = vadd.f32 %v230, %v445
      %455 = vst [vmem:[%s170] sm:$0xff] %v447
      %456 = vst [vmem:[%s170 + $0x8] sm:$0xff] %v448
      %457 = vst [vmem:[%s170 + $0x10] sm:$0xff] %v449
      %458 = vst [vmem:[%s170 + $0x18] sm:$0xff] %v450
      %459 = vst [vmem:[%s170 + $0x20] sm:$0xff] %v451
      %460 = vst [vmem:[%s170 + $0x28] sm:$0xff] %v452
      %461 = vst [vmem:[%s170 + $0x30] sm:$0xff] %v453
      %462 = vst [vmem:[%s170 + $0x38] sm:$0xff] %v454
      %p463 = scmp.lt.s32.totalorder %s14, 1
      %s464 = scalar_select %p463, %s14, 1
      %s465 = smul.addr %s464, 8
      %s466 = smul.addr %s465, 8
      %s467 = scalar_lea.vmem %s3, %s466
      // Predicated region
      $region40: #{convnext_forward.8} parent=31 // pred_check
        %p468 = pneg %p100
      $region41: #{convnext_forward.8} parent=31 // pred_check_branch
        %470 = sbr.rel (%p468) target = $region43
      $region42: #{convnext_forward.8} parent=31 // pred_region
        _
      $region43: #{convnext_forward.8} parent=31 // pred_fallthru
        _
    $region32: #{convnext_forward.8} parent=5 // pred_fallthru
      _
    %p471 = scmp.le.s32.totalorder 2, %s9
    // Predicated region
    $region44: #{convnext_forward.8} parent=5 // pred_check
      %p472 = pneg %p471
    $region45: #{convnext_forward.8} parent=5 // pred_check_branch
      %474 = sbr.rel (%p472) target = $region47
    $region46: #{convnext_forward.8} parent=5 // pred_region
      %s475 = ssub.s32 %s9, 2
      // Predicated region
      $region48: #{convnext_forward.8} parent=46 // pred_check
        %p476 = pneg %p106
      $region49: #{convnext_forward.8} parent=46 // pred_check_branch
        %478 = sbr.rel (%p476) target = $region51
      $region50: #{convnext_forward.8} parent=46 // pred_region
        %p479 = scmp.lt.s32.totalorder %s15, 1
        %s480 = scalar_select %p479, %s15, 1
        %s481 = smul.addr %s480, 8
        %s482 = smul.addr %s481, 8
        %s483 = scalar_lea.vmem %s3, %s482
      $region51: #{convnext_forward.8} parent=46 // pred_fallthru
        _
    $region47: #{convnext_forward.8} parent=5 // pred_fallthru
      _
  $region6: #{convnext_forward.8} parent=0 // loop_footer
    %s13 = sadd.s32 1, %s9
  $region7: #{convnext_forward.8} parent=0 // loop_footer_branch
    %8 = sbr.rel target = $region3
  $region8: #{convnext_forward.8} parent=0 // loop_exit
    _

// kernel: convnext_forward.9
$region0: #{convnext_forward.9}
  #allocation0 [shape = 'u32[]', space=smem, size = 0x4, offset = 0x4, fixed_abs, tag = 'smem constant byte address 0x4 - core index']
  #allocation1 [shape = 'u32[72,128]{1,0:T(1,128)}', space=vmem, size = 0x9000, scoped, tag = 'internal scratch']
  %s0 = inlined_call_operand.vmem [shape: f32[128,128], index: 0, kind: input, shape index: {}]
  %s1 = inlined_call_operand.vmem [shape: f32[128,128], index: 1, kind: input, shape index: {}, may-alias: {1,6}]
  %s2 = inlined_call_operand.vmem [shape: bf16[128,512], index: 2, kind: input, shape index: {}]
  %s3 = inlined_call_operand.vmem [shape: f32[1,512], index: 3, kind: input, shape index: {}]
  %s4 = inlined_call_operand.vmem [shape: bf16[512,128], index: 4, kind: input, shape index: {}]
  %s5 = inlined_call_operand.vmem [shape: f32[1,128], index: 5, kind: input, shape index: {}]
  %s6 = inlined_call_operand.vmem [shape: f32[128,128], index: 6, kind: output, shape index: {}, may-alias: {1,6}]
  %s7 = sld [smem:[#allocation0]]
  $region57: #{convnext_forward.9} parent=0
    _
  %s9 = ssub.s32 1, %s7
  %s10 = scalar_select 0, %s9, %s7
  loop: start=0, step=1, limit=4
  $region2: #{convnext_forward.9} parent=0 // loop_pre_header
    _
  $region3: #{convnext_forward.9} parent=0 // loop_header
    %s12 = sphi 0, %s16
    %p13 = scmp.ge.s32.totalorder %s12, 4
    %s22 = sphi 0, %s24
    %s25 = sphi 0, %s22
    %s26 = sphi 0, %s25
    %s42 = sphi 0, %s26
    %s48 = sphi 0, %s50
    %s51 = sphi 0, %s48
    %s52 = sphi 0, %s51
    %s68 = sphi 0, %s52
    %s72 = sphi 0, %s72
    %s74 = sphi 0, %s72
    %s75 = sphi 0, %s74
    %s89 = sphi 0, %s75
    %s93 = sphi 0, %s93
    %s95 = sphi 0, %s93
    %s96 = sphi 0, %s95
    %s110 = sphi 0, %s96
    %s114 = sphi 0, %s114
    %s116 = sphi 0, %s114
    %s117 = sphi 0, %s116
    %s131 = sphi 0, %s117
    %s135 = sphi 0, %s135
    %s137 = sphi 0, %s135
    %s138 = sphi 0, %s137
    %s152 = sphi 0, %s138
    %s158 = sphi 0, %s160
    %s161 = sphi 0, %s158
    %s162 = sphi 0, %s161
    %s178 = sphi 0, %s162
  $region4: #{convnext_forward.9} parent=0 // loop_header_branch
    %15 = sbr.rel (%p13) target = $region8
  $region5: #{convnext_forward.9} parent=0 // loop_body
    %s17 = ssub.s32 %s12, 1
    %s18 = ssub.s32 %s12, 2
    %s19 = sadd.s32 %s12, 1
    %s20 = ssub.s32 %s12, %s19
    %p21 = scmp.eq.s32.totalorder %s20, 0
    %s23 = sadd.s32 %s22, 1
    %s24 = scalar_select %p21, %s22, %s23
    %p27 = pneg %p21
    %p28 = scmp.eq.s32.totalorder %s12, 1
    %p29 = por %p27, %p28
    %p30 = scmp.ne.s32.totalorder %s22, %s25
    %p31 = scmp.eq.s32.totalorder %s12, 0
    %p32 = por %p30, %p31
    %p33 = scmp.ne.s32.totalorder %s22, %s25
    %p34 = scmp.eq.s32.totalorder %s17, 1
    %p35 = por %p33, %p34
    %p36 = scmp.ne.s32.totalorder %s25, %s26
    %p37 = scmp.eq.s32.totalorder %s17, 0
    %p38 = por %p36, %p37
    %p39 = scmp.ne.s32.totalorder %s25, %s26
    %p40 = scmp.eq.s32.totalorder %s18, 1
    %p41 = por %p39, %p40
    %p43 = scmp.ne.s32.totalorder %s26, %s42
    %p44 = scmp.eq.s32.totalorder %s18, 0
    %p45 = por %p43, %p44
    %s46 = ssub.s32 %s12, %s19
    %p47 = scmp.eq.s32.totalorder %s46, 0
    %s49 = sadd.s32 %s48, 1
    %s50 = scalar_select %p47, %s48, %s49
    %p53 = pneg %p47
    %p54 = scmp.eq.s32.totalorder %s12, 1
    %p55 = por %p53, %p54
    %p56 = scmp.ne.s32.totalorder %s48, %s51
    %p57 = scmp.eq.s32.totalorder %s12, 0
    %p58 = por %p56, %p57
    %p59 = scmp.ne.s32.totalorder %s48, %s51
    %p60 = scmp.eq.s32.totalorder %s17, 1
    %p61 = por %p59, %p60
    %p62 = scmp.ne.s32.totalorder %s51, %s52
    %p63 = scmp.eq.s32.totalorder %s17, 0
    %p64 = por %p62, %p63
    %p65 = scmp.ne.s32.totalorder %s51, %s52
    %p66 = scmp.eq.s32.totalorder %s18, 1
    %p67 = por %p65, %p66
    %p69 = scmp.ne.s32.totalorder %s52, %s68
    %p70 = scmp.eq.s32.totalorder %s18, 0
    %p71 = por %p69, %p70
    %s73 = sadd.s32 %s72, 1
    %p76 = scmp.eq.s32.totalorder %s12, 1
    %p77 = scmp.ne.s32.totalorder %s72, %s74
    %p78 = scmp.eq.s32.totalorder %s12, 0
    %p79 = por %p77, %p78
    %p80 = scmp.ne.s32.totalorder %s72, %s74
    %p81 = scmp.eq.s32.totalorder %s17, 1
    %p82 = por %p80, %p81
    %p83 = scmp.ne.s32.totalorder %s74, %s75
    %p84 = scmp.eq.s32.totalorder %s17, 0
    %p85 = por %p83, %p84
    %p86 = scmp.ne.s32.totalorder %s74, %s75
    %p87 = scmp.eq.s32.totalorder %s18, 1
    %p88 = por %p86, %p87
    %p90 = scmp.ne.s32.totalorder %s75, %s89
    %p91 = scmp.eq.s32.totalorder %s18, 0
    %p92 = por %p90, %p91
    %s94 = sadd.s32 %s93, 1
    %p97 = scmp.eq.s32.totalorder %s12, 1
    %p98 = scmp.ne.s32.totalorder %s93, %s95
    %p99 = scmp.eq.s32.totalorder %s12, 0
    %p100 = por %p98, %p99
    %p101 = scmp.ne.s32.totalorder %s93, %s95
    %p102 = scmp.eq.s32.totalorder %s17, 1
    %p103 = por %p101, %p102
    %p104 = scmp.ne.s32.totalorder %s95, %s96
    %p105 = scmp.eq.s32.totalorder %s17, 0
    %p106 = por %p104, %p105
    %p107 = scmp.ne.s32.totalorder %s95, %s96
    %p108 = scmp.eq.s32.totalorder %s18, 1
    %p109 = por %p107, %p108
    %p111 = scmp.ne.s32.totalorder %s96, %s110
    %p112 = scmp.eq.s32.totalorder %s18, 0
    %p113 = por %p111, %p112
    %s115 = sadd.s32 %s114, 1
    %p118 = scmp.eq.s32.totalorder %s12, 1
    %p119 = scmp.ne.s32.totalorder %s114, %s116
    %p120 = scmp.eq.s32.totalorder %s12, 0
    %p121 = por %p119, %p120
    %p122 = scmp.ne.s32.totalorder %s114, %s116
    %p123 = scmp.eq.s32.totalorder %s17, 1
    %p124 = por %p122, %p123
    %p125 = scmp.ne.s32.totalorder %s116, %s117
    %p126 = scmp.eq.s32.totalorder %s17, 0
    %p127 = por %p125, %p126
    %p128 = scmp.ne.s32.totalorder %s116, %s117
    %p129 = scmp.eq.s32.totalorder %s18, 1
    %p130 = por %p128, %p129
    %p132 = scmp.ne.s32.totalorder %s117, %s131
    %p133 = scmp.eq.s32.totalorder %s18, 0
    %p134 = por %p132, %p133
    %s136 = sadd.s32 %s135, 1
    %p139 = scmp.eq.s32.totalorder %s12, 1
    %p140 = scmp.ne.s32.totalorder %s135, %s137
    %p141 = scmp.eq.s32.totalorder %s12, 0
    %p142 = por %p140, %p141
    %p143 = scmp.ne.s32.totalorder %s135, %s137
    %p144 = scmp.eq.s32.totalorder %s17, 1
    %p145 = por %p143, %p144
    %p146 = scmp.ne.s32.totalorder %s137, %s138
    %p147 = scmp.eq.s32.totalorder %s17, 0
    %p148 = por %p146, %p147
    %p149 = scmp.ne.s32.totalorder %s137, %s138
    %p150 = scmp.eq.s32.totalorder %s18, 1
    %p151 = por %p149, %p150
    %p153 = scmp.ne.s32.totalorder %s138, %s152
    %p154 = scmp.eq.s32.totalorder %s18, 0
    %p155 = por %p153, %p154
    %s156 = ssub.s32 %s12, %s19
    %p157 = scmp.eq.s32.totalorder %s156, 0
    %s159 = sadd.s32 %s158, 1
    %s160 = scalar_select %p157, %s158, %s159
    %p163 = pneg %p157
    %p164 = scmp.eq.s32.totalorder %s12, 1
    %p165 = por %p163, %p164
    %p166 = scmp.ne.s32.totalorder %s158, %s161
    %p167 = scmp.eq.s32.totalorder %s12, 0
    %p168 = por %p166, %p167
    %p169 = scmp.ne.s32.totalorder %s158, %s161
    %p170 = scmp.eq.s32.totalorder %s17, 1
    %p171 = por %p169, %p170
    %p172 = scmp.ne.s32.totalorder %s161, %s162
    %p173 = scmp.eq.s32.totalorder %s17, 0
    %p174 = por %p172, %p173
    %p175 = scmp.ne.s32.totalorder %s161, %s162
    %p176 = scmp.eq.s32.totalorder %s18, 1
    %p177 = por %p175, %p176
    %p179 = scmp.ne.s32.totalorder %s162, %s178
    %p180 = scmp.eq.s32.totalorder %s18, 0
    %p181 = por %p179, %p180
    %p182 = scmp.le.s32.totalorder 1, %s12
    %p183 = scmp.lt.s32.totalorder %s12, 3
    %p184 = pnand %p182, %p183
    %p185 = pneg %p184
    // Predicated region
    $region9: #{convnext_forward.9} parent=5 // pred_check
      _
    $region10: #{convnext_forward.9} parent=5 // pred_check_branch
      %187 = sbr.rel (%p184) target = $region12
    $region11: #{convnext_forward.9} parent=5 // pred_region
      %s188 = ssub.s32 %s12, 1
      // Predicated region
      $region13: #{convnext_forward.9} parent=11 // pred_check
        %p189 = pneg %p85
      $region14: #{convnext_forward.9} parent=11 // pred_check_branch
        %191 = sbr.rel (%p189) target = $region16
      $region15: #{convnext_forward.9} parent=11 // pred_region
        _
      $region16: #{convnext_forward.9} parent=11 // pred_fallthru
        _
      // Predicated region
      $region17: #{convnext_forward.9} parent=11 // pred_check
        %p192 = pneg %p106
      $region18: #{convnext_forward.9} parent=11 // pred_check_branch
        %194 = sbr.rel (%p192) target = $region20
      $region19: #{convnext_forward.9} parent=11 // pred_region
        _
      $region20: #{convnext_forward.9} parent=11 // pred_fallthru
        _
      // Predicated region
      $region21: #{convnext_forward.9} parent=11 // pred_check
        %p195 = pneg %p127
      $region22: #{convnext_forward.9} parent=11 // pred_check_branch
        %197 = sbr.rel (%p195) target = $region24
      $region23: #{convnext_forward.9} parent=11 // pred_region
        _
      $region24: #{convnext_forward.9} parent=11 // pred_fallthru
        _
      // Predicated region
      $region25: #{convnext_forward.9} parent=11 // pred_check
        %p198 = pneg %p148
      $region26: #{convnext_forward.9} parent=11 // pred_check_branch
        %200 = sbr.rel (%p198) target = $region28
      $region27: #{convnext_forward.9} parent=11 // pred_region
        _
      $region28: #{convnext_forward.9} parent=11 // pred_fallthru
        _
    $region12: #{convnext_forward.9} parent=5 // pred_fallthru
      _
    %p201 = scmp.lt.s32.totalorder %s12, 2
    // Predicated region
    $region29: #{convnext_forward.9} parent=5 // pred_check
      %p202 = pneg %p201
    $region30: #{convnext_forward.9} parent=5 // pred_check_branch
      %204 = sbr.rel (%p202) target = $region32
    $region31: #{convnext_forward.9} parent=5 // pred_region
      // Predicated region
      $region33: #{convnext_forward.9} parent=31 // pred_check
        %p205 = pneg %p32
      $region34: #{convnext_forward.9} parent=31 // pred_check_branch
        %207 = sbr.rel (%p205) target = $region36
      $region35: #{convnext_forward.9} parent=31 // pred_region
        %s208 = smul.u32 8, %s12
        %p209 = scmp.lt.s32.totalorder %s208, 15
        %s210 = scalar_select %p209, %s208, 15
        %s211 = smul.addr %s210, 8
        %s212 = scalar_lea.vmem %s0, %s211
        %s213 = smul.u32 8, %s12
      $region36: #{convnext_forward.9} parent=31 // pred_fallthru
        _
      // Predicated region
      $region37: #{convnext_forward.9} parent=31 // pred_check
        %p214 = pneg %p58
      $region38: #{convnext_forward.9} parent=31 // pred_check_branch
        %216 = sbr.rel (%p214) target = $region40
      $region39: #{convnext_forward.9} parent=31 // pred_region
        %s217 = smul.u32 8, %s12
        %p218 = scmp.lt.s32.totalorder %s217, 15
        %s219 = scalar_select %p218, %s217, 15
        %s220 = smul.addr %s219, 8
        %s221 = scalar_lea.vmem %s1, %s220
        %s222 = smul.u32 8, %s12
      $region40: #{convnext_forward.9} parent=31 // pred_fallthru
        _
    $region32: #{convnext_forward.9} parent=5 // pred_fallthru
      _
    %p223 = scmp.le.s32.totalorder 1, %s12
    %p224 = scmp.lt.s32.totalorder %s12, 3
    %p225 = pnand %p223, %p224
    %p226 = pneg %p225
    // Predicated region
    $region41: #{convnext_forward.9} parent=5 // pred_check
      _
    $region42: #{convnext_forward.9} parent=5 // pred_check_branch
      %228 = sbr.rel (%p225) target = $region44
    $region43: #{convnext_forward.9} parent=5 // pred_region
      %s229 = ssub.s32 %s12, 1
      %s230 = smul.u32 8, %s17
      %p231 = scmp.lt.s32.totalorder %s230, 15
      %s232 = scalar_select %p231, %s230, 15
      %s233 = smul.addr %s232, 8
      %s234 = scalar_lea.vmem %s0, %s233
      %p235 = pneg %p38
      %p236 = pneg %p35
      %s237 = smul.u32 8, %s17
      %p238 = scmp.lt.s32.totalorder %s237, 15
      %s239 = scalar_select %p238, %s237, 15
      %s240 = smul.addr %s239, 8
      %s241 = scalar_lea.vmem %s1, %s240
      %p242 = pneg %p64
      %p243 = pneg %p61
      %p244 = pneg %p85
      %p245 = pneg %p82
      %p246 = pneg %p106
      %p247 = pneg %p103
      %p248 = pneg %p127
      %p249 = pneg %p124
      %p250 = pneg %p148
      %p251 = pneg %p145
      %p252 = pneg %p174
      %p253 = pneg %p171
      %s254 = smul.u32 8, %s17
      %p255 = scmp.lt.s32.totalorder %s254, 15
      %s256 = scalar_select %p255, %s254, 15
      %s257 = smul.addr %s256, 8
      %s258 = scalar_lea.vmem %s6, %s257
      %s259 = smul.u32 8, %s17
      %p260 = scmp.lt.s32.totalorder %s259, 15
      %s261 = scalar_select %p260, %s259, 15
      %s262 = smul.addr %s261, 8
      %s263 = scalar_lea.vmem %s0, %s262
      %s264 = smul.u32 8, %s17
      %s265 = smul.u32 8, %s17
      %p266 = scmp.lt.s32.totalorder %s265, 15
      %s267 = scalar_select %p266, %s265, 15
      %s268 = smul.addr %s267, 8
      %s269 = scalar_lea.vmem %s1, %s268
      %s270 = smul.u32 8, %s17
      %s271 = smul.u32 8, %s17
      %p272 = scmp.lt.s32.totalorder %s271, 15
      %s273 = scalar_select %p272, %s271, 15
      %s274 = smul.addr %s273, 8
      %s275 = scalar_lea.vmem %s6, %s274
      %s276 = smul.u32 8, %s17
      %v277 = vld [vmem:[%s263] sm:$0xff]
      %v278 = vld [vmem:[%s263 + $0x8] sm:$0xff]
      %v279 = vld [vmem:[%s263 + $0x10] sm:$0xff]
      %v280 = vld [vmem:[%s263 + $0x18] sm:$0xff]
      %v281 = vld [vmem:[%s263 + $0x20] sm:$0xff]
      %v282 = vld [vmem:[%s263 + $0x28] sm:$0xff]
      %v283 = vld [vmem:[%s263 + $0x30] sm:$0xff]
      %v284 = vld [vmem:[%s263 + $0x38] sm:$0xff]
      %285 = vadd.xlane.f32.xlu0 %v277
      %v286 = vpop.xlane.xlu0 %285
      %287 = vadd.xlane.f32.xlu0 %v278
      %v288 = vpop.xlane.xlu0 %287
      %289 = vadd.xlane.f32.xlu0 %v279
      %v290 = vpop.xlane.xlu0 %289
      %291 = vadd.xlane.f32.xlu0 %v280
      %v292 = vpop.xlane.xlu0 %291
      %293 = vadd.xlane.f32.xlu0 %v281
      %v294 = vpop.xlane.xlu0 %293
      %295 = vadd.xlane.f32.xlu0 %v282
      %v296 = vpop.xlane.xlu0 %295
      %297 = vadd.xlane.f32.xlu0 %v283
      %v298 = vpop.xlane.xlu0 %297
      %299 = vadd.xlane.f32.xlu0 %v284
      %v300 = vpop.xlane.xlu0 %299
      %v301 = vrcp.pop 128.0
      %v302 = vmul.f32 128.0, %v301
      %v303 = vsub.f32 1.0, %v302
      %v304 = vmul.f32 %v301, %v303
      %v305 = vadd.f32 %v301, %v304
      %vm306 = vweird.f32 %v301
      %v307 = vsel %vm306, %v301, %v305
      %v308 = vmul.f32 %v286, %v307
      %v309 = vmul.f32 %v288, %v307
      %v310 = vmul.f32 %v290, %v307
      %v311 = vmul.f32 %v292, %v307
      %v312 = vmul.f32 %v294, %v307
      %v313 = vmul.f32 %v296, %v307
      %v314 = vmul.f32 %v298, %v307
      %v315 = vmul.f32 %v300, %v307
      %v316 = vsub.f32 %v277, %v308
      %v317 = vsub.f32 %v278, %v309
      %v318 = vsub.f32 %v279, %v310
      %v319 = vsub.f32 %v280, %v311
      %v320 = vsub.f32 %v281, %v312
      %v321 = vsub.f32 %v282, %v313
      %v322 = vsub.f32 %v283, %v314
      %v323 = vsub.f32 %v284, %v315
      %v324 = vmul.f32 %v316, %v316
      %v325 = vmul.f32 %v317, %v317
      %v326 = vmul.f32 %v318, %v318
      %v327 = vmul.f32 %v319, %v319
      %v328 = vmul.f32 %v320, %v320
      %v329 = vmul.f32 %v321, %v321
      %v330 = vmul.f32 %v322, %v322
      %v331 = vmul.f32 %v323, %v323
      %332 = vadd.xlane.f32.xlu0 %v324
      %v333 = vpop.xlane.xlu0 %332
      %334 = vadd.xlane.f32.xlu0 %v325
      %v335 = vpop.xlane.xlu0 %334
      %336 = vadd.xlane.f32.xlu0 %v326
      %v337 = vpop.xlane.xlu0 %336
      %338 = vadd.xlane.f32.xlu0 %v327
      %v339 = vpop.xlane.xlu0 %338
      %340 = vadd.xlane.f32.xlu0 %v328
      %v341 = vpop.xlane.xlu0 %340
      %342 = vadd.xlane.f32.xlu0 %v329
      %v343 = vpop.xlane.xlu0 %342
      %344 = vadd.xlane.f32.xlu0 %v330
      %v345 = vpop.xlane.xlu0 %344
      %346 = vadd.xlane.f32.xlu0 %v331
      %v347 = vpop.xlane.xlu0 %346
      %v348 = vmul.f32 %v333, %v307
      %v349 = vmul.f32 %v335, %v307
      %v350 = vmul.f32 %v337, %v307
      %v351 = vmul.f32 %v339, %v307
      %v352 = vmul.f32 %v341, %v307
      %v353 = vmul.f32 %v343, %v307
      %v354 = vmul.f32 %v345, %v307
      %v355 = vmul.f32 %v347, %v307
      %v356 = vadd.f32 %v348, 1e-06
      %v357 = vadd.f32 %v349, 1e-06
      %v358 = vadd.f32 %v350, 1e-06
      %v359 = vadd.f32 %v351, 1e-06
      %v360 = vadd.f32 %v352, 1e-06
      %v361 = vadd.f32 %v353, 1e-06
      %v362 = vadd.f32 %v354, 1e-06
      %v363 = vadd.f32 %v355, 1e-06
      %v364 = vrsqrt.pop %v356
      %v365 = vmul.f32 %v364, %v356
      %v366 = vmul.f32 %v365, %v364
      %v367 = vmul.f32 0.5, %v366
      %v368 = vsub.f32 1.5, %v367
      %v369 = vmul.f32 %v364, %v368
      %vm370 = vweird.f32 %v356
      %vm371 = vweird.f32 %v364
      %vm372 = vmor %vm370, %vm371
      %v373 = vsel %vm372, %v364, %v369
      %v374 = vrsqrt.pop %v357
      %v375 = vmul.f32 %v374, %v357
      %v376 = vmul.f32 %v375, %v374
      %v377 = vmul.f32 0.5, %v376
      %v378 = vsub.f32 1.5, %v377
      %v379 = vmul.f32 %v374, %v378
      %vm380 = vweird.f32 %v357
      %vm381 = vweird.f32 %v374
      %vm382 = vmor %vm380, %vm381
      %v383 = vsel %vm382, %v374, %v379
      %v384 = vrsqrt.pop %v358
      %v385 = vmul.f32 %v384, %v358
      %v386 = vmul.f32 %v385, %v384
      %v387 = vmul.f32 0.5, %v386
      %v388 = vsub.f32 1.5, %v387
      %v389 = vmul.f32 %v384, %v388
      %vm390 = vweird.f32 %v358
      %vm391 = vweird.f32 %v384
      %vm392 = vmor %vm390, %vm391
      %v393 = vsel %vm392, %v384, %v389
      %v394 = vrsqrt.pop %v359
      %v395 = vmul.f32 %v394, %v359
      %v396 = vmul.f32 %v395, %v394
      %v397 = vmul.f32 0.5, %v396
      %v398 = vsub.f32 1.5, %v397
      %v399 = vmul.f32 %v394, %v398
      %vm400 = vweird.f32 %v359
      %vm401 = vweird.f32 %v394
      %vm402 = vmor %vm400, %vm401
      %v403 = vsel %vm402, %v394, %v399
      %v404 = vrsqrt.pop %v360
      %v405 = vmul.f32 %v404, %v360
      %v406 = vmul.f32 %v405, %v404
      %v407 = vmul.f32 0.5, %v406
      %v408 = vsub.f32 1.5, %v407
      %v409 = vmul.f32 %v404, %v408
      %vm410 = vweird.f32 %v360
      %vm411 = vweird.f32 %v404
      %vm412 = vmor %vm410, %vm411
      %v413 = vsel %vm412, %v404, %v409
      %v414 = vrsqrt.pop %v361
      %v415 = vmul.f32 %v414, %v361
      %v416 = vmul.f32 %v415, %v414
      %v417 = vmul.f32 0.5, %v416
      %v418 = vsub.f32 1.5, %v417
      %v419 = vmul.f32 %v414, %v418
      %vm420 = vweird.f32 %v361
      %vm421 = vweird.f32 %v414
      %vm422 = vmor %vm420, %vm421
      %v423 = vsel %vm422, %v414, %v419
      %v424 = vrsqrt.pop %v362
      %v425 = vmul.f32 %v424, %v362
      %v426 = vmul.f32 %v425, %v424
      %v427 = vmul.f32 0.5, %v426
      %v428 = vsub.f32 1.5, %v427
      %v429 = vmul.f32 %v424, %v428
      %vm430 = vweird.f32 %v362
      %vm431 = vweird.f32 %v424
      %vm432 = vmor %vm430, %vm431
      %v433 = vsel %vm432, %v424, %v429
      %v434 = vrsqrt.pop %v363
      %v435 = vmul.f32 %v434, %v363
      %v436 = vmul.f32 %v435, %v434
      %v437 = vmul.f32 0.5, %v436
      %v438 = vsub.f32 1.5, %v437
      %v439 = vmul.f32 %v434, %v438
      %vm440 = vweird.f32 %v363
      %vm441 = vweird.f32 %v434
      %vm442 = vmor %vm440, %vm441
      %v443 = vsel %vm442, %v434, %v439
      %v444 = vmul.f32 %v316, %v373
      %v445 = vmul.f32 %v317, %v383
      %v446 = vmul.f32 %v318, %v393
      %v447 = vmul.f32 %v319, %v403
      %v448 = vmul.f32 %v320, %v413
      %v449 = vmul.f32 %v321, %v423
      %v450 = vmul.f32 %v322, %v433
      %v451 = vmul.f32 %v323, %v443
      %v452 = vpack.c.bf16 %v445, %v444
      %v453 = vpack.c.bf16 %v447, %v446
      %v454 = vpack.c.bf16 %v449, %v448
      %v455 = vpack.c.bf16 %v451, %v450
      %v456 = vld [vmem:[%s2] sm:$0xff]
      %v457 = vld [vmem:[%s2 + $0x8] sm:$0xff]
      %v458 = vld [vmem:[%s2 + $0x10] sm:$0xff]
      %v459 = vld [vmem:[%s2 + $0x18] sm:$0xff]
      %v460 = vld [vmem:[%s2 + $0x20] sm:$0xff]
      %v461 = vld [vmem:[%s2 + $0x28] sm:$0xff]
      %v462 = vld [vmem:[%s2 + $0x30] sm:$0xff]
      %v463 = vld [vmem:[%s2 + $0x38] sm:$0xff]
      %v464 = vld [vmem:[%s2 + $0x40] sm:$0xff]
      %v465 = vld [vmem:[%s2 + $0x48] sm:$0xff]
      %v466 = vld [vmem:[%s2 + $0x50] sm:$0xff]
      %v467 = vld [vmem:[%s2 + $0x58] sm:$0xff]
      %v468 = vld [vmem:[%s2 + $0x60] sm:$0xff]
      %v469 = vld [vmem:[%s2 + $0x68] sm:$0xff]
      %v470 = vld [vmem:[%s2 + $0x70] sm:$0xff]
      %v471 = vld [vmem:[%s2 + $0x78] sm:$0xff]
      %v472 = vld [vmem:[%s2 + $0x80] sm:$0xff]
      %v473 = vld [vmem:[%s2 + $0x88] sm:$0xff]
      %v474 = vld [vmem:[%s2 + $0x90] sm:$0xff]
      %v475 = vld [vmem:[%s2 + $0x98] sm:$0xff]
      %v476 = vld [vmem:[%s2 + $0xa0] sm:$0xff]
      %v477 = vld [vmem:[%s2 + $0xa8] sm:$0xff]
      %v478 = vld [vmem:[%s2 + $0xb0] sm:$0xff]
      %v479 = vld [vmem:[%s2 + $0xb8] sm:$0xff]
      %v480 = vld [vmem:[%s2 + $0xc0] sm:$0xff]
      %v481 = vld [vmem:[%s2 + $0xc8] sm:$0xff]
      %v482 = vld [vmem:[%s2 + $0xd0] sm:$0xff]
      %v483 = vld [vmem:[%s2 + $0xd8] sm:$0xff]
      %v484 = vld [vmem:[%s2 + $0xe0] sm:$0xff]
      %v485 = vld [vmem:[%s2 + $0xe8] sm:$0xff]
      %v486 = vld [vmem:[%s2 + $0xf0] sm:$0xff]
      %v487 = vld [vmem:[%s2 + $0xf8] sm:$0xff]
      %v488 = vld [vmem:[%s3] sm:$0xf]
      %v490 = vperm.slane %v488, 0
      %v491 = vperm.slane %v488, 1
      %v492 = vperm.slane %v488, 2
      %v493 = vperm.slane %v488, 3
      %v530 = vunpack.c.l.b16 %v456
      %v531 = vunpack.c.h.b16 %v456
      %v532 = vunpack.c.l.b16 %v457
      %v533 = vunpack.c.h.b16 %v457
      %v534 = vunpack.c.l.b16 %v458
      %v535 = vunpack.c.h.b16 %v458
      %v536 = vunpack.c.l.b16 %v459
      %v537 = vunpack.c.h.b16 %v459
      %v538 = vunpack.c.l.b16 %v460
      %v539 = vunpack.c.h.b16 %v460
      %v540 = vunpack.c.l.b16 %v461
      %v541 = vunpack.c.h.b16 %v461
      %v542 = vunpack.c.l.b16 %v462
      %v543 = vunpack.c.h.b16 %v462
      %v544 = vunpack.c.l.b16 %v463
      %v545 = vunpack.c.h.b16 %v463
      %v546 = vunpack.c.l.b16 %v464
      %v547 = vunpack.c.h.b16 %v464
      %v548 = vunpack.c.l.b16 %v465
      %v549 = vunpack.c.h.b16 %v465
      %v550 = vunpack.c.l.b16 %v466
      %v551 = vunpack.c.h.b16 %v466
      %v552 = vunpack.c.l.b16 %v467
      %v553 = vunpack.c.h.b16 %v467
      %v554 = vunpack.c.l.b16 %v468
      %v555 = vunpack.c.h.b16 %v468
      %v556 = vunpack.c.l.b16 %v469
      %v557 = vunpack.c.h.b16 %v469
      %v558 = vunpack.c.l.b16 %v470
      %v559 = vunpack.c.h.b16 %v470
      %v560 = vunpack.c.l.b16 %v471
      %v561 = vunpack.c.h.b16 %v471
      %v562 = vunpack.c.l.b16 %v472
      %v563 = vunpack.c.h.b16 %v472
      %v564 = vunpack.c.l.b16 %v473
      %v565 = vunpack.c.h.b16 %v473
      %v566 = vunpack.c.l.b16 %v474
      %v567 = vunpack.c.h.b16 %v474
      %v568 = vunpack.c.l.b16 %v475
      %v569 = vunpack.c.h.b16 %v475
      %v570 = vunpack.c.l.b16 %v476
      %v571 = vunpack.c.h.b16 %v476
      %v572 = vunpack.c.l.b16 %v477
      %v573 = vunpack.c.h.b16 %v477
      %v574 = vunpack.c.l.b16 %v478
      %v575 = vunpack.c.h.b16 %v478
      %v576 = vunpack.c.l.b16 %v479
      %v577 = vunpack.c.h.b16 %v479
      %v578 = vunpack.c.l.b16 %v480
      %v579 = vunpack.c.h.b16 %v480
      %v580 = vunpack.c.l.b16 %v481
      %v581 = vunpack.c.h.b16 %v481
      %v582 = vunpack.c.l.b16 %v482
      %v583 = vunpack.c.h.b16 %v482
      %v584 = vunpack.c.l.b16 %v483
      %v585 = vunpack.c.h.b16 %v483
      %v586 = vunpack.c.l.b16 %v484
      %v587 = vunpack.c.h.b16 %v484
      %v588 = vunpack.c.l.b16 %v485
      %v589 = vunpack.c.h.b16 %v485
      %v590 = vunpack.c.l.b16 %v486
      %v591 = vunpack.c.h.b16 %v486
      %v592 = vunpack.c.l.b16 %v487
      %v593 = vunpack.c.h.b16 %v487
      %v594 = vpack.c.b16 %v534, %v530
      %v595 = vpack.c.b16 %v535, %v531
      %v596 = vpack.c.b16 %v536, %v532
      %v597 = vpack.c.b16 %v537, %v533
      %v598 = vpack.c.b16 %v542, %v538
      %v599 = vpack.c.b16 %v543, %v539
      %v600 = vpack.c.b16 %v544, %v540
      %v601 = vpack.c.b16 %v545, %v541
      %v602 = vpack.c.b16 %v550, %v546
      %v603 = vpack.c.b16 %v551, %v547
      %v604 = vpack.c.b16 %v552, %v548
      %v605 = vpack.c.b16 %v553, %v549
      %v606 = vpack.c.b16 %v558, %v554
      %v607 = vpack.c.b16 %v559, %v555
      %v608 = vpack.c.b16 %v560, %v556
      %v609 = vpack.c.b16 %v561, %v557
      %v610 = vpack.c.b16 %v566, %v562
      %v611 = vpack.c.b16 %v567, %v563
      %v612 = vpack.c.b16 %v568, %v564
      %v613 = vpack.c.b16 %v569, %v565
      %v614 = vpack.c.b16 %v574, %v570
      %v615 = vpack.c.b16 %v575, %v571
      %v616 = vpack.c.b16 %v576, %v572
      %v617 = vpack.c.b16 %v577, %v573
      %v618 = vpack.c.b16 %v582, %v578
      %v619 = vpack.c.b16 %v583, %v579
      %v620 = vpack.c.b16 %v584, %v580
      %v621 = vpack.c.b16 %v585, %v581
      %v622 = vpack.c.b16 %v590, %v586
      %v623 = vpack.c.b16 %v591, %v587
      %v624 = vpack.c.b16 %v592, %v588
      %v625 = vpack.c.b16 %v593, %v589
      %658 = vmatpush.bf16.msra.mxu0 %v622
      %659 = vmatpush.bf16.msra.mxu0 %v618
      %660 = vmatpush.bf16.msra.mxu0 %v614
      %661 = vmatpush.bf16.msra.mxu0 %v610
      %662 = vmatpush.bf16.msra.mxu0 %v606
      %663 = vmatpush.bf16.msra.mxu0 %v602
      %664 = vmatpush.bf16.msra.mxu0 %v598
      %665 = vmatpush.bf16.msra.mxu0 %v594
      %666 = vmatmul.bf16.gmra.mxu0 %v452
      %v667 = vpop.f32.mrf.mxu0
      %v668 = vadd.f32 %v490, %v667
      %v669 = vpop.f32.mrf.mxu0
      %v670 = vadd.f32 %v490, %v669
      %671 = vmatmul.bf16.gmra.mxu0 %v453
      %v672 = vpop.f32.mrf.mxu0
      %v673 = vadd.f32 %v490, %v672
      %v674 = vpop.f32.mrf.mxu0
      %v675 = vadd.f32 %v490, %v674
      %676 = vmatmul.bf16.gmra.mxu0 %v454
      %v677 = vpop.f32.mrf.mxu0
      %v678 = vadd.f32 %v490, %v677
      %v679 = vpop.f32.mrf.mxu0
      %v680 = vadd.f32 %v490, %v679
      %681 = vmatmul.bf16.gmra.mxu0 %v455
      %v682 = vpop.f32.mrf.mxu0
      %v683 = vadd.f32 %v490, %v682
      %v684 = vpop.f32.mrf.mxu0
      %v685 = vadd.f32 %v490, %v684
      %686 = vdwg.mxu0
      %687 = vmatpush.bf16.msra.mxu0 %v623
      %688 = vmatpush.bf16.msra.mxu0 %v619
      %689 = vmatpush.bf16.msra.mxu0 %v615
      %690 = vmatpush.bf16.msra.mxu0 %v611
      %691 = vmatpush.bf16.msra.mxu0 %v607
      %692 = vmatpush.bf16.msra.mxu0 %v603
      %693 = vmatpush.bf16.msra.mxu0 %v599
      %694 = vmatpush.bf16.msra.mxu0 %v595
      %695 = vmatmul.bf16.gmra.mxu0 %v452
      %v696 = vpop.f32.mrf.mxu0
      %v697 = vadd.f32 %v491, %v696
      %v698 = vpop.f32.mrf.mxu0
      %v699 = vadd.f32 %v491, %v698
      %700 = vmatmul.bf16.gmra.mxu0 %v453
      %v701 = vpop.f32.mrf.mxu0
      %v702 = vadd.f32 %v491, %v701
      %v703 = vpop.f32.mrf.mxu0
      %v704 = vadd.f32 %v491, %v703
      %705 = vmatmul.bf16.gmra.mxu0 %v454
      %v706 = vpop.f32.mrf.mxu0
      %v707 = vadd.f32 %v491, %v706
      %v708 = vpop.f32.mrf.mxu0
      %v709 = vadd.f32 %v491, %v708
      %710 = vmatmul.bf16.gmra.mxu0 %v455
      %v711 = vpop.f32.mrf.mxu0
      %v712 = vadd.f32 %v491, %v711
      %v713 = vpop.f32.mrf.mxu0
      %v714 = vadd.f32 %v491, %v713
      %715 = vdwg.mxu0
      %716 = vmatpush.bf16.msra.mxu0 %v624
      %717 = vmatpush.bf16.msra.mxu0 %v620
      %718 = vmatpush.bf16.msra.mxu0 %v616
      %719 = vmatpush.bf16.msra.mxu0 %v612
      %720 = vmatpush.bf16.msra.mxu0 %v608
      %721 = vmatpush.bf16.msra.mxu0 %v604
      %722 = vmatpush.bf16.msra.mxu0 %v600
      %723 = vmatpush.bf16.msra.mxu0 %v596
      %724 = vmatmul.bf16.gmra.mxu0 %v452
      %v725 = vpop.f32.mrf.mxu0
      %v726 = vadd.f32 %v492, %v725
      %v727 = vpop.f32.mrf.mxu0
      %v728 = vadd.f32 %v492, %v727
      %729 = vmatmul.bf16.gmra.mxu0 %v453
      %v730 = vpop.f32.mrf.mxu0
      %v731 = vadd.f32 %v492, %v730
      %v732 = vpop.f32.mrf.mxu0
      %v733 = vadd.f32 %v492, %v732
      %734 = vmatmul.bf16.gmra.mxu0 %v454
      %v735 = vpop.f32.mrf.mxu0
      %v736 = vadd.f32 %v492, %v735
      %v737 = vpop.f32.mrf.mxu0
      %v738 = vadd.f32 %v492, %v737
      %739 = vmatmul.bf16.gmra.mxu0 %v455
      %v740 = vpop.f32.mrf.mxu0
      %v741 = vadd.f32 %v492, %v740
      %v742 = vpop.f32.mrf.mxu0
      %v743 = vadd.f32 %v492, %v742
      %744 = vdwg.mxu0
      %745 = vmatpush.bf16.msra.mxu0 %v625
      %746 = vmatpush.bf16.msra.mxu0 %v621
      %747 = vmatpush.bf16.msra.mxu0 %v617
      %748 = vmatpush.bf16.msra.mxu0 %v613
      %749 = vmatpush.bf16.msra.mxu0 %v609
      %750 = vmatpush.bf16.msra.mxu0 %v605
      %751 = vmatpush.bf16.msra.mxu0 %v601
      %752 = vmatpush.bf16.msra.mxu0 %v597
      %753 = vmatmul.bf16.gmra.mxu0 %v452
      %v754 = vpop.f32.mrf.mxu0
      %v755 = vadd.f32 %v493, %v754
      %v756 = vpop.f32.mrf.mxu0
      %v757 = vadd.f32 %v493, %v756
      %758 = vmatmul.bf16.gmra.mxu0 %v453
      %v759 = vpop.f32.mrf.mxu0
      %v760 = vadd.f32 %v493, %v759
      %v761 = vpop.f32.mrf.mxu0
      %v762 = vadd.f32 %v493, %v761
      %763 = vmatmul.bf16.gmra.mxu0 %v454
      %v764 = vpop.f32.mrf.mxu0
      %v765 = vadd.f32 %v493, %v764
      %v766 = vpop.f32.mrf.mxu0
      %v767 = vadd.f32 %v493, %v766
      %768 = vmatmul.bf16.gmra.mxu0 %v455
      %v769 = vpop.f32.mrf.mxu0
      %v770 = vadd.f32 %v493, %v769
      %v771 = vpop.f32.mrf.mxu0
      %v772 = vadd.f32 %v493, %v771
      %773 = vdwg.mxu0
      %v774 = vmul.f32 %v668, 0.5
      %v775 = vmul.f32 %v697, 0.5
      %v776 = vmul.f32 %v726, 0.5
      %v777 = vmul.f32 %v755, 0.5
      %v778 = vmul.f32 %v670, 0.5
      %v779 = vmul.f32 %v699, 0.5
      %v780 = vmul.f32 %v728, 0.5
      %v781 = vmul.f32 %v757, 0.5
      %v782 = vmul.f32 %v673, 0.5
      %v783 = vmul.f32 %v702, 0.5
      %v784 = vmul.f32 %v731, 0.5
      %v785 = vmul.f32 %v760, 0.5
      %v786 = vmul.f32 %v675, 0.5
      %v787 = vmul.f32 %v704, 0.5
      %v788 = vmul.f32 %v733, 0.5
      %v789 = vmul.f32 %v762, 0.5
      %v790 = vmul.f32 %v678, 0.5
      %v791 = vmul.f32 %v707, 0.5
      %v792 = vmul.f32 %v736, 0.5
      %v793 = vmul.f32 %v765, 0.5
      %v794 = vmul.f32 %v680, 0.5
      %v795 = vmul.f32 %v709, 0.5
      %v796 = vmul.f32 %v738, 0.5
      %v797 = vmul.f32 %v767, 0.5
      %v798 = vmul.f32 %v683, 0.5
      %v799 = vmul.f32 %v712, 0.5
      %v800 = vmul.f32 %v741, 0.5
      %v801 = vmul.f32 %v770, 0.5
      %v802 = vmul.f32 %v685, 0.5
      %v803 = vmul.f32 %v714, 0.5
      %v804 = vmul.f32 %v743, 0.5
      %v805 = vmul.f32 %v772, 0.5
      %v806 = vmul.f32 %v668, 0.70710677
      %v807 = vmul.f32 %v697, 0.70710677
      %v808 = vmul.f32 %v726, 0.70710677
      %v809 = vmul.f32 %v755, 0.70710677
      %v810 = vmul.f32 %v670, 0.70710677
      %v811 = vmul.f32 %v699, 0.70710677
      %v812 = vmul.f32 %v728, 0.70710677
      %v813 = vmul.f32 %v757, 0.70710677
      %v814 = vmul.f32 %v673, 0.70710677
      %v815 = vmul.f32 %v702, 0.70710677
      %v816 = vmul.f32 %v731, 0.70710677
      %v817 = vmul.f32 %v760, 0.70710677
      %v818 = vmul.f32 %v675, 0.70710677
      %v819 = vmul.f32 %v704, 0.70710677
      %v820 = vmul.f32 %v733, 0.70710677
      %v821 = vmul.f32 %v762, 0.70710677
      %v822 = vmul.f32 %v678, 0.70710677
      %v823 = vmul.f32 %v707, 0.70710677
      %v824 = vmul.f32 %v736, 0.70710677
      %v825 = vmul.f32 %v765, 0.70710677
      %v826 = vmul.f32 %v680, 0.70710677
      %v827 = vmul.f32 %v709, 0.70710677
      %v828 = vmul.f32 %v738, 0.70710677
      %v829 = vmul.f32 %v767, 0.70710677
      %v830 = vmul.f32 %v683, 0.70710677
      %v831 = vmul.f32 %v712, 0.70710677
      %v832 = vmul.f32 %v741, 0.70710677
      %v833 = vmul.f32 %v770, 0.70710677
      %v834 = vmul.f32 %v685, 0.70710677
      %v835 = vmul.f32 %v714, 0.70710677
      %v836 = vmul.f32 %v743, 0.70710677
      %v837 = vmul.f32 %v772, 0.70710677
      %v838 = vand.u32 2147483647, %v806
      %v839 = vand.u32 2147483647, %v807
      %v840 = vand.u32 2147483647, %v808
      %v841 = vand.u32 2147483647, %v809
      %v842 = vand.u32 2147483647, %v810
      %v843 = vand.u32 2147483647, %v811
      %v844 = vand.u32 2147483647, %v812
      %v845 = vand.u32 2147483647, %v813
      %v846 = vand.u32 2147483647, %v814
      %v847 = vand.u32 2147483647, %v815
      %v848 = vand.u32 2147483647, %v816
      %v849 = vand.u32 2147483647, %v817
      %v850 = vand.u32 2147483647, %v818
      %v851 = vand.u32 2147483647, %v819
      %v852 = vand.u32 2147483647, %v820
      %v853 = vand.u32 2147483647, %v821
      %v854 = vand.u32 2147483647, %v822
      %v855 = vand.u32 2147483647, %v823
      %v856 = vand.u32 2147483647, %v824
      %v857 = vand.u32 2147483647, %v825
      %v858 = vand.u32 2147483647, %v826
      %v859 = vand.u32 2147483647, %v827
      %v860 = vand.u32 2147483647, %v828
      %v861 = vand.u32 2147483647, %v829
      %v862 = vand.u32 2147483647, %v830
      %v863 = vand.u32 2147483647, %v831
      %v864 = vand.u32 2147483647, %v832
      %v865 = vand.u32 2147483647, %v833
      %v866 = vand.u32 2147483647, %v834
      %v867 = vand.u32 2147483647, %v835
      %v868 = vand.u32 2147483647, %v836
      %v869 = vand.u32 2147483647, %v837
      %v870 = vmul.f32 %v838, 0.3275911
      %v871 = vmul.f32 %v839, 0.3275911
      %v872 = vmul.f32 %v840, 0.3275911
      %v873 = vmul.f32 %v841, 0.3275911
      %v874 = vmul.f32 %v842, 0.3275911
      %v875 = vmul.f32 %v843, 0.3275911
      %v876 = vmul.f32 %v844, 0.3275911
      %v877 = vmul.f32 %v845, 0.3275911
      %v878 = vmul.f32 %v846, 0.3275911
      %v879 = vmul.f32 %v847, 0.3275911
      %v880 = vmul.f32 %v848, 0.3275911
      %v881 = vmul.f32 %v849, 0.3275911
      %v882 = vmul.f32 %v850, 0.3275911
      %v883 = vmul.f32 %v851, 0.3275911
      %v884 = vmul.f32 %v852, 0.3275911
      %v885 = vmul.f32 %v853, 0.3275911
      %v886 = vmul.f32 %v854, 0.3275911
      %v887 = vmul.f32 %v855, 0.3275911
      %v888 = vmul.f32 %v856, 0.3275911
      %v889 = vmul.f32 %v857, 0.3275911
      %v890 = vmul.f32 %v858, 0.3275911
      %v891 = vmul.f32 %v859, 0.3275911
      %v892 = vmul.f32 %v860, 0.3275911
      %v893 = vmul.f32 %v861, 0.3275911
      %v894 = vmul.f32 %v862, 0.3275911
      %v895 = vmul.f32 %v863, 0.3275911
      %v896 = vmul.f32 %v864, 0.3275911
      %v897 = vmul.f32 %v865, 0.3275911
      %v898 = vmul.f32 %v866, 0.3275911
      %v899 = vmul.f32 %v867, 0.3275911
      %v900 = vmul.f32 %v868, 0.3275911
      %v901 = vmul.f32 %v869, 0.3275911
      %v902 = vadd.f32 %v870, 1.0
      %v903 = vadd.f32 %v871, 1.0
      %v904 = vadd.f32 %v872, 1.0
      %v905 = vadd.f32 %v873, 1.0
      %v906 = vadd.f32 %v874, 1.0
      %v907 = vadd.f32 %v875, 1.0
      %v908 = vadd.f32 %v876, 1.0
      %v909 = vadd.f32 %v877, 1.0
      %v910 = vadd.f32 %v878, 1.0
      %v911 = vadd.f32 %v879, 1.0
      %v912 = vadd.f32 %v880, 1.0
      %v913 = vadd.f32 %v881, 1.0
      %v914 = vadd.f32 %v882, 1.0
      %v915 = vadd.f32 %v883, 1.0
      %v916 = vadd.f32 %v884, 1.0
      %v917 = vadd.f32 %v885, 1.0
      %v918 = vadd.f32 %v886, 1.0
      %v919 = vadd.f32 %v887, 1.0
      %v920 = vadd.f32 %v888, 1.0
      %v921 = vadd.f32 %v889, 1.0
      %v922 = vadd.f32 %v890, 1.0
      %v923 = vadd.f32 %v891, 1.0
      %v924 = vadd.f32 %v892, 1.0
      %v925 = vadd.f32 %v893, 1.0
      %v926 = vadd.f32 %v894, 1.0
      %v927 = vadd.f32 %v895, 1.0
      %v928 = vadd.f32 %v896, 1.0
      %v929 = vadd.f32 %v897, 1.0
      %v930 = vadd.f32 %v898, 1.0
      %v931 = vadd.f32 %v899, 1.0
      %v932 = vadd.f32 %v900, 1.0
      %v933 = vadd.f32 %v901, 1.0
      %v934 = vrcp.pop %v902
      %v935 = vrcp.pop %v903
      %v936 = vrcp.pop %v904
      %v937 = vrcp.pop %v905
      %v938 = vrcp.pop %v906
      %v939 = vrcp.pop %v907
      %v940 = vrcp.pop %v908
      %v941 = vrcp.pop %v909
      %v942 = vrcp.pop %v910
      %v943 = vrcp.pop %v911
      %v944 = vrcp.pop %v912
      %v945 = vrcp.pop %v913
      %v946 = vrcp.pop %v914
      %v947 = vrcp.pop %v915
      %v948 = vrcp.pop %v916
      %v949 = vrcp.pop %v917
      %v950 = vrcp.pop %v918
      %v951 = vrcp.pop %v919
      %v952 = vrcp.pop %v920
      %v953 = vrcp.pop %v921
      %v954 = vrcp.pop %v922
      %v955 = vrcp.pop %v923
      %v956 = vrcp.pop %v924
      %v957 = vrcp.pop %v925
      %v958 = vrcp.pop %v926
      %v959 = vrcp.pop %v927
      %v960 = vrcp.pop %v928
      %v961 = vrcp.pop %v929
      %v962 = vrcp.pop %v930
      %v963 = vrcp.pop %v931
      %v964 = vrcp.pop %v932
      %v965 = vrcp.pop %v933
      %v966 = vmul.f32 %v934, 1.0614054
      %v967 = vmul.f32 %v935, 1.0614054
      %v968 = vmul.f32 %v936, 1.0614054
      %v969 = vmul.f32 %v937, 1.0614054
      %v970 = vmul.f32 %v938, 1.0614054
      %v971 = vmul.f32 %v939, 1.0614054
      %v972 = vmul.f32 %v940, 1.0614054
      %v973 = vmul.f32 %v941, 1.0614054
      %v974 = vmul.f32 %v942, 1.0614054
      %v975 = vmul.f32 %v943, 1.0614054
      %v976 = vmul.f32 %v944, 1.0614054
      %v977 = vmul.f32 %v945, 1.0614054
      %v978 = vmul.f32 %v946, 1.0614054
      %v979 = vmul.f32 %v947, 1.0614054
      %v980 = vmul.f32 %v948, 1.0614054
      %v981 = vmul.f32 %v949, 1.0614054
      %v982 = vmul.f32 %v950, 1.0614054
      %v983 = vmul.f32 %v951, 1.0614054
      %v984 = vmul.f32 %v952, 1.0614054
      %v985 = vmul.f32 %v953, 1.0614054
      %v986 = vmul.f32 %v954, 1.0614054
      %v987 = vmul.f32 %v955, 1.0614054
      %v988 = vmul.f32 %v956, 1.0614054
      %v989 = vmul.f32 %v957, 1.0614054
      %v990 = vmul.f32 %v958, 1.0614054
      %v991 = vmul.f32 %v959, 1.0614054
      %v992 = vmul.f32 %v960, 1.0614054
      %v993 = vmul.f32 %v961, 1.0614054
      %v994 = vmul.f32 %v962, 1.0614054
      %v995 = vmul.f32 %v963, 1.0614054
      %v996 = vmul.f32 %v964, 1.0614054
      %v997 = vmul.f32 %v965, 1.0614054
      %v998 = vadd.f32 %v966, -1.4531521
      %v999 = vadd.f32 %v967, -1.4531521
      %v1000 = vadd.f32 %v968, -1.4531521
      %v1001 = vadd.f32 %v969, -1.4531521
      %v1002 = vadd.f32 %v970, -1.4531521
      %v1003 = vadd.f32 %v971, -1.4531521
      %v1004 = vadd.f32 %v972, -1.4531521
      %v1005 = vadd.f32 %v973, -1.4531521
      %v1006 = vadd.f32 %v974, -1.4531521
      %v1007 = vadd.f32 %v975, -1.4531521
      %v1008 = vadd.f32 %v976, -1.4531521
      %v1009 = vadd.f32 %v977, -1.4531521
      %v1010 = vadd.f32 %v978, -1.4531521
      %v1011 = vadd.f32 %v979, -1.4531521
      %v1012 = vadd.f32 %v980, -1.4531521
      %v1013 = vadd.f32 %v981, -1.4531521
      %v1014 = vadd.f32 %v982, -1.4531521
      %v1015 = vadd.f32 %v983, -1.4531521
      %v1016 = vadd.f32 %v984, -1.4531521
      %v1017 = vadd.f32 %v985, -1.4531521
      %v1018 = vadd.f32 %v986, -1.4531521
      %v1019 = vadd.f32 %v987, -1.4531521
      %v1020 = vadd.f32 %v988, -1.4531521
      %v1021 = vadd.f32 %v989, -1.4531521
      %v1022 = vadd.f32 %v990, -1.4531521
      %v1023 = vadd.f32 %v991, -1.4531521
      %v1024 = vadd.f32 %v992, -1.4531521
      %v1025 = vadd.f32 %v993, -1.4531521
      %v1026 = vadd.f32 %v994, -1.4531521
      %v1027 = vadd.f32 %v995, -1.4531521
      %v1028 = vadd.f32 %v996, -1.4531521
      %v1029 = vadd.f32 %v997, -1.4531521
      %v1030 = vmul.f32 %v934, %v998
      %v1031 = vmul.f32 %v935, %v999
      %v1032 = vmul.f32 %v936, %v1000
      %v1033 = vmul.f32 %v937, %v1001
      %v1034 = vmul.f32 %v938, %v1002
      %v1035 = vmul.f32 %v939, %v1003
      %v1036 = vmul.f32 %v940, %v1004
      %v1037 = vmul.f32 %v941, %v1005
      %v1038 = vmul.f32 %v942, %v1006
      %v1039 = vmul.f32 %v943, %v1007
      %v1040 = vmul.f32 %v944, %v1008
      %v1041 = vmul.f32 %v945, %v1009
      %v1042 = vmul.f32 %v946, %v1010
      %v1043 = vmul.f32 %v947, %v1011
      %v1044 = vmul.f32 %v948, %v1012
      %v1045 = vmul.f32 %v949, %v1013
      %v1046 = vmul.f32 %v950, %v1014
      %v1047 = vmul.f32 %v951, %v1015
      %v1048 = vmul.f32 %v952, %v1016
      %v1049 = vmul.f32 %v953, %v1017
      %v1050 = vmul.f32 %v954, %v1018
      %v1051 = vmul.f32 %v955, %v1019
      %v1052 = vmul.f32 %v956, %v1020
      %v1053 = vmul.f32 %v957, %v1021
      %v1054 = vmul.f32 %v958, %v1022
      %v1055 = vmul.f32 %v959, %v1023
      %v1056 = vmul.f32 %v960, %v1024
      %v1057 = vmul.f32 %v961, %v1025
      %v1058 = vmul.f32 %v962, %v1026
      %v1059 = vmul.f32 %v963, %v1027
      %v1060 = vmul.f32 %v964, %v1028
      %v1061 = vmul.f32 %v965, %v1029
      %v1062 = vadd.f32 %v1030, 1.4214138
      %v1063 = vadd.f32 %v1031, 1.4214138
      %v1064 = vadd.f32 %v1032, 1.4214138
      %v1065 = vadd.f32 %v1033, 1.4214138
      %v1066 = vadd.f32 %v1034, 1.4214138
      %v1067 = vadd.f32 %v1035, 1.4214138
      %v1068 = vadd.f32 %v1036, 1.4214138
      %v1069 = vadd.f32 %v1037, 1.4214138
      %v1070 = vadd.f32 %v1038, 1.4214138
      %v1071 = vadd.f32 %v1039, 1.4214138
      %v1072 = vadd.f32 %v1040, 1.4214138
      %v1073 = vadd.f32 %v1041, 1.4214138
      %v1074 = vadd.f32 %v1042, 1.4214138
      %v1075 = vadd.f32 %v1043, 1.4214138
      %v1076 = vadd.f32 %v1044, 1.4214138
      %v1077 = vadd.f32 %v1045, 1.4214138
      %v1078 = vadd.f32 %v1046, 1.4214138
      %v1079 = vadd.f32 %v1047, 1.4214138
      %v1080 = vadd.f32 %v1048, 1.4214138
      %v1081 = vadd.f32 %v1049, 1.4214138
      %v1082 = vadd.f32 %v1050, 1.4214138
      %v1083 = vadd.f32 %v1051, 1.4214138
      %v1084 = vadd.f32 %v1052, 1.4214138
      %v1085 = vadd.f32 %v1053, 1.4214138
      %v1086 = vadd.f32 %v1054, 1.4214138
      %v1087 = vadd.f32 %v1055, 1.4214138
      %v1088 = vadd.f32 %v1056, 1.4214138
      %v1089 = vadd.f32 %v1057, 1.4214138
      %v1090 = vadd.f32 %v1058, 1.4214138
      %v1091 = vadd.f32 %v1059, 1.4214138
      %v1092 = vadd.f32 %v1060, 1.4214138
      %v1093 = vadd.f32 %v1061, 1.4214138
      %v1094 = vmul.f32 %v934, %v1062
      %v1095 = vmul.f32 %v935, %v1063
      %v1096 = vmul.f32 %v936, %v1064
      %v1097 = vmul.f32 %v937, %v1065
      %v1098 = vmul.f32 %v938, %v1066
      %v1099 = vmul.f32 %v939, %v1067
      %v1100 = vmul.f32 %v940, %v1068
      %v1101 = vmul.f32 %v941, %v1069
      %v1102 = vmul.f32 %v942, %v1070
      %v1103 = vmul.f32 %v943, %v1071
      %v1104 = vmul.f32 %v944, %v1072
      %v1105 = vmul.f32 %v945, %v1073
      %v1106 = vmul.f32 %v946, %v1074
      %v1107 = vmul.f32 %v947, %v1075
      %v1108 = vmul.f32 %v948, %v1076
      %v1109 = vmul.f32 %v949, %v1077
      %v1110 = vmul.f32 %v950, %v1078
      %v1111 = vmul.f32 %v951, %v1079
      %v1112 = vmul.f32 %v952, %v1080
      %v1113 = vmul.f32 %v953, %v1081
      %v1114 = vmul.f32 %v954, %v1082
      %v1115 = vmul.f32 %v955, %v1083
      %v1116 = vmul.f32 %v956, %v1084
      %v1117 = vmul.f32 %v957, %v1085
      %v1118 = vmul.f32 %v958, %v1086
      %v1119 = vmul.f32 %v959, %v1087
      %v1120 = vmul.f32 %v960, %v1088
      %v1121 = vmul.f32 %v961, %v1089
      %v1122 = vmul.f32 %v962, %v1090
      %v1123 = vmul.f32 %v963, %v1091
      %v1124 = vmul.f32 %v964, %v1092
      %v1125 = vmul.f32 %v965, %v1093
      %v1126 = vadd.f32 %v1094, -0.28449672
      %v1127 = vadd.f32 %v1095, -0.28449672
      %v1128 = vadd.f32 %v1096, -0.28449672
      %v1129 = vadd.f32 %v1097, -0.28449672
      %v1130 = vadd.f32 %v1098, -0.28449672
      %v1131 = vadd.f32 %v1099, -0.28449672
      %v1132 = vadd.f32 %v1100, -0.28449672
      %v1133 = vadd.f32 %v1101, -0.28449672
      %v1134 = vadd.f32 %v1102, -0.28449672
      %v1135 = vadd.f32 %v1103, -0.28449672
      %v1136 = vadd.f32 %v1104, -0.28449672
      %v1137 = vadd.f32 %v1105, -0.28449672
      %v1138 = vadd.f32 %v1106, -0.28449672
      %v1139 = vadd.f32 %v1107, -0.28449672
      %v1140 = vadd.f32 %v1108, -0.28449672
      %v1141 = vadd.f32 %v1109, -0.28449672
      %v1142 = vadd.f32 %v1110, -0.28449672
      %v1143 = vadd.f32 %v1111, -0.28449672
      %v1144 = vadd.f32 %v1112, -0.28449672
      %v1145 = vadd.f32 %v1113, -0.28449672
      %v1146 = vadd.f32 %v1114, -0.28449672
      %v1147 = vadd.f32 %v1115, -0.28449672
      %v1148 = vadd.f32 %v1116, -0.28449672
      %v1149 = vadd.f32 %v1117, -0.28449672
      %v1150 = vadd.f32 %v1118, -0.28449672
      %v1151 = vadd.f32 %v1119, -0.28449672
      %v1152 = vadd.f32 %v1120, -0.28449672
      %v1153 = vadd.f32 %v1121, -0.28449672
      %v1154 = vadd.f32 %v1122, -0.28449672
      %v1155 = vadd.f32 %v1123, -0.28449672
      %v1156 = vadd.f32 %v1124, -0.28449672
      %v1157 = vadd.f32 %v1125, -0.28449672
      %v1158 = vmul.f32 %v934, %v1126
      %v1159 = vmul.f32 %v935, %v1127
      %v1160 = vmul.f32 %v936, %v1128
      %v1161 = vmul.f32 %v937, %v1129
      %v1162 = vmul.f32 %v938, %v1130
      %v1163 = vmul.f32 %v939, %v1131
      %v1164 = vmul.f32 %v940, %v1132
      %v1165 = vmul.f32 %v941, %v1133
      %v1166 = vmul.f32 %v942, %v1134
      %v1167 = vmul.f32 %v943, %v1135
      %v1168 = vmul.f32 %v944, %v1136
      %v1169 = vmul.f32 %v945, %v1137
      %v1170 = vmul.f32 %v946, %v1138
      %v1171 = vmul.f32 %v947, %v1139
      %v1172 = vmul.f32 %v948, %v1140
      %v1173 = vmul.f32 %v949, %v1141
      %v1174 = vmul.f32 %v950, %v1142
      %v1175 = vmul.f32 %v951, %v1143
      %v1176 = vmul.f32 %v952, %v1144
      %v1177 = vmul.f32 %v953, %v1145
      %v1178 = vmul.f32 %v954, %v1146
      %v1179 = vmul.f32 %v955, %v1147
      %v1180 = vmul.f32 %v956, %v1148
      %v1181 = vmul.f32 %v957, %v1149
      %v1182 = vmul.f32 %v958, %v1150
      %v1183 = vmul.f32 %v959, %v1151
      %v1184 = vmul.f32 %v960, %v1152
      %v1185 = vmul.f32 %v961, %v1153
      %v1186 = vmul.f32 %v962, %v1154
      %v1187 = vmul.f32 %v963, %v1155
      %v1188 = vmul.f32 %v964, %v1156
      %v1189 = vmul.f32 %v965, %v1157
      %v1190 = vadd.f32 %v1158, 0.2548296
      %v1191 = vadd.f32 %v1159, 0.2548296
      %v1192 = vadd.f32 %v1160, 0.2548296
      %v1193 = vadd.f32 %v1161, 0.2548296
      %v1194 = vadd.f32 %v1162, 0.2548296
      %v1195 = vadd.f32 %v1163, 0.2548296
      %v1196 = vadd.f32 %v1164, 0.2548296
      %v1197 = vadd.f32 %v1165, 0.2548296
      %v1198 = vadd.f32 %v1166, 0.2548296
      %v1199 = vadd.f32 %v1167, 0.2548296
      %v1200 = vadd.f32 %v1168, 0.2548296
      %v1201 = vadd.f32 %v1169, 0.2548296
      %v1202 = vadd.f32 %v1170, 0.2548296
      %v1203 = vadd.f32 %v1171, 0.2548296
      %v1204 = vadd.f32 %v1172, 0.2548296
      %v1205 = vadd.f32 %v1173, 0.2548296
      %v1206 = vadd.f32 %v1174, 0.2548296
      %v1207 = vadd.f32 %v1175, 0.2548296
      %v1208 = vadd.f32 %v1176, 0.2548296
      %v1209 = vadd.f32 %v1177, 0.2548296
      %v1210 = vadd.f32 %v1178, 0.2548296
      %v1211 = vadd.f32 %v1179, 0.2548296
      %v1212 = vadd.f32 %v1180, 0.2548296
      %v1213 = vadd.f32 %v1181, 0.2548296
      %v1214 = vadd.f32 %v1182, 0.2548296
      %v1215 = vadd.f32 %v1183, 0.2548296
      %v1216 = vadd.f32 %v1184, 0.2548296
      %v1217 = vadd.f32 %v1185, 0.2548296
      %v1218 = vadd.f32 %v1186, 0.2548296
      %v1219 = vadd.f32 %v1187, 0.2548296
      %v1220 = vadd.f32 %v1188, 0.2548296
      %v1221 = vadd.f32 %v1189, 0.2548296
      %v1222 = vmul.f32 %v934, %v1190
      %v1223 = vmul.f32 %v935, %v1191
      %v1224 = vmul.f32 %v936, %v1192
      %v1225 = vmul.f32 %v937, %v1193
      %v1226 = vmul.f32 %v938, %v1194
      %v1227 = vmul.f32 %v939, %v1195
      %v1228 = vmul.f32 %v940, %v1196
      %v1229 = vmul.f32 %v941, %v1197
      %v1230 = vmul.f32 %v942, %v1198
      %v1231 = vmul.f32 %v943, %v1199
      %v1232 = vmul.f32 %v944, %v1200
      %v1233 = vmul.f32 %v945, %v1201
      %v1234 = vmul.f32 %v946, %v1202
      %v1235 = vmul.f32 %v947, %v1203
      %v1236 = vmul.f32 %v948, %v1204
      %v1237 = vmul.f32 %v949, %v1205
      %v1238 = vmul.f32 %v950, %v1206
      %v1239 = vmul.f32 %v951, %v1207
      %v1240 = vmul.f32 %v952, %v1208
      %v1241 = vmul.f32 %v953, %v1209
      %v1242 = vmul.f32 %v954, %v1210
      %v1243 = vmul.f32 %v955, %v1211
      %v1244 = vmul.f32 %v956, %v1212
      %v1245 = vmul.f32 %v957, %v1213
      %v1246 = vmul.f32 %v958, %v1214
      %v1247 = vmul.f32 %v959, %v1215
      %v1248 = vmul.f32 %v960, %v1216
      %v1249 = vmul.f32 %v961, %v1217
      %v1250 = vmul.f32 %v962, %v1218
      %v1251 = vmul.f32 %v963, %v1219
      %v1252 = vmul.f32 %v964, %v1220
      %v1253 = vmul.f32 %v965, %v1221
      %v1254 = vsub.f32 0.0, %v838
      %v1255 = vsub.f32 0.0, %v839
      %v1256 = vsub.f32 0.0, %v840
      %v1257 = vsub.f32 0.0, %v841
      %v1258 = vsub.f32 0.0, %v842
      %v1259 = vsub.f32 0.0, %v843
      %v1260 = vsub.f32 0.0, %v844
      %v1261 = vsub.f32 0.0, %v845
      %v1262 = vsub.f32 0.0, %v846
      %v1263 = vsub.f32 0.0, %v847
      %v1264 = vsub.f32 0.0, %v848
      %v1265 = vsub.f32 0.0, %v849
      %v1266 = vsub.f32 0.0, %v850
      %v1267 = vsub.f32 0.0, %v851
      %v1268 = vsub.f32 0.0, %v852
      %v1269 = vsub.f32 0.0, %v853
      %v1270 = vsub.f32 0.0, %v854
      %v1271 = vsub.f32 0.0, %v855
      %v1272 = vsub.f32 0.0, %v856
      %v1273 = vsub.f32 0.0, %v857
      %v1274 = vsub.f32 0.0, %v858
      %v1275 = vsub.f32 0.0, %v859
      %v1276 = vsub.f32 0.0, %v860
      %v1277 = vsub.f32 0.0, %v861
      %v1278 = vsub.f32 0.0, %v862
      %v1279 = vsub.f32 0.0, %v863
      %v1280 = vsub.f32 0.0, %v864
      %v1281 = vsub.f32 0.0, %v865
      %v1282 = vsub.f32 0.0, %v866
      %v1283 = vsub.f32 0.0, %v867
      %v1284 = vsub.f32 0.0, %v868
      %v1285 = vsub.f32 0.0, %v869
      %v1286 = vmul.f32 %v1254, %v838
      %v1287 = vmul.f32 %v1255, %v839
      %v1288 = vmul.f32 %v1256, %v840
      %v1289 = vmul.f32 %v1257, %v841
      %v1290 = vmul.f32 %v1258, %v842
      %v1291 = vmul.f32 %v1259, %v843
      %v1292 = vmul.f32 %v1260, %v844
      %v1293 = vmul.f32 %v1261, %v845
      %v1294 = vmul.f32 %v1262, %v846
      %v1295 = vmul.f32 %v1263, %v847
      %v1296 = vmul.f32 %v1264, %v848
      %v1297 = vmul.f32 %v1265, %v849
      %v1298 = vmul.f32 %v1266, %v850
      %v1299 = vmul.f32 %v1267, %v851
      %v1300 = vmul.f32 %v1268, %v852
      %v1301 = vmul.f32 %v1269, %v853
      %v1302 = vmul.f32 %v1270, %v854
      %v1303 = vmul.f32 %v1271, %v855
      %v1304 = vmul.f32 %v1272, %v856
      %v1305 = vmul.f32 %v1273, %v857
      %v1306 = vmul.f32 %v1274, %v858
      %v1307 = vmul.f32 %v1275, %v859
      %v1308 = vmul.f32 %v1276, %v860
      %v1309 = vmul.f32 %v1277, %v861
      %v1310 = vmul.f32 %v1278, %v862
      %v1311 = vmul.f32 %v1279, %v863
      %v1312 = vmul.f32 %v1280, %v864
      %v1313 = vmul.f32 %v1281, %v865
      %v1314 = vmul.f32 %v1282, %v866
      %v1315 = vmul.f32 %v1283, %v867
      %v1316 = vmul.f32 %v1284, %v868
      %v1317 = vmul.f32 %v1285, %v869
      %v1318 = vmul.f32 %v1286, 1.442695
      %v1319 = vpow.pop %v1318
      %v1320 = vmul.f32 %v1287, 1.442695
      %v1321 = vpow.pop %v1320
      %v1322 = vmul.f32 %v1288, 1.442695
      %v1323 = vpow.pop %v1322
      %v1324 = vmul.f32 %v1289, 1.442695
      %v1325 = vpow.pop %v1324
      %v1326 = vmul.f32 %v1290, 1.442695
      %v1327 = vpow.pop %v1326
      %v1328 = vmul.f32 %v1291, 1.442695
      %v1329 = vpow.pop %v1328
      %v1330 = vmul.f32 %v1292, 1.442695
      %v1331 = vpow.pop %v1330
      %v1332 = vmul.f32 %v1293, 1.442695
      %v1333 = vpow.pop %v1332
      %v1334 = vmul.f32 %v1294, 1.442695
      %v1335 = vpow.pop %v1334
      %v1336 = vmul.f32 %v1295, 1.442695
      %v1337 = vpow.pop %v1336
      %v1338 = vmul.f32 %v1296, 1.442695
      %v1339 = vpow.pop %v1338
      %v1340 = vmul.f32 %v1297, 1.442695
      %v1341 = vpow.pop %v1340
      %v1342 = vmul.f32 %v1298, 1.442695
      %v1343 = vpow.pop %v1342
      %v1344 = vmul.f32 %v1299, 1.442695
      %v1345 = vpow.pop %v1344
      %v1346 = vmul.f32 %v1300, 1.442695
      %v1347 = vpow.pop %v1346
      %v1348 = vmul.f32 %v1301, 1.442695
      %v1349 = vpow.pop %v1348
      %v1350 = vmul.f32 %v1302, 1.442695
      %v1351 = vpow.pop %v1350
      %v1352 = vmul.f32 %v1303, 1.442695
      %v1353 = vpow.pop %v1352
      %v1354 = vmul.f32 %v1304, 1.442695
      %v1355 = vpow.pop %v1354
      %v1356 = vmul.f32 %v1305, 1.442695
      %v1357 = vpow.pop %v1356
      %v1358 = vmul.f32 %v1306, 1.442695
      %v1359 = vpow.pop %v1358
      %v1360 = vmul.f32 %v1307, 1.442695
      %v1361 = vpow.pop %v1360
      %v1362 = vmul.f32 %v1308, 1.442695
      %v1363 = vpow.pop %v1362
      %v1364 = vmul.f32 %v1309, 1.442695
      %v1365 = vpow.pop %v1364
      %v1366 = vmul.f32 %v1310, 1.442695
      %v1367 = vpow.pop %v1366
      %v1368 = vmul.f32 %v1311, 1.442695
      %v1369 = vpow.pop %v1368
      %v1370 = vmul.f32 %v1312, 1.442695
      %v1371 = vpow.pop %v1370
      %v1372 = vmul.f32 %v1313, 1.442695
      %v1373 = vpow.pop %v1372
      %v1374 = vmul.f32 %v1314, 1.442695
      %v1375 = vpow.pop %v1374
      %v1376 = vmul.f32 %v1315, 1.442695
      %v1377 = vpow.pop %v1376
      %v1378 = vmul.f32 %v1316, 1.442695
      %v1379 = vpow.pop %v1378
      %v1380 = vmul.f32 %v1317, 1.442695
      %v1381 = vpow.pop %v1380
      %v1382 = vmul.f32 %v1222, %v1319
      %v1383 = vmul.f32 %v1223, %v1321
      %v1384 = vmul.f32 %v1224, %v1323
      %v1385 = vmul.f32 %v1225, %v1325
      %v1386 = vmul.f32 %v1226, %v1327
      %v1387 = vmul.f32 %v1227, %v1329
      %v1388 = vmul.f32 %v1228, %v1331
      %v1389 = vmul.f32 %v1229, %v1333
      %v1390 = vmul.f32 %v1230, %v1335
      %v1391 = vmul.f32 %v1231, %v1337
      %v1392 = vmul.f32 %v1232, %v1339
      %v1393 = vmul.f32 %v1233, %v1341
      %v1394 = vmul.f32 %v1234, %v1343
      %v1395 = vmul.f32 %v1235, %v1345
      %v1396 = vmul.f32 %v1236, %v1347
      %v1397 = vmul.f32 %v1237, %v1349
      %v1398 = vmul.f32 %v1238, %v1351
      %v1399 = vmul.f32 %v1239, %v1353
      %v1400 = vmul.f32 %v1240, %v1355
      %v1401 = vmul.f32 %v1241, %v1357
      %v1402 = vmul.f32 %v1242, %v1359
      %v1403 = vmul.f32 %v1243, %v1361
      %v1404 = vmul.f32 %v1244, %v1363
      %v1405 = vmul.f32 %v1245, %v1365
      %v1406 = vmul.f32 %v1246, %v1367
      %v1407 = vmul.f32 %v1247, %v1369
      %v1408 = vmul.f32 %v1248, %v1371
      %v1409 = vmul.f32 %v1249, %v1373
      %v1410 = vmul.f32 %v1250, %v1375
      %v1411 = vmul.f32 %v1251, %v1377
      %v1412 = vmul.f32 %v1252, %v1379
      %v1413 = vmul.f32 %v1253, %v1381
      %v1414 = vsub.f32 1.0, %v1382
      %v1415 = vsub.f32 1.0, %v1383
      %v1416 = vsub.f32 1.0, %v1384
      %v1417 = vsub.f32 1.0, %v1385
      %v1418 = vsub.f32 1.0, %v1386
      %v1419 = vsub.f32 1.0, %v1387
      %v1420 = vsub.f32 1.0, %v1388
      %v1421 = vsub.f32 1.0, %v1389
      %v1422 = vsub.f32 1.0, %v1390
      %v1423 = vsub.f32 1.0, %v1391
      %v1424 = vsub.f32 1.0, %v1392
      %v1425 = vsub.f32 1.0, %v1393
      %v1426 = vsub.f32 1.0, %v1394
      %v1427 = vsub.f32 1.0, %v1395
      %v1428 = vsub.f32 1.0, %v1396
      %v1429 = vsub.f32 1.0, %v1397
      %v1430 = vsub.f32 1.0, %v1398
      %v1431 = vsub.f32 1.0, %v1399
      %v1432 = vsub.f32 1.0, %v1400
      %v1433 = vsub.f32 1.0, %v1401
      %v1434 = vsub.f32 1.0, %v1402
      %v1435 = vsub.f32 1.0, %v1403
      %v1436 = vsub.f32 1.0, %v1404
      %v1437 = vsub.f32 1.0, %v1405
      %v1438 = vsub.f32 1.0, %v1406
      %v1439 = vsub.f32 1.0, %v1407
      %v1440 = vsub.f32 1.0, %v1408
      %v1441 = vsub.f32 1.0, %v1409
      %v1442 = vsub.f32 1.0, %v1410
      %v1443 = vsub.f32 1.0, %v1411
      %v1444 = vsub.f32 1.0, %v1412
      %v1445 = vsub.f32 1.0, %v1413
      %vm1446 = vcmp.ge.f32.partialorder %v806, 0.0
      %vm1447 = vcmp.ge.f32.partialorder %v807, 0.0
      %vm1448 = vcmp.ge.f32.partialorder %v808, 0.0
      %vm1449 = vcmp.ge.f32.partialorder %v809, 0.0
      %vm1450 = vcmp.ge.f32.partialorder %v810, 0.0
      %vm1451 = vcmp.ge.f32.partialorder %v811, 0.0
      %vm1452 = vcmp.ge.f32.partialorder %v812, 0.0
      %vm1453 = vcmp.ge.f32.partialorder %v813, 0.0
      %vm1454 = vcmp.ge.f32.partialorder %v814, 0.0
      %vm1455 = vcmp.ge.f32.partialorder %v815, 0.0
      %vm1456 = vcmp.ge.f32.partialorder %v816, 0.0
      %vm1457 = vcmp.ge.f32.partialorder %v817, 0.0
      %vm1458 = vcmp.ge.f32.partialorder %v818, 0.0
      %vm1459 = vcmp.ge.f32.partialorder %v819, 0.0
      %vm1460 = vcmp.ge.f32.partialorder %v820, 0.0
      %vm1461 = vcmp.ge.f32.partialorder %v821, 0.0
      %vm1462 = vcmp.ge.f32.partialorder %v822, 0.0
      %vm1463 = vcmp.ge.f32.partialorder %v823, 0.0
      %vm1464 = vcmp.ge.f32.partialorder %v824, 0.0
      %vm1465 = vcmp.ge.f32.partialorder %v825, 0.0
      %vm1466 = vcmp.ge.f32.partialorder %v826, 0.0
      %vm1467 = vcmp.ge.f32.partialorder %v827, 0.0
      %vm1468 = vcmp.ge.f32.partialorder %v828, 0.0
      %vm1469 = vcmp.ge.f32.partialorder %v829, 0.0
      %vm1470 = vcmp.ge.f32.partialorder %v830, 0.0
      %vm1471 = vcmp.ge.f32.partialorder %v831, 0.0
      %vm1472 = vcmp.ge.f32.partialorder %v832, 0.0
      %vm1473 = vcmp.ge.f32.partialorder %v833, 0.0
      %vm1474 = vcmp.ge.f32.partialorder %v834, 0.0
      %vm1475 = vcmp.ge.f32.partialorder %v835, 0.0
      %vm1476 = vcmp.ge.f32.partialorder %v836, 0.0
      %vm1477 = vcmp.ge.f32.partialorder %v837, 0.0
      %v1478 = vsub.f32 0.0, %v1414
      %v1479 = vsub.f32 0.0, %v1415
      %v1480 = vsub.f32 0.0, %v1416
      %v1481 = vsub.f32 0.0, %v1417
      %v1482 = vsub.f32 0.0, %v1418
      %v1483 = vsub.f32 0.0, %v1419
      %v1484 = vsub.f32 0.0, %v1420
      %v1485 = vsub.f32 0.0, %v1421
      %v1486 = vsub.f32 0.0, %v1422
      %v1487 = vsub.f32 0.0, %v1423
      %v1488 = vsub.f32 0.0, %v1424
      %v1489 = vsub.f32 0.0, %v1425
      %v1490 = vsub.f32 0.0, %v1426
      %v1491 = vsub.f32 0.0, %v1427
      %v1492 = vsub.f32 0.0, %v1428
      %v1493 = vsub.f32 0.0, %v1429
      %v1494 = vsub.f32 0.0, %v1430
      %v1495 = vsub.f32 0.0, %v1431
      %v1496 = vsub.f32 0.0, %v1432
      %v1497 = vsub.f32 0.0, %v1433
      %v1498 = vsub.f32 0.0, %v1434
      %v1499 = vsub.f32 0.0, %v1435
      %v1500 = vsub.f32 0.0, %v1436
      %v1501 = vsub.f32 0.0, %v1437
      %v1502 = vsub.f32 0.0, %v1438
      %v1503 = vsub.f32 0.0, %v1439
      %v1504 = vsub.f32 0.0, %v1440
      %v1505 = vsub.f32 0.0, %v1441
      %v1506 = vsub.f32 0.0, %v1442
      %v1507 = vsub.f32 0.0, %v1443
      %v1508 = vsub.f32 0.0, %v1444
      %v1509 = vsub.f32 0.0, %v1445
      %v1510 = vsel %vm1446, %v1414, %v1478
      %v1511 = vsel %vm1447, %v1415, %v1479
      %v1512 = vsel %vm1448, %v1416, %v1480
      %v1513 = vsel %vm1449, %v1417, %v1481
      %v1514 = vsel %vm1450, %v1418, %v1482
      %v1515 = vsel %vm1451, %v1419, %v1483
      %v1516 = vsel %vm1452, %v1420, %v1484
      %v1517 = vsel %vm1453, %v1421, %v1485
      %v1518 = vsel %vm1454, %v1422, %v1486
      %v1519 = vsel %vm1455, %v1423, %v1487
      %v1520 = vsel %vm1456, %v1424, %v1488
      %v1521 = vsel %vm1457, %v1425, %v1489
      %v1522 = vsel %vm1458, %v1426, %v1490
      %v1523 = vsel %vm1459, %v1427, %v1491
      %v1524 = vsel %vm1460, %v1428, %v1492
      %v1525 = vsel %vm1461, %v1429, %v1493
      %v1526 = vsel %vm1462, %v1430, %v1494
      %v1527 = vsel %vm1463, %v1431, %v1495
      %v1528 = vsel %vm1464, %v1432, %v1496
      %v1529 = vsel %vm1465, %v1433, %v1497
      %v1530 = vsel %vm1466, %v1434, %v1498
      %v1531 = vsel %vm1467, %v1435, %v1499
      %v1532 = vsel %vm1468, %v1436, %v1500
      %v1533 = vsel %vm1469, %v1437, %v1501
      %v1534 = vsel %vm1470, %v1438, %v1502
      %v1535 = vsel %vm1471, %v1439, %v1503
      %v1536 = vsel %vm1472, %v1440, %v1504
      %v1537 = vsel %vm1473, %v1441, %v1505
      %v1538 = vsel %vm1474, %v1442, %v1506
      %v1539 = vsel %vm1475, %v1443, %v1507
      %v1540 = vsel %vm1476, %v1444, %v1508
      %v1541 = vsel %vm1477, %v1445, %v1509
      %v1542 = vadd.f32 %v1510, 1.0
      %v1543 = vadd.f32 %v1511, 1.0
      %v1544 = vadd.f32 %v1512, 1.0
      %v1545 = vadd.f32 %v1513, 1.0
      %v1546 = vadd.f32 %v1514, 1.0
      %v1547 = vadd.f32 %v1515, 1.0
      %v1548 = vadd.f32 %v1516, 1.0
      %v1549 = vadd.f32 %v1517, 1.0
      %v1550 = vadd.f32 %v1518, 1.0
      %v1551 = vadd.f32 %v1519, 1.0
      %v1552 = vadd.f32 %v1520, 1.0
      %v1553 = vadd.f32 %v1521, 1.0
      %v1554 = vadd.f32 %v1522, 1.0
      %v1555 = vadd.f32 %v1523, 1.0
      %v1556 = vadd.f32 %v1524, 1.0
      %v1557 = vadd.f32 %v1525, 1.0
      %v1558 = vadd.f32 %v1526, 1.0
      %v1559 = vadd.f32 %v1527, 1.0
      %v1560 = vadd.f32 %v1528, 1.0
      %v1561 = vadd.f32 %v1529, 1.0
      %v1562 = vadd.f32 %v1530, 1.0
      %v1563 = vadd.f32 %v1531, 1.0
      %v1564 = vadd.f32 %v1532, 1.0
      %v1565 = vadd.f32 %v1533, 1.0
      %v1566 = vadd.f32 %v1534, 1.0
      %v1567 = vadd.f32 %v1535, 1.0
      %v1568 = vadd.f32 %v1536, 1.0
      %v1569 = vadd.f32 %v1537, 1.0
      %v1570 = vadd.f32 %v1538, 1.0
      %v1571 = vadd.f32 %v1539, 1.0
      %v1572 = vadd.f32 %v1540, 1.0
      %v1573 = vadd.f32 %v1541, 1.0
      %v1574 = vmul.f32 %v774, %v1542
      %v1575 = vmul.f32 %v775, %v1543
      %v1576 = vmul.f32 %v776, %v1544
      %v1577 = vmul.f32 %v777, %v1545
      %v1578 = vmul.f32 %v778, %v1546
      %v1579 = vmul.f32 %v779, %v1547
      %v1580 = vmul.f32 %v780, %v1548
      %v1581 = vmul.f32 %v781, %v1549
      %v1582 = vmul.f32 %v782, %v1550
      %v1583 = vmul.f32 %v783, %v1551
      %v1584 = vmul.f32 %v784, %v1552
      %v1585 = vmul.f32 %v785, %v1553
      %v1586 = vmul.f32 %v786, %v1554
      %v1587 = vmul.f32 %v787, %v1555
      %v1588 = vmul.f32 %v788, %v1556
      %v1589 = vmul.f32 %v789, %v1557
      %v1590 = vmul.f32 %v790, %v1558
      %v1591 = vmul.f32 %v791, %v1559
      %v1592 = vmul.f32 %v792, %v1560
      %v1593 = vmul.f32 %v793, %v1561
      %v1594 = vmul.f32 %v794, %v1562
      %v1595 = vmul.f32 %v795, %v1563
      %v1596 = vmul.f32 %v796, %v1564
      %v1597 = vmul.f32 %v797, %v1565
      %v1598 = vmul.f32 %v798, %v1566
      %v1599 = vmul.f32 %v799, %v1567
      %v1600 = vmul.f32 %v800, %v1568
      %v1601 = vmul.f32 %v801, %v1569
      %v1602 = vmul.f32 %v802, %v1570
      %v1603 = vmul.f32 %v803, %v1571
      %v1604 = vmul.f32 %v804, %v1572
      %v1605 = vmul.f32 %v805, %v1573
      %v1606 = vpack.c.bf16 %v1578, %v1574
      %v1607 = vpack.c.bf16 %v1579, %v1575
      %v1608 = vpack.c.bf16 %v1580, %v1576
      %v1609 = vpack.c.bf16 %v1581, %v1577
      %v1610 = vpack.c.bf16 %v1586, %v1582
      %v1611 = vpack.c.bf16 %v1587, %v1583
      %v1612 = vpack.c.bf16 %v1588, %v1584
      %v1613 = vpack.c.bf16 %v1589, %v1585
      %v1614 = vpack.c.bf16 %v1594, %v1590
      %v1615 = vpack.c.bf16 %v1595, %v1591
      %v1616 = vpack.c.bf16 %v1596, %v1592
      %v1617 = vpack.c.bf16 %v1597, %v1593
      %v1618 = vpack.c.bf16 %v1602, %v1598
      %v1619 = vpack.c.bf16 %v1603, %v1599
      %v1620 = vpack.c.bf16 %v1604, %v1600
      %v1621 = vpack.c.bf16 %v1605, %v1601
      %v1622 = vld [vmem:[%s4] sm:$0xf]
      %v1623 = vld [vmem:[%s4 + $0x4] sm:$0xf]
      %v1624 = vld [vmem:[%s4 + $0x8] sm:$0xf]
      %v1625 = vld [vmem:[%s4 + $0xc] sm:$0xf]
      %v1626 = vld [vmem:[%s4 + $0x10] sm:$0xf]
      %v1627 = vld [vmem:[%s4 + $0x14] sm:$0xf]
      %v1628 = vld [vmem:[%s4 + $0x18] sm:$0xf]
      %v1629 = vld [vmem:[%s4 + $0x1c] sm:$0xf]
      %v1630 = vld [vmem:[%s4 + $0x20] sm:$0xf]
      %v1631 = vld [vmem:[%s4 + $0x24] sm:$0xf]
      %v1632 = vld [vmem:[%s4 + $0x28] sm:$0xf]
      %v1633 = vld [vmem:[%s4 + $0x2c] sm:$0xf]
      %v1634 = vld [vmem:[%s4 + $0x30] sm:$0xf]
      %v1635 = vld [vmem:[%s4 + $0x34] sm:$0xf]
      %v1636 = vld [vmem:[%s4 + $0x38] sm:$0xf]
      %v1637 = vld [vmem:[%s4 + $0x3c] sm:$0xf]
      %v1638 = vld [vmem:[%s4 + $0x40] sm:$0xf]
      %v1639 = vld [vmem:[%s4 + $0x44] sm:$0xf]
      %v1640 = vld [vmem:[%s4 + $0x48] sm:$0xf]
      %v1641 = vld [vmem:[%s4 + $0x4c] sm:$0xf]
      %v1642 = vld [vmem:[%s4 + $0x50] sm:$0xf]
      %v1643 = vld [vmem:[%s4 + $0x54] sm:$0xf]
      %v1644 = vld [vmem:[%s4 + $0x58] sm:$0xf]
      %v1645 = vld [vmem:[%s4 + $0x5c] sm:$0xf]
      %v1646 = vld [vmem:[%s4 + $0x60] sm:$0xf]
      %v1647 = vld [vmem:[%s4 + $0x64] sm:$0xf]
      %v1648 = vld [vmem:[%s4 + $0x68] sm:$0xf]
      %v1649 = vld [vmem:[%s4 + $0x6c] sm:$0xf]
      %v1650 = vld [vmem:[%s4 + $0x70] sm:$0xf]
      %v1651 = vld [vmem:[%s4 + $0x74] sm:$0xf]
      %v1652 = vld [vmem:[%s4 + $0x78] sm:$0xf]
      %v1653 = vld [vmem:[%s4 + $0x7c] sm:$0xf]
      %v1654 = vld [vmem:[%s4 + $0x80] sm:$0xf]
      %v1655 = vld [vmem:[%s4 + $0x84] sm:$0xf]
      %v1656 = vld [vmem:[%s4 + $0x88] sm:$0xf]
      %v1657 = vld [vmem:[%s4 + $0x8c] sm:$0xf]
      %v1658 = vld [vmem:[%s4 + $0x90] sm:$0xf]
      %v1659 = vld [vmem:[%s4 + $0x94] sm:$0xf]
      %v1660 = vld [vmem:[%s4 + $0x98] sm:$0xf]
      %v1661 = vld [vmem:[%s4 + $0x9c] sm:$0xf]
      %v1662 = vld [vmem:[%s4 + $0xa0] sm:$0xf]
      %v1663 = vld [vmem:[%s4 + $0xa4] sm:$0xf]
      %v1664 = vld [vmem:[%s4 + $0xa8] sm:$0xf]
      %v1665 = vld [vmem:[%s4 + $0xac] sm:$0xf]
      %v1666 = vld [vmem:[%s4 + $0xb0] sm:$0xf]
      %v1667 = vld [vmem:[%s4 + $0xb4] sm:$0xf]
      %v1668 = vld [vmem:[%s4 + $0xb8] sm:$0xf]
      %v1669 = vld [vmem:[%s4 + $0xbc] sm:$0xf]
      %v1670 = vld [vmem:[%s4 + $0xc0] sm:$0xf]
      %v1671 = vld [vmem:[%s4 + $0xc4] sm:$0xf]
      %v1672 = vld [vmem:[%s4 + $0xc8] sm:$0xf]
      %v1673 = vld [vmem:[%s4 + $0xcc] sm:$0xf]
      %v1674 = vld [vmem:[%s4 + $0xd0] sm:$0xf]
      %v1675 = vld [vmem:[%s4 + $0xd4] sm:$0xf]
      %v1676 = vld [vmem:[%s4 + $0xd8] sm:$0xf]
      %v1677 = vld [vmem:[%s4 + $0xdc] sm:$0xf]
      %v1678 = vld [vmem:[%s4 + $0xe0] sm:$0xf]
      %v1679 = vld [vmem:[%s4 + $0xe4] sm:$0xf]
      %v1680 = vld [vmem:[%s4 + $0xe8] sm:$0xf]
      %v1681 = vld [vmem:[%s4 + $0xec] sm:$0xf]
      %v1682 = vld [vmem:[%s4 + $0xf0] sm:$0xf]
      %v1683 = vld [vmem:[%s4 + $0xf4] sm:$0xf]
      %v1684 = vld [vmem:[%s4 + $0xf8] sm:$0xf]
      %v1685 = vld [vmem:[%s4 + $0xfc] sm:$0xf]
      %v1686 = vld [vmem:[%s5] sm:$0x1]
      %v1688 = vperm.slane %v1686, 0
      %v1754 = vunpack.c.l.b16 %v1622
      %v1755 = vunpack.c.l.b16 %v1623
      %v1756 = vunpack.c.l.b16 %v1624
      %v1757 = vunpack.c.l.b16 %v1625
      %v1758 = vunpack.c.l.b16 %v1626
      %v1759 = vunpack.c.l.b16 %v1627
      %v1760 = vunpack.c.l.b16 %v1628
      %v1761 = vunpack.c.l.b16 %v1629
      %v1762 = vunpack.c.l.b16 %v1630
      %v1763 = vunpack.c.l.b16 %v1631
      %v1764 = vunpack.c.l.b16 %v1632
      %v1765 = vunpack.c.l.b16 %v1633
      %v1766 = vunpack.c.l.b16 %v1634
      %v1767 = vunpack.c.l.b16 %v1635
      %v1768 = vunpack.c.l.b16 %v1636
      %v1769 = vunpack.c.l.b16 %v1637
      %v1770 = vunpack.c.l.b16 %v1638
      %v1771 = vunpack.c.l.b16 %v1639
      %v1772 = vunpack.c.l.b16 %v1640
      %v1773 = vunpack.c.l.b16 %v1641
      %v1774 = vunpack.c.l.b16 %v1642
      %v1775 = vunpack.c.l.b16 %v1643
      %v1776 = vunpack.c.l.b16 %v1644
      %v1777 = vunpack.c.l.b16 %v1645
      %v1778 = vunpack.c.l.b16 %v1646
      %v1779 = vunpack.c.l.b16 %v1647
      %v1780 = vunpack.c.l.b16 %v1648
      %v1781 = vunpack.c.l.b16 %v1649
      %v1782 = vunpack.c.l.b16 %v1650
      %v1783 = vunpack.c.l.b16 %v1651
      %v1784 = vunpack.c.l.b16 %v1652
      %v1785 = vunpack.c.l.b16 %v1653
      %v1786 = vunpack.c.l.b16 %v1654
      %v1787 = vunpack.c.l.b16 %v1655
      %v1788 = vunpack.c.l.b16 %v1656
      %v1789 = vunpack.c.l.b16 %v1657
      %v1790 = vunpack.c.l.b16 %v1658
      %v1791 = vunpack.c.l.b16 %v1659
      %v1792 = vunpack.c.l.b16 %v1660
      %v1793 = vunpack.c.l.b16 %v1661
      %v1794 = vunpack.c.l.b16 %v1662
      %v1795 = vunpack.c.l.b16 %v1663
      %v1796 = vunpack.c.l.b16 %v1664
      %v1797 = vunpack.c.l.b16 %v1665
      %v1798 = vunpack.c.l.b16 %v1666
      %v1799 = vunpack.c.l.b16 %v1667
      %v1800 = vunpack.c.l.b16 %v1668
      %v1801 = vunpack.c.l.b16 %v1669
      %v1802 = vunpack.c.l.b16 %v1670
      %v1803 = vunpack.c.l.b16 %v1671
      %v1804 = vunpack.c.l.b16 %v1672
      %v1805 = vunpack.c.l.b16 %v1673
      %v1806 = vunpack.c.l.b16 %v1674
      %v1807 = vunpack.c.l.b16 %v1675
      %v1808 = vunpack.c.l.b16 %v1676
      %v1809 = vunpack.c.l.b16 %v1677
      %v1810 = vunpack.c.l.b16 %v1678
      %v1811 = vunpack.c.l.b16 %v1679
      %v1812 = vunpack.c.l.b16 %v1680
      %v1813 = vunpack.c.l.b16 %v1681
      %v1814 = vunpack.c.l.b16 %v1682
      %v1815 = vunpack.c.l.b16 %v1683
      %v1816 = vunpack.c.l.b16 %v1684
      %v1817 = vunpack.c.l.b16 %v1685
      %v1818 = vpack.c.b16 %v1755, %v1754
      %v1819 = vpack.c.b16 %v1757, %v1756
      %v1820 = vpack.c.b16 %v1759, %v1758
      %v1821 = vpack.c.b16 %v1761, %v1760
      %v1822 = vpack.c.b16 %v1763, %v1762
      %v1823 = vpack.c.b16 %v1765, %v1764
      %v1824 = vpack.c.b16 %v1767, %v1766
      %v1825 = vpack.c.b16 %v1769, %v1768
      %v1826 = vpack.c.b16 %v1771, %v1770
      %v1827 = vpack.c.b16 %v1773, %v1772
      %v1828 = vpack.c.b16 %v1775, %v1774
      %v1829 = vpack.c.b16 %v1777, %v1776
      %v1830 = vpack.c.b16 %v1779, %v1778
      %v1831 = vpack.c.b16 %v1781, %v1780
      %v1832 = vpack.c.b16 %v1783, %v1782
      %v1833 = vpack.c.b16 %v1785, %v1784
      %v1834 = vpack.c.b16 %v1787, %v1786
      %v1835 = vpack.c.b16 %v1789, %v1788
      %v1836 = vpack.c.b16 %v1791, %v1790
      %v1837 = vpack.c.b16 %v1793, %v1792
      %v1838 = vpack.c.b16 %v1795, %v1794
      %v1839 = vpack.c.b16 %v1797, %v1796
      %v1840 = vpack.c.b16 %v1799, %v1798
      %v1841 = vpack.c.b16 %v1801, %v1800
      %v1842 = vpack.c.b16 %v1803, %v1802
      %v1843 = vpack.c.b16 %v1805, %v1804
      %v1844 = vpack.c.b16 %v1807, %v1806
      %v1845 = vpack.c.b16 %v1809, %v1808
      %v1846 = vpack.c.b16 %v1811, %v1810
      %v1847 = vpack.c.b16 %v1813, %v1812
      %v1848 = vpack.c.b16 %v1815, %v1814
      %v1849 = vpack.c.b16 %v1817, %v1816
      %1882 = vmatpush.bf16.msra.mxu0 %v1825
      %1883 = vmatpush.bf16.msra.mxu0 %v1824
      %1884 = vmatpush.bf16.msra.mxu0 %v1823
      %1885 = vmatpush.bf16.msra.mxu0 %v1822
      %1886 = vmatpush.bf16.msra.mxu0 %v1821
      %1887 = vmatpush.bf16.msra.mxu0 %v1820
      %1888 = vmatpush.bf16.msra.mxu0 %v1819
      %1889 = vmatpush.bf16.msra.mxu0 %v1818
      %1890 = vmatmul.bf16.gmra.mxu0 %v1606
      %v1891 = vpop.f32.mrf.mxu0
      %v1892 = vadd.f32 %v1688, %v1891
      %v1893 = vpop.f32.mrf.mxu0
      %v1894 = vadd.f32 %v1688, %v1893
      %1895 = vmatmul.bf16.gmra.mxu0 %v1610
      %v1896 = vpop.f32.mrf.mxu0
      %v1897 = vadd.f32 %v1688, %v1896
      %v1898 = vpop.f32.mrf.mxu0
      %v1899 = vadd.f32 %v1688, %v1898
      %1900 = vmatmul.bf16.gmra.mxu0 %v1614
      %v1901 = vpop.f32.mrf.mxu0
      %v1902 = vadd.f32 %v1688, %v1901
      %v1903 = vpop.f32.mrf.mxu0
      %v1904 = vadd.f32 %v1688, %v1903
      %1905 = vmatmul.bf16.gmra.mxu0 %v1618
      %v1906 = vpop.f32.mrf.mxu0
      %v1907 = vadd.f32 %v1688, %v1906
      %v1908 = vpop.f32.mrf.mxu0
      %v1909 = vadd.f32 %v1688, %v1908
      %1910 = vdwg.mxu0
      %1911 = vmatpush.bf16.msra.mxu0 %v1833
      %1912 = vmatpush.bf16.msra.mxu0 %v1832
      %1913 = vmatpush.bf16.msra.mxu0 %v1831
      %1914 = vmatpush.bf16.msra.mxu0 %v1830
      %1915 = vmatpush.bf16.msra.mxu0 %v1829
      %1916 = vmatpush.bf16.msra.mxu0 %v1828
      %1917 = vmatpush.bf16.msra.mxu0 %v1827
      %1918 = vmatpush.bf16.msra.mxu0 %v1826
      %1919 = vmatmul.bf16.gmra.mxu0 %v1607
      %v1920 = vpop.f32.mrf.mxu0
      %v1921 = vadd.f32 %v1892, %v1920
      %v1922 = vpop.f32.mrf.mxu0
      %v1923 = vadd.f32 %v1894, %v1922
      %1924 = vmatmul.bf16.gmra.mxu0 %v1611
      %v1925 = vpop.f32.mrf.mxu0
      %v1926 = vadd.f32 %v1897, %v1925
      %v1927 = vpop.f32.mrf.mxu0
      %v1928 = vadd.f32 %v1899, %v1927
      %1929 = vmatmul.bf16.gmra.mxu0 %v1615
      %v1930 = vpop.f32.mrf.mxu0
      %v1931 = vadd.f32 %v1902, %v1930
      %v1932 = vpop.f32.mrf.mxu0
      %v1933 = vadd.f32 %v1904, %v1932
      %1934 = vmatmul.bf16.gmra.mxu0 %v1619
      %v1935 = vpop.f32.mrf.mxu0
      %v1936 = vadd.f32 %v1907, %v1935
      %v1937 = vpop.f32.mrf.mxu0
      %v1938 = vadd.f32 %v1909, %v1937
      %1939 = vdwg.mxu0
      %1940 = vmatpush.bf16.msra.mxu0 %v1841
      %1941 = vmatpush.bf16.msra.mxu0 %v1840
      %1942 = vmatpush.bf16.msra.mxu0 %v1839
      %1943 = vmatpush.bf16.msra.mxu0 %v1838
      %1944 = vmatpush.bf16.msra.mxu0 %v1837
      %1945 = vmatpush.bf16.msra.mxu0 %v1836
      %1946 = vmatpush.bf16.msra.mxu0 %v1835
      %1947 = vmatpush.bf16.msra.mxu0 %v1834
      %1948 = vmatmul.bf16.gmra.mxu0 %v1608
      %v1949 = vpop.f32.mrf.mxu0
      %v1950 = vadd.f32 %v1921, %v1949
      %v1951 = vpop.f32.mrf.mxu0
      %v1952 = vadd.f32 %v1923, %v1951
      %1953 = vmatmul.bf16.gmra.mxu0 %v1612
      %v1954 = vpop.f32.mrf.mxu0
      %v1955 = vadd.f32 %v1926, %v1954
      %v1956 = vpop.f32.mrf.mxu0
      %v1957 = vadd.f32 %v1928, %v1956
      %1958 = vmatmul.bf16.gmra.mxu0 %v1616
      %v1959 = vpop.f32.mrf.mxu0
      %v1960 = vadd.f32 %v1931, %v1959
      %v1961 = vpop.f32.mrf.mxu0
      %v1962 = vadd.f32 %v1933, %v1961
      %1963 = vmatmul.bf16.gmra.mxu0 %v1620
      %v1964 = vpop.f32.mrf.mxu0
      %v1965 = vadd.f32 %v1936, %v1964
      %v1966 = vpop.f32.mrf.mxu0
      %v1967 = vadd.f32 %v1938, %v1966
      %1968 = vdwg.mxu0
      %1969 = vmatpush.bf16.msra.mxu0 %v1849
      %1970 = vmatpush.bf16.msra.mxu0 %v1848
      %1971 = vmatpush.bf16.msra.mxu0 %v1847
      %1972 = vmatpush.bf16.msra.mxu0 %v1846
      %1973 = vmatpush.bf16.msra.mxu0 %v1845
      %1974 = vmatpush.bf16.msra.mxu0 %v1844
      %1975 = vmatpush.bf16.msra.mxu0 %v1843
      %1976 = vmatpush.bf16.msra.mxu0 %v1842
      %1977 = vmatmul.bf16.gmra.mxu0 %v1609
      %v1978 = vpop.f32.mrf.mxu0
      %v1979 = vadd.f32 %v1950, %v1978
      %v1980 = vpop.f32.mrf.mxu0
      %v1981 = vadd.f32 %v1952, %v1980
      %1982 = vmatmul.bf16.gmra.mxu0 %v1613
      %v1983 = vpop.f32.mrf.mxu0
      %v1984 = vadd.f32 %v1955, %v1983
      %v1985 = vpop.f32.mrf.mxu0
      %v1986 = vadd.f32 %v1957, %v1985
      %1987 = vmatmul.bf16.gmra.mxu0 %v1617
      %v1988 = vpop.f32.mrf.mxu0
      %v1989 = vadd.f32 %v1960, %v1988
      %v1990 = vpop.f32.mrf.mxu0
      %v1991 = vadd.f32 %v1962, %v1990
      %1992 = vmatmul.bf16.gmra.mxu0 %v1621
      %v1993 = vpop.f32.mrf.mxu0
      %v1994 = vadd.f32 %v1965, %v1993
      %v1995 = vpop.f32.mrf.mxu0
      %v1996 = vadd.f32 %v1967, %v1995
      %1997 = vdwg.mxu0
      %v1998 = vld [vmem:[%s269] sm:$0xff]
      %v1999 = vld [vmem:[%s269 + $0x8] sm:$0xff]
      %v2000 = vld [vmem:[%s269 + $0x10] sm:$0xff]
      %v2001 = vld [vmem:[%s269 + $0x18] sm:$0xff]
      %v2002 = vld [vmem:[%s269 + $0x20] sm:$0xff]
      %v2003 = vld [vmem:[%s269 + $0x28] sm:$0xff]
      %v2004 = vld [vmem:[%s269 + $0x30] sm:$0xff]
      %v2005 = vld [vmem:[%s269 + $0x38] sm:$0xff]
      %v2006 = vadd.f32 %v1998, %v1979
      %v2007 = vadd.f32 %v1999, %v1981
      %v2008 = vadd.f32 %v2000, %v1984
      %v2009 = vadd.f32 %v2001, %v1986
      %v2010 = vadd.f32 %v2002, %v1989
      %v2011 = vadd.f32 %v2003, %v1991
      %v2012 = vadd.f32 %v2004, %v1994
      %v2013 = vadd.f32 %v2005, %v1996
      %2014 = vst [vmem:[%s275] sm:$0xff] %v2006
      %2015 = vst [vmem:[%s275 + $0x8] sm:$0xff] %v2007
      %2016 = vst [vmem:[%s275 + $0x10] sm:$0xff] %v2008
      %2017 = vst [vmem:[%s275 + $0x18] sm:$0xff] %v2009
      %2018 = vst [vmem:[%s275 + $0x20] sm:$0xff] %v2010
      %2019 = vst [vmem:[%s275 + $0x28] sm:$0xff] %v2011
      %2020 = vst [vmem:[%s275 + $0x30] sm:$0xff] %v2012
      %2021 = vst [vmem:[%s275 + $0x38] sm:$0xff] %v2013
      %s2022 = smul.u32 8, %s17
      %p2023 = scmp.lt.s32.totalorder %s2022, 15
      %s2024 = scalar_select %p2023, %s2022, 15
      %s2025 = smul.addr %s2024, 8
      %s2026 = scalar_lea.vmem %s6, %s2025
      // Predicated region
      $region45: #{convnext_forward.9} parent=43 // pred_check
        %p2027 = pneg %p171
      $region46: #{convnext_forward.9} parent=43 // pred_check_branch
        %2029 = sbr.rel (%p2027) target = $region48
      $region47: #{convnext_forward.9} parent=43 // pred_region
        %s2030 = smul.u32 8, %s17
      $region48: #{convnext_forward.9} parent=43 // pred_fallthru
        _
    $region44: #{convnext_forward.9} parent=5 // pred_fallthru
      _
    %p2031 = scmp.le.s32.totalorder 2, %s12
    // Predicated region
    $region49: #{convnext_forward.9} parent=5 // pred_check
      %p2032 = pneg %p2031
    $region50: #{convnext_forward.9} parent=5 // pred_check_branch
      %2034 = sbr.rel (%p2032) target = $region52
    $region51: #{convnext_forward.9} parent=5 // pred_region
      %s2035 = ssub.s32 %s12, 2
      // Predicated region
      $region53: #{convnext_forward.9} parent=51 // pred_check
        %p2036 = pneg %p177
      $region54: #{convnext_forward.9} parent=51 // pred_check_branch
        %2038 = sbr.rel (%p2036) target = $region56
      $region55: #{convnext_forward.9} parent=51 // pred_region
        %s2039 = smul.u32 8, %s18
        %p2040 = scmp.lt.s32.totalorder %s2039, 15
        %s2041 = scalar_select %p2040, %s2039, 15
        %s2042 = smul.addr %s2041, 8
        %s2043 = scalar_lea.vmem %s6, %s2042
      $region56: #{convnext_forward.9} parent=51 // pred_fallthru
        _
    $region52: #{convnext_forward.9} parent=5 // pred_fallthru
      _
  $region6: #{convnext_forward.9} parent=0 // loop_footer
    %s16 = sadd.s32 1, %s12
  $region7: #{convnext_forward.9} parent=0 // loop_footer_branch
    %11 = sbr.rel target = $region3
  $region8: #{convnext_forward.9} parent=0 // loop_exit
    _

// kernel: convnext_forward.10
$region0: #{convnext_forward.10}
  #allocation0 [shape = 'u32[]', space=smem, size = 0x4, offset = 0x4, fixed_abs, tag = 'smem constant byte address 0x4 - core index']
  #allocation1 [shape = 'u32[72,128]{1,0:T(1,128)}', space=vmem, size = 0x9000, scoped, tag = 'internal scratch']
  %s0 = inlined_call_operand.vmem [shape: f32[32,512], index: 0, kind: input, shape index: {}]
  %s1 = inlined_call_operand.vmem [shape: bf16[512,256], index: 1, kind: input, shape index: {}]
  %s2 = inlined_call_operand.vmem [shape: f32[1,256], index: 2, kind: input, shape index: {}]
  %s3 = inlined_call_operand.vmem [shape: f32[32,256], index: 3, kind: output, shape index: {}]
  %s4 = sld [smem:[#allocation0]]
  $region45: #{convnext_forward.10} parent=0
    _
  %s6 = ssub.s32 1, %s4
  %s7 = scalar_select 0, %s6, %s4
  loop: start=0, step=1, limit=4
  $region2: #{convnext_forward.10} parent=0 // loop_pre_header
    _
  $region3: #{convnext_forward.10} parent=0 // loop_header
    %s9 = sphi 0, %s13
    %p10 = scmp.ge.s32.totalorder %s9, 4
    %s19 = sphi 0, %s21
    %s22 = sphi 0, %s19
    %s23 = sphi 0, %s22
    %s39 = sphi 0, %s23
    %s43 = sphi 0, %s43
    %s45 = sphi 0, %s43
    %s46 = sphi 0, %s45
    %s60 = sphi 0, %s46
    %s64 = sphi 0, %s64
    %s66 = sphi 0, %s64
    %s67 = sphi 0, %s66
    %s81 = sphi 0, %s67
    %s87 = sphi 0, %s89
    %s90 = sphi 0, %s87
    %s91 = sphi 0, %s90
    %s107 = sphi 0, %s91
  $region4: #{convnext_forward.10} parent=0 // loop_header_branch
    %12 = sbr.rel (%p10) target = $region8
  $region5: #{convnext_forward.10} parent=0 // loop_body
    %s14 = ssub.s32 %s9, 1
    %s15 = ssub.s32 %s9, 2
    %s16 = sadd.s32 %s9, 1
    %s17 = ssub.s32 %s9, %s16
    %p18 = scmp.eq.s32.totalorder %s17, 0
    %s20 = sadd.s32 %s19, 1
    %s21 = scalar_select %p18, %s19, %s20
    %p24 = pneg %p18
    %p25 = scmp.eq.s32.totalorder %s9, 1
    %p26 = por %p24, %p25
    %p27 = scmp.ne.s32.totalorder %s19, %s22
    %p28 = scmp.eq.s32.totalorder %s9, 0
    %p29 = por %p27, %p28
    %p30 = scmp.ne.s32.totalorder %s19, %s22
    %p31 = scmp.eq.s32.totalorder %s14, 1
    %p32 = por %p30, %p31
    %p33 = scmp.ne.s32.totalorder %s22, %s23
    %p34 = scmp.eq.s32.totalorder %s14, 0
    %p35 = por %p33, %p34
    %p36 = scmp.ne.s32.totalorder %s22, %s23
    %p37 = scmp.eq.s32.totalorder %s15, 1
    %p38 = por %p36, %p37
    %p40 = scmp.ne.s32.totalorder %s23, %s39
    %p41 = scmp.eq.s32.totalorder %s15, 0
    %p42 = por %p40, %p41
    %s44 = sadd.s32 %s43, 1
    %p47 = scmp.eq.s32.totalorder %s9, 1
    %p48 = scmp.ne.s32.totalorder %s43, %s45
    %p49 = scmp.eq.s32.totalorder %s9, 0
    %p50 = por %p48, %p49
    %p51 = scmp.ne.s32.totalorder %s43, %s45
    %p52 = scmp.eq.s32.totalorder %s14, 1
    %p53 = por %p51, %p52
    %p54 = scmp.ne.s32.totalorder %s45, %s46
    %p55 = scmp.eq.s32.totalorder %s14, 0
    %p56 = por %p54, %p55
    %p57 = scmp.ne.s32.totalorder %s45, %s46
    %p58 = scmp.eq.s32.totalorder %s15, 1
    %p59 = por %p57, %p58
    %p61 = scmp.ne.s32.totalorder %s46, %s60
    %p62 = scmp.eq.s32.totalorder %s15, 0
    %p63 = por %p61, %p62
    %s65 = sadd.s32 %s64, 1
    %p68 = scmp.eq.s32.totalorder %s9, 1
    %p69 = scmp.ne.s32.totalorder %s64, %s66
    %p70 = scmp.eq.s32.totalorder %s9, 0
    %p71 = por %p69, %p70
    %p72 = scmp.ne.s32.totalorder %s64, %s66
    %p73 = scmp.eq.s32.totalorder %s14, 1
    %p74 = por %p72, %p73
    %p75 = scmp.ne.s32.totalorder %s66, %s67
    %p76 = scmp.eq.s32.totalorder %s14, 0
    %p77 = por %p75, %p76
    %p78 = scmp.ne.s32.totalorder %s66, %s67
    %p79 = scmp.eq.s32.totalorder %s15, 1
    %p80 = por %p78, %p79
    %p82 = scmp.ne.s32.totalorder %s67, %s81
    %p83 = scmp.eq.s32.totalorder %s15, 0
    %p84 = por %p82, %p83
    %s85 = ssub.s32 %s9, %s16
    %p86 = scmp.eq.s32.totalorder %s85, 0
    %s88 = sadd.s32 %s87, 1
    %s89 = scalar_select %p86, %s87, %s88
    %p92 = pneg %p86
    %p93 = scmp.eq.s32.totalorder %s9, 1
    %p94 = por %p92, %p93
    %p95 = scmp.ne.s32.totalorder %s87, %s90
    %p96 = scmp.eq.s32.totalorder %s9, 0
    %p97 = por %p95, %p96
    %p98 = scmp.ne.s32.totalorder %s87, %s90
    %p99 = scmp.eq.s32.totalorder %s14, 1
    %p100 = por %p98, %p99
    %p101 = scmp.ne.s32.totalorder %s90, %s91
    %p102 = scmp.eq.s32.totalorder %s14, 0
    %p103 = por %p101, %p102
    %p104 = scmp.ne.s32.totalorder %s90, %s91
    %p105 = scmp.eq.s32.totalorder %s15, 1
    %p106 = por %p104, %p105
    %p108 = scmp.ne.s32.totalorder %s91, %s107
    %p109 = scmp.eq.s32.totalorder %s15, 0
    %p110 = por %p108, %p109
    %p111 = scmp.le.s32.totalorder 1, %s9
    %p112 = scmp.lt.s32.totalorder %s9, 3
    %p113 = pnand %p111, %p112
    %p114 = pneg %p113
    // Predicated region
    $region9: #{convnext_forward.10} parent=5 // pred_check
      _
    $region10: #{convnext_forward.10} parent=5 // pred_check_branch
      %116 = sbr.rel (%p113) target = $region12
    $region11: #{convnext_forward.10} parent=5 // pred_region
      %s117 = ssub.s32 %s9, 1
      // Predicated region
      $region13: #{convnext_forward.10} parent=11 // pred_check
        %p118 = pneg %p56
      $region14: #{convnext_forward.10} parent=11 // pred_check_branch
        %120 = sbr.rel (%p118) target = $region16
      $region15: #{convnext_forward.10} parent=11 // pred_region
        _
      $region16: #{convnext_forward.10} parent=11 // pred_fallthru
        _
      // Predicated region
      $region17: #{convnext_forward.10} parent=11 // pred_check
        %p121 = pneg %p77
      $region18: #{convnext_forward.10} parent=11 // pred_check_branch
        %123 = sbr.rel (%p121) target = $region20
      $region19: #{convnext_forward.10} parent=11 // pred_region
        _
      $region20: #{convnext_forward.10} parent=11 // pred_fallthru
        _
    $region12: #{convnext_forward.10} parent=5 // pred_fallthru
      _
    %p124 = scmp.lt.s32.totalorder %s9, 2
    // Predicated region
    $region21: #{convnext_forward.10} parent=5 // pred_check
      %p125 = pneg %p124
    $region22: #{convnext_forward.10} parent=5 // pred_check_branch
      %127 = sbr.rel (%p125) target = $region24
    $region23: #{convnext_forward.10} parent=5 // pred_region
      // Predicated region
      $region25: #{convnext_forward.10} parent=23 // pred_check
        %p128 = pneg %p29
      $region26: #{convnext_forward.10} parent=23 // pred_check_branch
        %130 = sbr.rel (%p128) target = $region28
      $region27: #{convnext_forward.10} parent=23 // pred_region
        %s131 = smul.u32 2, %s9
        %p132 = scmp.lt.s32.totalorder %s131, 3
        %s133 = scalar_select %p132, %s131, 3
        %s134 = smul.addr %s133, 4
        %s135 = smul.addr %s134, 8
        %s136 = scalar_lea.vmem %s0, %s135
        %s137 = smul.u32 2, %s9
      $region28: #{convnext_forward.10} parent=23 // pred_fallthru
        _
    $region24: #{convnext_forward.10} parent=5 // pred_fallthru
      _
    %p138 = scmp.le.s32.totalorder 1, %s9
    %p139 = scmp.lt.s32.totalorder %s9, 3
    %p140 = pnand %p138, %p139
    %p141 = pneg %p140
    // Predicated region
    $region29: #{convnext_forward.10} parent=5 // pred_check
      _
    $region30: #{convnext_forward.10} parent=5 // pred_check_branch
      %143 = sbr.rel (%p140) target = $region32
    $region31: #{convnext_forward.10} parent=5 // pred_region
      %s144 = ssub.s32 %s9, 1
      %s145 = smul.u32 2, %s14
      %p146 = scmp.lt.s32.totalorder %s145, 3
      %s147 = scalar_select %p146, %s145, 3
      %s148 = smul.addr %s147, 4
      %s149 = smul.addr %s148, 8
      %s150 = scalar_lea.vmem %s0, %s149
      %p151 = pneg %p35
      %p152 = pneg %p32
      %p153 = pneg %p56
      %p154 = pneg %p53
      %p155 = pneg %p77
      %p156 = pneg %p74
      %p157 = pneg %p103
      %p158 = pneg %p100
      %s159 = smul.u32 2, %s14
      %p160 = scmp.lt.s32.totalorder %s159, 3
      %s161 = scalar_select %p160, %s159, 3
      %s162 = smul.addr %s161, 2
      %s163 = smul.addr %s162, 8
      %s164 = scalar_lea.vmem %s3, %s163
      %s165 = smul.u32 2, %s14
      %p166 = scmp.lt.s32.totalorder %s165, 3
      %s167 = scalar_select %p166, %s165, 3
      %s168 = smul.addr %s167, 4
      %s169 = smul.addr %s168, 8
      %s170 = scalar_lea.vmem %s0, %s169
      %s171 = smul.u32 2, %s14
      %s172 = smul.u32 2, %s14
      %p173 = scmp.lt.s32.totalorder %s172, 3
      %s174 = scalar_select %p173, %s172, 3
      %s175 = smul.addr %s174, 2
      %s176 = smul.addr %s175, 8
      %s177 = scalar_lea.vmem %s3, %s176
      %s178 = smul.u32 2, %s14
      %v179 = vld [vmem:[%s170] sm:$0xff]
      %v180 = vld [vmem:[%s170 + $0x8] sm:$0xff]
      %v181 = vld [vmem:[%s170 + $0x10] sm:$0xff]
      %v182 = vld [vmem:[%s170 + $0x18] sm:$0xff]
      %v183 = vld [vmem:[%s170 + $0x20] sm:$0xff]
      %v184 = vld [vmem:[%s170 + $0x28] sm:$0xff]
      %v185 = vld [vmem:[%s170 + $0x30] sm:$0xff]
      %v186 = vld [vmem:[%s170 + $0x38] sm:$0xff]
      %187 = vadd.xlane.f32.xlu0 %v179
      %v188 = vpop.xlane.xlu0 %187
      %189 = vadd.xlane.f32.xlu0 %v183
      %v190 = vpop.xlane.xlu0 %189
      %v191 = vrcp.pop 128.0
      %v192 = vmul.f32 128.0, %v191
      %v193 = vsub.f32 1.0, %v192
      %v194 = vmul.f32 %v191, %v193
      %v195 = vadd.f32 %v191, %v194
      %vm196 = vweird.f32 %v191
      %v197 = vsel %vm196, %v191, %v195
      %v198 = vmul.f32 %v188, %v197
      %v199 = vmul.f32 %v190, %v197
      %v200 = vsub.f32 %v179, %v198
      %v201 = vsub.f32 %v183, %v199
      %v202 = vmul.f32 %v200, %v200
      %v203 = vmul.f32 %v201, %v201
      %204 = vadd.xlane.f32.xlu0 %v202
      %v205 = vpop.xlane.xlu0 %204
      %206 = vadd.xlane.f32.xlu0 %v203
      %v207 = vpop.xlane.xlu0 %206
      %v208 = vmul.f32 %v205, %v197
      %v209 = vmul.f32 %v207, %v197
      %v210 = vadd.f32 %v208, 1e-06
      %v211 = vadd.f32 %v209, 1e-06
      %v212 = vrsqrt.pop %v210
      %v213 = vmul.f32 %v212, %v210
      %v214 = vmul.f32 %v213, %v212
      %v215 = vmul.f32 0.5, %v214
      %v216 = vsub.f32 1.5, %v215
      %v217 = vmul.f32 %v212, %v216
      %vm218 = vweird.f32 %v210
      %vm219 = vweird.f32 %v212
      %vm220 = vmor %vm218, %vm219
      %v221 = vsel %vm220, %v212, %v217
      %v222 = vrsqrt.pop %v211
      %v223 = vmul.f32 %v222, %v211
      %v224 = vmul.f32 %v223, %v222
      %v225 = vmul.f32 0.5, %v224
      %v226 = vsub.f32 1.5, %v225
      %v227 = vmul.f32 %v222, %v226
      %vm228 = vweird.f32 %v211
      %vm229 = vweird.f32 %v222
      %vm230 = vmor %vm228, %vm229
      %v231 = vsel %vm230, %v222, %v227
      %v232 = vmul.f32 %v200, %v221
      %v233 = vmul.f32 %v201, %v231
      %234 = vadd.xlane.f32.xlu0 %v180
      %v235 = vpop.xlane.xlu0 %234
      %236 = vadd.xlane.f32.xlu0 %v184
      %v237 = vpop.xlane.xlu0 %236
      %v238 = vmul.f32 %v235, %v197
      %v239 = vmul.f32 %v237, %v197
      %v240 = vsub.f32 %v180, %v238
      %v241 = vsub.f32 %v184, %v239
      %v242 = vmul.f32 %v240, %v240
      %v243 = vmul.f32 %v241, %v241
      %244 = vadd.xlane.f32.xlu0 %v242
      %v245 = vpop.xlane.xlu0 %244
      %246 = vadd.xlane.f32.xlu0 %v243
      %v247 = vpop.xlane.xlu0 %246
      %v248 = vmul.f32 %v245, %v197
      %v249 = vmul.f32 %v247, %v197
      %v250 = vadd.f32 %v248, 1e-06
      %v251 = vadd.f32 %v249, 1e-06
      %v252 = vrsqrt.pop %v250
      %v253 = vmul.f32 %v252, %v250
      %v254 = vmul.f32 %v253, %v252
      %v255 = vmul.f32 0.5, %v254
      %v256 = vsub.f32 1.5, %v255
      %v257 = vmul.f32 %v252, %v256
      %vm258 = vweird.f32 %v250
      %vm259 = vweird.f32 %v252
      %vm260 = vmor %vm258, %vm259
      %v261 = vsel %vm260, %v252, %v257
      %v262 = vrsqrt.pop %v251
      %v263 = vmul.f32 %v262, %v251
      %v264 = vmul.f32 %v263, %v262
      %v265 = vmul.f32 0.5, %v264
      %v266 = vsub.f32 1.5, %v265
      %v267 = vmul.f32 %v262, %v266
      %vm268 = vweird.f32 %v251
      %vm269 = vweird.f32 %v262
      %vm270 = vmor %vm268, %vm269
      %v271 = vsel %vm270, %v262, %v267
      %v272 = vmul.f32 %v240, %v261
      %v273 = vmul.f32 %v241, %v271
      %274 = vadd.xlane.f32.xlu0 %v181
      %v275 = vpop.xlane.xlu0 %274
      %276 = vadd.xlane.f32.xlu0 %v185
      %v277 = vpop.xlane.xlu0 %276
      %v278 = vmul.f32 %v275, %v197
      %v279 = vmul.f32 %v277, %v197
      %v280 = vsub.f32 %v181, %v278
      %v281 = vsub.f32 %v185, %v279
      %v282 = vmul.f32 %v280, %v280
      %v283 = vmul.f32 %v281, %v281
      %284 = vadd.xlane.f32.xlu0 %v282
      %v285 = vpop.xlane.xlu0 %284
      %286 = vadd.xlane.f32.xlu0 %v283
      %v287 = vpop.xlane.xlu0 %286
      %v288 = vmul.f32 %v285, %v197
      %v289 = vmul.f32 %v287, %v197
      %v290 = vadd.f32 %v288, 1e-06
      %v291 = vadd.f32 %v289, 1e-06
      %v292 = vrsqrt.pop %v290
      %v293 = vmul.f32 %v292, %v290
      %v294 = vmul.f32 %v293, %v292
      %v295 = vmul.f32 0.5, %v294
      %v296 = vsub.f32 1.5, %v295
      %v297 = vmul.f32 %v292, %v296
      %vm298 = vweird.f32 %v290
      %vm299 = vweird.f32 %v292
      %vm300 = vmor %vm298, %vm299
      %v301 = vsel %vm300, %v292, %v297
      %v302 = vrsqrt.pop %v291
      %v303 = vmul.f32 %v302, %v291
      %v304 = vmul.f32 %v303, %v302
      %v305 = vmul.f32 0.5, %v304
      %v306 = vsub.f32 1.5, %v305
      %v307 = vmul.f32 %v302, %v306
      %vm308 = vweird.f32 %v291
      %vm309 = vweird.f32 %v302
      %vm310 = vmor %vm308, %vm309
      %v311 = vsel %vm310, %v302, %v307
      %v312 = vmul.f32 %v280, %v301
      %v313 = vmul.f32 %v281, %v311
      %314 = vadd.xlane.f32.xlu0 %v182
      %v315 = vpop.xlane.xlu0 %314
      %316 = vadd.xlane.f32.xlu0 %v186
      %v317 = vpop.xlane.xlu0 %316
      %v318 = vmul.f32 %v315, %v197
      %v319 = vmul.f32 %v317, %v197
      %v320 = vsub.f32 %v182, %v318
      %v321 = vsub.f32 %v186, %v319
      %v322 = vmul.f32 %v320, %v320
      %v323 = vmul.f32 %v321, %v321
      %324 = vadd.xlane.f32.xlu0 %v322
      %v325 = vpop.xlane.xlu0 %324
      %326 = vadd.xlane.f32.xlu0 %v323
      %v327 = vpop.xlane.xlu0 %326
      %v328 = vmul.f32 %v325, %v197
      %v329 = vmul.f32 %v327, %v197
      %v330 = vadd.f32 %v328, 1e-06
      %v331 = vadd.f32 %v329, 1e-06
      %v332 = vrsqrt.pop %v330
      %v333 = vmul.f32 %v332, %v330
      %v334 = vmul.f32 %v333, %v332
      %v335 = vmul.f32 0.5, %v334
      %v336 = vsub.f32 1.5, %v335
      %v337 = vmul.f32 %v332, %v336
      %vm338 = vweird.f32 %v330
      %vm339 = vweird.f32 %v332
      %vm340 = vmor %vm338, %vm339
      %v341 = vsel %vm340, %v332, %v337
      %v342 = vrsqrt.pop %v331
      %v343 = vmul.f32 %v342, %v331
      %v344 = vmul.f32 %v343, %v342
      %v345 = vmul.f32 0.5, %v344
      %v346 = vsub.f32 1.5, %v345
      %v347 = vmul.f32 %v342, %v346
      %vm348 = vweird.f32 %v331
      %vm349 = vweird.f32 %v342
      %vm350 = vmor %vm348, %vm349
      %v351 = vsel %vm350, %v342, %v347
      %v352 = vmul.f32 %v320, %v341
      %v353 = vmul.f32 %v321, %v351
      %v354 = vpack.c.bf16 %v233, %v232
      %v355 = vpack.c.bf16 %v273, %v272
      %v356 = vpack.c.bf16 %v313, %v312
      %v357 = vpack.c.bf16 %v353, %v352
      %v358 = vld [vmem:[%s1] sm:$0xff]
      %v359 = vld [vmem:[%s1 + $0x8] sm:$0xff]
      %v360 = vld [vmem:[%s1 + $0x10] sm:$0xff]
      %v361 = vld [vmem:[%s1 + $0x18] sm:$0xff]
      %v362 = vld [vmem:[%s1 + $0x20] sm:$0xff]
      %v363 = vld [vmem:[%s1 + $0x28] sm:$0xff]
      %v364 = vld [vmem:[%s1 + $0x30] sm:$0xff]
      %v365 = vld [vmem:[%s1 + $0x38] sm:$0xff]
      %v366 = vld [vmem:[%s1 + $0x40] sm:$0xff]
      %v367 = vld [vmem:[%s1 + $0x48] sm:$0xff]
      %v368 = vld [vmem:[%s1 + $0x50] sm:$0xff]
      %v369 = vld [vmem:[%s1 + $0x58] sm:$0xff]
      %v370 = vld [vmem:[%s1 + $0x60] sm:$0xff]
      %v371 = vld [vmem:[%s1 + $0x68] sm:$0xff]
      %v372 = vld [vmem:[%s1 + $0x70] sm:$0xff]
      %v373 = vld [vmem:[%s1 + $0x78] sm:$0xff]
      %v374 = vld [vmem:[%s1 + $0x80] sm:$0xff]
      %v375 = vld [vmem:[%s1 + $0x88] sm:$0xff]
      %v376 = vld [vmem:[%s1 + $0x90] sm:$0xff]
      %v377 = vld [vmem:[%s1 + $0x98] sm:$0xff]
      %v378 = vld [vmem:[%s1 + $0xa0] sm:$0xff]
      %v379 = vld [vmem:[%s1 + $0xa8] sm:$0xff]
      %v380 = vld [vmem:[%s1 + $0xb0] sm:$0xff]
      %v381 = vld [vmem:[%s1 + $0xb8] sm:$0xff]
      %v382 = vld [vmem:[%s1 + $0xc0] sm:$0xff]
      %v383 = vld [vmem:[%s1 + $0xc8] sm:$0xff]
      %v384 = vld [vmem:[%s1 + $0xd0] sm:$0xff]
      %v385 = vld [vmem:[%s1 + $0xd8] sm:$0xff]
      %v386 = vld [vmem:[%s1 + $0xe0] sm:$0xff]
      %v387 = vld [vmem:[%s1 + $0xe8] sm:$0xff]
      %v388 = vld [vmem:[%s1 + $0xf0] sm:$0xff]
      %v389 = vld [vmem:[%s1 + $0xf8] sm:$0xff]
      %v390 = vld [vmem:[%s1 + $0x100] sm:$0xff]
      %v391 = vld [vmem:[%s1 + $0x108] sm:$0xff]
      %v392 = vld [vmem:[%s1 + $0x110] sm:$0xff]
      %v393 = vld [vmem:[%s1 + $0x118] sm:$0xff]
      %v394 = vld [vmem:[%s1 + $0x120] sm:$0xff]
      %v395 = vld [vmem:[%s1 + $0x128] sm:$0xff]
      %v396 = vld [vmem:[%s1 + $0x130] sm:$0xff]
      %v397 = vld [vmem:[%s1 + $0x138] sm:$0xff]
      %v398 = vld [vmem:[%s1 + $0x140] sm:$0xff]
      %v399 = vld [vmem:[%s1 + $0x148] sm:$0xff]
      %v400 = vld [vmem:[%s1 + $0x150] sm:$0xff]
      %v401 = vld [vmem:[%s1 + $0x158] sm:$0xff]
      %v402 = vld [vmem:[%s1 + $0x160] sm:$0xff]
      %v403 = vld [vmem:[%s1 + $0x168] sm:$0xff]
      %v404 = vld [vmem:[%s1 + $0x170] sm:$0xff]
      %v405 = vld [vmem:[%s1 + $0x178] sm:$0xff]
      %v406 = vld [vmem:[%s1 + $0x180] sm:$0xff]
      %v407 = vld [vmem:[%s1 + $0x188] sm:$0xff]
      %v408 = vld [vmem:[%s1 + $0x190] sm:$0xff]
      %v409 = vld [vmem:[%s1 + $0x198] sm:$0xff]
      %v410 = vld [vmem:[%s1 + $0x1a0] sm:$0xff]
      %v411 = vld [vmem:[%s1 + $0x1a8] sm:$0xff]
      %v412 = vld [vmem:[%s1 + $0x1b0] sm:$0xff]
      %v413 = vld [vmem:[%s1 + $0x1b8] sm:$0xff]
      %v414 = vld [vmem:[%s1 + $0x1c0] sm:$0xff]
      %v415 = vld [vmem:[%s1 + $0x1c8] sm:$0xff]
      %v416 = vld [vmem:[%s1 + $0x1d0] sm:$0xff]
      %v417 = vld [vmem:[%s1 + $0x1d8] sm:$0xff]
      %v418 = vld [vmem:[%s1 + $0x1e0] sm:$0xff]
      %v419 = vld [vmem:[%s1 + $0x1e8] sm:$0xff]
      %v420 = vld [vmem:[%s1 + $0x1f0] sm:$0xff]
      %v421 = vld [vmem:[%s1 + $0x1f8] sm:$0xff]
      %v422 = vld [vmem:[%s2] sm:$0x3]
      %v424 = vperm.slane %v422, 0
      %v425 = vperm.slane %v422, 1
      %v492 = vunpack.c.l.b16 %v358
      %v493 = vunpack.c.h.b16 %v358
      %v494 = vunpack.c.l.b16 %v359
      %v495 = vunpack.c.h.b16 %v359
      %v496 = vunpack.c.l.b16 %v360
      %v497 = vunpack.c.h.b16 %v360
      %v498 = vunpack.c.l.b16 %v361
      %v499 = vunpack.c.h.b16 %v361
      %v500 = vunpack.c.l.b16 %v362
      %v501 = vunpack.c.h.b16 %v362
      %v502 = vunpack.c.l.b16 %v363
      %v503 = vunpack.c.h.b16 %v363
      %v504 = vunpack.c.l.b16 %v364
      %v505 = vunpack.c.h.b16 %v364
      %v506 = vunpack.c.l.b16 %v365
      %v507 = vunpack.c.h.b16 %v365
      %v508 = vunpack.c.l.b16 %v366
      %v509 = vunpack.c.h.b16 %v366
      %v510 = vunpack.c.l.b16 %v367
      %v511 = vunpack.c.h.b16 %v367
      %v512 = vunpack.c.l.b16 %v368
      %v513 = vunpack.c.h.b16 %v368
      %v514 = vunpack.c.l.b16 %v369
      %v515 = vunpack.c.h.b16 %v369
      %v516 = vunpack.c.l.b16 %v370
      %v517 = vunpack.c.h.b16 %v370
      %v518 = vunpack.c.l.b16 %v371
      %v519 = vunpack.c.h.b16 %v371
      %v520 = vunpack.c.l.b16 %v372
      %v521 = vunpack.c.h.b16 %v372
      %v522 = vunpack.c.l.b16 %v373
      %v523 = vunpack.c.h.b16 %v373
      %v524 = vunpack.c.l.b16 %v374
      %v525 = vunpack.c.h.b16 %v374
      %v526 = vunpack.c.l.b16 %v375
      %v527 = vunpack.c.h.b16 %v375
      %v528 = vunpack.c.l.b16 %v376
      %v529 = vunpack.c.h.b16 %v376
      %v530 = vunpack.c.l.b16 %v377
      %v531 = vunpack.c.h.b16 %v377
      %v532 = vunpack.c.l.b16 %v378
      %v533 = vunpack.c.h.b16 %v378
      %v534 = vunpack.c.l.b16 %v379
      %v535 = vunpack.c.h.b16 %v379
      %v536 = vunpack.c.l.b16 %v380
      %v537 = vunpack.c.h.b16 %v380
      %v538 = vunpack.c.l.b16 %v381
      %v539 = vunpack.c.h.b16 %v381
      %v540 = vunpack.c.l.b16 %v382
      %v541 = vunpack.c.h.b16 %v382
      %v542 = vunpack.c.l.b16 %v383
      %v543 = vunpack.c.h.b16 %v383
      %v544 = vunpack.c.l.b16 %v384
      %v545 = vunpack.c.h.b16 %v384
      %v546 = vunpack.c.l.b16 %v385
      %v547 = vunpack.c.h.b16 %v385
      %v548 = vunpack.c.l.b16 %v386
      %v549 = vunpack.c.h.b16 %v386
      %v550 = vunpack.c.l.b16 %v387
      %v551 = vunpack.c.h.b16 %v387
      %v552 = vunpack.c.l.b16 %v388
      %v553 = vunpack.c.h.b16 %v388
      %v554 = vunpack.c.l.b16 %v389
      %v555 = vunpack.c.h.b16 %v389
      %v556 = vunpack.c.l.b16 %v390
      %v557 = vunpack.c.h.b16 %v390
      %v558 = vunpack.c.l.b16 %v391
      %v559 = vunpack.c.h.b16 %v391
      %v560 = vunpack.c.l.b16 %v392
      %v561 = vunpack.c.h.b16 %v392
      %v562 = vunpack.c.l.b16 %v393
      %v563 = vunpack.c.h.b16 %v393
      %v564 = vunpack.c.l.b16 %v394
      %v565 = vunpack.c.h.b16 %v394
      %v566 = vunpack.c.l.b16 %v395
      %v567 = vunpack.c.h.b16 %v395
      %v568 = vunpack.c.l.b16 %v396
      %v569 = vunpack.c.h.b16 %v396
      %v570 = vunpack.c.l.b16 %v397
      %v571 = vunpack.c.h.b16 %v397
      %v572 = vunpack.c.l.b16 %v398
      %v573 = vunpack.c.h.b16 %v398
      %v574 = vunpack.c.l.b16 %v399
      %v575 = vunpack.c.h.b16 %v399
      %v576 = vunpack.c.l.b16 %v400
      %v577 = vunpack.c.h.b16 %v400
      %v578 = vunpack.c.l.b16 %v401
      %v579 = vunpack.c.h.b16 %v401
      %v580 = vunpack.c.l.b16 %v402
      %v581 = vunpack.c.h.b16 %v402
      %v582 = vunpack.c.l.b16 %v403
      %v583 = vunpack.c.h.b16 %v403
      %v584 = vunpack.c.l.b16 %v404
      %v585 = vunpack.c.h.b16 %v404
      %v586 = vunpack.c.l.b16 %v405
      %v587 = vunpack.c.h.b16 %v405
      %v588 = vunpack.c.l.b16 %v406
      %v589 = vunpack.c.h.b16 %v406
      %v590 = vunpack.c.l.b16 %v407
      %v591 = vunpack.c.h.b16 %v407
      %v592 = vunpack.c.l.b16 %v408
      %v593 = vunpack.c.h.b16 %v408
      %v594 = vunpack.c.l.b16 %v409
      %v595 = vunpack.c.h.b16 %v409
      %v596 = vunpack.c.l.b16 %v410
      %v597 = vunpack.c.h.b16 %v410
      %v598 = vunpack.c.l.b16 %v411
      %v599 = vunpack.c.h.b16 %v411
      %v600 = vunpack.c.l.b16 %v412
      %v601 = vunpack.c.h.b16 %v412
      %v602 = vunpack.c.l.b16 %v413
      %v603 = vunpack.c.h.b16 %v413
      %v604 = vunpack.c.l.b16 %v414
      %v605 = vunpack.c.h.b16 %v414
      %v606 = vunpack.c.l.b16 %v415
      %v607 = vunpack.c.h.b16 %v415
      %v608 = vunpack.c.l.b16 %v416
      %v609 = vunpack.c.h.b16 %v416
      %v610 = vunpack.c.l.b16 %v417
      %v611 = vunpack.c.h.b16 %v417
      %v612 = vunpack.c.l.b16 %v418
      %v613 = vunpack.c.h.b16 %v418
      %v614 = vunpack.c.l.b16 %v419
      %v615 = vunpack.c.h.b16 %v419
      %v616 = vunpack.c.l.b16 %v420
      %v617 = vunpack.c.h.b16 %v420
      %v618 = vunpack.c.l.b16 %v421
      %v619 = vunpack.c.h.b16 %v421
      %v620 = vpack.c.b16 %v494, %v492
      %v621 = vpack.c.b16 %v495, %v493
      %v622 = vpack.c.b16 %v498, %v496
      %v623 = vpack.c.b16 %v499, %v497
      %v624 = vpack.c.b16 %v502, %v500
      %v625 = vpack.c.b16 %v503, %v501
      %v626 = vpack.c.b16 %v506, %v504
      %v627 = vpack.c.b16 %v507, %v505
      %v628 = vpack.c.b16 %v510, %v508
      %v629 = vpack.c.b16 %v511, %v509
      %v630 = vpack.c.b16 %v514, %v512
      %v631 = vpack.c.b16 %v515, %v513
      %v632 = vpack.c.b16 %v518, %v516
      %v633 = vpack.c.b16 %v519, %v517
      %v634 = vpack.c.b16 %v522, %v520
      %v635 = vpack.c.b16 %v523, %v521
      %v636 = vpack.c.b16 %v526, %v524
      %v637 = vpack.c.b16 %v527, %v525
      %v638 = vpack.c.b16 %v530, %v528
      %v639 = vpack.c.b16 %v531, %v529
      %v640 = vpack.c.b16 %v534, %v532
      %v641 = vpack.c.b16 %v535, %v533
      %v642 = vpack.c.b16 %v538, %v536
      %v643 = vpack.c.b16 %v539, %v537
      %v644 = vpack.c.b16 %v542, %v540
      %v645 = vpack.c.b16 %v543, %v541
      %v646 = vpack.c.b16 %v546, %v544
      %v647 = vpack.c.b16 %v547, %v545
      %v648 = vpack.c.b16 %v550, %v548
      %v649 = vpack.c.b16 %v551, %v549
      %v650 = vpack.c.b16 %v554, %v552
      %v651 = vpack.c.b16 %v555, %v553
      %v652 = vpack.c.b16 %v558, %v556
      %v653 = vpack.c.b16 %v559, %v557
      %v654 = vpack.c.b16 %v562, %v560
      %v655 = vpack.c.b16 %v563, %v561
      %v656 = vpack.c.b16 %v566, %v564
      %v657 = vpack.c.b16 %v567, %v565
      %v658 = vpack.c.b16 %v570, %v568
      %v659 = vpack.c.b16 %v571, %v569
      %v660 = vpack.c.b16 %v574, %v572
      %v661 = vpack.c.b16 %v575, %v573
      %v662 = vpack.c.b16 %v578, %v576
      %v663 = vpack.c.b16 %v579, %v577
      %v664 = vpack.c.b16 %v582, %v580
      %v665 = vpack.c.b16 %v583, %v581
      %v666 = vpack.c.b16 %v586, %v584
      %v667 = vpack.c.b16 %v587, %v585
      %v668 = vpack.c.b16 %v590, %v588
      %v669 = vpack.c.b16 %v591, %v589
      %v670 = vpack.c.b16 %v594, %v592
      %v671 = vpack.c.b16 %v595, %v593
      %v672 = vpack.c.b16 %v598, %v596
      %v673 = vpack.c.b16 %v599, %v597
      %v674 = vpack.c.b16 %v602, %v600
      %v675 = vpack.c.b16 %v603, %v601
      %v676 = vpack.c.b16 %v606, %v604
      %v677 = vpack.c.b16 %v607, %v605
      %v678 = vpack.c.b16 %v610, %v608
      %v679 = vpack.c.b16 %v611, %v609
      %v680 = vpack.c.b16 %v614, %v612
      %v681 = vpack.c.b16 %v615, %v613
      %v682 = vpack.c.b16 %v618, %v616
      %v683 = vpack.c.b16 %v619, %v617
      %748 = vmatpush.bf16.msra.mxu0 %v634
      %749 = vmatpush.bf16.msra.mxu0 %v632
      %750 = vmatpush.bf16.msra.mxu0 %v630
      %751 = vmatpush.bf16.msra.mxu0 %v628
      %752 = vmatpush.bf16.msra.mxu0 %v626
      %753 = vmatpush.bf16.msra.mxu0 %v624
      %754 = vmatpush.bf16.msra.mxu0 %v622
      %755 = vmatpush.bf16.msra.mxu0 %v620
      %756 = vmatmul.bf16.gmra.mxu0 %v354
      %v757 = vpop.f32.mrf.mxu0
      %v758 = vadd.f32 %v424, %v757
      %v759 = vpop.f32.mrf.mxu0
      %v760 = vadd.f32 %v424, %v759
      %761 = vdwg.mxu0
      %762 = vmatpush.bf16.msra.mxu0 %v650
      %763 = vmatpush.bf16.msra.mxu0 %v648
      %764 = vmatpush.bf16.msra.mxu0 %v646
      %765 = vmatpush.bf16.msra.mxu0 %v644
      %766 = vmatpush.bf16.msra.mxu0 %v642
      %767 = vmatpush.bf16.msra.mxu0 %v640
      %768 = vmatpush.bf16.msra.mxu0 %v638
      %769 = vmatpush.bf16.msra.mxu0 %v636
      %770 = vmatmul.bf16.gmra.mxu0 %v355
      %v771 = vpop.f32.mrf.mxu0
      %v772 = vadd.f32 %v758, %v771
      %v773 = vpop.f32.mrf.mxu0
      %v774 = vadd.f32 %v760, %v773
      %775 = vdwg.mxu0
      %776 = vmatpush.bf16.msra.mxu0 %v666
      %777 = vmatpush.bf16.msra.mxu0 %v664
      %778 = vmatpush.bf16.msra.mxu0 %v662
      %779 = vmatpush.bf16.msra.mxu0 %v660
      %780 = vmatpush.bf16.msra.mxu0 %v658
      %781 = vmatpush.bf16.msra.mxu0 %v656
      %782 = vmatpush.bf16.msra.mxu0 %v654
      %783 = vmatpush.bf16.msra.mxu0 %v652
      %784 = vmatmul.bf16.gmra.mxu0 %v356
      %v785 = vpop.f32.mrf.mxu0
      %v786 = vadd.f32 %v772, %v785
      %v787 = vpop.f32.mrf.mxu0
      %v788 = vadd.f32 %v774, %v787
      %789 = vdwg.mxu0
      %790 = vmatpush.bf16.msra.mxu0 %v682
      %791 = vmatpush.bf16.msra.mxu0 %v680
      %792 = vmatpush.bf16.msra.mxu0 %v678
      %793 = vmatpush.bf16.msra.mxu0 %v676
      %794 = vmatpush.bf16.msra.mxu0 %v674
      %795 = vmatpush.bf16.msra.mxu0 %v672
      %796 = vmatpush.bf16.msra.mxu0 %v670
      %797 = vmatpush.bf16.msra.mxu0 %v668
      %798 = vmatmul.bf16.gmra.mxu0 %v357
      %v799 = vpop.f32.mrf.mxu0
      %v800 = vadd.f32 %v786, %v799
      %v801 = vpop.f32.mrf.mxu0
      %v802 = vadd.f32 %v788, %v801
      %803 = vdwg.mxu0
      %804 = vmatpush.bf16.msra.mxu0 %v635
      %805 = vmatpush.bf16.msra.mxu0 %v633
      %806 = vmatpush.bf16.msra.mxu0 %v631
      %807 = vmatpush.bf16.msra.mxu0 %v629
      %808 = vmatpush.bf16.msra.mxu0 %v627
      %809 = vmatpush.bf16.msra.mxu0 %v625
      %810 = vmatpush.bf16.msra.mxu0 %v623
      %811 = vmatpush.bf16.msra.mxu0 %v621
      %812 = vmatmul.bf16.gmra.mxu0 %v354
      %v813 = vpop.f32.mrf.mxu0
      %v814 = vadd.f32 %v425, %v813
      %v815 = vpop.f32.mrf.mxu0
      %v816 = vadd.f32 %v425, %v815
      %817 = vdwg.mxu0
      %818 = vmatpush.bf16.msra.mxu0 %v651
      %819 = vmatpush.bf16.msra.mxu0 %v649
      %820 = vmatpush.bf16.msra.mxu0 %v647
      %821 = vmatpush.bf16.msra.mxu0 %v645
      %822 = vmatpush.bf16.msra.mxu0 %v643
      %823 = vmatpush.bf16.msra.mxu0 %v641
      %824 = vmatpush.bf16.msra.mxu0 %v639
      %825 = vmatpush.bf16.msra.mxu0 %v637
      %826 = vmatmul.bf16.gmra.mxu0 %v355
      %v827 = vpop.f32.mrf.mxu0
      %v828 = vadd.f32 %v814, %v827
      %v829 = vpop.f32.mrf.mxu0
      %v830 = vadd.f32 %v816, %v829
      %831 = vdwg.mxu0
      %832 = vmatpush.bf16.msra.mxu0 %v667
      %833 = vmatpush.bf16.msra.mxu0 %v665
      %834 = vmatpush.bf16.msra.mxu0 %v663
      %835 = vmatpush.bf16.msra.mxu0 %v661
      %836 = vmatpush.bf16.msra.mxu0 %v659
      %837 = vmatpush.bf16.msra.mxu0 %v657
      %838 = vmatpush.bf16.msra.mxu0 %v655
      %839 = vmatpush.bf16.msra.mxu0 %v653
      %840 = vmatmul.bf16.gmra.mxu0 %v356
      %v841 = vpop.f32.mrf.mxu0
      %v842 = vadd.f32 %v828, %v841
      %v843 = vpop.f32.mrf.mxu0
      %v844 = vadd.f32 %v830, %v843
      %845 = vdwg.mxu0
      %846 = vmatpush.bf16.msra.mxu0 %v683
      %847 = vmatpush.bf16.msra.mxu0 %v681
      %848 = vmatpush.bf16.msra.mxu0 %v679
      %849 = vmatpush.bf16.msra.mxu0 %v677
      %850 = vmatpush.bf16.msra.mxu0 %v675
      %851 = vmatpush.bf16.msra.mxu0 %v673
      %852 = vmatpush.bf16.msra.mxu0 %v671
      %853 = vmatpush.bf16.msra.mxu0 %v669
      %854 = vmatmul.bf16.gmra.mxu0 %v357
      %v855 = vpop.f32.mrf.mxu0
      %v856 = vadd.f32 %v842, %v855
      %v857 = vpop.f32.mrf.mxu0
      %v858 = vadd.f32 %v844, %v857
      %859 = vdwg.mxu0
      %860 = vst [vmem:[%s177] sm:$0xff] %v800
      %861 = vst [vmem:[%s177 + $0x8] sm:$0xff] %v856
      %862 = vst [vmem:[%s177 + $0x10] sm:$0xff] %v802
      %863 = vst [vmem:[%s177 + $0x18] sm:$0xff] %v858
      %s864 = smul.u32 2, %s14
      %p865 = scmp.lt.s32.totalorder %s864, 3
      %s866 = scalar_select %p865, %s864, 3
      %s867 = smul.addr %s866, 2
      %s868 = smul.addr %s867, 8
      %s869 = scalar_lea.vmem %s3, %s868
      // Predicated region
      $region33: #{convnext_forward.10} parent=31 // pred_check
        %p870 = pneg %p100
      $region34: #{convnext_forward.10} parent=31 // pred_check_branch
        %872 = sbr.rel (%p870) target = $region36
      $region35: #{convnext_forward.10} parent=31 // pred_region
        %s873 = smul.u32 2, %s14
      $region36: #{convnext_forward.10} parent=31 // pred_fallthru
        _
    $region32: #{convnext_forward.10} parent=5 // pred_fallthru
      _
    %p874 = scmp.le.s32.totalorder 2, %s9
    // Predicated region
    $region37: #{convnext_forward.10} parent=5 // pred_check
      %p875 = pneg %p874
    $region38: #{convnext_forward.10} parent=5 // pred_check_branch
      %877 = sbr.rel (%p875) target = $region40
    $region39: #{convnext_forward.10} parent=5 // pred_region
      %s878 = ssub.s32 %s9, 2
      // Predicated region
      $region41: #{convnext_forward.10} parent=39 // pred_check
        %p879 = pneg %p106
      $region42: #{convnext_forward.10} parent=39 // pred_check_branch
        %881 = sbr.rel (%p879) target = $region44
      $region43: #{convnext_forward.10} parent=39 // pred_region
        %s882 = smul.u32 2, %s15
        %p883 = scmp.lt.s32.totalorder %s882, 3
        %s884 = scalar_select %p883, %s882, 3
        %s885 = smul.addr %s884, 2
        %s886 = smul.addr %s885, 8
        %s887 = scalar_lea.vmem %s3, %s886
      $region44: #{convnext_forward.10} parent=39 // pred_fallthru
        _
    $region40: #{convnext_forward.10} parent=5 // pred_fallthru
      _
  $region6: #{convnext_forward.10} parent=0 // loop_footer
    %s13 = sadd.s32 1, %s9
  $region7: #{convnext_forward.10} parent=0 // loop_footer_branch
    %8 = sbr.rel target = $region3
  $region8: #{convnext_forward.10} parent=0 // loop_exit
    _

// kernel: convnext_forward.11
$region0: #{convnext_forward.11}
  #allocation0 [shape = 'u32[]', space=smem, size = 0x4, offset = 0x4, fixed_abs, tag = 'smem constant byte address 0x4 - core index']
  #allocation1 [shape = 'u32[72,128]{1,0:T(1,128)}', space=vmem, size = 0x9000, scoped, tag = 'internal scratch']
  #allocation2 [shape = 'f32[10,16,256]{2,1,0:T(8,128)}', space=vmem, size = 0x28000, scoped, tag = 'scratch operand']
  %s0 = inlined_call_operand.vmem [shape: f32[2,4,4,256], index: 0, kind: input, shape index: {}]
  %s1 = inlined_call_operand.vmem [shape: f32[49,1,256], index: 1, kind: input, shape index: {}]
  %s2 = inlined_call_operand.vmem [shape: f32[1,256], index: 2, kind: input, shape index: {}]
  %s3 = inlined_call_operand.vmem [shape: f32[2,16,256], index: 3, kind: output, shape index: {}]
  %s4 = sld [smem:[#allocation0]]
  $region52: #{convnext_forward.11} parent=0
    _
  %s6 = ssub.s32 1, %s4
  %s7 = scalar_select 0, %s6, %s4
  loop: start=0, step=1, limit=4
  $region2: #{convnext_forward.11} parent=0 // loop_pre_header
    _
  $region3: #{convnext_forward.11} parent=0 // loop_header
    %s9 = sphi 0, %s13
    %p10 = scmp.ge.s32.totalorder %s9, 4
    %s19 = sphi 0, %s21
    %s22 = sphi 0, %s19
    %s23 = sphi 0, %s22
    %s39 = sphi 0, %s23
    %s43 = sphi 0, %s43
    %s45 = sphi 0, %s43
    %s46 = sphi 0, %s45
    %s60 = sphi 0, %s46
    %s64 = sphi 0, %s64
    %s66 = sphi 0, %s64
    %s67 = sphi 0, %s66
    %s81 = sphi 0, %s67
    %s87 = sphi 0, %s89
    %s90 = sphi 0, %s87
    %s91 = sphi 0, %s90
    %s107 = sphi 0, %s91
  $region4: #{convnext_forward.11} parent=0 // loop_header_branch
    %12 = sbr.rel (%p10) target = $region8
  $region5: #{convnext_forward.11} parent=0 // loop_body
    %s14 = ssub.s32 %s9, 1
    %s15 = ssub.s32 %s9, 2
    %s16 = sadd.s32 %s9, 1
    %s17 = ssub.s32 %s9, %s16
    %p18 = scmp.eq.s32.totalorder %s17, 0
    %s20 = sadd.s32 %s19, 1
    %s21 = scalar_select %p18, %s19, %s20
    %p24 = pneg %p18
    %p25 = scmp.eq.s32.totalorder %s9, 1
    %p26 = por %p24, %p25
    %p27 = scmp.ne.s32.totalorder %s19, %s22
    %p28 = scmp.eq.s32.totalorder %s9, 0
    %p29 = por %p27, %p28
    %p30 = scmp.ne.s32.totalorder %s19, %s22
    %p31 = scmp.eq.s32.totalorder %s14, 1
    %p32 = por %p30, %p31
    %p33 = scmp.ne.s32.totalorder %s22, %s23
    %p34 = scmp.eq.s32.totalorder %s14, 0
    %p35 = por %p33, %p34
    %p36 = scmp.ne.s32.totalorder %s22, %s23
    %p37 = scmp.eq.s32.totalorder %s15, 1
    %p38 = por %p36, %p37
    %p40 = scmp.ne.s32.totalorder %s23, %s39
    %p41 = scmp.eq.s32.totalorder %s15, 0
    %p42 = por %p40, %p41
    %s44 = sadd.s32 %s43, 1
    %p47 = scmp.eq.s32.totalorder %s9, 1
    %p48 = scmp.ne.s32.totalorder %s43, %s45
    %p49 = scmp.eq.s32.totalorder %s9, 0
    %p50 = por %p48, %p49
    %p51 = scmp.ne.s32.totalorder %s43, %s45
    %p52 = scmp.eq.s32.totalorder %s14, 1
    %p53 = por %p51, %p52
    %p54 = scmp.ne.s32.totalorder %s45, %s46
    %p55 = scmp.eq.s32.totalorder %s14, 0
    %p56 = por %p54, %p55
    %p57 = scmp.ne.s32.totalorder %s45, %s46
    %p58 = scmp.eq.s32.totalorder %s15, 1
    %p59 = por %p57, %p58
    %p61 = scmp.ne.s32.totalorder %s46, %s60
    %p62 = scmp.eq.s32.totalorder %s15, 0
    %p63 = por %p61, %p62
    %s65 = sadd.s32 %s64, 1
    %p68 = scmp.eq.s32.totalorder %s9, 1
    %p69 = scmp.ne.s32.totalorder %s64, %s66
    %p70 = scmp.eq.s32.totalorder %s9, 0
    %p71 = por %p69, %p70
    %p72 = scmp.ne.s32.totalorder %s64, %s66
    %p73 = scmp.eq.s32.totalorder %s14, 1
    %p74 = por %p72, %p73
    %p75 = scmp.ne.s32.totalorder %s66, %s67
    %p76 = scmp.eq.s32.totalorder %s14, 0
    %p77 = por %p75, %p76
    %p78 = scmp.ne.s32.totalorder %s66, %s67
    %p79 = scmp.eq.s32.totalorder %s15, 1
    %p80 = por %p78, %p79
    %p82 = scmp.ne.s32.totalorder %s67, %s81
    %p83 = scmp.eq.s32.totalorder %s15, 0
    %p84 = por %p82, %p83
    %s85 = ssub.s32 %s9, %s16
    %p86 = scmp.eq.s32.totalorder %s85, 0
    %s88 = sadd.s32 %s87, 1
    %s89 = scalar_select %p86, %s87, %s88
    %p92 = pneg %p86
    %p93 = scmp.eq.s32.totalorder %s9, 1
    %p94 = por %p92, %p93
    %p95 = scmp.ne.s32.totalorder %s87, %s90
    %p96 = scmp.eq.s32.totalorder %s9, 0
    %p97 = por %p95, %p96
    %p98 = scmp.ne.s32.totalorder %s87, %s90
    %p99 = scmp.eq.s32.totalorder %s14, 1
    %p100 = por %p98, %p99
    %p101 = scmp.ne.s32.totalorder %s90, %s91
    %p102 = scmp.eq.s32.totalorder %s14, 0
    %p103 = por %p101, %p102
    %p104 = scmp.ne.s32.totalorder %s90, %s91
    %p105 = scmp.eq.s32.totalorder %s15, 1
    %p106 = por %p104, %p105
    %p108 = scmp.ne.s32.totalorder %s91, %s107
    %p109 = scmp.eq.s32.totalorder %s15, 0
    %p110 = por %p108, %p109
    %p111 = scmp.le.s32.totalorder 1, %s9
    %p112 = scmp.lt.s32.totalorder %s9, 3
    %p113 = pnand %p111, %p112
    %p114 = pneg %p113
    // Predicated region
    $region9: #{convnext_forward.11} parent=5 // pred_check
      _
    $region10: #{convnext_forward.11} parent=5 // pred_check_branch
      %116 = sbr.rel (%p113) target = $region12
    $region11: #{convnext_forward.11} parent=5 // pred_region
      %s117 = ssub.s32 %s9, 1
      // Predicated region
      $region13: #{convnext_forward.11} parent=11 // pred_check
        %p118 = pneg %p56
      $region14: #{convnext_forward.11} parent=11 // pred_check_branch
        %120 = sbr.rel (%p118) target = $region16
      $region15: #{convnext_forward.11} parent=11 // pred_region
        _
      $region16: #{convnext_forward.11} parent=11 // pred_fallthru
        _
      // Predicated region
      $region17: #{convnext_forward.11} parent=11 // pred_check
        %p121 = pneg %p77
      $region18: #{convnext_forward.11} parent=11 // pred_check_branch
        %123 = sbr.rel (%p121) target = $region20
      $region19: #{convnext_forward.11} parent=11 // pred_region
        _
      $region20: #{convnext_forward.11} parent=11 // pred_fallthru
        _
    $region12: #{convnext_forward.11} parent=5 // pred_fallthru
      _
    %p124 = scmp.lt.s32.totalorder %s9, 2
    // Predicated region
    $region21: #{convnext_forward.11} parent=5 // pred_check
      %p125 = pneg %p124
    $region22: #{convnext_forward.11} parent=5 // pred_check_branch
      %127 = sbr.rel (%p125) target = $region24
    $region23: #{convnext_forward.11} parent=5 // pred_region
      // Predicated region
      $region25: #{convnext_forward.11} parent=23 // pred_check
        %p128 = pneg %p29
      $region26: #{convnext_forward.11} parent=23 // pred_check_branch
        %130 = sbr.rel (%p128) target = $region28
      $region27: #{convnext_forward.11} parent=23 // pred_region
        %p131 = scmp.lt.s32.totalorder %s9, 1
        %s132 = scalar_select %p131, %s9, 1
        %s133 = smul.addr %s132, 8
        %s134 = smul.addr %s133, 4
        %s135 = scalar_lea.vmem %s0, %s134
      $region28: #{convnext_forward.11} parent=23 // pred_fallthru
        _
    $region24: #{convnext_forward.11} parent=5 // pred_fallthru
      _
    %p136 = scmp.le.s32.totalorder 1, %s9
    %p137 = scmp.lt.s32.totalorder %s9, 3
    %p138 = pnand %p136, %p137
    %p139 = pneg %p138
    // Predicated region
    $region29: #{convnext_forward.11} parent=5 // pred_check
      _
    $region30: #{convnext_forward.11} parent=5 // pred_check_branch
      %141 = sbr.rel (%p138) target = $region32
    $region31: #{convnext_forward.11} parent=5 // pred_region
      %s142 = ssub.s32 %s9, 1
      %p143 = scmp.lt.s32.totalorder %s14, 1
      %s144 = scalar_select %p143, %s14, 1
      %s145 = smul.addr %s144, 8
      %s146 = smul.addr %s145, 4
      %s147 = scalar_lea.vmem %s0, %s146
      %p148 = pneg %p35
      %p149 = pneg %p32
      %p150 = pneg %p56
      %p151 = pneg %p53
      %p152 = pneg %p77
      %p153 = pneg %p74
      %p154 = pneg %p103
      %p155 = pneg %p100
      %p156 = scmp.lt.s32.totalorder %s14, 1
      %s157 = scalar_select %p156, %s14, 1
      %s158 = smul.addr %s157, 4
      %s159 = smul.addr %s158, 8
      %s160 = scalar_lea.vmem %s3, %s159
      %p161 = scmp.lt.s32.totalorder %s14, 1
      %s162 = scalar_select %p161, %s14, 1
      %s163 = smul.addr %s162, 8
      %s164 = smul.addr %s163, 4
      %s165 = scalar_lea.vmem %s0, %s164
      %p166 = scmp.lt.s32.totalorder %s14, 1
      %s167 = scalar_select %p166, %s14, 1
      %s168 = smul.addr %s167, 4
      %s169 = smul.addr %s168, 8
      %s170 = scalar_lea.vmem %s3, %s169
      %171 = vst [vmem:[#allocation2] sm:$0xff] 0.0
      %172 = vst [vmem:[#allocation2 + $0x8] sm:$0xff] 0.0
      %173 = vst [vmem:[#allocation2 + $0x10] sm:$0xff] 0.0
      %174 = vst [vmem:[#allocation2 + $0x18] sm:$0xff] 0.0
      %175 = vst [vmem:[#allocation2 + $0x20] sm:$0xff] 0.0
      %176 = vst [vmem:[#allocation2 + $0x28] sm:$0xff] 0.0
      %177 = vst [vmem:[#allocation2 + $0x30] sm:$0xff] 0.0
      %178 = vst [vmem:[#allocation2 + $0x38] sm:$0xff] 0.0
      %179 = vst [vmem:[#allocation2 + $0x40] sm:$0xff] 0.0
      %180 = vst [vmem:[#allocation2 + $0x48] sm:$0xff] 0.0
      %181 = vst [vmem:[#allocation2 + $0x50] sm:$0xff] 0.0
      %182 = vst [vmem:[#allocation2 + $0x58] sm:$0xff] 0.0
      %s183 = scalar_lea.vmem [#allocation2], 224
      %184 = vst [vmem:[%s183] sm:$0xff] 0.0
      %185 = vst [vmem:[%s183 + $0x8] sm:$0xff] 0.0
      %186 = vst [vmem:[%s183 + $0x10] sm:$0xff] 0.0
      %187 = vst [vmem:[%s183 + $0x18] sm:$0xff] 0.0
      %188 = vst [vmem:[%s183 + $0x20] sm:$0xff] 0.0
      %189 = vst [vmem:[%s183 + $0x28] sm:$0xff] 0.0
      %190 = vst [vmem:[%s183 + $0x30] sm:$0xff] 0.0
      %191 = vst [vmem:[%s183 + $0x38] sm:$0xff] 0.0
      %192 = vst [vmem:[%s183 + $0x40] sm:$0xff] 0.0
      %193 = vst [vmem:[%s183 + $0x48] sm:$0xff] 0.0
      %194 = vst [vmem:[%s183 + $0x50] sm:$0xff] 0.0
      %195 = vst [vmem:[%s183 + $0x58] sm:$0xff] 0.0
      %s196 = scalar_lea.vmem [#allocation2], 96
      %197 = vst [vmem:[%s196] sm:$0x7] 0.0
      %198 = vst [vmem:[%s196 + $0x8] sm:$0x7] 0.0
      %199 = vst [vmem:[%s196 + $0x20] sm:$0x7] 0.0
      %200 = vst [vmem:[%s196 + $0x28] sm:$0x7] 0.0
      %201 = vst [vmem:[%s196 + $0x40] sm:$0x7] 0.0
      %202 = vst [vmem:[%s196 + $0x48] sm:$0x7] 0.0
      %203 = vst [vmem:[%s196 + $0x60] sm:$0x7] 0.0
      %204 = vst [vmem:[%s196 + $0x68] sm:$0x7] 0.0
      %205 = vst [vmem:[%s196] sm:$0x80] 0.0
      %206 = vst [vmem:[%s196 + $0x8] sm:$0x80] 0.0
      %207 = vst [vmem:[%s196 + $0x10] sm:$0x3] 0.0
      %208 = vst [vmem:[%s196 + $0x18] sm:$0x3] 0.0
      %209 = vst [vmem:[%s196 + $0x20] sm:$0x80] 0.0
      %210 = vst [vmem:[%s196 + $0x28] sm:$0x80] 0.0
      %211 = vst [vmem:[%s196 + $0x30] sm:$0x3] 0.0
      %212 = vst [vmem:[%s196 + $0x38] sm:$0x3] 0.0
      %213 = vst [vmem:[%s196 + $0x40] sm:$0x80] 0.0
      %214 = vst [vmem:[%s196 + $0x48] sm:$0x80] 0.0
      %215 = vst [vmem:[%s196 + $0x50] sm:$0x3] 0.0
      %216 = vst [vmem:[%s196 + $0x58] sm:$0x3] 0.0
      %217 = vst [vmem:[%s196 + $0x60] sm:$0x80] 0.0
      %218 = vst [vmem:[%s196 + $0x68] sm:$0x80] 0.0
      %219 = vst [vmem:[%s196 + $0x70] sm:$0x3] 0.0
      %220 = vst [vmem:[%s196 + $0x78] sm:$0x3] 0.0
      %v221 = vld [vmem:[%s165] sm:$0xff]
      %v222 = vld [vmem:[%s165 + $0x8] sm:$0xff]
      %v223 = vld [vmem:[%s165 + $0x10] sm:$0xff]
      %v224 = vld [vmem:[%s165 + $0x18] sm:$0xff]
      %229 = vst [vmem:[#allocation1] ss:$2 sm:$0xff] %v221
      %v230 = vld.sshfl [vmem:[#allocation1] sm:$0xff pattern:$0x75316420]
      %v231 = vld.sshfl [vmem:[#allocation1 + $0x8] sm:$0xff pattern:$0x75316420]
      %s232 = scalar_lea.vmem [#allocation1], 16
      %233 = vst [vmem:[%s232] ss:$2 sm:$0xff] %v222
      %v234 = vld.sshfl [vmem:[#allocation1 + $0x10] sm:$0xff pattern:$0x75316420]
      %v235 = vld.sshfl [vmem:[#allocation1 + $0x18] sm:$0xff pattern:$0x75316420]
      %s236 = scalar_lea.vmem [#allocation1], 32
      %237 = vst [vmem:[%s236] ss:$2 sm:$0xff] %v223
      %v238 = vld.sshfl [vmem:[#allocation1 + $0x20] sm:$0xff pattern:$0x75316420]
      %v239 = vld.sshfl [vmem:[#allocation1 + $0x28] sm:$0xff pattern:$0x75316420]
      %s240 = scalar_lea.vmem [#allocation1], 48
      %241 = vst [vmem:[%s240] ss:$2 sm:$0xff] %v224
      %v242 = vld.sshfl [vmem:[#allocation1 + $0x30] sm:$0xff pattern:$0x75316420]
      %v243 = vld.sshfl [vmem:[#allocation1 + $0x38] sm:$0xff pattern:$0x75316420]
      %v244 = vrot.slane %v230, 5
      %v245 = vrot.slane %v231, 5
      %v246 = vrot.slane %v234, 5
      %v247 = vrot.slane %v235, 5
      %v248 = vrot.slane %v238, 5
      %v249 = vrot.slane %v239, 5
      %v250 = vrot.slane %v242, 5
      %v251 = vrot.slane %v243, 5
      %260 = vst [vmem:[%s196] sm:$0x78] %v244
      %261 = vst [vmem:[%s196 + $0x8] sm:$0x78] %v245
      %262 = vst [vmem:[%s196 + $0x20] sm:$0x78] %v246
      %263 = vst [vmem:[%s196 + $0x28] sm:$0x78] %v247
      %264 = vst [vmem:[%s196 + $0x40] sm:$0x78] %v248
      %265 = vst [vmem:[%s196 + $0x48] sm:$0x78] %v249
      %266 = vst [vmem:[%s196 + $0x60] sm:$0x78] %v250
      %267 = vst [vmem:[%s196 + $0x68] sm:$0x78] %v251
      loop: start=0, step=1, limit=7
      $region33: #{convnext_forward.11} parent=31 // loop_pre_header
        _
      $region34: #{convnext_forward.11} parent=31 // loop_header
        %s269 = sphi 0, %s273
        %p270 = scmp.ge.s32.totalorder %s269, 7
        %v274 = vphi 0.0, %v734
        %v275 = vphi 0.0, %v735
        %v276 = vphi 0.0, %v736
        %v277 = vphi 0.0, %v737
        %v278 = vphi 0.0, %v738
        %v279 = vphi 0.0, %v739
        %v280 = vphi 0.0, %v740
        %v281 = vphi 0.0, %v741
      $region35: #{convnext_forward.11} parent=31 // loop_header_branch
        %272 = sbr.rel (%p270) target = $region39
      $region36: #{convnext_forward.11} parent=31 // loop_body
        %s282 = smul.u32 %s269, 4
        %s283 = smul.addr %s282, 8
        %s284 = scalar_lea.vmem [#allocation2], %s283
        %v285 = vld [vmem:[%s284] sm:$0xf]
        %v286 = vld [vmem:[%s284 + $0x8] sm:$0xf]
        %v287 = vld [vmem:[%s284 + $0x20] sm:$0xf]
        %v288 = vld [vmem:[%s284 + $0x28] sm:$0xf]
        %v289 = vld [vmem:[%s284 + $0x40] sm:$0xf]
        %v290 = vld [vmem:[%s284 + $0x48] sm:$0xf]
        %v291 = vld [vmem:[%s284 + $0x60] sm:$0xf]
        %v292 = vld [vmem:[%s284 + $0x68] sm:$0xf]
        %s293 = smul.u32 %s269, 7
        %s294 = smul.u32 %s293, 2
        %s295 = scalar_lea.vmem %s1, %s294
        %v296 = vld [vmem:[%s295] sm:$0x3]
        %v298 = vperm.slane %v296, 0
        %v299 = vperm.slane %v296, 1
        %v302 = vmul.f32 %v285, %v298
        %v303 = vmul.f32 %v286, %v299
        %v304 = vmul.f32 %v287, %v298
        %v305 = vmul.f32 %v288, %v299
        %v306 = vmul.f32 %v289, %v298
        %v307 = vmul.f32 %v290, %v299
        %v308 = vmul.f32 %v291, %v298
        %v309 = vmul.f32 %v292, %v299
        %v310 = vadd.f32 %v274, %v302
        %v311 = vadd.f32 %v275, %v303
        %v312 = vadd.f32 %v276, %v304
        %v313 = vadd.f32 %v277, %v305
        %v314 = vadd.f32 %v278, %v306
        %v315 = vadd.f32 %v279, %v307
        %v316 = vadd.f32 %v280, %v308
        %v317 = vadd.f32 %v281, %v309
        %v318 = vld [vmem:[%s284] sm:$0x1e]
        %v319 = vld [vmem:[%s284 + $0x8] sm:$0x1e]
        %v320 = vld [vmem:[%s284 + $0x20] sm:$0x1e]
        %v321 = vld [vmem:[%s284 + $0x28] sm:$0x1e]
        %v322 = vld [vmem:[%s284 + $0x40] sm:$0x1e]
        %v323 = vld [vmem:[%s284 + $0x48] sm:$0x1e]
        %v324 = vld [vmem:[%s284 + $0x60] sm:$0x1e]
        %v325 = vld [vmem:[%s284 + $0x68] sm:$0x1e]
        %s326 = sadd.s32 %s293, 1
        %s327 = smul.u32 %s326, 2
        %s328 = scalar_lea.vmem %s1, %s327
        %v329 = vld [vmem:[%s328] sm:$0x3]
        %v331 = vperm.slane %v329, 0
        %v332 = vperm.slane %v329, 1
        %v335 = vmul.f32 %v318, %v331
        %v336 = vmul.f32 %v319, %v332
        %v337 = vmul.f32 %v320, %v331
        %v338 = vmul.f32 %v321, %v332
        %v339 = vmul.f32 %v322, %v331
        %v340 = vmul.f32 %v323, %v332
        %v341 = vmul.f32 %v324, %v331
        %v342 = vmul.f32 %v325, %v332
        %v351 = vrot.slane %v335, 1
        %v352 = vrot.slane %v336, 1
        %v353 = vrot.slane %v337, 1
        %v354 = vrot.slane %v338, 1
        %v355 = vrot.slane %v339, 1
        %v356 = vrot.slane %v340, 1
        %v357 = vrot.slane %v341, 1
        %v358 = vrot.slane %v342, 1
        %v367 = vadd.f32 %v310, %v351
        %v368 = vadd.f32 %v311, %v352
        %v369 = vadd.f32 %v312, %v353
        %v370 = vadd.f32 %v313, %v354
        %v371 = vadd.f32 %v314, %v355
        %v372 = vadd.f32 %v315, %v356
        %v373 = vadd.f32 %v316, %v357
        %v374 = vadd.f32 %v317, %v358
        %v375 = vld [vmem:[%s284] sm:$0x3c]
        %v376 = vld [vmem:[%s284 + $0x8] sm:$0x3c]
        %v377 = vld [vmem:[%s284 + $0x20] sm:$0x3c]
        %v378 = vld [vmem:[%s284 + $0x28] sm:$0x3c]
        %v379 = vld [vmem:[%s284 + $0x40] sm:$0x3c]
        %v380 = vld [vmem:[%s284 + $0x48] sm:$0x3c]
        %v381 = vld [vmem:[%s284 + $0x60] sm:$0x3c]
        %v382 = vld [vmem:[%s284 + $0x68] sm:$0x3c]
        %s383 = sadd.s32 %s293, 2
        %s384 = smul.u32 %s383, 2
        %s385 = scalar_lea.vmem %s1, %s384
        %v386 = vld [vmem:[%s385] sm:$0x3]
        %v388 = vperm.slane %v386, 0
        %v389 = vperm.slane %v386, 1
        %v392 = vmul.f32 %v375, %v388
        %v393 = vmul.f32 %v376, %v389
        %v394 = vmul.f32 %v377, %v388
        %v395 = vmul.f32 %v378, %v389
        %v396 = vmul.f32 %v379, %v388
        %v397 = vmul.f32 %v380, %v389
        %v398 = vmul.f32 %v381, %v388
        %v399 = vmul.f32 %v382, %v389
        %v408 = vrot.slane %v392, 2
        %v409 = vrot.slane %v393, 2
        %v410 = vrot.slane %v394, 2
        %v411 = vrot.slane %v395, 2
        %v412 = vrot.slane %v396, 2
        %v413 = vrot.slane %v397, 2
        %v414 = vrot.slane %v398, 2
        %v415 = vrot.slane %v399, 2
        %v424 = vadd.f32 %v367, %v408
        %v425 = vadd.f32 %v368, %v409
        %v426 = vadd.f32 %v369, %v410
        %v427 = vadd.f32 %v370, %v411
        %v428 = vadd.f32 %v371, %v412
        %v429 = vadd.f32 %v372, %v413
        %v430 = vadd.f32 %v373, %v414
        %v431 = vadd.f32 %v374, %v415
        %v432 = vld [vmem:[%s284] sm:$0x78]
        %v433 = vld [vmem:[%s284 + $0x8] sm:$0x78]
        %v434 = vld [vmem:[%s284 + $0x20] sm:$0x78]
        %v435 = vld [vmem:[%s284 + $0x28] sm:$0x78]
        %v436 = vld [vmem:[%s284 + $0x40] sm:$0x78]
        %v437 = vld [vmem:[%s284 + $0x48] sm:$0x78]
        %v438 = vld [vmem:[%s284 + $0x60] sm:$0x78]
        %v439 = vld [vmem:[%s284 + $0x68] sm:$0x78]
        %s440 = sadd.s32 %s293, 3
        %s441 = smul.u32 %s440, 2
        %s442 = scalar_lea.vmem %s1, %s441
        %v443 = vld [vmem:[%s442] sm:$0x3]
        %v445 = vperm.slane %v443, 0
        %v446 = vperm.slane %v443, 1
        %v449 = vmul.f32 %v432, %v445
        %v450 = vmul.f32 %v433, %v446
        %v451 = vmul.f32 %v434, %v445
        %v452 = vmul.f32 %v435, %v446
        %v453 = vmul.f32 %v436, %v445
        %v454 = vmul.f32 %v437, %v446
        %v455 = vmul.f32 %v438, %v445
        %v456 = vmul.f32 %v439, %v446
        %v465 = vrot.slane %v449, 3
        %v466 = vrot.slane %v450, 3
        %v467 = vrot.slane %v451, 3
        %v468 = vrot.slane %v452, 3
        %v469 = vrot.slane %v453, 3
        %v470 = vrot.slane %v454, 3
        %v471 = vrot.slane %v455, 3
        %v472 = vrot.slane %v456, 3
        %v481 = vadd.f32 %v424, %v465
        %v482 = vadd.f32 %v425, %v466
        %v483 = vadd.f32 %v426, %v467
        %v484 = vadd.f32 %v427, %v468
        %v485 = vadd.f32 %v428, %v469
        %v486 = vadd.f32 %v429, %v470
        %v487 = vadd.f32 %v430, %v471
        %v488 = vadd.f32 %v431, %v472
        %v489 = vld [vmem:[%s284] sm:$0xf0]
        %v490 = vld [vmem:[%s284 + $0x8] sm:$0xf0]
        %v491 = vld [vmem:[%s284 + $0x20] sm:$0xf0]
        %v492 = vld [vmem:[%s284 + $0x28] sm:$0xf0]
        %v493 = vld [vmem:[%s284 + $0x40] sm:$0xf0]
        %v494 = vld [vmem:[%s284 + $0x48] sm:$0xf0]
        %v495 = vld [vmem:[%s284 + $0x60] sm:$0xf0]
        %v496 = vld [vmem:[%s284 + $0x68] sm:$0xf0]
        %s497 = sadd.s32 %s293, 4
        %s498 = smul.u32 %s497, 2
        %s499 = scalar_lea.vmem %s1, %s498
        %v500 = vld [vmem:[%s499] sm:$0x3]
        %v502 = vperm.slane %v500, 0
        %v503 = vperm.slane %v500, 1
        %v506 = vmul.f32 %v489, %v502
        %v507 = vmul.f32 %v490, %v503
        %v508 = vmul.f32 %v491, %v502
        %v509 = vmul.f32 %v492, %v503
        %v510 = vmul.f32 %v493, %v502
        %v511 = vmul.f32 %v494, %v503
        %v512 = vmul.f32 %v495, %v502
        %v513 = vmul.f32 %v496, %v503
        %v522 = vrot.slane %v506, 4
        %v523 = vrot.slane %v507, 4
        %v524 = vrot.slane %v508, 4
        %v525 = vrot.slane %v509, 4
        %v526 = vrot.slane %v510, 4
        %v527 = vrot.slane %v511, 4
        %v528 = vrot.slane %v512, 4
        %v529 = vrot.slane %v513, 4
        %v538 = vadd.f32 %v481, %v522
        %v539 = vadd.f32 %v482, %v523
        %v540 = vadd.f32 %v483, %v524
        %v541 = vadd.f32 %v484, %v525
        %v542 = vadd.f32 %v485, %v526
        %v543 = vadd.f32 %v486, %v527
        %v544 = vadd.f32 %v487, %v528
        %v545 = vadd.f32 %v488, %v529
        %v546 = vld [vmem:[%s284] sm:$0xe0]
        %v547 = vld [vmem:[%s284 + $0x8] sm:$0xe0]
        %v548 = vld [vmem:[%s284 + $0x10] sm:$0x1]
        %v549 = vld [vmem:[%s284 + $0x18] sm:$0x1]
        %v550 = vld [vmem:[%s284 + $0x20] sm:$0xe0]
        %v551 = vld [vmem:[%s284 + $0x28] sm:$0xe0]
        %v552 = vld [vmem:[%s284 + $0x30] sm:$0x1]
        %v553 = vld [vmem:[%s284 + $0x38] sm:$0x1]
        %v554 = vld [vmem:[%s284 + $0x40] sm:$0xe0]
        %v555 = vld [vmem:[%s284 + $0x48] sm:$0xe0]
        %v556 = vld [vmem:[%s284 + $0x50] sm:$0x1]
        %v557 = vld [vmem:[%s284 + $0x58] sm:$0x1]
        %v558 = vld [vmem:[%s284 + $0x60] sm:$0xe0]
        %v559 = vld [vmem:[%s284 + $0x68] sm:$0xe0]
        %v560 = vld [vmem:[%s284 + $0x70] sm:$0x1]
        %v561 = vld [vmem:[%s284 + $0x78] sm:$0x1]
        %s562 = sadd.s32 %s293, 5
        %s563 = smul.u32 %s562, 2
        %s564 = scalar_lea.vmem %s1, %s563
        %v565 = vld [vmem:[%s564] sm:$0x3]
        %v567 = vperm.slane %v565, 0
        %v568 = vperm.slane %v565, 1
        %v571 = vmul.f32 %v546, %v567
        %v572 = vmul.f32 %v547, %v568
        %v573 = vmul.f32 %v548, %v567
        %v574 = vmul.f32 %v549, %v568
        %v575 = vmul.f32 %v550, %v567
        %v576 = vmul.f32 %v551, %v568
        %v577 = vmul.f32 %v552, %v567
        %v578 = vmul.f32 %v553, %v568
        %v579 = vmul.f32 %v554, %v567
        %v580 = vmul.f32 %v555, %v568
        %v581 = vmul.f32 %v556, %v567
        %v582 = vmul.f32 %v557, %v568
        %v583 = vmul.f32 %v558, %v567
        %v584 = vmul.f32 %v559, %v568
        %v585 = vmul.f32 %v560, %v567
        %v586 = vmul.f32 %v561, %v568
        %vm603 = vcmask 1042432
        %v604 = vrot.slane %v571, 5
        %v605 = vrot.slane %v573, 5
        %v606 = vsel %vm603, %v604, %v605
        %v607 = vrot.slane %v572, 5
        %v608 = vrot.slane %v574, 5
        %v609 = vsel %vm603, %v607, %v608
        %v610 = vrot.slane %v575, 5
        %v611 = vrot.slane %v577, 5
        %v612 = vsel %vm603, %v610, %v611
        %v613 = vrot.slane %v576, 5
        %v614 = vrot.slane %v578, 5
        %v615 = vsel %vm603, %v613, %v614
        %v616 = vrot.slane %v579, 5
        %v617 = vrot.slane %v581, 5
        %v618 = vsel %vm603, %v616, %v617
        %v619 = vrot.slane %v580, 5
        %v620 = vrot.slane %v582, 5
        %v621 = vsel %vm603, %v619, %v620
        %v622 = vrot.slane %v583, 5
        %v623 = vrot.slane %v585, 5
        %v624 = vsel %vm603, %v622, %v623
        %v625 = vrot.slane %v584, 5
        %v626 = vrot.slane %v586, 5
        %v627 = vsel %vm603, %v625, %v626
        %v636 = vadd.f32 %v538, %v606
        %v637 = vadd.f32 %v539, %v609
        %v638 = vadd.f32 %v540, %v612
        %v639 = vadd.f32 %v541, %v615
        %v640 = vadd.f32 %v542, %v618
        %v641 = vadd.f32 %v543, %v621
        %v642 = vadd.f32 %v544, %v624
        %v643 = vadd.f32 %v545, %v627
        %v644 = vld [vmem:[%s284] sm:$0xc0]
        %v645 = vld [vmem:[%s284 + $0x8] sm:$0xc0]
        %v646 = vld [vmem:[%s284 + $0x10] sm:$0x3]
        %v647 = vld [vmem:[%s284 + $0x18] sm:$0x3]
        %v648 = vld [vmem:[%s284 + $0x20] sm:$0xc0]
        %v649 = vld [vmem:[%s284 + $0x28] sm:$0xc0]
        %v650 = vld [vmem:[%s284 + $0x30] sm:$0x3]
        %v651 = vld [vmem:[%s284 + $0x38] sm:$0x3]
        %v652 = vld [vmem:[%s284 + $0x40] sm:$0xc0]
        %v653 = vld [vmem:[%s284 + $0x48] sm:$0xc0]
        %v654 = vld [vmem:[%s284 + $0x50] sm:$0x3]
        %v655 = vld [vmem:[%s284 + $0x58] sm:$0x3]
        %v656 = vld [vmem:[%s284 + $0x60] sm:$0xc0]
        %v657 = vld [vmem:[%s284 + $0x68] sm:$0xc0]
        %v658 = vld [vmem:[%s284 + $0x70] sm:$0x3]
        %v659 = vld [vmem:[%s284 + $0x78] sm:$0x3]
        %s660 = sadd.s32 %s293, 6
        %s661 = smul.u32 %s660, 2
        %s662 = scalar_lea.vmem %s1, %s661
        %v663 = vld [vmem:[%s662] sm:$0x3]
        %v665 = vperm.slane %v663, 0
        %v666 = vperm.slane %v663, 1
        %v669 = vmul.f32 %v644, %v665
        %v670 = vmul.f32 %v645, %v666
        %v671 = vmul.f32 %v646, %v665
        %v672 = vmul.f32 %v647, %v666
        %v673 = vmul.f32 %v648, %v665
        %v674 = vmul.f32 %v649, %v666
        %v675 = vmul.f32 %v650, %v665
        %v676 = vmul.f32 %v651, %v666
        %v677 = vmul.f32 %v652, %v665
        %v678 = vmul.f32 %v653, %v666
        %v679 = vmul.f32 %v654, %v665
        %v680 = vmul.f32 %v655, %v666
        %v681 = vmul.f32 %v656, %v665
        %v682 = vmul.f32 %v657, %v666
        %v683 = vmul.f32 %v658, %v665
        %v684 = vmul.f32 %v659, %v666
        %vm701 = vcmask 1041408
        %v702 = vrot.slane %v669, 6
        %v703 = vrot.slane %v671, 6
        %v704 = vsel %vm701, %v702, %v703
        %v705 = vrot.slane %v670, 6
        %v706 = vrot.slane %v672, 6
        %v707 = vsel %vm701, %v705, %v706
        %v708 = vrot.slane %v673, 6
        %v709 = vrot.slane %v675, 6
        %v710 = vsel %vm701, %v708, %v709
        %v711 = vrot.slane %v674, 6
        %v712 = vrot.slane %v676, 6
        %v713 = vsel %vm701, %v711, %v712
        %v714 = vrot.slane %v677, 6
        %v715 = vrot.slane %v679, 6
        %v716 = vsel %vm701, %v714, %v715
        %v717 = vrot.slane %v678, 6
        %v718 = vrot.slane %v680, 6
        %v719 = vsel %vm701, %v717, %v718
        %v720 = vrot.slane %v681, 6
        %v721 = vrot.slane %v683, 6
        %v722 = vsel %vm701, %v720, %v721
        %v723 = vrot.slane %v682, 6
        %v724 = vrot.slane %v684, 6
        %v725 = vsel %vm701, %v723, %v724
        %v734 = vadd.f32 %v636, %v704
        %v735 = vadd.f32 %v637, %v707
        %v736 = vadd.f32 %v638, %v710
        %v737 = vadd.f32 %v639, %v713
        %v738 = vadd.f32 %v640, %v716
        %v739 = vadd.f32 %v641, %v719
        %v740 = vadd.f32 %v642, %v722
        %v741 = vadd.f32 %v643, %v725
      $region37: #{convnext_forward.11} parent=31 // loop_footer
        %s273 = sadd.s32 1, %s269
      $region38: #{convnext_forward.11} parent=31 // loop_footer_branch
        %268 = sbr.rel target = $region34
      $region39: #{convnext_forward.11} parent=31 // loop_exit
        _
      %v742 = vld [vmem:[%s2] sm:$0x3]
      %v744 = vperm.slane %v742, 0
      %v745 = vperm.slane %v742, 1
      %v748 = vadd.f32 %v274, %v744
      %v749 = vadd.f32 %v275, %v745
      %v750 = vadd.f32 %v276, %v744
      %v751 = vadd.f32 %v277, %v745
      %v752 = vadd.f32 %v278, %v744
      %v753 = vadd.f32 %v279, %v745
      %v754 = vadd.f32 %v280, %v744
      %v755 = vadd.f32 %v281, %v745
      %v764 = vrot.slane %v749, 4
      %v765 = vrot.slane %v751, 4
      %v766 = vrot.slane %v753, 4
      %v767 = vrot.slane %v755, 4
      %vm768 = vcmask 1043456
      %v769 = vsel %vm768, %v748, %v764
      %v770 = vsel %vm768, %v750, %v765
      %v771 = vsel %vm768, %v752, %v766
      %v772 = vsel %vm768, %v754, %v767
      %773 = vst [vmem:[#allocation1] ss:$2 sm:$0xff] %v769
      %s774 = scalar_lea.vmem [#allocation1], 1
      %775 = vst [vmem:[%s774] ss:$2 sm:$0xff] %v770
      %s776 = scalar_lea.vmem [#allocation1], 16
      %777 = vst [vmem:[%s776] ss:$2 sm:$0xff] %v771
      %s778 = scalar_lea.vmem [#allocation1], 17
      %779 = vst [vmem:[%s778] ss:$2 sm:$0xff] %v772
      %v780 = vld.sshfl [vmem:[#allocation1] sm:$0xff pattern:$0x75316420]
      %v781 = vld.sshfl [vmem:[#allocation1 + $0x8] sm:$0xff pattern:$0x75316420]
      %v782 = vld.sshfl [vmem:[#allocation1 + $0x10] sm:$0xff pattern:$0x75316420]
      %v783 = vld.sshfl [vmem:[#allocation1 + $0x18] sm:$0xff pattern:$0x75316420]
      %788 = vst [vmem:[%s170] sm:$0xff] %v780
      %789 = vst [vmem:[%s170 + $0x8] sm:$0xff] %v781
      %790 = vst [vmem:[%s170 + $0x10] sm:$0xff] %v782
      %791 = vst [vmem:[%s170 + $0x18] sm:$0xff] %v783
      %p792 = scmp.lt.s32.totalorder %s14, 1
      %s793 = scalar_select %p792, %s14, 1
      %s794 = smul.addr %s793, 4
      %s795 = smul.addr %s794, 8
      %s796 = scalar_lea.vmem %s3, %s795
      // Predicated region
      $region40: #{convnext_forward.11} parent=31 // pred_check
        %p797 = pneg %p100
      $region41: #{convnext_forward.11} parent=31 // pred_check_branch
        %799 = sbr.rel (%p797) target = $region43
      $region42: #{convnext_forward.11} parent=31 // pred_region
        _
      $region43: #{convnext_forward.11} parent=31 // pred_fallthru
        _
    $region32: #{convnext_forward.11} parent=5 // pred_fallthru
      _
    %p800 = scmp.le.s32.totalorder 2, %s9
    // Predicated region
    $region44: #{convnext_forward.11} parent=5 // pred_check
      %p801 = pneg %p800
    $region45: #{convnext_forward.11} parent=5 // pred_check_branch
      %803 = sbr.rel (%p801) target = $region47
    $region46: #{convnext_forward.11} parent=5 // pred_region
      %s804 = ssub.s32 %s9, 2
      // Predicated region
      $region48: #{convnext_forward.11} parent=46 // pred_check
        %p805 = pneg %p106
      $region49: #{convnext_forward.11} parent=46 // pred_check_branch
        %807 = sbr.rel (%p805) target = $region51
      $region50: #{convnext_forward.11} parent=46 // pred_region
        %p808 = scmp.lt.s32.totalorder %s15, 1
        %s809 = scalar_select %p808, %s15, 1
        %s810 = smul.addr %s809, 4
        %s811 = smul.addr %s810, 8
        %s812 = scalar_lea.vmem %s3, %s811
      $region51: #{convnext_forward.11} parent=46 // pred_fallthru
        _
    $region47: #{convnext_forward.11} parent=5 // pred_fallthru
      _
  $region6: #{convnext_forward.11} parent=0 // loop_footer
    %s13 = sadd.s32 1, %s9
  $region7: #{convnext_forward.11} parent=0 // loop_footer_branch
    %8 = sbr.rel target = $region3
  $region8: #{convnext_forward.11} parent=0 // loop_exit
    _

// kernel: convnext_forward.13
$region0: #{convnext_forward.13}
  #allocation0 [shape = 'u32[]', space=smem, size = 0x4, offset = 0x4, fixed_abs, tag = 'smem constant byte address 0x4 - core index']
  #allocation1 [shape = 'u32[72,128]{1,0:T(1,128)}', space=vmem, size = 0x9000, scoped, tag = 'internal scratch']
  %s0 = inlined_call_operand.vmem [shape: f32[2,16,256], index: 0, kind: input, shape index: {}]
  %s1 = inlined_call_operand.vmem [shape: bf16[256,128], index: 1, kind: input, shape index: {}]
  %s2 = inlined_call_operand.vmem [shape: f32[1,128], index: 2, kind: input, shape index: {}]
  %s3 = inlined_call_operand.hbm [shape: f32[2,1,128], index: 3, kind: output, shape index: {}]
  %s4 = sld [smem:[#allocation0]]
  $region45: #{convnext_forward.13} parent=0
    _
  %s6 = ssub.s32 1, %s4
  %s7 = scalar_select 0, %s6, %s4
  $region1: #{convnext_forward.13} parent=0
    #allocation2 [shape = 'u8[1024]{0}', space=vmem, size = 0x400, scoped, tag = 'output window, operand 0']
    #allocation3 [shape = 's32[2]{0}', space=sflag, size = 0x8, scoped, tag = 'scoped memory for convnext_forward.13']
    %8 = vsyncpa [#allocation3], 0
    %s9 = scalar_lea.sflag [#allocation3], 1
    %10 = vsyncpa %s9, 0
    loop: start=0, step=1, limit=4
    $region2: #{convnext_forward.13} parent=1 // loop_pre_header
      _
    $region3: #{convnext_forward.13} parent=1 // loop_header
      %s12 = sphi 0, %s16
      %p13 = scmp.ge.s32.totalorder %s12, 4
      %s22 = sphi 0, %s24
      %s25 = sphi 0, %s22
      %s26 = sphi 0, %s25
      %s42 = sphi 0, %s26
      %s46 = sphi 0, %s46
      %s48 = sphi 0, %s46
      %s49 = sphi 0, %s48
      %s63 = sphi 0, %s49
      %s67 = sphi 0, %s67
      %s69 = sphi 0, %s67
      %s70 = sphi 0, %s69
      %s84 = sphi 0, %s70
      %s90 = sphi 0, %s92
      %s93 = sphi 0, %s90
      %s94 = sphi 0, %s93
      %s110 = sphi 0, %s94
    $region4: #{convnext_forward.13} parent=1 // loop_header_branch
      %15 = sbr.rel (%p13) target = $region8
    $region5: #{convnext_forward.13} parent=1 // loop_body
      %s17 = ssub.s32 %s12, 1
      %s18 = ssub.s32 %s12, 2
      %s19 = sadd.s32 %s12, 1
      %s20 = ssub.s32 %s12, %s19
      %p21 = scmp.eq.s32.totalorder %s20, 0
      %s23 = sadd.s32 %s22, 1
      %s24 = scalar_select %p21, %s22, %s23
      %p27 = pneg %p21
      %p28 = scmp.eq.s32.totalorder %s12, 1
      %p29 = por %p27, %p28
      %p30 = scmp.ne.s32.totalorder %s22, %s25
      %p31 = scmp.eq.s32.totalorder %s12, 0
      %p32 = por %p30, %p31
      %p33 = scmp.ne.s32.totalorder %s22, %s25
      %p34 = scmp.eq.s32.totalorder %s17, 1
      %p35 = por %p33, %p34
      %p36 = scmp.ne.s32.totalorder %s25, %s26
      %p37 = scmp.eq.s32.totalorder %s17, 0
      %p38 = por %p36, %p37
      %p39 = scmp.ne.s32.totalorder %s25, %s26
      %p40 = scmp.eq.s32.totalorder %s18, 1
      %p41 = por %p39, %p40
      %p43 = scmp.ne.s32.totalorder %s26, %s42
      %p44 = scmp.eq.s32.totalorder %s18, 0
      %p45 = por %p43, %p44
      %s47 = sadd.s32 %s46, 1
      %p50 = scmp.eq.s32.totalorder %s12, 1
      %p51 = scmp.ne.s32.totalorder %s46, %s48
      %p52 = scmp.eq.s32.totalorder %s12, 0
      %p53 = por %p51, %p52
      %p54 = scmp.ne.s32.totalorder %s46, %s48
      %p55 = scmp.eq.s32.totalorder %s17, 1
      %p56 = por %p54, %p55
      %p57 = scmp.ne.s32.totalorder %s48, %s49
      %p58 = scmp.eq.s32.totalorder %s17, 0
      %p59 = por %p57, %p58
      %p60 = scmp.ne.s32.totalorder %s48, %s49
      %p61 = scmp.eq.s32.totalorder %s18, 1
      %p62 = por %p60, %p61
      %p64 = scmp.ne.s32.totalorder %s49, %s63
      %p65 = scmp.eq.s32.totalorder %s18, 0
      %p66 = por %p64, %p65
      %s68 = sadd.s32 %s67, 1
      %p71 = scmp.eq.s32.totalorder %s12, 1
      %p72 = scmp.ne.s32.totalorder %s67, %s69
      %p73 = scmp.eq.s32.totalorder %s12, 0
      %p74 = por %p72, %p73
      %p75 = scmp.ne.s32.totalorder %s67, %s69
      %p76 = scmp.eq.s32.totalorder %s17, 1
      %p77 = por %p75, %p76
      %p78 = scmp.ne.s32.totalorder %s69, %s70
      %p79 = scmp.eq.s32.totalorder %s17, 0
      %p80 = por %p78, %p79
      %p81 = scmp.ne.s32.totalorder %s69, %s70
      %p82 = scmp.eq.s32.totalorder %s18, 1
      %p83 = por %p81, %p82
      %p85 = scmp.ne.s32.totalorder %s70, %s84
      %p86 = scmp.eq.s32.totalorder %s18, 0
      %p87 = por %p85, %p86
      %s88 = ssub.s32 %s12, %s19
      %p89 = scmp.eq.s32.totalorder %s88, 0
      %s91 = sadd.s32 %s90, 1
      %s92 = scalar_select %p89, %s90, %s91
      %p95 = pneg %p89
      %p96 = scmp.eq.s32.totalorder %s12, 1
      %p97 = por %p95, %p96
      %p98 = scmp.ne.s32.totalorder %s90, %s93
      %p99 = scmp.eq.s32.totalorder %s12, 0
      %p100 = por %p98, %p99
      %p101 = scmp.ne.s32.totalorder %s90, %s93
      %p102 = scmp.eq.s32.totalorder %s17, 1
      %p103 = por %p101, %p102
      %p104 = scmp.ne.s32.totalorder %s93, %s94
      %p105 = scmp.eq.s32.totalorder %s17, 0
      %p106 = por %p104, %p105
      %p107 = scmp.ne.s32.totalorder %s93, %s94
      %p108 = scmp.eq.s32.totalorder %s18, 1
      %p109 = por %p107, %p108
      %p111 = scmp.ne.s32.totalorder %s94, %s110
      %p112 = scmp.eq.s32.totalorder %s18, 0
      %p113 = por %p111, %p112
      %p114 = scmp.le.s32.totalorder 1, %s12
      %p115 = scmp.lt.s32.totalorder %s12, 3
      %p116 = pnand %p114, %p115
      %p117 = pneg %p116
      // Predicated region
      $region9: #{convnext_forward.13} parent=5 // pred_check
        _
      $region10: #{convnext_forward.13} parent=5 // pred_check_branch
        %119 = sbr.rel (%p116) target = $region12
      $region11: #{convnext_forward.13} parent=5 // pred_region
        %s120 = ssub.s32 %s12, 1
        // Predicated region
        $region13: #{convnext_forward.13} parent=11 // pred_check
          %p121 = pneg %p59
        $region14: #{convnext_forward.13} parent=11 // pred_check_branch
          %123 = sbr.rel (%p121) target = $region16
        $region15: #{convnext_forward.13} parent=11 // pred_region
          _
        $region16: #{convnext_forward.13} parent=11 // pred_fallthru
          _
        // Predicated region
        $region17: #{convnext_forward.13} parent=11 // pred_check
          %p124 = pneg %p80
        $region18: #{convnext_forward.13} parent=11 // pred_check_branch
          %126 = sbr.rel (%p124) target = $region20
        $region19: #{convnext_forward.13} parent=11 // pred_region
          _
        $region20: #{convnext_forward.13} parent=11 // pred_fallthru
          _
      $region12: #{convnext_forward.13} parent=5 // pred_fallthru
        _
      %p127 = scmp.lt.s32.totalorder %s12, 2
      // Predicated region
      $region21: #{convnext_forward.13} parent=5 // pred_check
        %p128 = pneg %p127
      $region22: #{convnext_forward.13} parent=5 // pred_check_branch
        %130 = sbr.rel (%p128) target = $region24
      $region23: #{convnext_forward.13} parent=5 // pred_region
        // Predicated region
        $region25: #{convnext_forward.13} parent=23 // pred_check
          %p131 = pneg %p32
        $region26: #{convnext_forward.13} parent=23 // pred_check_branch
          %133 = sbr.rel (%p131) target = $region28
        $region27: #{convnext_forward.13} parent=23 // pred_region
          %p134 = scmp.lt.s32.totalorder %s12, 1
          %s135 = scalar_select %p134, %s12, 1
          %s136 = smul.addr %s135, 4
          %s137 = smul.addr %s136, 8
          %s138 = scalar_lea.vmem %s0, %s137
        $region28: #{convnext_forward.13} parent=23 // pred_fallthru
          _
      $region24: #{convnext_forward.13} parent=5 // pred_fallthru
        _
      %p139 = scmp.le.s32.totalorder 1, %s12
      %p140 = scmp.lt.s32.totalorder %s12, 3
      %p141 = pnand %p139, %p140
      %p142 = pneg %p141
      // Predicated region
      $region29: #{convnext_forward.13} parent=5 // pred_check
        _
      $region30: #{convnext_forward.13} parent=5 // pred_check_branch
        %144 = sbr.rel (%p141) target = $region32
      $region31: #{convnext_forward.13} parent=5 // pred_region
        %s145 = ssub.s32 %s12, 1
        %p146 = scmp.lt.s32.totalorder %s17, 1
        %s147 = scalar_select %p146, %s17, 1
        %s148 = smul.addr %s147, 4
        %s149 = smul.addr %s148, 8
        %s150 = scalar_lea.vmem %s0, %s149
        %p151 = pneg %p38
        %p152 = pneg %p35
        %p153 = pneg %p59
        %p154 = pneg %p56
        %p155 = pneg %p80
        %p156 = pneg %p77
        %p157 = pneg %p106
        %p158 = pneg %p103
        %s159 = sand.u32 %s93, 1
        %s160 = scalar_lea.sflag [#allocation3], %s159
        %s161 = sand.u32 %s93, 1
        %s162 = scalar_lea.vmem [#allocation2], %s161
        %p163 = scmp.lt.s32.totalorder %s17, 1
        %s164 = scalar_select %p163, %s17, 1
        %s165 = smul.addr %s164, 4
        %s166 = smul.addr %s165, 8
        %s167 = scalar_lea.vmem %s0, %s166
        %v168 = vld [vmem:[%s167] sm:$0xff]
        %v169 = vld [vmem:[%s167 + $0x8] sm:$0xff]
        %v170 = vld [vmem:[%s167 + $0x10] sm:$0xff]
        %v171 = vld [vmem:[%s167 + $0x18] sm:$0xff]
        %v172 = vadd.f32 %v168, %v170
        %v173 = vrot.slane %v172, 4
        %v174 = vadd.f32 %v172, %v173
        %v175 = vrot.slane %v174, 2
        %v176 = vadd.f32 %v174, %v175
        %v177 = vrot.slane %v176, 1
        %v178 = vadd.f32 %v176, %v177
        %v179 = vadd.f32 %v169, %v171
        %v180 = vrot.slane %v179, 4
        %v181 = vadd.f32 %v179, %v180
        %v182 = vrot.slane %v181, 2
        %v183 = vadd.f32 %v181, %v182
        %v184 = vrot.slane %v183, 1
        %v185 = vadd.f32 %v183, %v184
        %v186 = vrcp.pop 16.0
        %v187 = vmul.f32 16.0, %v186
        %v188 = vsub.f32 1.0, %v187
        %v189 = vmul.f32 %v186, %v188
        %v190 = vadd.f32 %v186, %v189
        %vm191 = vweird.f32 %v186
        %v192 = vsel %vm191, %v186, %v190
        %v193 = vmul.f32 %v178, %v192
        %v194 = vmul.f32 %v185, %v192
        %v195 = vadd.f32 %v193, %v194
        %196 = vadd.xlane.f32.xlu0 %v195
        %v197 = vpop.xlane.xlu0 %196
        %v198 = vrcp.pop 256.0
        %v199 = vmul.f32 256.0, %v198
        %v200 = vsub.f32 1.0, %v199
        %v201 = vmul.f32 %v198, %v200
        %v202 = vadd.f32 %v198, %v201
        %vm203 = vweird.f32 %v198
        %v204 = vsel %vm203, %v198, %v202
        %v205 = vmul.f32 %v197, %v204
        %v206 = vsub.f32 %v193, %v205
        %v207 = vsub.f32 %v194, %v205
        %v208 = vmul.f32 %v206, %v206
        %v209 = vmul.f32 %v207, %v207
        %v210 = vadd.f32 %v208, %v209
        %211 = vadd.xlane.f32.xlu0 %v210
        %v212 = vpop.xlane.xlu0 %211
        %v213 = vmul.f32 %v212, %v204
        %v214 = vadd.f32 %v213, 1e-06
        %v215 = vrsqrt.pop %v214
        %v216 = vmul.f32 %v215, %v214
        %v217 = vmul.f32 %v216, %v215
        %v218 = vmul.f32 0.5, %v217
        %v219 = vsub.f32 1.5, %v218
        %v220 = vmul.f32 %v215, %v219
        %vm221 = vweird.f32 %v214
        %vm222 = vweird.f32 %v215
        %vm223 = vmor %vm221, %vm222
        %v224 = vsel %vm223, %v215, %v220
        %v225 = vmul.f32 %v206, %v224
        %v226 = vmul.f32 %v207, %v224
        %v227 = vpack.c.bf16 %v225, %v225
        %v228 = vpack.c.bf16 %v226, %v226
        %v229 = vld [vmem:[%s1] sm:$0xf]
        %v230 = vld [vmem:[%s1 + $0x4] sm:$0xf]
        %v231 = vld [vmem:[%s1 + $0x8] sm:$0xf]
        %v232 = vld [vmem:[%s1 + $0xc] sm:$0xf]
        %v233 = vld [vmem:[%s1 + $0x10] sm:$0xf]
        %v234 = vld [vmem:[%s1 + $0x14] sm:$0xf]
        %v235 = vld [vmem:[%s1 + $0x18] sm:$0xf]
        %v236 = vld [vmem:[%s1 + $0x1c] sm:$0xf]
        %v237 = vld [vmem:[%s1 + $0x20] sm:$0xf]
        %v238 = vld [vmem:[%s1 + $0x24] sm:$0xf]
        %v239 = vld [vmem:[%s1 + $0x28] sm:$0xf]
        %v240 = vld [vmem:[%s1 + $0x2c] sm:$0xf]
        %v241 = vld [vmem:[%s1 + $0x30] sm:$0xf]
        %v242 = vld [vmem:[%s1 + $0x34] sm:$0xf]
        %v243 = vld [vmem:[%s1 + $0x38] sm:$0xf]
        %v244 = vld [vmem:[%s1 + $0x3c] sm:$0xf]
        %v245 = vld [vmem:[%s1 + $0x40] sm:$0xf]
        %v246 = vld [vmem:[%s1 + $0x44] sm:$0xf]
        %v247 = vld [vmem:[%s1 + $0x48] sm:$0xf]
        %v248 = vld [vmem:[%s1 + $0x4c] sm:$0xf]
        %v249 = vld [vmem:[%s1 + $0x50] sm:$0xf]
        %v250 = vld [vmem:[%s1 + $0x54] sm:$0xf]
        %v251 = vld [vmem:[%s1 + $0x58] sm:$0xf]
        %v252 = vld [vmem:[%s1 + $0x5c] sm:$0xf]
        %v253 = vld [vmem:[%s1 + $0x60] sm:$0xf]
        %v254 = vld [vmem:[%s1 + $0x64] sm:$0xf]
        %v255 = vld [vmem:[%s1 + $0x68] sm:$0xf]
        %v256 = vld [vmem:[%s1 + $0x6c] sm:$0xf]
        %v257 = vld [vmem:[%s1 + $0x70] sm:$0xf]
        %v258 = vld [vmem:[%s1 + $0x74] sm:$0xf]
        %v259 = vld [vmem:[%s1 + $0x78] sm:$0xf]
        %v260 = vld [vmem:[%s1 + $0x7c] sm:$0xf]
        %v261 = vld [vmem:[%s2] sm:$0x1]
        %v294 = vunpack.c.l.b16 %v229
        %v295 = vunpack.c.l.b16 %v230
        %v296 = vunpack.c.l.b16 %v231
        %v297 = vunpack.c.l.b16 %v232
        %v298 = vunpack.c.l.b16 %v233
        %v299 = vunpack.c.l.b16 %v234
        %v300 = vunpack.c.l.b16 %v235
        %v301 = vunpack.c.l.b16 %v236
        %v302 = vunpack.c.l.b16 %v237
        %v303 = vunpack.c.l.b16 %v238
        %v304 = vunpack.c.l.b16 %v239
        %v305 = vunpack.c.l.b16 %v240
        %v306 = vunpack.c.l.b16 %v241
        %v307 = vunpack.c.l.b16 %v242
        %v308 = vunpack.c.l.b16 %v243
        %v309 = vunpack.c.l.b16 %v244
        %v310 = vunpack.c.l.b16 %v245
        %v311 = vunpack.c.l.b16 %v246
        %v312 = vunpack.c.l.b16 %v247
        %v313 = vunpack.c.l.b16 %v248
        %v314 = vunpack.c.l.b16 %v249
        %v315 = vunpack.c.l.b16 %v250
        %v316 = vunpack.c.l.b16 %v251
        %v317 = vunpack.c.l.b16 %v252
        %v318 = vunpack.c.l.b16 %v253
        %v319 = vunpack.c.l.b16 %v254
        %v320 = vunpack.c.l.b16 %v255
        %v321 = vunpack.c.l.b16 %v256
        %v322 = vunpack.c.l.b16 %v257
        %v323 = vunpack.c.l.b16 %v258
        %v324 = vunpack.c.l.b16 %v259
        %v325 = vunpack.c.l.b16 %v260
        %v326 = vpack.c.b16 %v295, %v294
        %v327 = vpack.c.b16 %v297, %v296
        %v328 = vpack.c.b16 %v299, %v298
        %v329 = vpack.c.b16 %v301, %v300
        %v330 = vpack.c.b16 %v303, %v302
        %v331 = vpack.c.b16 %v305, %v304
        %v332 = vpack.c.b16 %v307, %v306
        %v333 = vpack.c.b16 %v309, %v308
        %v334 = vpack.c.b16 %v311, %v310
        %v335 = vpack.c.b16 %v313, %v312
        %v336 = vpack.c.b16 %v315, %v314
        %v337 = vpack.c.b16 %v317, %v316
        %v338 = vpack.c.b16 %v319, %v318
        %v339 = vpack.c.b16 %v321, %v320
        %v340 = vpack.c.b16 %v323, %v322
        %v341 = vpack.c.b16 %v325, %v324
        %358 = vmatpush.bf16.msra.mxu0 %v333
        %359 = vmatpush.bf16.msra.mxu0 %v332
        %360 = vmatpush.bf16.msra.mxu0 %v331
        %361 = vmatpush.bf16.msra.mxu0 %v330
        %362 = vmatpush.bf16.msra.mxu0 %v329
        %363 = vmatpush.bf16.msra.mxu0 %v328
        %364 = vmatpush.bf16.msra.mxu0 %v327
        %365 = vmatpush.bf16.msra.mxu0 %v326
        %366 = vmatmul.bf16.gmra.mxu0 %v227
        %v367 = vpop.f32.mrf.mxu0
        %v368 = vadd.f32 %v261, %v367
        %v369 = vpop.f32.mrf.mxu0
        %370 = vdwg.mxu0
        %371 = vmatpush.bf16.msra.mxu0 %v341
        %372 = vmatpush.bf16.msra.mxu0 %v340
        %373 = vmatpush.bf16.msra.mxu0 %v339
        %374 = vmatpush.bf16.msra.mxu0 %v338
        %375 = vmatpush.bf16.msra.mxu0 %v337
        %376 = vmatpush.bf16.msra.mxu0 %v336
        %377 = vmatpush.bf16.msra.mxu0 %v335
        %378 = vmatpush.bf16.msra.mxu0 %v334
        %379 = vmatmul.bf16.gmra.mxu0 %v228
        %v380 = vpop.f32.mrf.mxu0
        %v381 = vadd.f32 %v368, %v380
        %v382 = vpop.f32.mrf.mxu0
        %383 = vdwg.mxu0
        %vm384 = vcmask 1040384
        %v385 = vsel %vm384, %v381, -inf
        %386 = vmax.xlane.f32.xlu0 %v385
        %v387 = vpop.xlane.xlu0 %386
        %v388 = vsub.f32 %v381, %v387
        %v389 = vmul.f32 %v388, 1.442695
        %v390 = vpow.pop %v389
        %v391 = vsel %vm384, %v390, 0.0
        %392 = vadd.xlane.f32.xlu0 %v391
        %v393 = vpop.xlane.xlu0 %392
        %v394 = vrcp.pop %v393
        %v395 = vmul.f32 %v393, %v394
        %v396 = vsub.f32 1.0, %v395
        %v397 = vmul.f32 %v394, %v396
        %v398 = vadd.f32 %v394, %v397
        %vm399 = vweird.f32 %v393
        %vm400 = vweird.f32 %v394
        %vm401 = vmor %vm399, %vm400
        %v402 = vsel %vm401, %v394, %v398
        %v403 = vand.u32 2147483647, %v393
        %vm404 = vcmp.eq.f32.partialorder %v403, 8.507059e+37
        %v405 = vand.u32 %v393, 2147483648
        %v406 = vor.u32 1.1754944e-38, %v405
        %v407 = vsel %vm404, %v406, %v402
        %v408 = vmul.f32 %v390, %v407
        %409 = vst [vmem:[%s162] sm:$0x1] %v408
        %s410 = sand.u32 %s93, 1
        %s411 = scalar_lea.sflag [#allocation3], %s410
        %s412 = sand.u32 %s93, 1
        %s413 = scalar_lea.vmem [#allocation2], %s412
        // Predicated region
        $region33: #{convnext_forward.13} parent=31 // pred_check
          %p414 = pneg %p103
        $region34: #{convnext_forward.13} parent=31 // pred_check_branch
          %416 = sbr.rel (%p414) target = $region36
        $region35: #{convnext_forward.13} parent=31 // pred_region
          %418 = vsyncadd %s411, 0
          %s419 = scalar_lea.hbm %s3, %s17
          %s421 = sshll.u32 %s413, 4
          %s422 = int_to_ptr.vmem [resolvable:$true] %s421
          %s423 = sshll.u32 %s419, 4
          %s424 = int_to_ptr.hbm [resolvable:$true] %s423
          %426 = dma.vmem_to_hbm [thread:$0]  %s422, 16, %s424, %s411
        $region36: #{convnext_forward.13} parent=31 // pred_fallthru
          _
      $region32: #{convnext_forward.13} parent=5 // pred_fallthru
        _
      %p427 = scmp.le.s32.totalorder 2, %s12
      // Predicated region
      $region37: #{convnext_forward.13} parent=5 // pred_check
        %p428 = pneg %p427
      $region38: #{convnext_forward.13} parent=5 // pred_check_branch
        %430 = sbr.rel (%p428) target = $region40
      $region39: #{convnext_forward.13} parent=5 // pred_region
        %s431 = ssub.s32 %s12, 2
        // Predicated region
        $region41: #{convnext_forward.13} parent=39 // pred_check
          %p432 = pneg %p109
        $region42: #{convnext_forward.13} parent=39 // pred_check_branch
          %434 = sbr.rel (%p432) target = $region44
        $region43: #{convnext_forward.13} parent=39 // pred_region
          %s435 = sand.u32 %s94, 1
          %s436 = scalar_lea.sflag [#allocation3], %s435
          %s437 = sand.u32 %s94, 1
          %s438 = scalar_lea.vmem [#allocation2], %s437
          %440 = dma.done %s436, 16
        $region44: #{convnext_forward.13} parent=39 // pred_fallthru
          _
      $region40: #{convnext_forward.13} parent=5 // pred_fallthru
        _
    $region6: #{convnext_forward.13} parent=1 // loop_footer
      %s16 = sadd.s32 1, %s12
    $region7: #{convnext_forward.13} parent=1 // loop_footer_branch
      %11 = sbr.rel target = $region3
    $region8: #{convnext_forward.13} parent=1 // loop_exit
      _
    %441 = vsyncpa [#allocation3], 1
    %s442 = scalar_lea.sflag [#allocation3], 1
    %443 = vsyncpa %s442, 1

// kernel: convnext_forward.12
$region0: #{convnext_forward.12}
  #allocation0 [shape = 'u32[]', space=smem, size = 0x4, offset = 0x4, fixed_abs, tag = 'smem constant byte address 0x4 - core index']
  #allocation1 [shape = 'u32[72,128]{1,0:T(1,128)}', space=vmem, size = 0x9000, scoped, tag = 'internal scratch']
  %s0 = inlined_call_operand.vmem [shape: f32[32,256], index: 0, kind: input, shape index: {}]
  %s1 = inlined_call_operand.vmem [shape: f32[32,256], index: 1, kind: input, shape index: {}, may-alias: {1,6}]
  %s2 = inlined_call_operand.vmem [shape: bf16[256,1024], index: 2, kind: input, shape index: {}]
  %s3 = inlined_call_operand.vmem [shape: f32[1,1024], index: 3, kind: input, shape index: {}]
  %s4 = inlined_call_operand.vmem [shape: bf16[1024,256], index: 4, kind: input, shape index: {}]
  %s5 = inlined_call_operand.vmem [shape: f32[1,256], index: 5, kind: input, shape index: {}]
  %s6 = inlined_call_operand.vmem [shape: f32[32,256], index: 6, kind: output, shape index: {}, may-alias: {1,6}]
  %s7 = sld [smem:[#allocation0]]
  $region57: #{convnext_forward.12} parent=0
    _
  %s9 = ssub.s32 1, %s7
  %s10 = scalar_select 0, %s9, %s7
  loop: start=0, step=1, limit=4
  $region2: #{convnext_forward.12} parent=0 // loop_pre_header
    _
  $region3: #{convnext_forward.12} parent=0 // loop_header
    %s12 = sphi 0, %s16
    %p13 = scmp.ge.s32.totalorder %s12, 4
    %s22 = sphi 0, %s24
    %s25 = sphi 0, %s22
    %s26 = sphi 0, %s25
    %s42 = sphi 0, %s26
    %s48 = sphi 0, %s50
    %s51 = sphi 0, %s48
    %s52 = sphi 0, %s51
    %s68 = sphi 0, %s52
    %s72 = sphi 0, %s72
    %s74 = sphi 0, %s72
    %s75 = sphi 0, %s74
    %s89 = sphi 0, %s75
    %s93 = sphi 0, %s93
    %s95 = sphi 0, %s93
    %s96 = sphi 0, %s95
    %s110 = sphi 0, %s96
    %s114 = sphi 0, %s114
    %s116 = sphi 0, %s114
    %s117 = sphi 0, %s116
    %s131 = sphi 0, %s117
    %s135 = sphi 0, %s135
    %s137 = sphi 0, %s135
    %s138 = sphi 0, %s137
    %s152 = sphi 0, %s138
    %s158 = sphi 0, %s160
    %s161 = sphi 0, %s158
    %s162 = sphi 0, %s161
    %s178 = sphi 0, %s162
  $region4: #{convnext_forward.12} parent=0 // loop_header_branch
    %15 = sbr.rel (%p13) target = $region8
  $region5: #{convnext_forward.12} parent=0 // loop_body
    %s17 = ssub.s32 %s12, 1
    %s18 = ssub.s32 %s12, 2
    %s19 = sadd.s32 %s12, 1
    %s20 = ssub.s32 %s12, %s19
    %p21 = scmp.eq.s32.totalorder %s20, 0
    %s23 = sadd.s32 %s22, 1
    %s24 = scalar_select %p21, %s22, %s23
    %p27 = pneg %p21
    %p28 = scmp.eq.s32.totalorder %s12, 1
    %p29 = por %p27, %p28
    %p30 = scmp.ne.s32.totalorder %s22, %s25
    %p31 = scmp.eq.s32.totalorder %s12, 0
    %p32 = por %p30, %p31
    %p33 = scmp.ne.s32.totalorder %s22, %s25
    %p34 = scmp.eq.s32.totalorder %s17, 1
    %p35 = por %p33, %p34
    %p36 = scmp.ne.s32.totalorder %s25, %s26
    %p37 = scmp.eq.s32.totalorder %s17, 0
    %p38 = por %p36, %p37
    %p39 = scmp.ne.s32.totalorder %s25, %s26
    %p40 = scmp.eq.s32.totalorder %s18, 1
    %p41 = por %p39, %p40
    %p43 = scmp.ne.s32.totalorder %s26, %s42
    %p44 = scmp.eq.s32.totalorder %s18, 0
    %p45 = por %p43, %p44
    %s46 = ssub.s32 %s12, %s19
    %p47 = scmp.eq.s32.totalorder %s46, 0
    %s49 = sadd.s32 %s48, 1
    %s50 = scalar_select %p47, %s48, %s49
    %p53 = pneg %p47
    %p54 = scmp.eq.s32.totalorder %s12, 1
    %p55 = por %p53, %p54
    %p56 = scmp.ne.s32.totalorder %s48, %s51
    %p57 = scmp.eq.s32.totalorder %s12, 0
    %p58 = por %p56, %p57
    %p59 = scmp.ne.s32.totalorder %s48, %s51
    %p60 = scmp.eq.s32.totalorder %s17, 1
    %p61 = por %p59, %p60
    %p62 = scmp.ne.s32.totalorder %s51, %s52
    %p63 = scmp.eq.s32.totalorder %s17, 0
    %p64 = por %p62, %p63
    %p65 = scmp.ne.s32.totalorder %s51, %s52
    %p66 = scmp.eq.s32.totalorder %s18, 1
    %p67 = por %p65, %p66
    %p69 = scmp.ne.s32.totalorder %s52, %s68
    %p70 = scmp.eq.s32.totalorder %s18, 0
    %p71 = por %p69, %p70
    %s73 = sadd.s32 %s72, 1
    %p76 = scmp.eq.s32.totalorder %s12, 1
    %p77 = scmp.ne.s32.totalorder %s72, %s74
    %p78 = scmp.eq.s32.totalorder %s12, 0
    %p79 = por %p77, %p78
    %p80 = scmp.ne.s32.totalorder %s72, %s74
    %p81 = scmp.eq.s32.totalorder %s17, 1
    %p82 = por %p80, %p81
    %p83 = scmp.ne.s32.totalorder %s74, %s75
    %p84 = scmp.eq.s32.totalorder %s17, 0
    %p85 = por %p83, %p84
    %p86 = scmp.ne.s32.totalorder %s74, %s75
    %p87 = scmp.eq.s32.totalorder %s18, 1
    %p88 = por %p86, %p87
    %p90 = scmp.ne.s32.totalorder %s75, %s89
    %p91 = scmp.eq.s32.totalorder %s18, 0
    %p92 = por %p90, %p91
    %s94 = sadd.s32 %s93, 1
    %p97 = scmp.eq.s32.totalorder %s12, 1
    %p98 = scmp.ne.s32.totalorder %s93, %s95
    %p99 = scmp.eq.s32.totalorder %s12, 0
    %p100 = por %p98, %p99
    %p101 = scmp.ne.s32.totalorder %s93, %s95
    %p102 = scmp.eq.s32.totalorder %s17, 1
    %p103 = por %p101, %p102
    %p104 = scmp.ne.s32.totalorder %s95, %s96
    %p105 = scmp.eq.s32.totalorder %s17, 0
    %p106 = por %p104, %p105
    %p107 = scmp.ne.s32.totalorder %s95, %s96
    %p108 = scmp.eq.s32.totalorder %s18, 1
    %p109 = por %p107, %p108
    %p111 = scmp.ne.s32.totalorder %s96, %s110
    %p112 = scmp.eq.s32.totalorder %s18, 0
    %p113 = por %p111, %p112
    %s115 = sadd.s32 %s114, 1
    %p118 = scmp.eq.s32.totalorder %s12, 1
    %p119 = scmp.ne.s32.totalorder %s114, %s116
    %p120 = scmp.eq.s32.totalorder %s12, 0
    %p121 = por %p119, %p120
    %p122 = scmp.ne.s32.totalorder %s114, %s116
    %p123 = scmp.eq.s32.totalorder %s17, 1
    %p124 = por %p122, %p123
    %p125 = scmp.ne.s32.totalorder %s116, %s117
    %p126 = scmp.eq.s32.totalorder %s17, 0
    %p127 = por %p125, %p126
    %p128 = scmp.ne.s32.totalorder %s116, %s117
    %p129 = scmp.eq.s32.totalorder %s18, 1
    %p130 = por %p128, %p129
    %p132 = scmp.ne.s32.totalorder %s117, %s131
    %p133 = scmp.eq.s32.totalorder %s18, 0
    %p134 = por %p132, %p133
    %s136 = sadd.s32 %s135, 1
    %p139 = scmp.eq.s32.totalorder %s12, 1
    %p140 = scmp.ne.s32.totalorder %s135, %s137
    %p141 = scmp.eq.s32.totalorder %s12, 0
    %p142 = por %p140, %p141
    %p143 = scmp.ne.s32.totalorder %s135, %s137
    %p144 = scmp.eq.s32.totalorder %s17, 1
    %p145 = por %p143, %p144
    %p146 = scmp.ne.s32.totalorder %s137, %s138
    %p147 = scmp.eq.s32.totalorder %s17, 0
    %p148 = por %p146, %p147
    %p149 = scmp.ne.s32.totalorder %s137, %s138
    %p150 = scmp.eq.s32.totalorder %s18, 1
    %p151 = por %p149, %p150
    %p153 = scmp.ne.s32.totalorder %s138, %s152
    %p154 = scmp.eq.s32.totalorder %s18, 0
    %p155 = por %p153, %p154
    %s156 = ssub.s32 %s12, %s19
    %p157 = scmp.eq.s32.totalorder %s156, 0
    %s159 = sadd.s32 %s158, 1
    %s160 = scalar_select %p157, %s158, %s159
    %p163 = pneg %p157
    %p164 = scmp.eq.s32.totalorder %s12, 1
    %p165 = por %p163, %p164
    %p166 = scmp.ne.s32.totalorder %s158, %s161
    %p167 = scmp.eq.s32.totalorder %s12, 0
    %p168 = por %p166, %p167
    %p169 = scmp.ne.s32.totalorder %s158, %s161
    %p170 = scmp.eq.s32.totalorder %s17, 1
    %p171 = por %p169, %p170
    %p172 = scmp.ne.s32.totalorder %s161, %s162
    %p173 = scmp.eq.s32.totalorder %s17, 0
    %p174 = por %p172, %p173
    %p175 = scmp.ne.s32.totalorder %s161, %s162
    %p176 = scmp.eq.s32.totalorder %s18, 1
    %p177 = por %p175, %p176
    %p179 = scmp.ne.s32.totalorder %s162, %s178
    %p180 = scmp.eq.s32.totalorder %s18, 0
    %p181 = por %p179, %p180
    %p182 = scmp.le.s32.totalorder 1, %s12
    %p183 = scmp.lt.s32.totalorder %s12, 3
    %p184 = pnand %p182, %p183
    %p185 = pneg %p184
    // Predicated region
    $region9: #{convnext_forward.12} parent=5 // pred_check
      _
    $region10: #{convnext_forward.12} parent=5 // pred_check_branch
      %187 = sbr.rel (%p184) target = $region12
    $region11: #{convnext_forward.12} parent=5 // pred_region
      %s188 = ssub.s32 %s12, 1
      // Predicated region
      $region13: #{convnext_forward.12} parent=11 // pred_check
        %p189 = pneg %p85
      $region14: #{convnext_forward.12} parent=11 // pred_check_branch
        %191 = sbr.rel (%p189) target = $region16
      $region15: #{convnext_forward.12} parent=11 // pred_region
        _
      $region16: #{convnext_forward.12} parent=11 // pred_fallthru
        _
      // Predicated region
      $region17: #{convnext_forward.12} parent=11 // pred_check
        %p192 = pneg %p106
      $region18: #{convnext_forward.12} parent=11 // pred_check_branch
        %194 = sbr.rel (%p192) target = $region20
      $region19: #{convnext_forward.12} parent=11 // pred_region
        _
      $region20: #{convnext_forward.12} parent=11 // pred_fallthru
        _
      // Predicated region
      $region21: #{convnext_forward.12} parent=11 // pred_check
        %p195 = pneg %p127
      $region22: #{convnext_forward.12} parent=11 // pred_check_branch
        %197 = sbr.rel (%p195) target = $region24
      $region23: #{convnext_forward.12} parent=11 // pred_region
        _
      $region24: #{convnext_forward.12} parent=11 // pred_fallthru
        _
      // Predicated region
      $region25: #{convnext_forward.12} parent=11 // pred_check
        %p198 = pneg %p148
      $region26: #{convnext_forward.12} parent=11 // pred_check_branch
        %200 = sbr.rel (%p198) target = $region28
      $region27: #{convnext_forward.12} parent=11 // pred_region
        _
      $region28: #{convnext_forward.12} parent=11 // pred_fallthru
        _
    $region12: #{convnext_forward.12} parent=5 // pred_fallthru
      _
    %p201 = scmp.lt.s32.totalorder %s12, 2
    // Predicated region
    $region29: #{convnext_forward.12} parent=5 // pred_check
      %p202 = pneg %p201
    $region30: #{convnext_forward.12} parent=5 // pred_check_branch
      %204 = sbr.rel (%p202) target = $region32
    $region31: #{convnext_forward.12} parent=5 // pred_region
      // Predicated region
      $region33: #{convnext_forward.12} parent=31 // pred_check
        %p205 = pneg %p32
      $region34: #{convnext_forward.12} parent=31 // pred_check_branch
        %207 = sbr.rel (%p205) target = $region36
      $region35: #{convnext_forward.12} parent=31 // pred_region
        %s208 = smul.u32 2, %s12
        %p209 = scmp.lt.s32.totalorder %s208, 3
        %s210 = scalar_select %p209, %s208, 3
        %s211 = smul.addr %s210, 2
        %s212 = smul.addr %s211, 8
        %s213 = scalar_lea.vmem %s0, %s212
        %s214 = smul.u32 2, %s12
      $region36: #{convnext_forward.12} parent=31 // pred_fallthru
        _
      // Predicated region
      $region37: #{convnext_forward.12} parent=31 // pred_check
        %p215 = pneg %p58
      $region38: #{convnext_forward.12} parent=31 // pred_check_branch
        %217 = sbr.rel (%p215) target = $region40
      $region39: #{convnext_forward.12} parent=31 // pred_region
        %s218 = smul.u32 2, %s12
        %p219 = scmp.lt.s32.totalorder %s218, 3
        %s220 = scalar_select %p219, %s218, 3
        %s221 = smul.addr %s220, 2
        %s222 = smul.addr %s221, 8
        %s223 = scalar_lea.vmem %s1, %s222
        %s224 = smul.u32 2, %s12
      $region40: #{convnext_forward.12} parent=31 // pred_fallthru
        _
    $region32: #{convnext_forward.12} parent=5 // pred_fallthru
      _
    %p225 = scmp.le.s32.totalorder 1, %s12
    %p226 = scmp.lt.s32.totalorder %s12, 3
    %p227 = pnand %p225, %p226
    %p228 = pneg %p227
    // Predicated region
    $region41: #{convnext_forward.12} parent=5 // pred_check
      _
    $region42: #{convnext_forward.12} parent=5 // pred_check_branch
      %230 = sbr.rel (%p227) target = $region44
    $region43: #{convnext_forward.12} parent=5 // pred_region
      %s231 = ssub.s32 %s12, 1
      %s232 = smul.u32 2, %s17
      %p233 = scmp.lt.s32.totalorder %s232, 3
      %s234 = scalar_select %p233, %s232, 3
      %s235 = smul.addr %s234, 2
      %s236 = smul.addr %s235, 8
      %s237 = scalar_lea.vmem %s0, %s236
      %p238 = pneg %p38
      %p239 = pneg %p35
      %s240 = smul.u32 2, %s17
      %p241 = scmp.lt.s32.totalorder %s240, 3
      %s242 = scalar_select %p241, %s240, 3
      %s243 = smul.addr %s242, 2
      %s244 = smul.addr %s243, 8
      %s245 = scalar_lea.vmem %s1, %s244
      %p246 = pneg %p64
      %p247 = pneg %p61
      %p248 = pneg %p85
      %p249 = pneg %p82
      %p250 = pneg %p106
      %p251 = pneg %p103
      %p252 = pneg %p127
      %p253 = pneg %p124
      %p254 = pneg %p148
      %p255 = pneg %p145
      %p256 = pneg %p174
      %p257 = pneg %p171
      %s258 = smul.u32 2, %s17
      %p259 = scmp.lt.s32.totalorder %s258, 3
      %s260 = scalar_select %p259, %s258, 3
      %s261 = smul.addr %s260, 2
      %s262 = smul.addr %s261, 8
      %s263 = scalar_lea.vmem %s6, %s262
      %s264 = smul.u32 2, %s17
      %p265 = scmp.lt.s32.totalorder %s264, 3
      %s266 = scalar_select %p265, %s264, 3
      %s267 = smul.addr %s266, 2
      %s268 = smul.addr %s267, 8
      %s269 = scalar_lea.vmem %s0, %s268
      %s270 = smul.u32 2, %s17
      %s271 = smul.u32 2, %s17
      %p272 = scmp.lt.s32.totalorder %s271, 3
      %s273 = scalar_select %p272, %s271, 3
      %s274 = smul.addr %s273, 2
      %s275 = smul.addr %s274, 8
      %s276 = scalar_lea.vmem %s1, %s275
      %s277 = smul.u32 2, %s17
      %s278 = smul.u32 2, %s17
      %p279 = scmp.lt.s32.totalorder %s278, 3
      %s280 = scalar_select %p279, %s278, 3
      %s281 = smul.addr %s280, 2
      %s282 = smul.addr %s281, 8
      %s283 = scalar_lea.vmem %s6, %s282
      %s284 = smul.u32 2, %s17
      %v285 = vld [vmem:[%s269] sm:$0xff]
      %v286 = vld [vmem:[%s269 + $0x8] sm:$0xff]
      %v287 = vld [vmem:[%s269 + $0x10] sm:$0xff]
      %v288 = vld [vmem:[%s269 + $0x18] sm:$0xff]
      %v289 = vadd.f32 %v285, %v286
      %290 = vadd.xlane.f32.xlu0 %v289
      %v291 = vpop.xlane.xlu0 %290
      %v292 = vadd.f32 %v287, %v288
      %293 = vadd.xlane.f32.xlu0 %v292
      %v294 = vpop.xlane.xlu0 %293
      %v295 = vrcp.pop 256.0
      %v296 = vmul.f32 256.0, %v295
      %v297 = vsub.f32 1.0, %v296
      %v298 = vmul.f32 %v295, %v297
      %v299 = vadd.f32 %v295, %v298
      %vm300 = vweird.f32 %v295
      %v301 = vsel %vm300, %v295, %v299
      %v302 = vmul.f32 %v291, %v301
      %v303 = vmul.f32 %v294, %v301
      %v304 = vsub.f32 %v285, %v302
      %v305 = vsub.f32 %v286, %v302
      %v306 = vsub.f32 %v287, %v303
      %v307 = vsub.f32 %v288, %v303
      %v308 = vmul.f32 %v304, %v304
      %v309 = vmul.f32 %v305, %v305
      %v310 = vmul.f32 %v306, %v306
      %v311 = vmul.f32 %v307, %v307
      %v312 = vadd.f32 %v308, %v309
      %313 = vadd.xlane.f32.xlu0 %v312
      %v314 = vpop.xlane.xlu0 %313
      %v315 = vadd.f32 %v310, %v311
      %316 = vadd.xlane.f32.xlu0 %v315
      %v317 = vpop.xlane.xlu0 %316
      %v318 = vmul.f32 %v314, %v301
      %v319 = vmul.f32 %v317, %v301
      %v320 = vadd.f32 %v318, 1e-06
      %v321 = vadd.f32 %v319, 1e-06
      %v322 = vrsqrt.pop %v320
      %v323 = vmul.f32 %v322, %v320
      %v324 = vmul.f32 %v323, %v322
      %v325 = vmul.f32 0.5, %v324
      %v326 = vsub.f32 1.5, %v325
      %v327 = vmul.f32 %v322, %v326
      %vm328 = vweird.f32 %v320
      %vm329 = vweird.f32 %v322
      %vm330 = vmor %vm328, %vm329
      %v331 = vsel %vm330, %v322, %v327
      %v332 = vrsqrt.pop %v321
      %v333 = vmul.f32 %v332, %v321
      %v334 = vmul.f32 %v333, %v332
      %v335 = vmul.f32 0.5, %v334
      %v336 = vsub.f32 1.5, %v335
      %v337 = vmul.f32 %v332, %v336
      %vm338 = vweird.f32 %v321
      %vm339 = vweird.f32 %v332
      %vm340 = vmor %vm338, %vm339
      %v341 = vsel %vm340, %v332, %v337
      %v342 = vmul.f32 %v304, %v331
      %v343 = vmul.f32 %v305, %v331
      %v344 = vmul.f32 %v306, %v341
      %v345 = vmul.f32 %v307, %v341
      %v346 = vpack.c.bf16 %v344, %v342
      %v347 = vpack.c.bf16 %v345, %v343
      %v348 = vld [vmem:[%s2] sm:$0xff]
      %v349 = vld [vmem:[%s2 + $0x8] sm:$0xff]
      %v350 = vld [vmem:[%s2 + $0x10] sm:$0xff]
      %v351 = vld [vmem:[%s2 + $0x18] sm:$0xff]
      %v352 = vld [vmem:[%s2 + $0x20] sm:$0xff]
      %v353 = vld [vmem:[%s2 + $0x28] sm:$0xff]
      %v354 = vld [vmem:[%s2 + $0x30] sm:$0xff]
      %v355 = vld [vmem:[%s2 + $0x38] sm:$0xff]
      %v356 = vld [vmem:[%s2 + $0x40] sm:$0xff]
      %v357 = vld [vmem:[%s2 + $0x48] sm:$0xff]
      %v358 = vld [vmem:[%s2 + $0x50] sm:$0xff]
      %v359 = vld [vmem:[%s2 + $0x58] sm:$0xff]
      %v360 = vld [vmem:[%s2 + $0x60] sm:$0xff]
      %v361 = vld [vmem:[%s2 + $0x68] sm:$0xff]
      %v362 = vld [vmem:[%s2 + $0x70] sm:$0xff]
      %v363 = vld [vmem:[%s2 + $0x78] sm:$0xff]
      %v364 = vld [vmem:[%s2 + $0x80] sm:$0xff]
      %v365 = vld [vmem:[%s2 + $0x88] sm:$0xff]
      %v366 = vld [vmem:[%s2 + $0x90] sm:$0xff]
      %v367 = vld [vmem:[%s2 + $0x98] sm:$0xff]
      %v368 = vld [vmem:[%s2 + $0xa0] sm:$0xff]
      %v369 = vld [vmem:[%s2 + $0xa8] sm:$0xff]
      %v370 = vld [vmem:[%s2 + $0xb0] sm:$0xff]
      %v371 = vld [vmem:[%s2 + $0xb8] sm:$0xff]
      %v372 = vld [vmem:[%s2 + $0xc0] sm:$0xff]
      %v373 = vld [vmem:[%s2 + $0xc8] sm:$0xff]
      %v374 = vld [vmem:[%s2 + $0xd0] sm:$0xff]
      %v375 = vld [vmem:[%s2 + $0xd8] sm:$0xff]
      %v376 = vld [vmem:[%s2 + $0xe0] sm:$0xff]
      %v377 = vld [vmem:[%s2 + $0xe8] sm:$0xff]
      %v378 = vld [vmem:[%s2 + $0xf0] sm:$0xff]
      %v379 = vld [vmem:[%s2 + $0xf8] sm:$0xff]
      %v380 = vld [vmem:[%s2 + $0x100] sm:$0xff]
      %v381 = vld [vmem:[%s2 + $0x108] sm:$0xff]
      %v382 = vld [vmem:[%s2 + $0x110] sm:$0xff]
      %v383 = vld [vmem:[%s2 + $0x118] sm:$0xff]
      %v384 = vld [vmem:[%s2 + $0x120] sm:$0xff]
      %v385 = vld [vmem:[%s2 + $0x128] sm:$0xff]
      %v386 = vld [vmem:[%s2 + $0x130] sm:$0xff]
      %v387 = vld [vmem:[%s2 + $0x138] sm:$0xff]
      %v388 = vld [vmem:[%s2 + $0x140] sm:$0xff]
      %v389 = vld [vmem:[%s2 + $0x148] sm:$0xff]
      %v390 = vld [vmem:[%s2 + $0x150] sm:$0xff]
      %v391 = vld [vmem:[%s2 + $0x158] sm:$0xff]
      %v392 = vld [vmem:[%s2 + $0x160] sm:$0xff]
      %v393 = vld [vmem:[%s2 + $0x168] sm:$0xff]
      %v394 = vld [vmem:[%s2 + $0x170] sm:$0xff]
      %v395 = vld [vmem:[%s2 + $0x178] sm:$0xff]
      %v396 = vld [vmem:[%s2 + $0x180] sm:$0xff]
      %v397 = vld [vmem:[%s2 + $0x188] sm:$0xff]
      %v398 = vld [vmem:[%s2 + $0x190] sm:$0xff]
      %v399 = vld [vmem:[%s2 + $0x198] sm:$0xff]
      %v400 = vld [vmem:[%s2 + $0x1a0] sm:$0xff]
      %v401 = vld [vmem:[%s2 + $0x1a8] sm:$0xff]
      %v402 = vld [vmem:[%s2 + $0x1b0] sm:$0xff]
      %v403 = vld [vmem:[%s2 + $0x1b8] sm:$0xff]
      %v404 = vld [vmem:[%s2 + $0x1c0] sm:$0xff]
      %v405 = vld [vmem:[%s2 + $0x1c8] sm:$0xff]
      %v406 = vld [vmem:[%s2 + $0x1d0] sm:$0xff]
      %v407 = vld [vmem:[%s2 + $0x1d8] sm:$0xff]
      %v408 = vld [vmem:[%s2 + $0x1e0] sm:$0xff]
      %v409 = vld [vmem:[%s2 + $0x1e8] sm:$0xff]
      %v410 = vld [vmem:[%s2 + $0x1f0] sm:$0xff]
      %v411 = vld [vmem:[%s2 + $0x1f8] sm:$0xff]
      %v412 = vld [vmem:[%s2 + $0x200] sm:$0xff]
      %v413 = vld [vmem:[%s2 + $0x208] sm:$0xff]
      %v414 = vld [vmem:[%s2 + $0x210] sm:$0xff]
      %v415 = vld [vmem:[%s2 + $0x218] sm:$0xff]
      %v416 = vld [vmem:[%s2 + $0x220] sm:$0xff]
      %v417 = vld [vmem:[%s2 + $0x228] sm:$0xff]
      %v418 = vld [vmem:[%s2 + $0x230] sm:$0xff]
      %v419 = vld [vmem:[%s2 + $0x238] sm:$0xff]
      %v420 = vld [vmem:[%s2 + $0x240] sm:$0xff]
      %v421 = vld [vmem:[%s2 + $0x248] sm:$0xff]
      %v422 = vld [vmem:[%s2 + $0x250] sm:$0xff]
      %v423 = vld [vmem:[%s2 + $0x258] sm:$0xff]
      %v424 = vld [vmem:[%s2 + $0x260] sm:$0xff]
      %v425 = vld [vmem:[%s2 + $0x268] sm:$0xff]
      %v426 = vld [vmem:[%s2 + $0x270] sm:$0xff]
      %v427 = vld [vmem:[%s2 + $0x278] sm:$0xff]
      %v428 = vld [vmem:[%s2 + $0x280] sm:$0xff]
      %v429 = vld [vmem:[%s2 + $0x288] sm:$0xff]
      %v430 = vld [vmem:[%s2 + $0x290] sm:$0xff]
      %v431 = vld [vmem:[%s2 + $0x298] sm:$0xff]
      %v432 = vld [vmem:[%s2 + $0x2a0] sm:$0xff]
      %v433 = vld [vmem:[%s2 + $0x2a8] sm:$0xff]
      %v434 = vld [vmem:[%s2 + $0x2b0] sm:$0xff]
      %v435 = vld [vmem:[%s2 + $0x2b8] sm:$0xff]
      %v436 = vld [vmem:[%s2 + $0x2c0] sm:$0xff]
      %v437 = vld [vmem:[%s2 + $0x2c8] sm:$0xff]
      %v438 = vld [vmem:[%s2 + $0x2d0] sm:$0xff]
      %v439 = vld [vmem:[%s2 + $0x2d8] sm:$0xff]
      %v440 = vld [vmem:[%s2 + $0x2e0] sm:$0xff]
      %v441 = vld [vmem:[%s2 + $0x2e8] sm:$0xff]
      %v442 = vld [vmem:[%s2 + $0x2f0] sm:$0xff]
      %v443 = vld [vmem:[%s2 + $0x2f8] sm:$0xff]
      %v444 = vld [vmem:[%s2 + $0x300] sm:$0xff]
      %v445 = vld [vmem:[%s2 + $0x308] sm:$0xff]
      %v446 = vld [vmem:[%s2 + $0x310] sm:$0xff]
      %v447 = vld [vmem:[%s2 + $0x318] sm:$0xff]
      %v448 = vld [vmem:[%s2 + $0x320] sm:$0xff]
      %v449 = vld [vmem:[%s2 + $0x328] sm:$0xff]
      %v450 = vld [vmem:[%s2 + $0x330] sm:$0xff]
      %v451 = vld [vmem:[%s2 + $0x338] sm:$0xff]
      %v452 = vld [vmem:[%s2 + $0x340] sm:$0xff]
      %v453 = vld [vmem:[%s2 + $0x348] sm:$0xff]
      %v454 = vld [vmem:[%s2 + $0x350] sm:$0xff]
      %v455 = vld [vmem:[%s2 + $0x358] sm:$0xff]
      %v456 = vld [vmem:[%s2 + $0x360] sm:$0xff]
      %v457 = vld [vmem:[%s2 + $0x368] sm:$0xff]
      %v458 = vld [vmem:[%s2 + $0x370] sm:$0xff]
      %v459 = vld [vmem:[%s2 + $0x378] sm:$0xff]
      %v460 = vld [vmem:[%s2 + $0x380] sm:$0xff]
      %v461 = vld [vmem:[%s2 + $0x388] sm:$0xff]
      %v462 = vld [vmem:[%s2 + $0x390] sm:$0xff]
      %v463 = vld [vmem:[%s2 + $0x398] sm:$0xff]
      %v464 = vld [vmem:[%s2 + $0x3a0] sm:$0xff]
      %v465 = vld [vmem:[%s2 + $0x3a8] sm:$0xff]
      %v466 = vld [vmem:[%s2 + $0x3b0] sm:$0xff]
      %v467 = vld [vmem:[%s2 + $0x3b8] sm:$0xff]
      %v468 = vld [vmem:[%s2 + $0x3c0] sm:$0xff]
      %v469 = vld [vmem:[%s2 + $0x3c8] sm:$0xff]
      %v470 = vld [vmem:[%s2 + $0x3d0] sm:$0xff]
      %v471 = vld [vmem:[%s2 + $0x3d8] sm:$0xff]
      %v472 = vld [vmem:[%s2 + $0x3e0] sm:$0xff]
      %v473 = vld [vmem:[%s2 + $0x3e8] sm:$0xff]
      %v474 = vld [vmem:[%s2 + $0x3f0] sm:$0xff]
      %v475 = vld [vmem:[%s2 + $0x3f8] sm:$0xff]
      %v476 = vld [vmem:[%s3] sm:$0xff]
      %v478 = vperm.slane %v476, 0
      %v479 = vperm.slane %v476, 1
      %v480 = vperm.slane %v476, 2
      %v481 = vperm.slane %v476, 3
      %v482 = vperm.slane %v476, 4
      %v483 = vperm.slane %v476, 5
      %v484 = vperm.slane %v476, 6
      %v485 = vperm.slane %v476, 7
      %v622 = vunpack.c.l.b16 %v348
      %v623 = vunpack.c.h.b16 %v348
      %v624 = vunpack.c.l.b16 %v349
      %v625 = vunpack.c.h.b16 %v349
      %v626 = vunpack.c.l.b16 %v350
      %v627 = vunpack.c.h.b16 %v350
      %v628 = vunpack.c.l.b16 %v351
      %v629 = vunpack.c.h.b16 %v351
      %v630 = vunpack.c.l.b16 %v352
      %v631 = vunpack.c.h.b16 %v352
      %v632 = vunpack.c.l.b16 %v353
      %v633 = vunpack.c.h.b16 %v353
      %v634 = vunpack.c.l.b16 %v354
      %v635 = vunpack.c.h.b16 %v354
      %v636 = vunpack.c.l.b16 %v355
      %v637 = vunpack.c.h.b16 %v355
      %v638 = vunpack.c.l.b16 %v356
      %v639 = vunpack.c.h.b16 %v356
      %v640 = vunpack.c.l.b16 %v357
      %v641 = vunpack.c.h.b16 %v357
      %v642 = vunpack.c.l.b16 %v358
      %v643 = vunpack.c.h.b16 %v358
      %v644 = vunpack.c.l.b16 %v359
      %v645 = vunpack.c.h.b16 %v359
      %v646 = vunpack.c.l.b16 %v360
      %v647 = vunpack.c.h.b16 %v360
      %v648 = vunpack.c.l.b16 %v361
      %v649 = vunpack.c.h.b16 %v361
      %v650 = vunpack.c.l.b16 %v362
      %v651 = vunpack.c.h.b16 %v362
      %v652 = vunpack.c.l.b16 %v363
      %v653 = vunpack.c.h.b16 %v363
      %v654 = vunpack.c.l.b16 %v364
      %v655 = vunpack.c.h.b16 %v364
      %v656 = vunpack.c.l.b16 %v365
      %v657 = vunpack.c.h.b16 %v365
      %v658 = vunpack.c.l.b16 %v366
      %v659 = vunpack.c.h.b16 %v366
      %v660 = vunpack.c.l.b16 %v367
      %v661 = vunpack.c.h.b16 %v367
      %v662 = vunpack.c.l.b16 %v368
      %v663 = vunpack.c.h.b16 %v368
      %v664 = vunpack.c.l.b16 %v369
      %v665 = vunpack.c.h.b16 %v369
      %v666 = vunpack.c.l.b16 %v370
      %v667 = vunpack.c.h.b16 %v370
      %v668 = vunpack.c.l.b16 %v371
      %v669 = vunpack.c.h.b16 %v371
      %v670 = vunpack.c.l.b16 %v372
      %v671 = vunpack.c.h.b16 %v372
      %v672 = vunpack.c.l.b16 %v373
      %v673 = vunpack.c.h.b16 %v373
      %v674 = vunpack.c.l.b16 %v374
      %v675 = vunpack.c.h.b16 %v374
      %v676 = vunpack.c.l.b16 %v375
      %v677 = vunpack.c.h.b16 %v375
      %v678 = vunpack.c.l.b16 %v376
      %v679 = vunpack.c.h.b16 %v376
      %v680 = vunpack.c.l.b16 %v377
      %v681 = vunpack.c.h.b16 %v377
      %v682 = vunpack.c.l.b16 %v378
      %v683 = vunpack.c.h.b16 %v378
      %v684 = vunpack.c.l.b16 %v379
      %v685 = vunpack.c.h.b16 %v379
      %v686 = vunpack.c.l.b16 %v380
      %v687 = vunpack.c.h.b16 %v380
      %v688 = vunpack.c.l.b16 %v381
      %v689 = vunpack.c.h.b16 %v381
      %v690 = vunpack.c.l.b16 %v382
      %v691 = vunpack.c.h.b16 %v382
      %v692 = vunpack.c.l.b16 %v383
      %v693 = vunpack.c.h.b16 %v383
      %v694 = vunpack.c.l.b16 %v384
      %v695 = vunpack.c.h.b16 %v384
      %v696 = vunpack.c.l.b16 %v385
      %v697 = vunpack.c.h.b16 %v385
      %v698 = vunpack.c.l.b16 %v386
      %v699 = vunpack.c.h.b16 %v386
      %v700 = vunpack.c.l.b16 %v387
      %v701 = vunpack.c.h.b16 %v387
      %v702 = vunpack.c.l.b16 %v388
      %v703 = vunpack.c.h.b16 %v388
      %v704 = vunpack.c.l.b16 %v389
      %v705 = vunpack.c.h.b16 %v389
      %v706 = vunpack.c.l.b16 %v390
      %v707 = vunpack.c.h.b16 %v390
      %v708 = vunpack.c.l.b16 %v391
      %v709 = vunpack.c.h.b16 %v391
      %v710 = vunpack.c.l.b16 %v392
      %v711 = vunpack.c.h.b16 %v392
      %v712 = vunpack.c.l.b16 %v393
      %v713 = vunpack.c.h.b16 %v393
      %v714 = vunpack.c.l.b16 %v394
      %v715 = vunpack.c.h.b16 %v394
      %v716 = vunpack.c.l.b16 %v395
      %v717 = vunpack.c.h.b16 %v395
      %v718 = vunpack.c.l.b16 %v396
      %v719 = vunpack.c.h.b16 %v396
      %v720 = vunpack.c.l.b16 %v397
      %v721 = vunpack.c.h.b16 %v397
      %v722 = vunpack.c.l.b16 %v398
      %v723 = vunpack.c.h.b16 %v398
      %v724 = vunpack.c.l.b16 %v399
      %v725 = vunpack.c.h.b16 %v399
      %v726 = vunpack.c.l.b16 %v400
      %v727 = vunpack.c.h.b16 %v400
      %v728 = vunpack.c.l.b16 %v401
      %v729 = vunpack.c.h.b16 %v401
      %v730 = vunpack.c.l.b16 %v402
      %v731 = vunpack.c.h.b16 %v402
      %v732 = vunpack.c.l.b16 %v403
      %v733 = vunpack.c.h.b16 %v403
      %v734 = vunpack.c.l.b16 %v404
      %v735 = vunpack.c.h.b16 %v404
      %v736 = vunpack.c.l.b16 %v405
      %v737 = vunpack.c.h.b16 %v405
      %v738 = vunpack.c.l.b16 %v406
      %v739 = vunpack.c.h.b16 %v406
      %v740 = vunpack.c.l.b16 %v407
      %v741 = vunpack.c.h.b16 %v407
      %v742 = vunpack.c.l.b16 %v408
      %v743 = vunpack.c.h.b16 %v408
      %v744 = vunpack.c.l.b16 %v409
      %v745 = vunpack.c.h.b16 %v409
      %v746 = vunpack.c.l.b16 %v410
      %v747 = vunpack.c.h.b16 %v410
      %v748 = vunpack.c.l.b16 %v411
      %v749 = vunpack.c.h.b16 %v411
      %v750 = vunpack.c.l.b16 %v412
      %v751 = vunpack.c.h.b16 %v412
      %v752 = vunpack.c.l.b16 %v413
      %v753 = vunpack.c.h.b16 %v413
      %v754 = vunpack.c.l.b16 %v414
      %v755 = vunpack.c.h.b16 %v414
      %v756 = vunpack.c.l.b16 %v415
      %v757 = vunpack.c.h.b16 %v415
      %v758 = vunpack.c.l.b16 %v416
      %v759 = vunpack.c.h.b16 %v416
      %v760 = vunpack.c.l.b16 %v417
      %v761 = vunpack.c.h.b16 %v417
      %v762 = vunpack.c.l.b16 %v418
      %v763 = vunpack.c.h.b16 %v418
      %v764 = vunpack.c.l.b16 %v419
      %v765 = vunpack.c.h.b16 %v419
      %v766 = vunpack.c.l.b16 %v420
      %v767 = vunpack.c.h.b16 %v420
      %v768 = vunpack.c.l.b16 %v421
      %v769 = vunpack.c.h.b16 %v421
      %v770 = vunpack.c.l.b16 %v422
      %v771 = vunpack.c.h.b16 %v422
      %v772 = vunpack.c.l.b16 %v423
      %v773 = vunpack.c.h.b16 %v423
      %v774 = vunpack.c.l.b16 %v424
      %v775 = vunpack.c.h.b16 %v424
      %v776 = vunpack.c.l.b16 %v425
      %v777 = vunpack.c.h.b16 %v425
      %v778 = vunpack.c.l.b16 %v426
      %v779 = vunpack.c.h.b16 %v426
      %v780 = vunpack.c.l.b16 %v427
      %v781 = vunpack.c.h.b16 %v427
      %v782 = vunpack.c.l.b16 %v428
      %v783 = vunpack.c.h.b16 %v428
      %v784 = vunpack.c.l.b16 %v429
      %v785 = vunpack.c.h.b16 %v429
      %v786 = vunpack.c.l.b16 %v430
      %v787 = vunpack.c.h.b16 %v430
      %v788 = vunpack.c.l.b16 %v431
      %v789 = vunpack.c.h.b16 %v431
      %v790 = vunpack.c.l.b16 %v432
      %v791 = vunpack.c.h.b16 %v432
      %v792 = vunpack.c.l.b16 %v433
      %v793 = vunpack.c.h.b16 %v433
      %v794 = vunpack.c.l.b16 %v434
      %v795 = vunpack.c.h.b16 %v434
      %v796 = vunpack.c.l.b16 %v435
      %v797 = vunpack.c.h.b16 %v435
      %v798 = vunpack.c.l.b16 %v436
      %v799 = vunpack.c.h.b16 %v436
      %v800 = vunpack.c.l.b16 %v437
      %v801 = vunpack.c.h.b16 %v437
      %v802 = vunpack.c.l.b16 %v438
      %v803 = vunpack.c.h.b16 %v438
      %v804 = vunpack.c.l.b16 %v439
      %v805 = vunpack.c.h.b16 %v439
      %v806 = vunpack.c.l.b16 %v440
      %v807 = vunpack.c.h.b16 %v440
      %v808 = vunpack.c.l.b16 %v441
      %v809 = vunpack.c.h.b16 %v441
      %v810 = vunpack.c.l.b16 %v442
      %v811 = vunpack.c.h.b16 %v442
      %v812 = vunpack.c.l.b16 %v443
      %v813 = vunpack.c.h.b16 %v443
      %v814 = vunpack.c.l.b16 %v444
      %v815 = vunpack.c.h.b16 %v444
      %v816 = vunpack.c.l.b16 %v445
      %v817 = vunpack.c.h.b16 %v445
      %v818 = vunpack.c.l.b16 %v446
      %v819 = vunpack.c.h.b16 %v446
      %v820 = vunpack.c.l.b16 %v447
      %v821 = vunpack.c.h.b16 %v447
      %v822 = vunpack.c.l.b16 %v448
      %v823 = vunpack.c.h.b16 %v448
      %v824 = vunpack.c.l.b16 %v449
      %v825 = vunpack.c.h.b16 %v449
      %v826 = vunpack.c.l.b16 %v450
      %v827 = vunpack.c.h.b16 %v450
      %v828 = vunpack.c.l.b16 %v451
      %v829 = vunpack.c.h.b16 %v451
      %v830 = vunpack.c.l.b16 %v452
      %v831 = vunpack.c.h.b16 %v452
      %v832 = vunpack.c.l.b16 %v453
      %v833 = vunpack.c.h.b16 %v453
      %v834 = vunpack.c.l.b16 %v454
      %v835 = vunpack.c.h.b16 %v454
      %v836 = vunpack.c.l.b16 %v455
      %v837 = vunpack.c.h.b16 %v455
      %v838 = vunpack.c.l.b16 %v456
      %v839 = vunpack.c.h.b16 %v456
      %v840 = vunpack.c.l.b16 %v457
      %v841 = vunpack.c.h.b16 %v457
      %v842 = vunpack.c.l.b16 %v458
      %v843 = vunpack.c.h.b16 %v458
      %v844 = vunpack.c.l.b16 %v459
      %v845 = vunpack.c.h.b16 %v459
      %v846 = vunpack.c.l.b16 %v460
      %v847 = vunpack.c.h.b16 %v460
      %v848 = vunpack.c.l.b16 %v461
      %v849 = vunpack.c.h.b16 %v461
      %v850 = vunpack.c.l.b16 %v462
      %v851 = vunpack.c.h.b16 %v462
      %v852 = vunpack.c.l.b16 %v463
      %v853 = vunpack.c.h.b16 %v463
      %v854 = vunpack.c.l.b16 %v464
      %v855 = vunpack.c.h.b16 %v464
      %v856 = vunpack.c.l.b16 %v465
      %v857 = vunpack.c.h.b16 %v465
      %v858 = vunpack.c.l.b16 %v466
      %v859 = vunpack.c.h.b16 %v466
      %v860 = vunpack.c.l.b16 %v467
      %v861 = vunpack.c.h.b16 %v467
      %v862 = vunpack.c.l.b16 %v468
      %v863 = vunpack.c.h.b16 %v468
      %v864 = vunpack.c.l.b16 %v469
      %v865 = vunpack.c.h.b16 %v469
      %v866 = vunpack.c.l.b16 %v470
      %v867 = vunpack.c.h.b16 %v470
      %v868 = vunpack.c.l.b16 %v471
      %v869 = vunpack.c.h.b16 %v471
      %v870 = vunpack.c.l.b16 %v472
      %v871 = vunpack.c.h.b16 %v472
      %v872 = vunpack.c.l.b16 %v473
      %v873 = vunpack.c.h.b16 %v473
      %v874 = vunpack.c.l.b16 %v474
      %v875 = vunpack.c.h.b16 %v474
      %v876 = vunpack.c.l.b16 %v475
      %v877 = vunpack.c.h.b16 %v475
      %v878 = vpack.c.b16 %v630, %v622
      %v879 = vpack.c.b16 %v631, %v623
      %v880 = vpack.c.b16 %v632, %v624
      %v881 = vpack.c.b16 %v633, %v625
      %v882 = vpack.c.b16 %v634, %v626
      %v883 = vpack.c.b16 %v635, %v627
      %v884 = vpack.c.b16 %v636, %v628
      %v885 = vpack.c.b16 %v637, %v629
      %v886 = vpack.c.b16 %v646, %v638
      %v887 = vpack.c.b16 %v647, %v639
      %v888 = vpack.c.b16 %v648, %v640
      %v889 = vpack.c.b16 %v649, %v641
      %v890 = vpack.c.b16 %v650, %v642
      %v891 = vpack.c.b16 %v651, %v643
      %v892 = vpack.c.b16 %v652, %v644
      %v893 = vpack.c.b16 %v653, %v645
      %v894 = vpack.c.b16 %v662, %v654
      %v895 = vpack.c.b16 %v663, %v655
      %v896 = vpack.c.b16 %v664, %v656
      %v897 = vpack.c.b16 %v665, %v657
      %v898 = vpack.c.b16 %v666, %v658
      %v899 = vpack.c.b16 %v667, %v659
      %v900 = vpack.c.b16 %v668, %v660
      %v901 = vpack.c.b16 %v669, %v661
      %v902 = vpack.c.b16 %v678, %v670
      %v903 = vpack.c.b16 %v679, %v671
      %v904 = vpack.c.b16 %v680, %v672
      %v905 = vpack.c.b16 %v681, %v673
      %v906 = vpack.c.b16 %v682, %v674
      %v907 = vpack.c.b16 %v683, %v675
      %v908 = vpack.c.b16 %v684, %v676
      %v909 = vpack.c.b16 %v685, %v677
      %v910 = vpack.c.b16 %v694, %v686
      %v911 = vpack.c.b16 %v695, %v687
      %v912 = vpack.c.b16 %v696, %v688
      %v913 = vpack.c.b16 %v697, %v689
      %v914 = vpack.c.b16 %v698, %v690
      %v915 = vpack.c.b16 %v699, %v691
      %v916 = vpack.c.b16 %v700, %v692
      %v917 = vpack.c.b16 %v701, %v693
      %v918 = vpack.c.b16 %v710, %v702
      %v919 = vpack.c.b16 %v711, %v703
      %v920 = vpack.c.b16 %v712, %v704
      %v921 = vpack.c.b16 %v713, %v705
      %v922 = vpack.c.b16 %v714, %v706
      %v923 = vpack.c.b16 %v715, %v707
      %v924 = vpack.c.b16 %v716, %v708
      %v925 = vpack.c.b16 %v717, %v709
      %v926 = vpack.c.b16 %v726, %v718
      %v927 = vpack.c.b16 %v727, %v719
      %v928 = vpack.c.b16 %v728, %v720
      %v929 = vpack.c.b16 %v729, %v721
      %v930 = vpack.c.b16 %v730, %v722
      %v931 = vpack.c.b16 %v731, %v723
      %v932 = vpack.c.b16 %v732, %v724
      %v933 = vpack.c.b16 %v733, %v725
      %v934 = vpack.c.b16 %v742, %v734
      %v935 = vpack.c.b16 %v743, %v735
      %v936 = vpack.c.b16 %v744, %v736
      %v937 = vpack.c.b16 %v745, %v737
      %v938 = vpack.c.b16 %v746, %v738
      %v939 = vpack.c.b16 %v747, %v739
      %v940 = vpack.c.b16 %v748, %v740
      %v941 = vpack.c.b16 %v749, %v741
      %v942 = vpack.c.b16 %v758, %v750
      %v943 = vpack.c.b16 %v759, %v751
      %v944 = vpack.c.b16 %v760, %v752
      %v945 = vpack.c.b16 %v761, %v753
      %v946 = vpack.c.b16 %v762, %v754
      %v947 = vpack.c.b16 %v763, %v755
      %v948 = vpack.c.b16 %v764, %v756
      %v949 = vpack.c.b16 %v765, %v757
      %v950 = vpack.c.b16 %v774, %v766
      %v951 = vpack.c.b16 %v775, %v767
      %v952 = vpack.c.b16 %v776, %v768
      %v953 = vpack.c.b16 %v777, %v769
      %v954 = vpack.c.b16 %v778, %v770
      %v955 = vpack.c.b16 %v779, %v771
      %v956 = vpack.c.b16 %v780, %v772
      %v957 = vpack.c.b16 %v781, %v773
      %v958 = vpack.c.b16 %v790, %v782
      %v959 = vpack.c.b16 %v791, %v783
      %v960 = vpack.c.b16 %v792, %v784
      %v961 = vpack.c.b16 %v793, %v785
      %v962 = vpack.c.b16 %v794, %v786
      %v963 = vpack.c.b16 %v795, %v787
      %v964 = vpack.c.b16 %v796, %v788
      %v965 = vpack.c.b16 %v797, %v789
      %v966 = vpack.c.b16 %v806, %v798
      %v967 = vpack.c.b16 %v807, %v799
      %v968 = vpack.c.b16 %v808, %v800
      %v969 = vpack.c.b16 %v809, %v801
      %v970 = vpack.c.b16 %v810, %v802
      %v971 = vpack.c.b16 %v811, %v803
      %v972 = vpack.c.b16 %v812, %v804
      %v973 = vpack.c.b16 %v813, %v805
      %v974 = vpack.c.b16 %v822, %v814
      %v975 = vpack.c.b16 %v823, %v815
      %v976 = vpack.c.b16 %v824, %v816
      %v977 = vpack.c.b16 %v825, %v817
      %v978 = vpack.c.b16 %v826, %v818
      %v979 = vpack.c.b16 %v827, %v819
      %v980 = vpack.c.b16 %v828, %v820
      %v981 = vpack.c.b16 %v829, %v821
      %v982 = vpack.c.b16 %v838, %v830
      %v983 = vpack.c.b16 %v839, %v831
      %v984 = vpack.c.b16 %v840, %v832
      %v985 = vpack.c.b16 %v841, %v833
      %v986 = vpack.c.b16 %v842, %v834
      %v987 = vpack.c.b16 %v843, %v835
      %v988 = vpack.c.b16 %v844, %v836
      %v989 = vpack.c.b16 %v845, %v837
      %v990 = vpack.c.b16 %v854, %v846
      %v991 = vpack.c.b16 %v855, %v847
      %v992 = vpack.c.b16 %v856, %v848
      %v993 = vpack.c.b16 %v857, %v849
      %v994 = vpack.c.b16 %v858, %v850
      %v995 = vpack.c.b16 %v859, %v851
      %v996 = vpack.c.b16 %v860, %v852
      %v997 = vpack.c.b16 %v861, %v853
      %v998 = vpack.c.b16 %v870, %v862
      %v999 = vpack.c.b16 %v871, %v863
      %v1000 = vpack.c.b16 %v872, %v864
      %v1001 = vpack.c.b16 %v873, %v865
      %v1002 = vpack.c.b16 %v874, %v866
      %v1003 = vpack.c.b16 %v875, %v867
      %v1004 = vpack.c.b16 %v876, %v868
      %v1005 = vpack.c.b16 %v877, %v869
      %1134 = vmatpush.bf16.msra.mxu0 %v934
      %1135 = vmatpush.bf16.msra.mxu0 %v926
      %1136 = vmatpush.bf16.msra.mxu0 %v918
      %1137 = vmatpush.bf16.msra.mxu0 %v910
      %1138 = vmatpush.bf16.msra.mxu0 %v902
      %1139 = vmatpush.bf16.msra.mxu0 %v894
      %1140 = vmatpush.bf16.msra.mxu0 %v886
      %1141 = vmatpush.bf16.msra.mxu0 %v878
      %1142 = vmatmul.bf16.gmra.mxu0 %v346
      %v1143 = vpop.f32.mrf.mxu0
      %v1144 = vadd.f32 %v478, %v1143
      %v1145 = vpop.f32.mrf.mxu0
      %v1146 = vadd.f32 %v478, %v1145
      %1147 = vdwg.mxu0
      %1148 = vmatpush.bf16.msra.mxu0 %v998
      %1149 = vmatpush.bf16.msra.mxu0 %v990
      %1150 = vmatpush.bf16.msra.mxu0 %v982
      %1151 = vmatpush.bf16.msra.mxu0 %v974
      %1152 = vmatpush.bf16.msra.mxu0 %v966
      %1153 = vmatpush.bf16.msra.mxu0 %v958
      %1154 = vmatpush.bf16.msra.mxu0 %v950
      %1155 = vmatpush.bf16.msra.mxu0 %v942
      %1156 = vmatmul.bf16.gmra.mxu0 %v347
      %v1157 = vpop.f32.mrf.mxu0
      %v1158 = vadd.f32 %v1144, %v1157
      %v1159 = vpop.f32.mrf.mxu0
      %v1160 = vadd.f32 %v1146, %v1159
      %1161 = vdwg.mxu0
      %1162 = vmatpush.bf16.msra.mxu0 %v935
      %1163 = vmatpush.bf16.msra.mxu0 %v927
      %1164 = vmatpush.bf16.msra.mxu0 %v919
      %1165 = vmatpush.bf16.msra.mxu0 %v911
      %1166 = vmatpush.bf16.msra.mxu0 %v903
      %1167 = vmatpush.bf16.msra.mxu0 %v895
      %1168 = vmatpush.bf16.msra.mxu0 %v887
      %1169 = vmatpush.bf16.msra.mxu0 %v879
      %1170 = vmatmul.bf16.gmra.mxu0 %v346
      %v1171 = vpop.f32.mrf.mxu0
      %v1172 = vadd.f32 %v479, %v1171
      %v1173 = vpop.f32.mrf.mxu0
      %v1174 = vadd.f32 %v479, %v1173
      %1175 = vdwg.mxu0
      %1176 = vmatpush.bf16.msra.mxu0 %v999
      %1177 = vmatpush.bf16.msra.mxu0 %v991
      %1178 = vmatpush.bf16.msra.mxu0 %v983
      %1179 = vmatpush.bf16.msra.mxu0 %v975
      %1180 = vmatpush.bf16.msra.mxu0 %v967
      %1181 = vmatpush.bf16.msra.mxu0 %v959
      %1182 = vmatpush.bf16.msra.mxu0 %v951
      %1183 = vmatpush.bf16.msra.mxu0 %v943
      %1184 = vmatmul.bf16.gmra.mxu0 %v347
      %v1185 = vpop.f32.mrf.mxu0
      %v1186 = vadd.f32 %v1172, %v1185
      %v1187 = vpop.f32.mrf.mxu0
      %v1188 = vadd.f32 %v1174, %v1187
      %1189 = vdwg.mxu0
      %1190 = vmatpush.bf16.msra.mxu0 %v936
      %1191 = vmatpush.bf16.msra.mxu0 %v928
      %1192 = vmatpush.bf16.msra.mxu0 %v920
      %1193 = vmatpush.bf16.msra.mxu0 %v912
      %1194 = vmatpush.bf16.msra.mxu0 %v904
      %1195 = vmatpush.bf16.msra.mxu0 %v896
      %1196 = vmatpush.bf16.msra.mxu0 %v888
      %1197 = vmatpush.bf16.msra.mxu0 %v880
      %1198 = vmatmul.bf16.gmra.mxu0 %v346
      %v1199 = vpop.f32.mrf.mxu0
      %v1200 = vadd.f32 %v480, %v1199
      %v1201 = vpop.f32.mrf.mxu0
      %v1202 = vadd.f32 %v480, %v1201
      %1203 = vdwg.mxu0
      %1204 = vmatpush.bf16.msra.mxu0 %v1000
      %1205 = vmatpush.bf16.msra.mxu0 %v992
      %1206 = vmatpush.bf16.msra.mxu0 %v984
      %1207 = vmatpush.bf16.msra.mxu0 %v976
      %1208 = vmatpush.bf16.msra.mxu0 %v968
      %1209 = vmatpush.bf16.msra.mxu0 %v960
      %1210 = vmatpush.bf16.msra.mxu0 %v952
      %1211 = vmatpush.bf16.msra.mxu0 %v944
      %1212 = vmatmul.bf16.gmra.mxu0 %v347
      %v1213 = vpop.f32.mrf.mxu0
      %v1214 = vadd.f32 %v1200, %v1213
      %v1215 = vpop.f32.mrf.mxu0
      %v1216 = vadd.f32 %v1202, %v1215
      %1217 = vdwg.mxu0
      %1218 = vmatpush.bf16.msra.mxu0 %v937
      %1219 = vmatpush.bf16.msra.mxu0 %v929
      %1220 = vmatpush.bf16.msra.mxu0 %v921
      %1221 = vmatpush.bf16.msra.mxu0 %v913
      %1222 = vmatpush.bf16.msra.mxu0 %v905
      %1223 = vmatpush.bf16.msra.mxu0 %v897
      %1224 = vmatpush.bf16.msra.mxu0 %v889
      %1225 = vmatpush.bf16.msra.mxu0 %v881
      %1226 = vmatmul.bf16.gmra.mxu0 %v346
      %v1227 = vpop.f32.mrf.mxu0
      %v1228 = vadd.f32 %v481, %v1227
      %v1229 = vpop.f32.mrf.mxu0
      %v1230 = vadd.f32 %v481, %v1229
      %1231 = vdwg.mxu0
      %1232 = vmatpush.bf16.msra.mxu0 %v1001
      %1233 = vmatpush.bf16.msra.mxu0 %v993
      %1234 = vmatpush.bf16.msra.mxu0 %v985
      %1235 = vmatpush.bf16.msra.mxu0 %v977
      %1236 = vmatpush.bf16.msra.mxu0 %v969
      %1237 = vmatpush.bf16.msra.mxu0 %v961
      %1238 = vmatpush.bf16.msra.mxu0 %v953
      %1239 = vmatpush.bf16.msra.mxu0 %v945
      %1240 = vmatmul.bf16.gmra.mxu0 %v347
      %v1241 = vpop.f32.mrf.mxu0
      %v1242 = vadd.f32 %v1228, %v1241
      %v1243 = vpop.f32.mrf.mxu0
      %v1244 = vadd.f32 %v1230, %v1243
      %1245 = vdwg.mxu0
      %1246 = vmatpush.bf16.msra.mxu0 %v938
      %1247 = vmatpush.bf16.msra.mxu0 %v930
      %1248 = vmatpush.bf16.msra.mxu0 %v922
      %1249 = vmatpush.bf16.msra.mxu0 %v914
      %1250 = vmatpush.bf16.msra.mxu0 %v906
      %1251 = vmatpush.bf16.msra.mxu0 %v898
      %1252 = vmatpush.bf16.msra.mxu0 %v890
      %1253 = vmatpush.bf16.msra.mxu0 %v882
      %1254 = vmatmul.bf16.gmra.mxu0 %v346
      %v1255 = vpop.f32.mrf.mxu0
      %v1256 = vadd.f32 %v482, %v1255
      %v1257 = vpop.f32.mrf.mxu0
      %v1258 = vadd.f32 %v482, %v1257
      %1259 = vdwg.mxu0
      %1260 = vmatpush.bf16.msra.mxu0 %v1002
      %1261 = vmatpush.bf16.msra.mxu0 %v994
      %1262 = vmatpush.bf16.msra.mxu0 %v986
      %1263 = vmatpush.bf16.msra.mxu0 %v978
      %1264 = vmatpush.bf16.msra.mxu0 %v970
      %1265 = vmatpush.bf16.msra.mxu0 %v962
      %1266 = vmatpush.bf16.msra.mxu0 %v954
      %1267 = vmatpush.bf16.msra.mxu0 %v946
      %1268 = vmatmul.bf16.gmra.mxu0 %v347
      %v1269 = vpop.f32.mrf.mxu0
      %v1270 = vadd.f32 %v1256, %v1269
      %v1271 = vpop.f32.mrf.mxu0
      %v1272 = vadd.f32 %v1258, %v1271
      %1273 = vdwg.mxu0
      %1274 = vmatpush.bf16.msra.mxu0 %v939
      %1275 = vmatpush.bf16.msra.mxu0 %v931
      %1276 = vmatpush.bf16.msra.mxu0 %v923
      %1277 = vmatpush.bf16.msra.mxu0 %v915
      %1278 = vmatpush.bf16.msra.mxu0 %v907
      %1279 = vmatpush.bf16.msra.mxu0 %v899
      %1280 = vmatpush.bf16.msra.mxu0 %v891
      %1281 = vmatpush.bf16.msra.mxu0 %v883
      %1282 = vmatmul.bf16.gmra.mxu0 %v346
      %v1283 = vpop.f32.mrf.mxu0
      %v1284 = vadd.f32 %v483, %v1283
      %v1285 = vpop.f32.mrf.mxu0
      %v1286 = vadd.f32 %v483, %v1285
      %1287 = vdwg.mxu0
      %1288 = vmatpush.bf16.msra.mxu0 %v1003
      %1289 = vmatpush.bf16.msra.mxu0 %v995
      %1290 = vmatpush.bf16.msra.mxu0 %v987
      %1291 = vmatpush.bf16.msra.mxu0 %v979
      %1292 = vmatpush.bf16.msra.mxu0 %v971
      %1293 = vmatpush.bf16.msra.mxu0 %v963
      %1294 = vmatpush.bf16.msra.mxu0 %v955
      %1295 = vmatpush.bf16.msra.mxu0 %v947
      %1296 = vmatmul.bf16.gmra.mxu0 %v347
      %v1297 = vpop.f32.mrf.mxu0
      %v1298 = vadd.f32 %v1284, %v1297
      %v1299 = vpop.f32.mrf.mxu0
      %v1300 = vadd.f32 %v1286, %v1299
      %1301 = vdwg.mxu0
      %1302 = vmatpush.bf16.msra.mxu0 %v940
      %1303 = vmatpush.bf16.msra.mxu0 %v932
      %1304 = vmatpush.bf16.msra.mxu0 %v924
      %1305 = vmatpush.bf16.msra.mxu0 %v916
      %1306 = vmatpush.bf16.msra.mxu0 %v908
      %1307 = vmatpush.bf16.msra.mxu0 %v900
      %1308 = vmatpush.bf16.msra.mxu0 %v892
      %1309 = vmatpush.bf16.msra.mxu0 %v884
      %1310 = vmatmul.bf16.gmra.mxu0 %v346
      %v1311 = vpop.f32.mrf.mxu0
      %v1312 = vadd.f32 %v484, %v1311
      %v1313 = vpop.f32.mrf.mxu0
      %v1314 = vadd.f32 %v484, %v1313
      %1315 = vdwg.mxu0
      %1316 = vmatpush.bf16.msra.mxu0 %v1004
      %1317 = vmatpush.bf16.msra.mxu0 %v996
      %1318 = vmatpush.bf16.msra.mxu0 %v988
      %1319 = vmatpush.bf16.msra.mxu0 %v980
      %1320 = vmatpush.bf16.msra.mxu0 %v972
      %1321 = vmatpush.bf16.msra.mxu0 %v964
      %1322 = vmatpush.bf16.msra.mxu0 %v956
      %1323 = vmatpush.bf16.msra.mxu0 %v948
      %1324 = vmatmul.bf16.gmra.mxu0 %v347
      %v1325 = vpop.f32.mrf.mxu0
      %v1326 = vadd.f32 %v1312, %v1325
      %v1327 = vpop.f32.mrf.mxu0
      %v1328 = vadd.f32 %v1314, %v1327
      %1329 = vdwg.mxu0
      %1330 = vmatpush.bf16.msra.mxu0 %v941
      %1331 = vmatpush.bf16.msra.mxu0 %v933
      %1332 = vmatpush.bf16.msra.mxu0 %v925
      %1333 = vmatpush.bf16.msra.mxu0 %v917
      %1334 = vmatpush.bf16.msra.mxu0 %v909
      %1335 = vmatpush.bf16.msra.mxu0 %v901
      %1336 = vmatpush.bf16.msra.mxu0 %v893
      %1337 = vmatpush.bf16.msra.mxu0 %v885
      %1338 = vmatmul.bf16.gmra.mxu0 %v346
      %v1339 = vpop.f32.mrf.mxu0
      %v1340 = vadd.f32 %v485, %v1339
      %v1341 = vpop.f32.mrf.mxu0
      %v1342 = vadd.f32 %v485, %v1341
      %1343 = vdwg.mxu0
      %1344 = vmatpush.bf16.msra.mxu0 %v1005
      %1345 = vmatpush.bf16.msra.mxu0 %v997
      %1346 = vmatpush.bf16.msra.mxu0 %v989
      %1347 = vmatpush.bf16.msra.mxu0 %v981
      %1348 = vmatpush.bf16.msra.mxu0 %v973
      %1349 = vmatpush.bf16.msra.mxu0 %v965
      %1350 = vmatpush.bf16.msra.mxu0 %v957
      %1351 = vmatpush.bf16.msra.mxu0 %v949
      %1352 = vmatmul.bf16.gmra.mxu0 %v347
      %v1353 = vpop.f32.mrf.mxu0
      %v1354 = vadd.f32 %v1340, %v1353
      %v1355 = vpop.f32.mrf.mxu0
      %v1356 = vadd.f32 %v1342, %v1355
      %1357 = vdwg.mxu0
      %v1358 = vmul.f32 %v1158, 0.5
      %v1359 = vmul.f32 %v1186, 0.5
      %v1360 = vmul.f32 %v1214, 0.5
      %v1361 = vmul.f32 %v1242, 0.5
      %v1362 = vmul.f32 %v1270, 0.5
      %v1363 = vmul.f32 %v1298, 0.5
      %v1364 = vmul.f32 %v1326, 0.5
      %v1365 = vmul.f32 %v1354, 0.5
      %v1366 = vmul.f32 %v1160, 0.5
      %v1367 = vmul.f32 %v1188, 0.5
      %v1368 = vmul.f32 %v1216, 0.5
      %v1369 = vmul.f32 %v1244, 0.5
      %v1370 = vmul.f32 %v1272, 0.5
      %v1371 = vmul.f32 %v1300, 0.5
      %v1372 = vmul.f32 %v1328, 0.5
      %v1373 = vmul.f32 %v1356, 0.5
      %v1374 = vmul.f32 %v1158, 0.70710677
      %v1375 = vmul.f32 %v1186, 0.70710677
      %v1376 = vmul.f32 %v1214, 0.70710677
      %v1377 = vmul.f32 %v1242, 0.70710677
      %v1378 = vmul.f32 %v1270, 0.70710677
      %v1379 = vmul.f32 %v1298, 0.70710677
      %v1380 = vmul.f32 %v1326, 0.70710677
      %v1381 = vmul.f32 %v1354, 0.70710677
      %v1382 = vmul.f32 %v1160, 0.70710677
      %v1383 = vmul.f32 %v1188, 0.70710677
      %v1384 = vmul.f32 %v1216, 0.70710677
      %v1385 = vmul.f32 %v1244, 0.70710677
      %v1386 = vmul.f32 %v1272, 0.70710677
      %v1387 = vmul.f32 %v1300, 0.70710677
      %v1388 = vmul.f32 %v1328, 0.70710677
      %v1389 = vmul.f32 %v1356, 0.70710677
      %v1390 = vand.u32 2147483647, %v1374
      %v1391 = vand.u32 2147483647, %v1375
      %v1392 = vand.u32 2147483647, %v1376
      %v1393 = vand.u32 2147483647, %v1377
      %v1394 = vand.u32 2147483647, %v1378
      %v1395 = vand.u32 2147483647, %v1379
      %v1396 = vand.u32 2147483647, %v1380
      %v1397 = vand.u32 2147483647, %v1381
      %v1398 = vand.u32 2147483647, %v1382
      %v1399 = vand.u32 2147483647, %v1383
      %v1400 = vand.u32 2147483647, %v1384
      %v1401 = vand.u32 2147483647, %v1385
      %v1402 = vand.u32 2147483647, %v1386
      %v1403 = vand.u32 2147483647, %v1387
      %v1404 = vand.u32 2147483647, %v1388
      %v1405 = vand.u32 2147483647, %v1389
      %v1406 = vmul.f32 %v1390, 0.3275911
      %v1407 = vmul.f32 %v1391, 0.3275911
      %v1408 = vmul.f32 %v1392, 0.3275911
      %v1409 = vmul.f32 %v1393, 0.3275911
      %v1410 = vmul.f32 %v1394, 0.3275911
      %v1411 = vmul.f32 %v1395, 0.3275911
      %v1412 = vmul.f32 %v1396, 0.3275911
      %v1413 = vmul.f32 %v1397, 0.3275911
      %v1414 = vmul.f32 %v1398, 0.3275911
      %v1415 = vmul.f32 %v1399, 0.3275911
      %v1416 = vmul.f32 %v1400, 0.3275911
      %v1417 = vmul.f32 %v1401, 0.3275911
      %v1418 = vmul.f32 %v1402, 0.3275911
      %v1419 = vmul.f32 %v1403, 0.3275911
      %v1420 = vmul.f32 %v1404, 0.3275911
      %v1421 = vmul.f32 %v1405, 0.3275911
      %v1422 = vadd.f32 %v1406, 1.0
      %v1423 = vadd.f32 %v1407, 1.0
      %v1424 = vadd.f32 %v1408, 1.0
      %v1425 = vadd.f32 %v1409, 1.0
      %v1426 = vadd.f32 %v1410, 1.0
      %v1427 = vadd.f32 %v1411, 1.0
      %v1428 = vadd.f32 %v1412, 1.0
      %v1429 = vadd.f32 %v1413, 1.0
      %v1430 = vadd.f32 %v1414, 1.0
      %v1431 = vadd.f32 %v1415, 1.0
      %v1432 = vadd.f32 %v1416, 1.0
      %v1433 = vadd.f32 %v1417, 1.0
      %v1434 = vadd.f32 %v1418, 1.0
      %v1435 = vadd.f32 %v1419, 1.0
      %v1436 = vadd.f32 %v1420, 1.0
      %v1437 = vadd.f32 %v1421, 1.0
      %v1438 = vrcp.pop %v1422
      %v1439 = vrcp.pop %v1423
      %v1440 = vrcp.pop %v1424
      %v1441 = vrcp.pop %v1425
      %v1442 = vrcp.pop %v1426
      %v1443 = vrcp.pop %v1427
      %v1444 = vrcp.pop %v1428
      %v1445 = vrcp.pop %v1429
      %v1446 = vrcp.pop %v1430
      %v1447 = vrcp.pop %v1431
      %v1448 = vrcp.pop %v1432
      %v1449 = vrcp.pop %v1433
      %v1450 = vrcp.pop %v1434
      %v1451 = vrcp.pop %v1435
      %v1452 = vrcp.pop %v1436
      %v1453 = vrcp.pop %v1437
      %v1454 = vmul.f32 %v1438, 1.0614054
      %v1455 = vmul.f32 %v1439, 1.0614054
      %v1456 = vmul.f32 %v1440, 1.0614054
      %v1457 = vmul.f32 %v1441, 1.0614054
      %v1458 = vmul.f32 %v1442, 1.0614054
      %v1459 = vmul.f32 %v1443, 1.0614054
      %v1460 = vmul.f32 %v1444, 1.0614054
      %v1461 = vmul.f32 %v1445, 1.0614054
      %v1462 = vmul.f32 %v1446, 1.0614054
      %v1463 = vmul.f32 %v1447, 1.0614054
      %v1464 = vmul.f32 %v1448, 1.0614054
      %v1465 = vmul.f32 %v1449, 1.0614054
      %v1466 = vmul.f32 %v1450, 1.0614054
      %v1467 = vmul.f32 %v1451, 1.0614054
      %v1468 = vmul.f32 %v1452, 1.0614054
      %v1469 = vmul.f32 %v1453, 1.0614054
      %v1470 = vadd.f32 %v1454, -1.4531521
      %v1471 = vadd.f32 %v1455, -1.4531521
      %v1472 = vadd.f32 %v1456, -1.4531521
      %v1473 = vadd.f32 %v1457, -1.4531521
      %v1474 = vadd.f32 %v1458, -1.4531521
      %v1475 = vadd.f32 %v1459, -1.4531521
      %v1476 = vadd.f32 %v1460, -1.4531521
      %v1477 = vadd.f32 %v1461, -1.4531521
      %v1478 = vadd.f32 %v1462, -1.4531521
      %v1479 = vadd.f32 %v1463, -1.4531521
      %v1480 = vadd.f32 %v1464, -1.4531521
      %v1481 = vadd.f32 %v1465, -1.4531521
      %v1482 = vadd.f32 %v1466, -1.4531521
      %v1483 = vadd.f32 %v1467, -1.4531521
      %v1484 = vadd.f32 %v1468, -1.4531521
      %v1485 = vadd.f32 %v1469, -1.4531521
      %v1486 = vmul.f32 %v1438, %v1470
      %v1487 = vmul.f32 %v1439, %v1471
      %v1488 = vmul.f32 %v1440, %v1472
      %v1489 = vmul.f32 %v1441, %v1473
      %v1490 = vmul.f32 %v1442, %v1474
      %v1491 = vmul.f32 %v1443, %v1475
      %v1492 = vmul.f32 %v1444, %v1476
      %v1493 = vmul.f32 %v1445, %v1477
      %v1494 = vmul.f32 %v1446, %v1478
      %v1495 = vmul.f32 %v1447, %v1479
      %v1496 = vmul.f32 %v1448, %v1480
      %v1497 = vmul.f32 %v1449, %v1481
      %v1498 = vmul.f32 %v1450, %v1482
      %v1499 = vmul.f32 %v1451, %v1483
      %v1500 = vmul.f32 %v1452, %v1484
      %v1501 = vmul.f32 %v1453, %v1485
      %v1502 = vadd.f32 %v1486, 1.4214138
      %v1503 = vadd.f32 %v1487, 1.4214138
      %v1504 = vadd.f32 %v1488, 1.4214138
      %v1505 = vadd.f32 %v1489, 1.4214138
      %v1506 = vadd.f32 %v1490, 1.4214138
      %v1507 = vadd.f32 %v1491, 1.4214138
      %v1508 = vadd.f32 %v1492, 1.4214138
      %v1509 = vadd.f32 %v1493, 1.4214138
      %v1510 = vadd.f32 %v1494, 1.4214138
      %v1511 = vadd.f32 %v1495, 1.4214138
      %v1512 = vadd.f32 %v1496, 1.4214138
      %v1513 = vadd.f32 %v1497, 1.4214138
      %v1514 = vadd.f32 %v1498, 1.4214138
      %v1515 = vadd.f32 %v1499, 1.4214138
      %v1516 = vadd.f32 %v1500, 1.4214138
      %v1517 = vadd.f32 %v1501, 1.4214138
      %v1518 = vmul.f32 %v1438, %v1502
      %v1519 = vmul.f32 %v1439, %v1503
      %v1520 = vmul.f32 %v1440, %v1504
      %v1521 = vmul.f32 %v1441, %v1505
      %v1522 = vmul.f32 %v1442, %v1506
      %v1523 = vmul.f32 %v1443, %v1507
      %v1524 = vmul.f32 %v1444, %v1508
      %v1525 = vmul.f32 %v1445, %v1509
      %v1526 = vmul.f32 %v1446, %v1510
      %v1527 = vmul.f32 %v1447, %v1511
      %v1528 = vmul.f32 %v1448, %v1512
      %v1529 = vmul.f32 %v1449, %v1513
      %v1530 = vmul.f32 %v1450, %v1514
      %v1531 = vmul.f32 %v1451, %v1515
      %v1532 = vmul.f32 %v1452, %v1516
      %v1533 = vmul.f32 %v1453, %v1517
      %v1534 = vadd.f32 %v1518, -0.28449672
      %v1535 = vadd.f32 %v1519, -0.28449672
      %v1536 = vadd.f32 %v1520, -0.28449672
      %v1537 = vadd.f32 %v1521, -0.28449672
      %v1538 = vadd.f32 %v1522, -0.28449672
      %v1539 = vadd.f32 %v1523, -0.28449672
      %v1540 = vadd.f32 %v1524, -0.28449672
      %v1541 = vadd.f32 %v1525, -0.28449672
      %v1542 = vadd.f32 %v1526, -0.28449672
      %v1543 = vadd.f32 %v1527, -0.28449672
      %v1544 = vadd.f32 %v1528, -0.28449672
      %v1545 = vadd.f32 %v1529, -0.28449672
      %v1546 = vadd.f32 %v1530, -0.28449672
      %v1547 = vadd.f32 %v1531, -0.28449672
      %v1548 = vadd.f32 %v1532, -0.28449672
      %v1549 = vadd.f32 %v1533, -0.28449672
      %v1550 = vmul.f32 %v1438, %v1534
      %v1551 = vmul.f32 %v1439, %v1535
      %v1552 = vmul.f32 %v1440, %v1536
      %v1553 = vmul.f32 %v1441, %v1537
      %v1554 = vmul.f32 %v1442, %v1538
      %v1555 = vmul.f32 %v1443, %v1539
      %v1556 = vmul.f32 %v1444, %v1540
      %v1557 = vmul.f32 %v1445, %v1541
      %v1558 = vmul.f32 %v1446, %v1542
      %v1559 = vmul.f32 %v1447, %v1543
      %v1560 = vmul.f32 %v1448, %v1544
      %v1561 = vmul.f32 %v1449, %v1545
      %v1562 = vmul.f32 %v1450, %v1546
      %v1563 = vmul.f32 %v1451, %v1547
      %v1564 = vmul.f32 %v1452, %v1548
      %v1565 = vmul.f32 %v1453, %v1549
      %v1566 = vadd.f32 %v1550, 0.2548296
      %v1567 = vadd.f32 %v1551, 0.2548296
      %v1568 = vadd.f32 %v1552, 0.2548296
      %v1569 = vadd.f32 %v1553, 0.2548296
      %v1570 = vadd.f32 %v1554, 0.2548296
      %v1571 = vadd.f32 %v1555, 0.2548296
      %v1572 = vadd.f32 %v1556, 0.2548296
      %v1573 = vadd.f32 %v1557, 0.2548296
      %v1574 = vadd.f32 %v1558, 0.2548296
      %v1575 = vadd.f32 %v1559, 0.2548296
      %v1576 = vadd.f32 %v1560, 0.2548296
      %v1577 = vadd.f32 %v1561, 0.2548296
      %v1578 = vadd.f32 %v1562, 0.2548296
      %v1579 = vadd.f32 %v1563, 0.2548296
      %v1580 = vadd.f32 %v1564, 0.2548296
      %v1581 = vadd.f32 %v1565, 0.2548296
      %v1582 = vmul.f32 %v1438, %v1566
      %v1583 = vmul.f32 %v1439, %v1567
      %v1584 = vmul.f32 %v1440, %v1568
      %v1585 = vmul.f32 %v1441, %v1569
      %v1586 = vmul.f32 %v1442, %v1570
      %v1587 = vmul.f32 %v1443, %v1571
      %v1588 = vmul.f32 %v1444, %v1572
      %v1589 = vmul.f32 %v1445, %v1573
      %v1590 = vmul.f32 %v1446, %v1574
      %v1591 = vmul.f32 %v1447, %v1575
      %v1592 = vmul.f32 %v1448, %v1576
      %v1593 = vmul.f32 %v1449, %v1577
      %v1594 = vmul.f32 %v1450, %v1578
      %v1595 = vmul.f32 %v1451, %v1579
      %v1596 = vmul.f32 %v1452, %v1580
      %v1597 = vmul.f32 %v1453, %v1581
      %v1598 = vsub.f32 0.0, %v1390
      %v1599 = vsub.f32 0.0, %v1391
      %v1600 = vsub.f32 0.0, %v1392
      %v1601 = vsub.f32 0.0, %v1393
      %v1602 = vsub.f32 0.0, %v1394
      %v1603 = vsub.f32 0.0, %v1395
      %v1604 = vsub.f32 0.0, %v1396
      %v1605 = vsub.f32 0.0, %v1397
      %v1606 = vsub.f32 0.0, %v1398
      %v1607 = vsub.f32 0.0, %v1399
      %v1608 = vsub.f32 0.0, %v1400
      %v1609 = vsub.f32 0.0, %v1401
      %v1610 = vsub.f32 0.0, %v1402
      %v1611 = vsub.f32 0.0, %v1403
      %v1612 = vsub.f32 0.0, %v1404
      %v1613 = vsub.f32 0.0, %v1405
      %v1614 = vmul.f32 %v1598, %v1390
      %v1615 = vmul.f32 %v1599, %v1391
      %v1616 = vmul.f32 %v1600, %v1392
      %v1617 = vmul.f32 %v1601, %v1393
      %v1618 = vmul.f32 %v1602, %v1394
      %v1619 = vmul.f32 %v1603, %v1395
      %v1620 = vmul.f32 %v1604, %v1396
      %v1621 = vmul.f32 %v1605, %v1397
      %v1622 = vmul.f32 %v1606, %v1398
      %v1623 = vmul.f32 %v1607, %v1399
      %v1624 = vmul.f32 %v1608, %v1400
      %v1625 = vmul.f32 %v1609, %v1401
      %v1626 = vmul.f32 %v1610, %v1402
      %v1627 = vmul.f32 %v1611, %v1403
      %v1628 = vmul.f32 %v1612, %v1404
      %v1629 = vmul.f32 %v1613, %v1405
      %v1630 = vmul.f32 %v1614, 1.442695
      %v1631 = vpow.pop %v1630
      %v1632 = vmul.f32 %v1615, 1.442695
      %v1633 = vpow.pop %v1632
      %v1634 = vmul.f32 %v1616, 1.442695
      %v1635 = vpow.pop %v1634
      %v1636 = vmul.f32 %v1617, 1.442695
      %v1637 = vpow.pop %v1636
      %v1638 = vmul.f32 %v1618, 1.442695
      %v1639 = vpow.pop %v1638
      %v1640 = vmul.f32 %v1619, 1.442695
      %v1641 = vpow.pop %v1640
      %v1642 = vmul.f32 %v1620, 1.442695
      %v1643 = vpow.pop %v1642
      %v1644 = vmul.f32 %v1621, 1.442695
      %v1645 = vpow.pop %v1644
      %v1646 = vmul.f32 %v1622, 1.442695
      %v1647 = vpow.pop %v1646
      %v1648 = vmul.f32 %v1623, 1.442695
      %v1649 = vpow.pop %v1648
      %v1650 = vmul.f32 %v1624, 1.442695
      %v1651 = vpow.pop %v1650
      %v1652 = vmul.f32 %v1625, 1.442695
      %v1653 = vpow.pop %v1652
      %v1654 = vmul.f32 %v1626, 1.442695
      %v1655 = vpow.pop %v1654
      %v1656 = vmul.f32 %v1627, 1.442695
      %v1657 = vpow.pop %v1656
      %v1658 = vmul.f32 %v1628, 1.442695
      %v1659 = vpow.pop %v1658
      %v1660 = vmul.f32 %v1629, 1.442695
      %v1661 = vpow.pop %v1660
      %v1662 = vmul.f32 %v1582, %v1631
      %v1663 = vmul.f32 %v1583, %v1633
      %v1664 = vmul.f32 %v1584, %v1635
      %v1665 = vmul.f32 %v1585, %v1637
      %v1666 = vmul.f32 %v1586, %v1639
      %v1667 = vmul.f32 %v1587, %v1641
      %v1668 = vmul.f32 %v1588, %v1643
      %v1669 = vmul.f32 %v1589, %v1645
      %v1670 = vmul.f32 %v1590, %v1647
      %v1671 = vmul.f32 %v1591, %v1649
      %v1672 = vmul.f32 %v1592, %v1651
      %v1673 = vmul.f32 %v1593, %v1653
      %v1674 = vmul.f32 %v1594, %v1655
      %v1675 = vmul.f32 %v1595, %v1657
      %v1676 = vmul.f32 %v1596, %v1659
      %v1677 = vmul.f32 %v1597, %v1661
      %v1678 = vsub.f32 1.0, %v1662
      %v1679 = vsub.f32 1.0, %v1663
      %v1680 = vsub.f32 1.0, %v1664
      %v1681 = vsub.f32 1.0, %v1665
      %v1682 = vsub.f32 1.0, %v1666
      %v1683 = vsub.f32 1.0, %v1667
      %v1684 = vsub.f32 1.0, %v1668
      %v1685 = vsub.f32 1.0, %v1669
      %v1686 = vsub.f32 1.0, %v1670
      %v1687 = vsub.f32 1.0, %v1671
      %v1688 = vsub.f32 1.0, %v1672
      %v1689 = vsub.f32 1.0, %v1673
      %v1690 = vsub.f32 1.0, %v1674
      %v1691 = vsub.f32 1.0, %v1675
      %v1692 = vsub.f32 1.0, %v1676
      %v1693 = vsub.f32 1.0, %v1677
      %vm1694 = vcmp.ge.f32.partialorder %v1374, 0.0
      %vm1695 = vcmp.ge.f32.partialorder %v1375, 0.0
      %vm1696 = vcmp.ge.f32.partialorder %v1376, 0.0
      %vm1697 = vcmp.ge.f32.partialorder %v1377, 0.0
      %vm1698 = vcmp.ge.f32.partialorder %v1378, 0.0
      %vm1699 = vcmp.ge.f32.partialorder %v1379, 0.0
      %vm1700 = vcmp.ge.f32.partialorder %v1380, 0.0
      %vm1701 = vcmp.ge.f32.partialorder %v1381, 0.0
      %vm1702 = vcmp.ge.f32.partialorder %v1382, 0.0
      %vm1703 = vcmp.ge.f32.partialorder %v1383, 0.0
      %vm1704 = vcmp.ge.f32.partialorder %v1384, 0.0
      %vm1705 = vcmp.ge.f32.partialorder %v1385, 0.0
      %vm1706 = vcmp.ge.f32.partialorder %v1386, 0.0
      %vm1707 = vcmp.ge.f32.partialorder %v1387, 0.0
      %vm1708 = vcmp.ge.f32.partialorder %v1388, 0.0
      %vm1709 = vcmp.ge.f32.partialorder %v1389, 0.0
      %v1710 = vsub.f32 0.0, %v1678
      %v1711 = vsub.f32 0.0, %v1679
      %v1712 = vsub.f32 0.0, %v1680
      %v1713 = vsub.f32 0.0, %v1681
      %v1714 = vsub.f32 0.0, %v1682
      %v1715 = vsub.f32 0.0, %v1683
      %v1716 = vsub.f32 0.0, %v1684
      %v1717 = vsub.f32 0.0, %v1685
      %v1718 = vsub.f32 0.0, %v1686
      %v1719 = vsub.f32 0.0, %v1687
      %v1720 = vsub.f32 0.0, %v1688
      %v1721 = vsub.f32 0.0, %v1689
      %v1722 = vsub.f32 0.0, %v1690
      %v1723 = vsub.f32 0.0, %v1691
      %v1724 = vsub.f32 0.0, %v1692
      %v1725 = vsub.f32 0.0, %v1693
      %v1726 = vsel %vm1694, %v1678, %v1710
      %v1727 = vsel %vm1695, %v1679, %v1711
      %v1728 = vsel %vm1696, %v1680, %v1712
      %v1729 = vsel %vm1697, %v1681, %v1713
      %v1730 = vsel %vm1698, %v1682, %v1714
      %v1731 = vsel %vm1699, %v1683, %v1715
      %v1732 = vsel %vm1700, %v1684, %v1716
      %v1733 = vsel %vm1701, %v1685, %v1717
      %v1734 = vsel %vm1702, %v1686, %v1718
      %v1735 = vsel %vm1703, %v1687, %v1719
      %v1736 = vsel %vm1704, %v1688, %v1720
      %v1737 = vsel %vm1705, %v1689, %v1721
      %v1738 = vsel %vm1706, %v1690, %v1722
      %v1739 = vsel %vm1707, %v1691, %v1723
      %v1740 = vsel %vm1708, %v1692, %v1724
      %v1741 = vsel %vm1709, %v1693, %v1725
      %v1742 = vadd.f32 %v1726, 1.0
      %v1743 = vadd.f32 %v1727, 1.0
      %v1744 = vadd.f32 %v1728, 1.0
      %v1745 = vadd.f32 %v1729, 1.0
      %v1746 = vadd.f32 %v1730, 1.0
      %v1747 = vadd.f32 %v1731, 1.0
      %v1748 = vadd.f32 %v1732, 1.0
      %v1749 = vadd.f32 %v1733, 1.0
      %v1750 = vadd.f32 %v1734, 1.0
      %v1751 = vadd.f32 %v1735, 1.0
      %v1752 = vadd.f32 %v1736, 1.0
      %v1753 = vadd.f32 %v1737, 1.0
      %v1754 = vadd.f32 %v1738, 1.0
      %v1755 = vadd.f32 %v1739, 1.0
      %v1756 = vadd.f32 %v1740, 1.0
      %v1757 = vadd.f32 %v1741, 1.0
      %v1758 = vmul.f32 %v1358, %v1742
      %v1759 = vmul.f32 %v1359, %v1743
      %v1760 = vmul.f32 %v1360, %v1744
      %v1761 = vmul.f32 %v1361, %v1745
      %v1762 = vmul.f32 %v1362, %v1746
      %v1763 = vmul.f32 %v1363, %v1747
      %v1764 = vmul.f32 %v1364, %v1748
      %v1765 = vmul.f32 %v1365, %v1749
      %v1766 = vmul.f32 %v1366, %v1750
      %v1767 = vmul.f32 %v1367, %v1751
      %v1768 = vmul.f32 %v1368, %v1752
      %v1769 = vmul.f32 %v1369, %v1753
      %v1770 = vmul.f32 %v1370, %v1754
      %v1771 = vmul.f32 %v1371, %v1755
      %v1772 = vmul.f32 %v1372, %v1756
      %v1773 = vmul.f32 %v1373, %v1757
      %v1774 = vpack.c.bf16 %v1766, %v1758
      %v1775 = vpack.c.bf16 %v1767, %v1759
      %v1776 = vpack.c.bf16 %v1768, %v1760
      %v1777 = vpack.c.bf16 %v1769, %v1761
      %v1778 = vpack.c.bf16 %v1770, %v1762
      %v1779 = vpack.c.bf16 %v1771, %v1763
      %v1780 = vpack.c.bf16 %v1772, %v1764
      %v1781 = vpack.c.bf16 %v1773, %v1765
      %v1782 = vld [vmem:[%s4] sm:$0xff]
      %v1783 = vld [vmem:[%s4 + $0x8] sm:$0xff]
      %v1784 = vld [vmem:[%s4 + $0x10] sm:$0xff]
      %v1785 = vld [vmem:[%s4 + $0x18] sm:$0xff]
      %v1786 = vld [vmem:[%s4 + $0x20] sm:$0xff]
      %v1787 = vld [vmem:[%s4 + $0x28] sm:$0xff]
      %v1788 = vld [vmem:[%s4 + $0x30] sm:$0xff]
      %v1789 = vld [vmem:[%s4 + $0x38] sm:$0xff]
      %v1790 = vld [vmem:[%s4 + $0x40] sm:$0xff]
      %v1791 = vld [vmem:[%s4 + $0x48] sm:$0xff]
      %v1792 = vld [vmem:[%s4 + $0x50] sm:$0xff]
      %v1793 = vld [vmem:[%s4 + $0x58] sm:$0xff]
      %v1794 = vld [vmem:[%s4 + $0x60] sm:$0xff]
      %v1795 = vld [vmem:[%s4 + $0x68] sm:$0xff]
      %v1796 = vld [vmem:[%s4 + $0x70] sm:$0xff]
      %v1797 = vld [vmem:[%s4 + $0x78] sm:$0xff]
      %v1798 = vld [vmem:[%s4 + $0x80] sm:$0xff]
      %v1799 = vld [vmem:[%s4 + $0x88] sm:$0xff]
      %v1800 = vld [vmem:[%s4 + $0x90] sm:$0xff]
      %v1801 = vld [vmem:[%s4 + $0x98] sm:$0xff]
      %v1802 = vld [vmem:[%s4 + $0xa0] sm:$0xff]
      %v1803 = vld [vmem:[%s4 + $0xa8] sm:$0xff]
      %v1804 = vld [vmem:[%s4 + $0xb0] sm:$0xff]
      %v1805 = vld [vmem:[%s4 + $0xb8] sm:$0xff]
      %v1806 = vld [vmem:[%s4 + $0xc0] sm:$0xff]
      %v1807 = vld [vmem:[%s4 + $0xc8] sm:$0xff]
      %v1808 = vld [vmem:[%s4 + $0xd0] sm:$0xff]
      %v1809 = vld [vmem:[%s4 + $0xd8] sm:$0xff]
      %v1810 = vld [vmem:[%s4 + $0xe0] sm:$0xff]
      %v1811 = vld [vmem:[%s4 + $0xe8] sm:$0xff]
      %v1812 = vld [vmem:[%s4 + $0xf0] sm:$0xff]
      %v1813 = vld [vmem:[%s4 + $0xf8] sm:$0xff]
      %v1814 = vld [vmem:[%s4 + $0x100] sm:$0xff]
      %v1815 = vld [vmem:[%s4 + $0x108] sm:$0xff]
      %v1816 = vld [vmem:[%s4 + $0x110] sm:$0xff]
      %v1817 = vld [vmem:[%s4 + $0x118] sm:$0xff]
      %v1818 = vld [vmem:[%s4 + $0x120] sm:$0xff]
      %v1819 = vld [vmem:[%s4 + $0x128] sm:$0xff]
      %v1820 = vld [vmem:[%s4 + $0x130] sm:$0xff]
      %v1821 = vld [vmem:[%s4 + $0x138] sm:$0xff]
      %v1822 = vld [vmem:[%s4 + $0x140] sm:$0xff]
      %v1823 = vld [vmem:[%s4 + $0x148] sm:$0xff]
      %v1824 = vld [vmem:[%s4 + $0x150] sm:$0xff]
      %v1825 = vld [vmem:[%s4 + $0x158] sm:$0xff]
      %v1826 = vld [vmem:[%s4 + $0x160] sm:$0xff]
      %v1827 = vld [vmem:[%s4 + $0x168] sm:$0xff]
      %v1828 = vld [vmem:[%s4 + $0x170] sm:$0xff]
      %v1829 = vld [vmem:[%s4 + $0x178] sm:$0xff]
      %v1830 = vld [vmem:[%s4 + $0x180] sm:$0xff]
      %v1831 = vld [vmem:[%s4 + $0x188] sm:$0xff]
      %v1832 = vld [vmem:[%s4 + $0x190] sm:$0xff]
      %v1833 = vld [vmem:[%s4 + $0x198] sm:$0xff]
      %v1834 = vld [vmem:[%s4 + $0x1a0] sm:$0xff]
      %v1835 = vld [vmem:[%s4 + $0x1a8] sm:$0xff]
      %v1836 = vld [vmem:[%s4 + $0x1b0] sm:$0xff]
      %v1837 = vld [vmem:[%s4 + $0x1b8] sm:$0xff]
      %v1838 = vld [vmem:[%s4 + $0x1c0] sm:$0xff]
      %v1839 = vld [vmem:[%s4 + $0x1c8] sm:$0xff]
      %v1840 = vld [vmem:[%s4 + $0x1d0] sm:$0xff]
      %v1841 = vld [vmem:[%s4 + $0x1d8] sm:$0xff]
      %v1842 = vld [vmem:[%s4 + $0x1e0] sm:$0xff]
      %v1843 = vld [vmem:[%s4 + $0x1e8] sm:$0xff]
      %v1844 = vld [vmem:[%s4 + $0x1f0] sm:$0xff]
      %v1845 = vld [vmem:[%s4 + $0x1f8] sm:$0xff]
      %v1846 = vld [vmem:[%s4 + $0x200] sm:$0xff]
      %v1847 = vld [vmem:[%s4 + $0x208] sm:$0xff]
      %v1848 = vld [vmem:[%s4 + $0x210] sm:$0xff]
      %v1849 = vld [vmem:[%s4 + $0x218] sm:$0xff]
      %v1850 = vld [vmem:[%s4 + $0x220] sm:$0xff]
      %v1851 = vld [vmem:[%s4 + $0x228] sm:$0xff]
      %v1852 = vld [vmem:[%s4 + $0x230] sm:$0xff]
      %v1853 = vld [vmem:[%s4 + $0x238] sm:$0xff]
      %v1854 = vld [vmem:[%s4 + $0x240] sm:$0xff]
      %v1855 = vld [vmem:[%s4 + $0x248] sm:$0xff]
      %v1856 = vld [vmem:[%s4 + $0x250] sm:$0xff]
      %v1857 = vld [vmem:[%s4 + $0x258] sm:$0xff]
      %v1858 = vld [vmem:[%s4 + $0x260] sm:$0xff]
      %v1859 = vld [vmem:[%s4 + $0x268] sm:$0xff]
      %v1860 = vld [vmem:[%s4 + $0x270] sm:$0xff]
      %v1861 = vld [vmem:[%s4 + $0x278] sm:$0xff]
      %v1862 = vld [vmem:[%s4 + $0x280] sm:$0xff]
      %v1863 = vld [vmem:[%s4 + $0x288] sm:$0xff]
      %v1864 = vld [vmem:[%s4 + $0x290] sm:$0xff]
      %v1865 = vld [vmem:[%s4 + $0x298] sm:$0xff]
      %v1866 = vld [vmem:[%s4 + $0x2a0] sm:$0xff]
      %v1867 = vld [vmem:[%s4 + $0x2a8] sm:$0xff]
      %v1868 = vld [vmem:[%s4 + $0x2b0] sm:$0xff]
      %v1869 = vld [vmem:[%s4 + $0x2b8] sm:$0xff]
      %v1870 = vld [vmem:[%s4 + $0x2c0] sm:$0xff]
      %v1871 = vld [vmem:[%s4 + $0x2c8] sm:$0xff]
      %v1872 = vld [vmem:[%s4 + $0x2d0] sm:$0xff]
      %v1873 = vld [vmem:[%s4 + $0x2d8] sm:$0xff]
      %v1874 = vld [vmem:[%s4 + $0x2e0] sm:$0xff]
      %v1875 = vld [vmem:[%s4 + $0x2e8] sm:$0xff]
      %v1876 = vld [vmem:[%s4 + $0x2f0] sm:$0xff]
      %v1877 = vld [vmem:[%s4 + $0x2f8] sm:$0xff]
      %v1878 = vld [vmem:[%s4 + $0x300] sm:$0xff]
      %v1879 = vld [vmem:[%s4 + $0x308] sm:$0xff]
      %v1880 = vld [vmem:[%s4 + $0x310] sm:$0xff]
      %v1881 = vld [vmem:[%s4 + $0x318] sm:$0xff]
      %v1882 = vld [vmem:[%s4 + $0x320] sm:$0xff]
      %v1883 = vld [vmem:[%s4 + $0x328] sm:$0xff]
      %v1884 = vld [vmem:[%s4 + $0x330] sm:$0xff]
      %v1885 = vld [vmem:[%s4 + $0x338] sm:$0xff]
      %v1886 = vld [vmem:[%s4 + $0x340] sm:$0xff]
      %v1887 = vld [vmem:[%s4 + $0x348] sm:$0xff]
      %v1888 = vld [vmem:[%s4 + $0x350] sm:$0xff]
      %v1889 = vld [vmem:[%s4 + $0x358] sm:$0xff]
      %v1890 = vld [vmem:[%s4 + $0x360] sm:$0xff]
      %v1891 = vld [vmem:[%s4 + $0x368] sm:$0xff]
      %v1892 = vld [vmem:[%s4 + $0x370] sm:$0xff]
      %v1893 = vld [vmem:[%s4 + $0x378] sm:$0xff]
      %v1894 = vld [vmem:[%s4 + $0x380] sm:$0xff]
      %v1895 = vld [vmem:[%s4 + $0x388] sm:$0xff]
      %v1896 = vld [vmem:[%s4 + $0x390] sm:$0xff]
      %v1897 = vld [vmem:[%s4 + $0x398] sm:$0xff]
      %v1898 = vld [vmem:[%s4 + $0x3a0] sm:$0xff]
      %v1899 = vld [vmem:[%s4 + $0x3a8] sm:$0xff]
      %v1900 = vld [vmem:[%s4 + $0x3b0] sm:$0xff]
      %v1901 = vld [vmem:[%s4 + $0x3b8] sm:$0xff]
      %v1902 = vld [vmem:[%s4 + $0x3c0] sm:$0xff]
      %v1903 = vld [vmem:[%s4 + $0x3c8] sm:$0xff]
      %v1904 = vld [vmem:[%s4 + $0x3d0] sm:$0xff]
      %v1905 = vld [vmem:[%s4 + $0x3d8] sm:$0xff]
      %v1906 = vld [vmem:[%s4 + $0x3e0] sm:$0xff]
      %v1907 = vld [vmem:[%s4 + $0x3e8] sm:$0xff]
      %v1908 = vld [vmem:[%s4 + $0x3f0] sm:$0xff]
      %v1909 = vld [vmem:[%s4 + $0x3f8] sm:$0xff]
      %v1910 = vld [vmem:[%s5] sm:$0x3]
      %v1912 = vperm.slane %v1910, 0
      %v1913 = vperm.slane %v1910, 1
      %v2044 = vunpack.c.l.b16 %v1782
      %v2045 = vunpack.c.h.b16 %v1782
      %v2046 = vunpack.c.l.b16 %v1783
      %v2047 = vunpack.c.h.b16 %v1783
      %v2048 = vunpack.c.l.b16 %v1784
      %v2049 = vunpack.c.h.b16 %v1784
      %v2050 = vunpack.c.l.b16 %v1785
      %v2051 = vunpack.c.h.b16 %v1785
      %v2052 = vunpack.c.l.b16 %v1786
      %v2053 = vunpack.c.h.b16 %v1786
      %v2054 = vunpack.c.l.b16 %v1787
      %v2055 = vunpack.c.h.b16 %v1787
      %v2056 = vunpack.c.l.b16 %v1788
      %v2057 = vunpack.c.h.b16 %v1788
      %v2058 = vunpack.c.l.b16 %v1789
      %v2059 = vunpack.c.h.b16 %v1789
      %v2060 = vunpack.c.l.b16 %v1790
      %v2061 = vunpack.c.h.b16 %v1790
      %v2062 = vunpack.c.l.b16 %v1791
      %v2063 = vunpack.c.h.b16 %v1791
      %v2064 = vunpack.c.l.b16 %v1792
      %v2065 = vunpack.c.h.b16 %v1792
      %v2066 = vunpack.c.l.b16 %v1793
      %v2067 = vunpack.c.h.b16 %v1793
      %v2068 = vunpack.c.l.b16 %v1794
      %v2069 = vunpack.c.h.b16 %v1794
      %v2070 = vunpack.c.l.b16 %v1795
      %v2071 = vunpack.c.h.b16 %v1795
      %v2072 = vunpack.c.l.b16 %v1796
      %v2073 = vunpack.c.h.b16 %v1796
      %v2074 = vunpack.c.l.b16 %v1797
      %v2075 = vunpack.c.h.b16 %v1797
      %v2076 = vunpack.c.l.b16 %v1798
      %v2077 = vunpack.c.h.b16 %v1798
      %v2078 = vunpack.c.l.b16 %v1799
      %v2079 = vunpack.c.h.b16 %v1799
      %v2080 = vunpack.c.l.b16 %v1800
      %v2081 = vunpack.c.h.b16 %v1800
      %v2082 = vunpack.c.l.b16 %v1801
      %v2083 = vunpack.c.h.b16 %v1801
      %v2084 = vunpack.c.l.b16 %v1802
      %v2085 = vunpack.c.h.b16 %v1802
      %v2086 = vunpack.c.l.b16 %v1803
      %v2087 = vunpack.c.h.b16 %v1803
      %v2088 = vunpack.c.l.b16 %v1804
      %v2089 = vunpack.c.h.b16 %v1804
      %v2090 = vunpack.c.l.b16 %v1805
      %v2091 = vunpack.c.h.b16 %v1805
      %v2092 = vunpack.c.l.b16 %v1806
      %v2093 = vunpack.c.h.b16 %v1806
      %v2094 = vunpack.c.l.b16 %v1807
      %v2095 = vunpack.c.h.b16 %v1807
      %v2096 = vunpack.c.l.b16 %v1808
      %v2097 = vunpack.c.h.b16 %v1808
      %v2098 = vunpack.c.l.b16 %v1809
      %v2099 = vunpack.c.h.b16 %v1809
      %v2100 = vunpack.c.l.b16 %v1810
      %v2101 = vunpack.c.h.b16 %v1810
      %v2102 = vunpack.c.l.b16 %v1811
      %v2103 = vunpack.c.h.b16 %v1811
      %v2104 = vunpack.c.l.b16 %v1812
      %v2105 = vunpack.c.h.b16 %v1812
      %v2106 = vunpack.c.l.b16 %v1813
      %v2107 = vunpack.c.h.b16 %v1813
      %v2108 = vunpack.c.l.b16 %v1814
      %v2109 = vunpack.c.h.b16 %v1814
      %v2110 = vunpack.c.l.b16 %v1815
      %v2111 = vunpack.c.h.b16 %v1815
      %v2112 = vunpack.c.l.b16 %v1816
      %v2113 = vunpack.c.h.b16 %v1816
      %v2114 = vunpack.c.l.b16 %v1817
      %v2115 = vunpack.c.h.b16 %v1817
      %v2116 = vunpack.c.l.b16 %v1818
      %v2117 = vunpack.c.h.b16 %v1818
      %v2118 = vunpack.c.l.b16 %v1819
      %v2119 = vunpack.c.h.b16 %v1819
      %v2120 = vunpack.c.l.b16 %v1820
      %v2121 = vunpack.c.h.b16 %v1820
      %v2122 = vunpack.c.l.b16 %v1821
      %v2123 = vunpack.c.h.b16 %v1821
      %v2124 = vunpack.c.l.b16 %v1822
      %v2125 = vunpack.c.h.b16 %v1822
      %v2126 = vunpack.c.l.b16 %v1823
      %v2127 = vunpack.c.h.b16 %v1823
      %v2128 = vunpack.c.l.b16 %v1824
      %v2129 = vunpack.c.h.b16 %v1824
      %v2130 = vunpack.c.l.b16 %v1825
      %v2131 = vunpack.c.h.b16 %v1825
      %v2132 = vunpack.c.l.b16 %v1826
      %v2133 = vunpack.c.h.b16 %v1826
      %v2134 = vunpack.c.l.b16 %v1827
      %v2135 = vunpack.c.h.b16 %v1827
      %v2136 = vunpack.c.l.b16 %v1828
      %v2137 = vunpack.c.h.b16 %v1828
      %v2138 = vunpack.c.l.b16 %v1829
      %v2139 = vunpack.c.h.b16 %v1829
      %v2140 = vunpack.c.l.b16 %v1830
      %v2141 = vunpack.c.h.b16 %v1830
      %v2142 = vunpack.c.l.b16 %v1831
      %v2143 = vunpack.c.h.b16 %v1831
      %v2144 = vunpack.c.l.b16 %v1832
      %v2145 = vunpack.c.h.b16 %v1832
      %v2146 = vunpack.c.l.b16 %v1833
      %v2147 = vunpack.c.h.b16 %v1833
      %v2148 = vunpack.c.l.b16 %v1834
      %v2149 = vunpack.c.h.b16 %v1834
      %v2150 = vunpack.c.l.b16 %v1835
      %v2151 = vunpack.c.h.b16 %v1835
      %v2152 = vunpack.c.l.b16 %v1836
      %v2153 = vunpack.c.h.b16 %v1836
      %v2154 = vunpack.c.l.b16 %v1837
      %v2155 = vunpack.c.h.b16 %v1837
      %v2156 = vunpack.c.l.b16 %v1838
      %v2157 = vunpack.c.h.b16 %v1838
      %v2158 = vunpack.c.l.b16 %v1839
      %v2159 = vunpack.c.h.b16 %v1839
      %v2160 = vunpack.c.l.b16 %v1840
      %v2161 = vunpack.c.h.b16 %v1840
      %v2162 = vunpack.c.l.b16 %v1841
      %v2163 = vunpack.c.h.b16 %v1841
      %v2164 = vunpack.c.l.b16 %v1842
      %v2165 = vunpack.c.h.b16 %v1842
      %v2166 = vunpack.c.l.b16 %v1843
      %v2167 = vunpack.c.h.b16 %v1843
      %v2168 = vunpack.c.l.b16 %v1844
      %v2169 = vunpack.c.h.b16 %v1844
      %v2170 = vunpack.c.l.b16 %v1845
      %v2171 = vunpack.c.h.b16 %v1845
      %v2172 = vunpack.c.l.b16 %v1846
      %v2173 = vunpack.c.h.b16 %v1846
      %v2174 = vunpack.c.l.b16 %v1847
      %v2175 = vunpack.c.h.b16 %v1847
      %v2176 = vunpack.c.l.b16 %v1848
      %v2177 = vunpack.c.h.b16 %v1848
      %v2178 = vunpack.c.l.b16 %v1849
      %v2179 = vunpack.c.h.b16 %v1849
      %v2180 = vunpack.c.l.b16 %v1850
      %v2181 = vunpack.c.h.b16 %v1850
      %v2182 = vunpack.c.l.b16 %v1851
      %v2183 = vunpack.c.h.b16 %v1851
      %v2184 = vunpack.c.l.b16 %v1852
      %v2185 = vunpack.c.h.b16 %v1852
      %v2186 = vunpack.c.l.b16 %v1853
      %v2187 = vunpack.c.h.b16 %v1853
      %v2188 = vunpack.c.l.b16 %v1854
      %v2189 = vunpack.c.h.b16 %v1854
      %v2190 = vunpack.c.l.b16 %v1855
      %v2191 = vunpack.c.h.b16 %v1855
      %v2192 = vunpack.c.l.b16 %v1856
      %v2193 = vunpack.c.h.b16 %v1856
      %v2194 = vunpack.c.l.b16 %v1857
      %v2195 = vunpack.c.h.b16 %v1857
      %v2196 = vunpack.c.l.b16 %v1858
      %v2197 = vunpack.c.h.b16 %v1858
      %v2198 = vunpack.c.l.b16 %v1859
      %v2199 = vunpack.c.h.b16 %v1859
      %v2200 = vunpack.c.l.b16 %v1860
      %v2201 = vunpack.c.h.b16 %v1860
      %v2202 = vunpack.c.l.b16 %v1861
      %v2203 = vunpack.c.h.b16 %v1861
      %v2204 = vunpack.c.l.b16 %v1862
      %v2205 = vunpack.c.h.b16 %v1862
      %v2206 = vunpack.c.l.b16 %v1863
      %v2207 = vunpack.c.h.b16 %v1863
      %v2208 = vunpack.c.l.b16 %v1864
      %v2209 = vunpack.c.h.b16 %v1864
      %v2210 = vunpack.c.l.b16 %v1865
      %v2211 = vunpack.c.h.b16 %v1865
      %v2212 = vunpack.c.l.b16 %v1866
      %v2213 = vunpack.c.h.b16 %v1866
      %v2214 = vunpack.c.l.b16 %v1867
      %v2215 = vunpack.c.h.b16 %v1867
      %v2216 = vunpack.c.l.b16 %v1868
      %v2217 = vunpack.c.h.b16 %v1868
      %v2218 = vunpack.c.l.b16 %v1869
      %v2219 = vunpack.c.h.b16 %v1869
      %v2220 = vunpack.c.l.b16 %v1870
      %v2221 = vunpack.c.h.b16 %v1870
      %v2222 = vunpack.c.l.b16 %v1871
      %v2223 = vunpack.c.h.b16 %v1871
      %v2224 = vunpack.c.l.b16 %v1872
      %v2225 = vunpack.c.h.b16 %v1872
      %v2226 = vunpack.c.l.b16 %v1873
      %v2227 = vunpack.c.h.b16 %v1873
      %v2228 = vunpack.c.l.b16 %v1874
      %v2229 = vunpack.c.h.b16 %v1874
      %v2230 = vunpack.c.l.b16 %v1875
      %v2231 = vunpack.c.h.b16 %v1875
      %v2232 = vunpack.c.l.b16 %v1876
      %v2233 = vunpack.c.h.b16 %v1876
      %v2234 = vunpack.c.l.b16 %v1877
      %v2235 = vunpack.c.h.b16 %v1877
      %v2236 = vunpack.c.l.b16 %v1878
      %v2237 = vunpack.c.h.b16 %v1878
      %v2238 = vunpack.c.l.b16 %v1879
      %v2239 = vunpack.c.h.b16 %v1879
      %v2240 = vunpack.c.l.b16 %v1880
      %v2241 = vunpack.c.h.b16 %v1880
      %v2242 = vunpack.c.l.b16 %v1881
      %v2243 = vunpack.c.h.b16 %v1881
      %v2244 = vunpack.c.l.b16 %v1882
      %v2245 = vunpack.c.h.b16 %v1882
      %v2246 = vunpack.c.l.b16 %v1883
      %v2247 = vunpack.c.h.b16 %v1883
      %v2248 = vunpack.c.l.b16 %v1884
      %v2249 = vunpack.c.h.b16 %v1884
      %v2250 = vunpack.c.l.b16 %v1885
      %v2251 = vunpack.c.h.b16 %v1885
      %v2252 = vunpack.c.l.b16 %v1886
      %v2253 = vunpack.c.h.b16 %v1886
      %v2254 = vunpack.c.l.b16 %v1887
      %v2255 = vunpack.c.h.b16 %v1887
      %v2256 = vunpack.c.l.b16 %v1888
      %v2257 = vunpack.c.h.b16 %v1888
      %v2258 = vunpack.c.l.b16 %v1889
      %v2259 = vunpack.c.h.b16 %v1889
      %v2260 = vunpack.c.l.b16 %v1890
      %v2261 = vunpack.c.h.b16 %v1890
      %v2262 = vunpack.c.l.b16 %v1891
      %v2263 = vunpack.c.h.b16 %v1891
      %v2264 = vunpack.c.l.b16 %v1892
      %v2265 = vunpack.c.h.b16 %v1892
      %v2266 = vunpack.c.l.b16 %v1893
      %v2267 = vunpack.c.h.b16 %v1893
      %v2268 = vunpack.c.l.b16 %v1894
      %v2269 = vunpack.c.h.b16 %v1894
      %v2270 = vunpack.c.l.b16 %v1895
      %v2271 = vunpack.c.h.b16 %v1895
      %v2272 = vunpack.c.l.b16 %v1896
      %v2273 = vunpack.c.h.b16 %v1896
      %v2274 = vunpack.c.l.b16 %v1897
      %v2275 = vunpack.c.h.b16 %v1897
      %v2276 = vunpack.c.l.b16 %v1898
      %v2277 = vunpack.c.h.b16 %v1898
      %v2278 = vunpack.c.l.b16 %v1899
      %v2279 = vunpack.c.h.b16 %v1899
      %v2280 = vunpack.c.l.b16 %v1900
      %v2281 = vunpack.c.h.b16 %v1900
      %v2282 = vunpack.c.l.b16 %v1901
      %v2283 = vunpack.c.h.b16 %v1901
      %v2284 = vunpack.c.l.b16 %v1902
      %v2285 = vunpack.c.h.b16 %v1902
      %v2286 = vunpack.c.l.b16 %v1903
      %v2287 = vunpack.c.h.b16 %v1903
      %v2288 = vunpack.c.l.b16 %v1904
      %v2289 = vunpack.c.h.b16 %v1904
      %v2290 = vunpack.c.l.b16 %v1905
      %v2291 = vunpack.c.h.b16 %v1905
      %v2292 = vunpack.c.l.b16 %v1906
      %v2293 = vunpack.c.h.b16 %v1906
      %v2294 = vunpack.c.l.b16 %v1907
      %v2295 = vunpack.c.h.b16 %v1907
      %v2296 = vunpack.c.l.b16 %v1908
      %v2297 = vunpack.c.h.b16 %v1908
      %v2298 = vunpack.c.l.b16 %v1909
      %v2299 = vunpack.c.h.b16 %v1909
      %v2300 = vpack.c.b16 %v2046, %v2044
      %v2301 = vpack.c.b16 %v2047, %v2045
      %v2302 = vpack.c.b16 %v2050, %v2048
      %v2303 = vpack.c.b16 %v2051, %v2049
      %v2304 = vpack.c.b16 %v2054, %v2052
      %v2305 = vpack.c.b16 %v2055, %v2053
      %v2306 = vpack.c.b16 %v2058, %v2056
      %v2307 = vpack.c.b16 %v2059, %v2057
      %v2308 = vpack.c.b16 %v2062, %v2060
      %v2309 = vpack.c.b16 %v2063, %v2061
      %v2310 = vpack.c.b16 %v2066, %v2064
      %v2311 = vpack.c.b16 %v2067, %v2065
      %v2312 = vpack.c.b16 %v2070, %v2068
      %v2313 = vpack.c.b16 %v2071, %v2069
      %v2314 = vpack.c.b16 %v2074, %v2072
      %v2315 = vpack.c.b16 %v2075, %v2073
      %v2316 = vpack.c.b16 %v2078, %v2076
      %v2317 = vpack.c.b16 %v2079, %v2077
      %v2318 = vpack.c.b16 %v2082, %v2080
      %v2319 = vpack.c.b16 %v2083, %v2081
      %v2320 = vpack.c.b16 %v2086, %v2084
      %v2321 = vpack.c.b16 %v2087, %v2085
      %v2322 = vpack.c.b16 %v2090, %v2088
      %v2323 = vpack.c.b16 %v2091, %v2089
      %v2324 = vpack.c.b16 %v2094, %v2092
      %v2325 = vpack.c.b16 %v2095, %v2093
      %v2326 = vpack.c.b16 %v2098, %v2096
      %v2327 = vpack.c.b16 %v2099, %v2097
      %v2328 = vpack.c.b16 %v2102, %v2100
      %v2329 = vpack.c.b16 %v2103, %v2101
      %v2330 = vpack.c.b16 %v2106, %v2104
      %v2331 = vpack.c.b16 %v2107, %v2105
      %v2332 = vpack.c.b16 %v2110, %v2108
      %v2333 = vpack.c.b16 %v2111, %v2109
      %v2334 = vpack.c.b16 %v2114, %v2112
      %v2335 = vpack.c.b16 %v2115, %v2113
      %v2336 = vpack.c.b16 %v2118, %v2116
      %v2337 = vpack.c.b16 %v2119, %v2117
      %v2338 = vpack.c.b16 %v2122, %v2120
      %v2339 = vpack.c.b16 %v2123, %v2121
      %v2340 = vpack.c.b16 %v2126, %v2124
      %v2341 = vpack.c.b16 %v2127, %v2125
      %v2342 = vpack.c.b16 %v2130, %v2128
      %v2343 = vpack.c.b16 %v2131, %v2129
      %v2344 = vpack.c.b16 %v2134, %v2132
      %v2345 = vpack.c.b16 %v2135, %v2133
      %v2346 = vpack.c.b16 %v2138, %v2136
      %v2347 = vpack.c.b16 %v2139, %v2137
      %v2348 = vpack.c.b16 %v2142, %v2140
      %v2349 = vpack.c.b16 %v2143, %v2141
      %v2350 = vpack.c.b16 %v2146, %v2144
      %v2351 = vpack.c.b16 %v2147, %v2145
      %v2352 = vpack.c.b16 %v2150, %v2148
      %v2353 = vpack.c.b16 %v2151, %v2149
      %v2354 = vpack.c.b16 %v2154, %v2152
      %v2355 = vpack.c.b16 %v2155, %v2153
      %v2356 = vpack.c.b16 %v2158, %v2156
      %v2357 = vpack.c.b16 %v2159, %v2157
      %v2358 = vpack.c.b16 %v2162, %v2160
      %v2359 = vpack.c.b16 %v2163, %v2161
      %v2360 = vpack.c.b16 %v2166, %v2164
      %v2361 = vpack.c.b16 %v2167, %v2165
      %v2362 = vpack.c.b16 %v2170, %v2168
      %v2363 = vpack.c.b16 %v2171, %v2169
      %v2364 = vpack.c.b16 %v2174, %v2172
      %v2365 = vpack.c.b16 %v2175, %v2173
      %v2366 = vpack.c.b16 %v2178, %v2176
      %v2367 = vpack.c.b16 %v2179, %v2177
      %v2368 = vpack.c.b16 %v2182, %v2180
      %v2369 = vpack.c.b16 %v2183, %v2181
      %v2370 = vpack.c.b16 %v2186, %v2184
      %v2371 = vpack.c.b16 %v2187, %v2185
      %v2372 = vpack.c.b16 %v2190, %v2188
      %v2373 = vpack.c.b16 %v2191, %v2189
      %v2374 = vpack.c.b16 %v2194, %v2192
      %v2375 = vpack.c.b16 %v2195, %v2193
      %v2376 = vpack.c.b16 %v2198, %v2196
      %v2377 = vpack.c.b16 %v2199, %v2197
      %v2378 = vpack.c.b16 %v2202, %v2200
      %v2379 = vpack.c.b16 %v2203, %v2201
      %v2380 = vpack.c.b16 %v2206, %v2204
      %v2381 = vpack.c.b16 %v2207, %v2205
      %v2382 = vpack.c.b16 %v2210, %v2208
      %v2383 = vpack.c.b16 %v2211, %v2209
      %v2384 = vpack.c.b16 %v2214, %v2212
      %v2385 = vpack.c.b16 %v2215, %v2213
      %v2386 = vpack.c.b16 %v2218, %v2216
      %v2387 = vpack.c.b16 %v2219, %v2217
      %v2388 = vpack.c.b16 %v2222, %v2220
      %v2389 = vpack.c.b16 %v2223, %v2221
      %v2390 = vpack.c.b16 %v2226, %v2224
      %v2391 = vpack.c.b16 %v2227, %v2225
      %v2392 = vpack.c.b16 %v2230, %v2228
      %v2393 = vpack.c.b16 %v2231, %v2229
      %v2394 = vpack.c.b16 %v2234, %v2232
      %v2395 = vpack.c.b16 %v2235, %v2233
      %v2396 = vpack.c.b16 %v2238, %v2236
      %v2397 = vpack.c.b16 %v2239, %v2237
      %v2398 = vpack.c.b16 %v2242, %v2240
      %v2399 = vpack.c.b16 %v2243, %v2241
      %v2400 = vpack.c.b16 %v2246, %v2244
      %v2401 = vpack.c.b16 %v2247, %v2245
      %v2402 = vpack.c.b16 %v2250, %v2248
      %v2403 = vpack.c.b16 %v2251, %v2249
      %v2404 = vpack.c.b16 %v2254, %v2252
      %v2405 = vpack.c.b16 %v2255, %v2253
      %v2406 = vpack.c.b16 %v2258, %v2256
      %v2407 = vpack.c.b16 %v2259, %v2257
      %v2408 = vpack.c.b16 %v2262, %v2260
      %v2409 = vpack.c.b16 %v2263, %v2261
      %v2410 = vpack.c.b16 %v2266, %v2264
      %v2411 = vpack.c.b16 %v2267, %v2265
      %v2412 = vpack.c.b16 %v2270, %v2268
      %v2413 = vpack.c.b16 %v2271, %v2269
      %v2414 = vpack.c.b16 %v2274, %v2272
      %v2415 = vpack.c.b16 %v2275, %v2273
      %v2416 = vpack.c.b16 %v2278, %v2276
      %v2417 = vpack.c.b16 %v2279, %v2277
      %v2418 = vpack.c.b16 %v2282, %v2280
      %v2419 = vpack.c.b16 %v2283, %v2281
      %v2420 = vpack.c.b16 %v2286, %v2284
      %v2421 = vpack.c.b16 %v2287, %v2285
      %v2422 = vpack.c.b16 %v2290, %v2288
      %v2423 = vpack.c.b16 %v2291, %v2289
      %v2424 = vpack.c.b16 %v2294, %v2292
      %v2425 = vpack.c.b16 %v2295, %v2293
      %v2426 = vpack.c.b16 %v2298, %v2296
      %v2427 = vpack.c.b16 %v2299, %v2297
      %2556 = vmatpush.bf16.msra.mxu0 %v2314
      %2557 = vmatpush.bf16.msra.mxu0 %v2312
      %2558 = vmatpush.bf16.msra.mxu0 %v2310
      %2559 = vmatpush.bf16.msra.mxu0 %v2308
      %2560 = vmatpush.bf16.msra.mxu0 %v2306
      %2561 = vmatpush.bf16.msra.mxu0 %v2304
      %2562 = vmatpush.bf16.msra.mxu0 %v2302
      %2563 = vmatpush.bf16.msra.mxu0 %v2300
      %2564 = vmatmul.bf16.gmra.mxu0 %v1774
      %v2565 = vpop.f32.mrf.mxu0
      %v2566 = vadd.f32 %v1912, %v2565
      %v2567 = vpop.f32.mrf.mxu0
      %v2568 = vadd.f32 %v1912, %v2567
      %2569 = vdwg.mxu0
      %2570 = vmatpush.bf16.msra.mxu0 %v2330
      %2571 = vmatpush.bf16.msra.mxu0 %v2328
      %2572 = vmatpush.bf16.msra.mxu0 %v2326
      %2573 = vmatpush.bf16.msra.mxu0 %v2324
      %2574 = vmatpush.bf16.msra.mxu0 %v2322
      %2575 = vmatpush.bf16.msra.mxu0 %v2320
      %2576 = vmatpush.bf16.msra.mxu0 %v2318
      %2577 = vmatpush.bf16.msra.mxu0 %v2316
      %2578 = vmatmul.bf16.gmra.mxu0 %v1775
      %v2579 = vpop.f32.mrf.mxu0
      %v2580 = vadd.f32 %v2566, %v2579
      %v2581 = vpop.f32.mrf.mxu0
      %v2582 = vadd.f32 %v2568, %v2581
      %2583 = vdwg.mxu0
      %2584 = vmatpush.bf16.msra.mxu0 %v2346
      %2585 = vmatpush.bf16.msra.mxu0 %v2344
      %2586 = vmatpush.bf16.msra.mxu0 %v2342
      %2587 = vmatpush.bf16.msra.mxu0 %v2340
      %2588 = vmatpush.bf16.msra.mxu0 %v2338
      %2589 = vmatpush.bf16.msra.mxu0 %v2336
      %2590 = vmatpush.bf16.msra.mxu0 %v2334
      %2591 = vmatpush.bf16.msra.mxu0 %v2332
      %2592 = vmatmul.bf16.gmra.mxu0 %v1776
      %v2593 = vpop.f32.mrf.mxu0
      %v2594 = vadd.f32 %v2580, %v2593
      %v2595 = vpop.f32.mrf.mxu0
      %v2596 = vadd.f32 %v2582, %v2595
      %2597 = vdwg.mxu0
      %2598 = vmatpush.bf16.msra.mxu0 %v2362
      %2599 = vmatpush.bf16.msra.mxu0 %v2360
      %2600 = vmatpush.bf16.msra.mxu0 %v2358
      %2601 = vmatpush.bf16.msra.mxu0 %v2356
      %2602 = vmatpush.bf16.msra.mxu0 %v2354
      %2603 = vmatpush.bf16.msra.mxu0 %v2352
      %2604 = vmatpush.bf16.msra.mxu0 %v2350
      %2605 = vmatpush.bf16.msra.mxu0 %v2348
      %2606 = vmatmul.bf16.gmra.mxu0 %v1777
      %v2607 = vpop.f32.mrf.mxu0
      %v2608 = vadd.f32 %v2594, %v2607
      %v2609 = vpop.f32.mrf.mxu0
      %v2610 = vadd.f32 %v2596, %v2609
      %2611 = vdwg.mxu0
      %2612 = vmatpush.bf16.msra.mxu0 %v2378
      %2613 = vmatpush.bf16.msra.mxu0 %v2376
      %2614 = vmatpush.bf16.msra.mxu0 %v2374
      %2615 = vmatpush.bf16.msra.mxu0 %v2372
      %2616 = vmatpush.bf16.msra.mxu0 %v2370
      %2617 = vmatpush.bf16.msra.mxu0 %v2368
      %2618 = vmatpush.bf16.msra.mxu0 %v2366
      %2619 = vmatpush.bf16.msra.mxu0 %v2364
      %2620 = vmatmul.bf16.gmra.mxu0 %v1778
      %v2621 = vpop.f32.mrf.mxu0
      %v2622 = vadd.f32 %v2608, %v2621
      %v2623 = vpop.f32.mrf.mxu0
      %v2624 = vadd.f32 %v2610, %v2623
      %2625 = vdwg.mxu0
      %2626 = vmatpush.bf16.msra.mxu0 %v2394
      %2627 = vmatpush.bf16.msra.mxu0 %v2392
      %2628 = vmatpush.bf16.msra.mxu0 %v2390
      %2629 = vmatpush.bf16.msra.mxu0 %v2388
      %2630 = vmatpush.bf16.msra.mxu0 %v2386
      %2631 = vmatpush.bf16.msra.mxu0 %v2384
      %2632 = vmatpush.bf16.msra.mxu0 %v2382
      %2633 = vmatpush.bf16.msra.mxu0 %v2380
      %2634 = vmatmul.bf16.gmra.mxu0 %v1779
      %v2635 = vpop.f32.mrf.mxu0
      %v2636 = vadd.f32 %v2622, %v2635
      %v2637 = vpop.f32.mrf.mxu0
      %v2638 = vadd.f32 %v2624, %v2637
      %2639 = vdwg.mxu0
      %2640 = vmatpush.bf16.msra.mxu0 %v2410
      %2641 = vmatpush.bf16.msra.mxu0 %v2408
      %2642 = vmatpush.bf16.msra.mxu0 %v2406
      %2643 = vmatpush.bf16.msra.mxu0 %v2404
      %2644 = vmatpush.bf16.msra.mxu0 %v2402
      %2645 = vmatpush.bf16.msra.mxu0 %v2400
      %2646 = vmatpush.bf16.msra.mxu0 %v2398
      %2647 = vmatpush.bf16.msra.mxu0 %v2396
      %2648 = vmatmul.bf16.gmra.mxu0 %v1780
      %v2649 = vpop.f32.mrf.mxu0
      %v2650 = vadd.f32 %v2636, %v2649
      %v2651 = vpop.f32.mrf.mxu0
      %v2652 = vadd.f32 %v2638, %v2651
      %2653 = vdwg.mxu0
      %2654 = vmatpush.bf16.msra.mxu0 %v2426
      %2655 = vmatpush.bf16.msra.mxu0 %v2424
      %2656 = vmatpush.bf16.msra.mxu0 %v2422
      %2657 = vmatpush.bf16.msra.mxu0 %v2420
      %2658 = vmatpush.bf16.msra.mxu0 %v2418
      %2659 = vmatpush.bf16.msra.mxu0 %v2416
      %2660 = vmatpush.bf16.msra.mxu0 %v2414
      %2661 = vmatpush.bf16.msra.mxu0 %v2412
      %2662 = vmatmul.bf16.gmra.mxu0 %v1781
      %v2663 = vpop.f32.mrf.mxu0
      %v2664 = vadd.f32 %v2650, %v2663
      %v2665 = vpop.f32.mrf.mxu0
      %v2666 = vadd.f32 %v2652, %v2665
      %2667 = vdwg.mxu0
      %2668 = vmatpush.bf16.msra.mxu0 %v2315
      %2669 = vmatpush.bf16.msra.mxu0 %v2313
      %2670 = vmatpush.bf16.msra.mxu0 %v2311
      %2671 = vmatpush.bf16.msra.mxu0 %v2309
      %2672 = vmatpush.bf16.msra.mxu0 %v2307
      %2673 = vmatpush.bf16.msra.mxu0 %v2305
      %2674 = vmatpush.bf16.msra.mxu0 %v2303
      %2675 = vmatpush.bf16.msra.mxu0 %v2301
      %2676 = vmatmul.bf16.gmra.mxu0 %v1774
      %v2677 = vpop.f32.mrf.mxu0
      %v2678 = vadd.f32 %v1913, %v2677
      %v2679 = vpop.f32.mrf.mxu0
      %v2680 = vadd.f32 %v1913, %v2679
      %2681 = vdwg.mxu0
      %2682 = vmatpush.bf16.msra.mxu0 %v2331
      %2683 = vmatpush.bf16.msra.mxu0 %v2329
      %2684 = vmatpush.bf16.msra.mxu0 %v2327
      %2685 = vmatpush.bf16.msra.mxu0 %v2325
      %2686 = vmatpush.bf16.msra.mxu0 %v2323
      %2687 = vmatpush.bf16.msra.mxu0 %v2321
      %2688 = vmatpush.bf16.msra.mxu0 %v2319
      %2689 = vmatpush.bf16.msra.mxu0 %v2317
      %2690 = vmatmul.bf16.gmra.mxu0 %v1775
      %v2691 = vpop.f32.mrf.mxu0
      %v2692 = vadd.f32 %v2678, %v2691
      %v2693 = vpop.f32.mrf.mxu0
      %v2694 = vadd.f32 %v2680, %v2693
      %2695 = vdwg.mxu0
      %2696 = vmatpush.bf16.msra.mxu0 %v2347
      %2697 = vmatpush.bf16.msra.mxu0 %v2345
      %2698 = vmatpush.bf16.msra.mxu0 %v2343
      %2699 = vmatpush.bf16.msra.mxu0 %v2341
      %2700 = vmatpush.bf16.msra.mxu0 %v2339
      %2701 = vmatpush.bf16.msra.mxu0 %v2337
      %2702 = vmatpush.bf16.msra.mxu0 %v2335
      %2703 = vmatpush.bf16.msra.mxu0 %v2333
      %2704 = vmatmul.bf16.gmra.mxu0 %v1776
      %v2705 = vpop.f32.mrf.mxu0
      %v2706 = vadd.f32 %v2692, %v2705
      %v2707 = vpop.f32.mrf.mxu0
      %v2708 = vadd.f32 %v2694, %v2707
      %2709 = vdwg.mxu0
      %2710 = vmatpush.bf16.msra.mxu0 %v2363
      %2711 = vmatpush.bf16.msra.mxu0 %v2361
      %2712 = vmatpush.bf16.msra.mxu0 %v2359
      %2713 = vmatpush.bf16.msra.mxu0 %v2357
      %2714 = vmatpush.bf16.msra.mxu0 %v2355
      %2715 = vmatpush.bf16.msra.mxu0 %v2353
      %2716 = vmatpush.bf16.msra.mxu0 %v2351
      %2717 = vmatpush.bf16.msra.mxu0 %v2349
      %2718 = vmatmul.bf16.gmra.mxu0 %v1777
      %v2719 = vpop.f32.mrf.mxu0
      %v2720 = vadd.f32 %v2706, %v2719
      %v2721 = vpop.f32.mrf.mxu0
      %v2722 = vadd.f32 %v2708, %v2721
      %2723 = vdwg.mxu0
      %2724 = vmatpush.bf16.msra.mxu0 %v2379
      %2725 = vmatpush.bf16.msra.mxu0 %v2377
      %2726 = vmatpush.bf16.msra.mxu0 %v2375
      %2727 = vmatpush.bf16.msra.mxu0 %v2373
      %2728 = vmatpush.bf16.msra.mxu0 %v2371
      %2729 = vmatpush.bf16.msra.mxu0 %v2369
      %2730 = vmatpush.bf16.msra.mxu0 %v2367
      %2731 = vmatpush.bf16.msra.mxu0 %v2365
      %2732 = vmatmul.bf16.gmra.mxu0 %v1778
      %v2733 = vpop.f32.mrf.mxu0
      %v2734 = vadd.f32 %v2720, %v2733
      %v2735 = vpop.f32.mrf.mxu0
      %v2736 = vadd.f32 %v2722, %v2735
      %2737 = vdwg.mxu0
      %2738 = vmatpush.bf16.msra.mxu0 %v2395
      %2739 = vmatpush.bf16.msra.mxu0 %v2393
      %2740 = vmatpush.bf16.msra.mxu0 %v2391
      %2741 = vmatpush.bf16.msra.mxu0 %v2389
      %2742 = vmatpush.bf16.msra.mxu0 %v2387
      %2743 = vmatpush.bf16.msra.mxu0 %v2385
      %2744 = vmatpush.bf16.msra.mxu0 %v2383
      %2745 = vmatpush.bf16.msra.mxu0 %v2381
      %2746 = vmatmul.bf16.gmra.mxu0 %v1779
      %v2747 = vpop.f32.mrf.mxu0
      %v2748 = vadd.f32 %v2734, %v2747
      %v2749 = vpop.f32.mrf.mxu0
      %v2750 = vadd.f32 %v2736, %v2749
      %2751 = vdwg.mxu0
      %2752 = vmatpush.bf16.msra.mxu0 %v2411
      %2753 = vmatpush.bf16.msra.mxu0 %v2409
      %2754 = vmatpush.bf16.msra.mxu0 %v2407
      %2755 = vmatpush.bf16.msra.mxu0 %v2405
      %2756 = vmatpush.bf16.msra.mxu0 %v2403
      %2757 = vmatpush.bf16.msra.mxu0 %v2401
      %2758 = vmatpush.bf16.msra.mxu0 %v2399
      %2759 = vmatpush.bf16.msra.mxu0 %v2397
      %2760 = vmatmul.bf16.gmra.mxu0 %v1780
      %v2761 = vpop.f32.mrf.mxu0
      %v2762 = vadd.f32 %v2748, %v2761
      %v2763 = vpop.f32.mrf.mxu0
      %v2764 = vadd.f32 %v2750, %v2763
      %2765 = vdwg.mxu0
      %2766 = vmatpush.bf16.msra.mxu0 %v2427
      %2767 = vmatpush.bf16.msra.mxu0 %v2425
      %2768 = vmatpush.bf16.msra.mxu0 %v2423
      %2769 = vmatpush.bf16.msra.mxu0 %v2421
      %2770 = vmatpush.bf16.msra.mxu0 %v2419
      %2771 = vmatpush.bf16.msra.mxu0 %v2417
      %2772 = vmatpush.bf16.msra.mxu0 %v2415
      %2773 = vmatpush.bf16.msra.mxu0 %v2413
      %2774 = vmatmul.bf16.gmra.mxu0 %v1781
      %v2775 = vpop.f32.mrf.mxu0
      %v2776 = vadd.f32 %v2762, %v2775
      %v2777 = vpop.f32.mrf.mxu0
      %v2778 = vadd.f32 %v2764, %v2777
      %2779 = vdwg.mxu0
      %v2780 = vld [vmem:[%s276] sm:$0xff]
      %v2781 = vld [vmem:[%s276 + $0x8] sm:$0xff]
      %v2782 = vld [vmem:[%s276 + $0x10] sm:$0xff]
      %v2783 = vld [vmem:[%s276 + $0x18] sm:$0xff]
      %v2784 = vadd.f32 %v2780, %v2664
      %v2785 = vadd.f32 %v2781, %v2776
      %v2786 = vadd.f32 %v2782, %v2666
      %v2787 = vadd.f32 %v2783, %v2778
      %2788 = vst [vmem:[%s283] sm:$0xff] %v2784
      %2789 = vst [vmem:[%s283 + $0x8] sm:$0xff] %v2785
      %2790 = vst [vmem:[%s283 + $0x10] sm:$0xff] %v2786
      %2791 = vst [vmem:[%s283 + $0x18] sm:$0xff] %v2787
      %s2792 = smul.u32 2, %s17
      %p2793 = scmp.lt.s32.totalorder %s2792, 3
      %s2794 = scalar_select %p2793, %s2792, 3
      %s2795 = smul.addr %s2794, 2
      %s2796 = smul.addr %s2795, 8
      %s2797 = scalar_lea.vmem %s6, %s2796
      // Predicated region
      $region45: #{convnext_forward.12} parent=43 // pred_check
        %p2798 = pneg %p171
      $region46: #{convnext_forward.12} parent=43 // pred_check_branch
        %2800 = sbr.rel (%p2798) target = $region48
      $region47: #{convnext_forward.12} parent=43 // pred_region
        %s2801 = smul.u32 2, %s17
      $region48: #{convnext_forward.12} parent=43 // pred_fallthru
        _
    $region44: #{convnext_forward.12} parent=5 // pred_fallthru
      _
    %p2802 = scmp.le.s32.totalorder 2, %s12
    // Predicated region
    $region49: #{convnext_forward.12} parent=5 // pred_check
      %p2803 = pneg %p2802
    $region50: #{convnext_forward.12} parent=5 // pred_check_branch
      %2805 = sbr.rel (%p2803) target = $region52
    $region51: #{convnext_forward.12} parent=5 // pred_region
      %s2806 = ssub.s32 %s12, 2
      // Predicated region
      $region53: #{convnext_forward.12} parent=51 // pred_check
        %p2807 = pneg %p177
      $region54: #{convnext_forward.12} parent=51 // pred_check_branch
        %2809 = sbr.rel (%p2807) target = $region56
      $region55: #{convnext_forward.12} parent=51 // pred_region
        %s2810 = smul.u32 2, %s18
        %p2811 = scmp.lt.s32.totalorder %s2810, 3
        %s2812 = scalar_select %p2811, %s2810, 3
        %s2813 = smul.addr %s2812, 2
        %s2814 = smul.addr %s2813, 8
        %s2815 = scalar_lea.vmem %s6, %s2814
      $region56: #{convnext_forward.12} parent=51 // pred_fallthru
        _
    $region52: #{convnext_forward.12} parent=5 // pred_fallthru
      _
  $region6: #{convnext_forward.12} parent=0 // loop_footer
    %s16 = sadd.s32 1, %s12
  $region7: #{convnext_forward.12} parent=0 // loop_footer_branch
    %11 = sbr.rel target = $region3
  $region8: #{convnext_forward.12} parent=0 // loop_exit
    _

</llo_original>
